<compile_context>
chip_gen: v7x
topology: tpu7x:2x2x1
jax: 0.10.0
libtpu: 0.0.40
codegen_flags: <defaults>
</compile_context>

<pallas_src>
import jax
import jax.numpy as jnp
from jax.experimental import pallas as pl
from jax.experimental.pallas import tpu as pltpu

BN_EPS = 1e-5


# ------------------------------ Pallas kernel ---------------------------------
def _stage(x_slab, wb_ref, g_ref, bt_ref, sdown, sup, sel_mean, selt):
    """One fused conv3d(k=3, pad=1) -> BN(batch stats) -> ReLU stage.

    x_slab   : (N*D, H*W*Cin)  f32 value (lane-dense slab, channel fastest)
    wb_ref   : (3, H*W*Cin, H*W*Cout)  banded weights indexed by kd (VMEM ref)
    g_ref    : (1, Cout) BN gamma,  bt_ref : (1, Cout) BN beta
    sdown/sup: (N*D, N*D) row-shift matrices (depth taps, D-padding as zeros)
    sel_mean : (H*W*Cout, Cout) channel-fold selector, pre-scaled by 1/count
    selt     : (Cout, H*W*Cout) channel lane-broadcast selector
    """
    f32 = jnp.float32
    # Three fat MXU pushes: (kh, kw, ci) accumulate inside the MXU.
    p0 = jnp.dot(x_slab, wb_ref[0], preferred_element_type=f32)
    p1 = jnp.dot(x_slab, wb_ref[1], preferred_element_type=f32)
    p2 = jnp.dot(x_slab, wb_ref[2], preferred_element_type=f32)
    # Depth taps kd=0 / kd=2 via tiny row-shift matmuls (boundary rows -> 0).
    conv = (p1
            + jnp.dot(sdown, p0, preferred_element_type=f32)
            + jnp.dot(sup, p2, preferred_element_type=f32))
    # conv bias omitted: exactly cancelled by the batch-mean subtraction below.

    # BatchNorm3d, training-mode batch stats, single pass (sum & sum-of-sq).
    colsum = jnp.sum(conv, axis=0, keepdims=True)                   # (1, HWC)
    colsq = jnp.sum(conv * conv, axis=0, keepdims=True)
    mean = jnp.dot(colsum, sel_mean, preferred_element_type=f32)    # (1, Cout)
    ex2 = jnp.dot(colsq, sel_mean, preferred_element_type=f32)
    var = ex2 - mean * mean
    scale = g_ref[...].astype(f32) * jax.lax.rsqrt(var + BN_EPS)    # (1, Cout)
    shift = bt_ref[...].astype(f32) - mean * scale
    scale_l = jnp.dot(scale, selt, preferred_element_type=f32)      # (1, HWC)
    shift_l = jnp.dot(shift, selt, preferred_element_type=f32)
    # Fused BN scale/shift + ReLU.
    return jnp.maximum(conv * scale_l + shift_l, 0.0)


def _double_conv_kernel(x_ref, wb1_ref, wb2_ref, sdown_ref, sup_ref,
                        selm_ref, selt_ref, g1_ref, bt1_ref, g2_ref, bt2_ref,
                        o_ref):
    sdown = sdown_ref[...]
    sup = sup_ref[...]
    selm = selm_ref[...]
    selt = selt_ref[...]
    x = x_ref[...].astype(jnp.float32)
    y = _stage(x, wb1_ref, g1_ref, bt1_ref, sdown, sup, selm, selt)
    y = _stage(y, wb2_ref, g2_ref, bt2_ref, sdown, sup, selm, selt)
    o_ref[...] = y.astype(o_ref.dtype)


# ------------------------------ wrapper (JAX glue) -----------------------------
def _build_banded_weight(w_oidhw, H, W):
    """Fold the (kh, kw, Cin) taps of an OIDHW conv weight into the contraction
    dim: returns (3, H*W*Cin, H*W*Cout), zero where a tap reads spatial padding."""
    wt = jnp.transpose(w_oidhw, (2, 3, 4, 1, 0))        # (kd, kh, kw, ci, co)
    dh = jnp.arange(H)[:, None] - jnp.arange(H)[None, :] + 1   # kh = hi - ho + 1
    dw = jnp.arange(W)[:, None] - jnp.arange(W)[None, :] + 1   # kw = wi - wo + 1
    valid = (((dh >= 0) & (dh <= 2))[:, :, None, None]
             & ((dw >= 0) & (dw <= 2))[None, None, :, :])      # (hi, ho, wi, wo)
    band = wt[:, jnp.clip(dh, 0, 2)][:, :, :, jnp.clip(dw, 0, 2)]
    # band: (kd, hi, ho, wi, wo, ci, co)
    band = band * valid[None, :, :, :, :, None, None].astype(wt.dtype)
    band = jnp.transpose(band, (0, 1, 3, 5, 2, 4, 6))   # (kd, hi, wi, ci, ho, wo, co)
    Cin, Cout = wt.shape[3], wt.shape[4]
    return band.reshape(3, H * W * Cin, H * W * Cout)


@jax.jit
def double_conv(x_ncdhw, params):
    """DoubleConv forward. Input/output in PyTorch NCDHW layout."""
    N, Cin, D, H, W = x_ncdhw.shape
    Cout = params["w1"].shape[0]

    # NCDHW -> lane-dense slab (N*D, H*W*Cin), channel fastest.
    x = jnp.transpose(x_ncdhw, (0, 2, 3, 4, 1)).reshape(N * D, H * W * Cin)

    wb1 = _build_banded_weight(params["w1"], H, W)      # (3, H*W*Cin,  H*W*Cout)
    wb2 = _build_banded_weight(params["w2"], H, W)      # (3, H*W*Cout, H*W*Cout)

    # Depth-tap row-shift matrices (per-sample depth padding baked in as zeros).
    r = jnp.arange(N * D)
    sdown = ((r[:, None] - 1 == r[None, :]) & (r[:, None] % D != 0)
             ).astype(jnp.float32)                      # row do <- row do-1
    sup = ((r[:, None] + 1 == r[None, :]) & (r[:, None] % D != D - 1)
           ).astype(jnp.float32)                        # row do <- row do+1

    # Channel fold / lane-broadcast selectors for BatchNorm stats.
    sel = jnp.tile(jnp.eye(Cout, dtype=jnp.float32), (H * W, 1))  # (H*W*Cout, Cout)
    sel_mean = sel / float(N * D * H * W)
    selt = sel.T                                                   # (Cout, H*W*Cout)

    vmem = pl.BlockSpec(memory_space=pltpu.MemorySpace.VMEM)
    out_slab = pl.pallas_call(
        _double_conv_kernel,
        out_shape=jax.ShapeDtypeStruct((N * D, H * W * Cout), x_ncdhw.dtype),
        in_specs=[vmem] * 11,
        out_specs=vmem,
        compiler_params=pltpu.CompilerParams(
            vmem_limit_bytes=32 * 1024 * 1024),
    )(x, wb1, wb2, sdown, sup, sel_mean, selt,
      params["g1"].reshape(1, -1), params["bt1"].reshape(1, -1),
      params["g2"].reshape(1, -1), params["bt2"].reshape(1, -1))

    y = out_slab.reshape(N, D, H, W, Cout)
    return jnp.transpose(y, (0, 4, 1, 2, 3))            # -> NCDHW


# ----------------------------- pure-JAX reference ------------------------------
def _ref_stage(x, w, b, g, bt):
    y = jax.lax.conv_general_dilated(
        x, w, window_strides=(1, 1, 1), padding=[(1, 1)] * 3,
        dimension_numbers=("NCDHW", "OIDHW", "NCDHW"))
    y = y + b.reshape(1, -1, 1, 1, 1)
    mean = jnp.mean(y, axis=(0, 2, 3, 4), keepdims=True)
    var = jnp.mean((y - mean) ** 2, axis=(0, 2, 3, 4), keepdims=True)
    y = (y - mean) * jax.lax.rsqrt(var + BN_EPS)
    y = y * g.reshape(1, -1, 1, 1, 1) + bt.reshape(1, -1, 1, 1, 1)
    return jnp.maximum(y, 0.0)


def _ref_double_conv(x, p):
    y = _ref_stage(x, p["w1"], p["b1"], p["g1"], p["bt1"])
    return _ref_stage(y, p["w2"], p["b2"], p["g2"], p["bt2"])


# ----------------------------------- main --------------------------------------
if __name__ == "__main__":
    N, Cin, Cout, D, H, W = 2, 4, 8, 8, 8, 8

    key = jax.random.PRNGKey(0)
    ks = jax.random.split(key, 9)
    params = {
        "w1": 0.1 * jax.random.normal(ks[0], (Cout, Cin, 3, 3, 3), jnp.float32),
        "b1": 0.1 * jax.random.normal(ks[1], (Cout,), jnp.float32),
        "g1": 1.0 + 0.1 * jax.random.normal(ks[2], (Cout,), jnp.float32),
        "bt1": 0.1 * jax.random.normal(ks[3], (Cout,), jnp.float32),
        "w2": 0.1 * jax.random.normal(ks[4], (Cout, Cout, 3, 3, 3), jnp.float32),
        "b2": 0.1 * jax.random.normal(ks[5], (Cout,), jnp.float32),
        "g2": 1.0 + 0.1 * jax.random.normal(ks[6], (Cout,), jnp.float32),
        "bt2": 0.1 * jax.random.normal(ks[7], (Cout,), jnp.float32),
    }
    x = jax.random.normal(ks[8], (N, Cin, D, H, W), jnp.float32)  # NCDHW

    out = double_conv(x, params)
    out = jax.block_until_ready(out)

    ref = _ref_double_conv(x, params)
    assert out.shape == (N, Cout, D, H, W), out.shape
    assert jnp.allclose(out, ref, atol=1e-3, rtol=1e-3), (
        float(jnp.max(jnp.abs(out - ref))))

    print("KERNEL_OK")
</pallas_src>

<mosaic_0001>
module attributes {stable_mosaic.version = 11 : i64} {
  func.func @_double_conv_kernel(%arg0: memref<16x256xf32, #tpu.memory_space<vmem>>, %arg1: memref<3x256x512xf32, #tpu.memory_space<vmem>>, %arg2: memref<3x512x512xf32, #tpu.memory_space<vmem>>, %arg3: memref<16x16xf32, #tpu.memory_space<vmem>>, %arg4: memref<16x16xf32, #tpu.memory_space<vmem>>, %arg5: memref<512x8xf32, #tpu.memory_space<vmem>>, %arg6: memref<8x512xf32, #tpu.memory_space<vmem>>, %arg7: memref<1x8xf32, #tpu.memory_space<vmem>>, %arg8: memref<1x8xf32, #tpu.memory_space<vmem>>, %arg9: memref<1x8xf32, #tpu.memory_space<vmem>>, %arg10: memref<1x8xf32, #tpu.memory_space<vmem>>, %arg11: memref<16x512xf32, #tpu.memory_space<vmem>>) attributes {dimension_semantics = [], scalar_prefetch = 0 : i64, scratch_operands = 0 : i64, tpu.core_type = #tpu.core_type<tc>} {
    %c0 = arith.constant 0 : index
    %c0_0 = arith.constant 0 : index
    %0 = vector.load %arg3[%c0, %c0_0] : memref<16x16xf32, #tpu.memory_space<vmem>>, vector<16x16xf32>
    %c0_1 = arith.constant 0 : index
    %c0_2 = arith.constant 0 : index
    %1 = vector.load %arg4[%c0_1, %c0_2] : memref<16x16xf32, #tpu.memory_space<vmem>>, vector<16x16xf32>
    %c0_3 = arith.constant 0 : index
    %c0_4 = arith.constant 0 : index
    %2 = vector.load %arg5[%c0_3, %c0_4] : memref<512x8xf32, #tpu.memory_space<vmem>>, vector<512x8xf32>
    %c0_5 = arith.constant 0 : index
    %c0_6 = arith.constant 0 : index
    %3 = vector.load %arg6[%c0_5, %c0_6] : memref<8x512xf32, #tpu.memory_space<vmem>>, vector<8x512xf32>
    %c0_7 = arith.constant 0 : index
    %c0_8 = arith.constant 0 : index
    %4 = vector.load %arg0[%c0_7, %c0_8] : memref<16x256xf32, #tpu.memory_space<vmem>>, vector<16x256xf32>
    %c0_9 = arith.constant 0 : index
    %c0_10 = arith.constant 0 : index
    %c0_11 = arith.constant 0 : index
    %5 = vector.load %arg1[%c0_9, %c0_10, %c0_11] : memref<3x256x512xf32, #tpu.memory_space<vmem>>, vector<1x256x512xf32>
    %6 = vector.shape_cast %5 : vector<1x256x512xf32> to vector<256x512xf32>
    %cst = arith.constant dense<0.000000e+00> : vector<16x512xf32>
    %7 = tpu.matmul %4, %6, %cst {dimension_numbers = #tpu.dot_dimension_numbers<[1], [0], [0], [1], [0, 0, 1, 1], [], []>} : vector<16x256xf32>, vector<256x512xf32>, vector<16x512xf32> -> vector<16x512xf32>
    %c1 = arith.constant 1 : index
    %c0_12 = arith.constant 0 : index
    %c0_13 = arith.constant 0 : index
    %8 = vector.load %arg1[%c1, %c0_12, %c0_13] : memref<3x256x512xf32, #tpu.memory_space<vmem>>, vector<1x256x512xf32>
    %9 = vector.shape_cast %8 : vector<1x256x512xf32> to vector<256x512xf32>
    %cst_14 = arith.constant dense<0.000000e+00> : vector<16x512xf32>
    %10 = tpu.matmul %4, %9, %cst_14 {dimension_numbers = #tpu.dot_dimension_numbers<[1], [0], [0], [1], [0, 0, 1, 1], [], []>} : vector<16x256xf32>, vector<256x512xf32>, vector<16x512xf32> -> vector<16x512xf32>
    %c2 = arith.constant 2 : index
    %c0_15 = arith.constant 0 : index
    %c0_16 = arith.constant 0 : index
    %11 = vector.load %arg1[%c2, %c0_15, %c0_16] : memref<3x256x512xf32, #tpu.memory_space<vmem>>, vector<1x256x512xf32>
    %12 = vector.shape_cast %11 : vector<1x256x512xf32> to vector<256x512xf32>
    %cst_17 = arith.constant dense<0.000000e+00> : vector<16x512xf32>
    %13 = tpu.matmul %4, %12, %cst_17 {dimension_numbers = #tpu.dot_dimension_numbers<[1], [0], [0], [1], [0, 0, 1, 1], [], []>} : vector<16x256xf32>, vector<256x512xf32>, vector<16x512xf32> -> vector<16x512xf32>
    %cst_18 = arith.constant dense<0.000000e+00> : vector<16x512xf32>
    %14 = tpu.matmul %0, %7, %cst_18 {dimension_numbers = #tpu.dot_dimension_numbers<[1], [0], [0], [1], [0, 0, 1, 1], [], []>} : vector<16x16xf32>, vector<16x512xf32>, vector<16x512xf32> -> vector<16x512xf32>
    %15 = arith.addf %10, %14 : vector<16x512xf32>
    %cst_19 = arith.constant dense<0.000000e+00> : vector<16x512xf32>
    %16 = tpu.matmul %1, %13, %cst_19 {dimension_numbers = #tpu.dot_dimension_numbers<[1], [0], [0], [1], [0, 0, 1, 1], [], []>} : vector<16x16xf32>, vector<16x512xf32>, vector<16x512xf32> -> vector<16x512xf32>
    %17 = arith.addf %15, %16 : vector<16x512xf32>
    %cst_20 = arith.constant dense<0.000000e+00> : vector<512xf32>
    %18 = vector.multi_reduction <add>, %17, %cst_20 [0] : vector<16x512xf32> to vector<512xf32>
    %19 = vector.shape_cast %18 : vector<512xf32> to vector<1x512xf32>
    %20 = arith.mulf %17, %17 : vector<16x512xf32>
    %cst_21 = arith.constant dense<0.000000e+00> : vector<512xf32>
    %21 = vector.multi_reduction <add>, %20, %cst_21 [0] : vector<16x512xf32> to vector<512xf32>
    %22 = vector.shape_cast %21 : vector<512xf32> to vector<1x512xf32>
    %cst_22 = arith.constant dense<0.000000e+00> : vector<1x8xf32>
    %23 = tpu.matmul %19, %2, %cst_22 {dimension_numbers = #tpu.dot_dimension_numbers<[1], [0], [0], [1], [0, 0, 1, 1], [], []>} : vector<1x512xf32>, vector<512x8xf32>, vector<1x8xf32> -> vector<1x8xf32>
    %cst_23 = arith.constant dense<0.000000e+00> : vector<1x8xf32>
    %24 = tpu.matmul %22, %2, %cst_23 {dimension_numbers = #tpu.dot_dimension_numbers<[1], [0], [0], [1], [0, 0, 1, 1], [], []>} : vector<1x512xf32>, vector<512x8xf32>, vector<1x8xf32> -> vector<1x8xf32>
    %25 = arith.mulf %23, %23 : vector<1x8xf32>
    %26 = arith.subf %24, %25 : vector<1x8xf32>
    %c0_24 = arith.constant 0 : index
    %c0_25 = arith.constant 0 : index
    %27 = vector.load %arg7[%c0_24, %c0_25] : memref<1x8xf32, #tpu.memory_space<vmem>>, vector<1x8xf32>
    %cst_26 = arith.constant 9.99999974E-6 : f32
    %28 = vector.broadcast %cst_26 : f32 to vector<1x8xf32>
    %29 = arith.addf %26, %28 : vector<1x8xf32>
    %30 = math.rsqrt %29 : vector<1x8xf32>
    %31 = arith.mulf %27, %30 : vector<1x8xf32>
    %c0_27 = arith.constant 0 : index
    %c0_28 = arith.constant 0 : index
    %32 = vector.load %arg8[%c0_27, %c0_28] : memref<1x8xf32, #tpu.memory_space<vmem>>, vector<1x8xf32>
    %33 = arith.mulf %23, %31 : vector<1x8xf32>
    %34 = arith.subf %32, %33 : vector<1x8xf32>
    %cst_29 = arith.constant dense<0.000000e+00> : vector<1x512xf32>
    %35 = tpu.matmul %31, %3, %cst_29 {dimension_numbers = #tpu.dot_dimension_numbers<[1], [0], [0], [1], [0, 0, 1, 1], [], []>} : vector<1x8xf32>, vector<8x512xf32>, vector<1x512xf32> -> vector<1x512xf32>
    %cst_30 = arith.constant dense<0.000000e+00> : vector<1x512xf32>
    %36 = tpu.matmul %34, %3, %cst_30 {dimension_numbers = #tpu.dot_dimension_numbers<[1], [0], [0], [1], [0, 0, 1, 1], [], []>} : vector<1x8xf32>, vector<8x512xf32>, vector<1x512xf32> -> vector<1x512xf32>
    %37 = vector.broadcast %35 : vector<1x512xf32> to vector<16x512xf32>
    %38 = arith.mulf %17, %37 : vector<16x512xf32>
    %39 = vector.broadcast %36 : vector<1x512xf32> to vector<16x512xf32>
    %40 = arith.addf %38, %39 : vector<16x512xf32>
    %cst_31 = arith.constant 0.000000e+00 : f32
    %41 = vector.broadcast %cst_31 : f32 to vector<16x512xf32>
    %42 = arith.maximumf %40, %41 : vector<16x512xf32>
    %c0_32 = arith.constant 0 : index
    %c0_33 = arith.constant 0 : index
    %c0_34 = arith.constant 0 : index
    %43 = vector.load %arg2[%c0_32, %c0_33, %c0_34] : memref<3x512x512xf32, #tpu.memory_space<vmem>>, vector<1x512x512xf32>
    %44 = vector.shape_cast %43 : vector<1x512x512xf32> to vector<512x512xf32>
    %cst_35 = arith.constant dense<0.000000e+00> : vector<16x512xf32>
    %45 = tpu.matmul %42, %44, %cst_35 {dimension_numbers = #tpu.dot_dimension_numbers<[1], [0], [0], [1], [0, 0, 1, 1], [], []>} : vector<16x512xf32>, vector<512x512xf32>, vector<16x512xf32> -> vector<16x512xf32>
    %c1_36 = arith.constant 1 : index
    %c0_37 = arith.constant 0 : index
    %c0_38 = arith.constant 0 : index
    %46 = vector.load %arg2[%c1_36, %c0_37, %c0_38] : memref<3x512x512xf32, #tpu.memory_space<vmem>>, vector<1x512x512xf32>
    %47 = vector.shape_cast %46 : vector<1x512x512xf32> to vector<512x512xf32>
    %cst_39 = arith.constant dense<0.000000e+00> : vector<16x512xf32>
    %48 = tpu.matmul %42, %47, %cst_39 {dimension_numbers = #tpu.dot_dimension_numbers<[1], [0], [0], [1], [0, 0, 1, 1], [], []>} : vector<16x512xf32>, vector<512x512xf32>, vector<16x512xf32> -> vector<16x512xf32>
    %c2_40 = arith.constant 2 : index
    %c0_41 = arith.constant 0 : index
    %c0_42 = arith.constant 0 : index
    %49 = vector.load %arg2[%c2_40, %c0_41, %c0_42] : memref<3x512x512xf32, #tpu.memory_space<vmem>>, vector<1x512x512xf32>
    %50 = vector.shape_cast %49 : vector<1x512x512xf32> to vector<512x512xf32>
    %cst_43 = arith.constant dense<0.000000e+00> : vector<16x512xf32>
    %51 = tpu.matmul %42, %50, %cst_43 {dimension_numbers = #tpu.dot_dimension_numbers<[1], [0], [0], [1], [0, 0, 1, 1], [], []>} : vector<16x512xf32>, vector<512x512xf32>, vector<16x512xf32> -> vector<16x512xf32>
    %cst_44 = arith.constant dense<0.000000e+00> : vector<16x512xf32>
    %52 = tpu.matmul %0, %45, %cst_44 {dimension_numbers = #tpu.dot_dimension_numbers<[1], [0], [0], [1], [0, 0, 1, 1], [], []>} : vector<16x16xf32>, vector<16x512xf32>, vector<16x512xf32> -> vector<16x512xf32>
    %53 = arith.addf %48, %52 : vector<16x512xf32>
    %cst_45 = arith.constant dense<0.000000e+00> : vector<16x512xf32>
    %54 = tpu.matmul %1, %51, %cst_45 {dimension_numbers = #tpu.dot_dimension_numbers<[1], [0], [0], [1], [0, 0, 1, 1], [], []>} : vector<16x16xf32>, vector<16x512xf32>, vector<16x512xf32> -> vector<16x512xf32>
    %55 = arith.addf %53, %54 : vector<16x512xf32>
    %cst_46 = arith.constant dense<0.000000e+00> : vector<512xf32>
    %56 = vector.multi_reduction <add>, %55, %cst_46 [0] : vector<16x512xf32> to vector<512xf32>
    %57 = vector.shape_cast %56 : vector<512xf32> to vector<1x512xf32>
    %58 = arith.mulf %55, %55 : vector<16x512xf32>
    %cst_47 = arith.constant dense<0.000000e+00> : vector<512xf32>
    %59 = vector.multi_reduction <add>, %58, %cst_47 [0] : vector<16x512xf32> to vector<512xf32>
    %60 = vector.shape_cast %59 : vector<512xf32> to vector<1x512xf32>
    %cst_48 = arith.constant dense<0.000000e+00> : vector<1x8xf32>
    %61 = tpu.matmul %57, %2, %cst_48 {dimension_numbers = #tpu.dot_dimension_numbers<[1], [0], [0], [1], [0, 0, 1, 1], [], []>} : vector<1x512xf32>, vector<512x8xf32>, vector<1x8xf32> -> vector<1x8xf32>
    %cst_49 = arith.constant dense<0.000000e+00> : vector<1x8xf32>
    %62 = tpu.matmul %60, %2, %cst_49 {dimension_numbers = #tpu.dot_dimension_numbers<[1], [0], [0], [1], [0, 0, 1, 1], [], []>} : vector<1x512xf32>, vector<512x8xf32>, vector<1x8xf32> -> vector<1x8xf32>
    %63 = arith.mulf %61, %61 : vector<1x8xf32>
    %64 = arith.subf %62, %63 : vector<1x8xf32>
    %c0_50 = arith.constant 0 : index
    %c0_51 = arith.constant 0 : index
    %65 = vector.load %arg9[%c0_50, %c0_51] : memref<1x8xf32, #tpu.memory_space<vmem>>, vector<1x8xf32>
    %cst_52 = arith.constant 9.99999974E-6 : f32
    %66 = vector.broadcast %cst_52 : f32 to vector<1x8xf32>
    %67 = arith.addf %64, %66 : vector<1x8xf32>
    %68 = math.rsqrt %67 : vector<1x8xf32>
    %69 = arith.mulf %65, %68 : vector<1x8xf32>
    %c0_53 = arith.constant 0 : index
    %c0_54 = arith.constant 0 : index
    %70 = vector.load %arg10[%c0_53, %c0_54] : memref<1x8xf32, #tpu.memory_space<vmem>>, vector<1x8xf32>
    %71 = arith.mulf %61, %69 : vector<1x8xf32>
    %72 = arith.subf %70, %71 : vector<1x8xf32>
    %cst_55 = arith.constant dense<0.000000e+00> : vector<1x512xf32>
    %73 = tpu.matmul %69, %3, %cst_55 {dimension_numbers = #tpu.dot_dimension_numbers<[1], [0], [0], [1], [0, 0, 1, 1], [], []>} : vector<1x8xf32>, vector<8x512xf32>, vector<1x512xf32> -> vector<1x512xf32>
    %cst_56 = arith.constant dense<0.000000e+00> : vector<1x512xf32>
    %74 = tpu.matmul %72, %3, %cst_56 {dimension_numbers = #tpu.dot_dimension_numbers<[1], [0], [0], [1], [0, 0, 1, 1], [], []>} : vector<1x8xf32>, vector<8x512xf32>, vector<1x512xf32> -> vector<1x512xf32>
    %75 = vector.broadcast %73 : vector<1x512xf32> to vector<16x512xf32>
    %76 = arith.mulf %55, %75 : vector<16x512xf32>
    %77 = vector.broadcast %74 : vector<1x512xf32> to vector<16x512xf32>
    %78 = arith.addf %76, %77 : vector<16x512xf32>
    %cst_57 = arith.constant 0.000000e+00 : f32
    %79 = vector.broadcast %cst_57 : f32 to vector<16x512xf32>
    %80 = arith.maximumf %78, %79 : vector<16x512xf32>
    %c0_58 = arith.constant 0 : index
    %c0_59 = arith.constant 0 : index
    %81 = vector.load %arg11[%c0_58, %c0_59] : memref<16x512xf32, #tpu.memory_space<vmem>>, vector<16x512xf32>
    tpu.vector_store %arg11[%c0_58, %c0_59], %80 {strides = array<i32>} : memref<16x512xf32, #tpu.memory_space<vmem>>, vector<16x512xf32>,
    return
  }
}

</mosaic_0001>

<llo_original>
// kernel: tile.9
$region0: #{tile.9}
  %s0 = inlined_call_operand.vmem [shape: f32[64,8,8], index: 0, kind: input, shape index: {}]
  %s1 = inlined_call_operand.vmem [shape: f32[512,8], index: 1, kind: output, shape index: {}]
  %s2 = smov 3
  %v3 = vld [vmem:[%s0] ss:$16 sm:%s2]
  %s4 = smov 12
  %v5 = vld [vmem:[%s0] ss:$16 sm:%s4]
  %vm6 = vcmask 1043458
  %v7 = vsel %vm6, %v5, %v3
  %s8 = smov 48
  %v9 = vld [vmem:[%s0] ss:$16 sm:%s8]
  %vm10 = vcmask 1045508
  %v11 = vsel %vm10, %v9, %v7
  %s12 = smov 192
  %v13 = vld [vmem:[%s0] ss:$16 sm:%s12]
  %vm14 = vcmask 1047558
  %v15 = vsel %vm14, %v13, %v11
  %vm16 = vcmask 64512
  %17 = vst.msk [vmem:[%s1] ss:$8 sm:$0xf] %vm16, %v15
  %s18 = scalar_lea.vmem %s1, 4294967265
  %19 = vst.msk [vmem:[%s18] ss:$8 sm:$0xf0] %vm16, %v15
  %s20 = scalar_lea.vmem %s0, 128
  %s21 = smov 3
  %v22 = vld [vmem:[%s20] ss:$16 sm:%s21]
  %s23 = scalar_lea.vmem %s0, 128
  %s24 = smov 12
  %v25 = vld [vmem:[%s23] ss:$16 sm:%s24]
  %vm26 = vcmask 1043458
  %v27 = vsel %vm26, %v25, %v22
  %s28 = scalar_lea.vmem %s0, 128
  %s29 = smov 48
  %v30 = vld [vmem:[%s28] ss:$16 sm:%s29]
  %vm31 = vcmask 1045508
  %v32 = vsel %vm31, %v30, %v27
  %s33 = scalar_lea.vmem %s0, 128
  %s34 = smov 192
  %v35 = vld [vmem:[%s33] ss:$16 sm:%s34]
  %vm36 = vcmask 1047558
  %v37 = vsel %vm36, %v35, %v32
  %vm38 = vcmask 64512
  %s39 = scalar_lea.vmem %s1, 2
  %40 = vst.msk [vmem:[%s39] ss:$8 sm:$0xf] %vm38, %v37
  %s41 = scalar_lea.vmem %s1, 4294967267
  %42 = vst.msk [vmem:[%s41] ss:$8 sm:$0xf0] %vm38, %v37
  %s43 = scalar_lea.vmem %s0, 256
  %s44 = smov 3
  %v45 = vld [vmem:[%s43] ss:$16 sm:%s44]
  %s46 = scalar_lea.vmem %s0, 256
  %s47 = smov 12
  %v48 = vld [vmem:[%s46] ss:$16 sm:%s47]
  %vm49 = vcmask 1043458
  %v50 = vsel %vm49, %v48, %v45
  %s51 = scalar_lea.vmem %s0, 256
  %s52 = smov 48
  %v53 = vld [vmem:[%s51] ss:$16 sm:%s52]
  %vm54 = vcmask 1045508
  %v55 = vsel %vm54, %v53, %v50
  %s56 = scalar_lea.vmem %s0, 256
  %s57 = smov 192
  %v58 = vld [vmem:[%s56] ss:$16 sm:%s57]
  %vm59 = vcmask 1047558
  %v60 = vsel %vm59, %v58, %v55
  %vm61 = vcmask 64512
  %s62 = scalar_lea.vmem %s1, 4
  %63 = vst.msk [vmem:[%s62] ss:$8 sm:$0xf] %vm61, %v60
  %s64 = scalar_lea.vmem %s1, 4294967269
  %65 = vst.msk [vmem:[%s64] ss:$8 sm:$0xf0] %vm61, %v60
  %s66 = scalar_lea.vmem %s0, 384
  %s67 = smov 3
  %v68 = vld [vmem:[%s66] ss:$16 sm:%s67]
  %s69 = scalar_lea.vmem %s0, 384
  %s70 = smov 12
  %v71 = vld [vmem:[%s69] ss:$16 sm:%s70]
  %vm72 = vcmask 1043458
  %v73 = vsel %vm72, %v71, %v68
  %s74 = scalar_lea.vmem %s0, 384
  %s75 = smov 48
  %v76 = vld [vmem:[%s74] ss:$16 sm:%s75]
  %vm77 = vcmask 1045508
  %v78 = vsel %vm77, %v76, %v73
  %s79 = scalar_lea.vmem %s0, 384
  %s80 = smov 192
  %v81 = vld [vmem:[%s79] ss:$16 sm:%s80]
  %vm82 = vcmask 1047558
  %v83 = vsel %vm82, %v81, %v78
  %vm84 = vcmask 64512
  %s85 = scalar_lea.vmem %s1, 6
  %86 = vst.msk [vmem:[%s85] ss:$8 sm:$0xf] %vm84, %v83
  %s87 = scalar_lea.vmem %s1, 4294967271
  %88 = vst.msk [vmem:[%s87] ss:$8 sm:$0xf0] %vm84, %v83
  %s89 = scalar_lea.vmem %s0, 15
  %v90 = vld [vmem:[%s89] sm:$0x1]
  %s91 = scalar_lea.vmem %s0, 78
  %v92 = vld [vmem:[%s91] sm:$0x2]
  %vm93 = vcmask 1041409
  %v94 = vsel %vm93, %v92, %v90
  %s95 = scalar_lea.vmem %s0, 141
  %v96 = vld [vmem:[%s95] sm:$0x4]
  %vm97 = vcmask 1042434
  %v98 = vsel %vm97, %v96, %v94
  %s99 = scalar_lea.vmem %s0, 204
  %v100 = vld [vmem:[%s99] sm:$0x8]
  %vm101 = vcmask 1043459
  %v102 = vsel %vm101, %v100, %v98
  %s103 = scalar_lea.vmem %s0, 267
  %v104 = vld [vmem:[%s103] sm:$0x10]
  %vm105 = vcmask 1044484
  %v106 = vsel %vm105, %v104, %v102
  %s107 = scalar_lea.vmem %s0, 330
  %v108 = vld [vmem:[%s107] sm:$0x20]
  %vm109 = vcmask 1045509
  %v110 = vsel %vm109, %v108, %v106
  %s111 = scalar_lea.vmem %s0, 393
  %v112 = vld [vmem:[%s111] sm:$0x40]
  %vm113 = vcmask 1046534
  %v114 = vsel %vm113, %v112, %v110
  %s115 = scalar_lea.vmem %s0, 456
  %v116 = vld [vmem:[%s115] sm:$0x80]
  %vm117 = vcmask 1047559
  %v118 = vsel %vm117, %v116, %v114
  %119 = vrot.lane.b32.xlu0 %v118, 120
  %v120 = vpop.permute.xlu0 %119
  %vm121 = vcmask 1048512
  %122 = vst.msk [vmem:[%s1] sm:$0xff] %vm121, %v120
  %s123 = scalar_lea.vmem %s0, 31
  %v124 = vld [vmem:[%s123] sm:$0x1]
  %s125 = scalar_lea.vmem %s0, 94
  %v126 = vld [vmem:[%s125] sm:$0x2]
  %vm127 = vcmask 1041409
  %v128 = vsel %vm127, %v126, %v124
  %s129 = scalar_lea.vmem %s0, 157
  %v130 = vld [vmem:[%s129] sm:$0x4]
  %vm131 = vcmask 1042434
  %v132 = vsel %vm131, %v130, %v128
  %s133 = scalar_lea.vmem %s0, 220
  %v134 = vld [vmem:[%s133] sm:$0x8]
  %vm135 = vcmask 1043459
  %v136 = vsel %vm135, %v134, %v132
  %s137 = scalar_lea.vmem %s0, 283
  %v138 = vld [vmem:[%s137] sm:$0x10]
  %vm139 = vcmask 1044484
  %v140 = vsel %vm139, %v138, %v136
  %s141 = scalar_lea.vmem %s0, 346
  %v142 = vld [vmem:[%s141] sm:$0x20]
  %vm143 = vcmask 1045509
  %v144 = vsel %vm143, %v142, %v140
  %s145 = scalar_lea.vmem %s0, 409
  %v146 = vld [vmem:[%s145] sm:$0x40]
  %vm147 = vcmask 1046534
  %v148 = vsel %vm147, %v146, %v144
  %s149 = scalar_lea.vmem %s0, 472
  %v150 = vld [vmem:[%s149] sm:$0x80]
  %vm151 = vcmask 1047559
  %v152 = vsel %vm151, %v150, %v148
  %153 = vrot.lane.b32.xlu0 %v152, 120
  %v154 = vpop.permute.xlu0 %153
  %vm155 = vcmask 1048512
  %s156 = scalar_lea.vmem %s1, 8
  %157 = vst.msk [vmem:[%s156] sm:$0xff] %vm155, %v154
  %s158 = scalar_lea.vmem %s0, 47
  %v159 = vld [vmem:[%s158] sm:$0x1]
  %s160 = scalar_lea.vmem %s0, 110
  %v161 = vld [vmem:[%s160] sm:$0x2]
  %vm162 = vcmask 1041409
  %v163 = vsel %vm162, %v161, %v159
  %s164 = scalar_lea.vmem %s0, 173
  %v165 = vld [vmem:[%s164] sm:$0x4]
  %vm166 = vcmask 1042434
  %v167 = vsel %vm166, %v165, %v163
  %s168 = scalar_lea.vmem %s0, 236
  %v169 = vld [vmem:[%s168] sm:$0x8]
  %vm170 = vcmask 1043459
  %v171 = vsel %vm170, %v169, %v167
  %s172 = scalar_lea.vmem %s0, 299
  %v173 = vld [vmem:[%s172] sm:$0x10]
  %vm174 = vcmask 1044484
  %v175 = vsel %vm174, %v173, %v171
  %s176 = scalar_lea.vmem %s0, 362
  %v177 = vld [vmem:[%s176] sm:$0x20]
  %vm178 = vcmask 1045509
  %v179 = vsel %vm178, %v177, %v175
  %s180 = scalar_lea.vmem %s0, 425
  %v181 = vld [vmem:[%s180] sm:$0x40]
  %vm182 = vcmask 1046534
  %v183 = vsel %vm182, %v181, %v179
  %s184 = scalar_lea.vmem %s0, 488
  %v185 = vld [vmem:[%s184] sm:$0x80]
  %vm186 = vcmask 1047559
  %v187 = vsel %vm186, %v185, %v183
  %188 = vrot.lane.b32.xlu0 %v187, 120
  %v189 = vpop.permute.xlu0 %188
  %vm190 = vcmask 1048512
  %s191 = scalar_lea.vmem %s1, 16
  %192 = vst.msk [vmem:[%s191] sm:$0xff] %vm190, %v189
  %s193 = scalar_lea.vmem %s0, 63
  %v194 = vld [vmem:[%s193] sm:$0x1]
  %s195 = scalar_lea.vmem %s0, 126
  %v196 = vld [vmem:[%s195] sm:$0x2]
  %vm197 = vcmask 1041409
  %v198 = vsel %vm197, %v196, %v194
  %s199 = scalar_lea.vmem %s0, 189
  %v200 = vld [vmem:[%s199] sm:$0x4]
  %vm201 = vcmask 1042434
  %v202 = vsel %vm201, %v200, %v198
  %s203 = scalar_lea.vmem %s0, 252
  %v204 = vld [vmem:[%s203] sm:$0x8]
  %vm205 = vcmask 1043459
  %v206 = vsel %vm205, %v204, %v202
  %s207 = scalar_lea.vmem %s0, 315
  %v208 = vld [vmem:[%s207] sm:$0x10]
  %vm209 = vcmask 1044484
  %v210 = vsel %vm209, %v208, %v206
  %s211 = scalar_lea.vmem %s0, 378
  %v212 = vld [vmem:[%s211] sm:$0x20]
  %vm213 = vcmask 1045509
  %v214 = vsel %vm213, %v212, %v210
  %s215 = scalar_lea.vmem %s0, 441
  %v216 = vld [vmem:[%s215] sm:$0x40]
  %vm217 = vcmask 1046534
  %v218 = vsel %vm217, %v216, %v214
  %s219 = scalar_lea.vmem %s0, 504
  %v220 = vld [vmem:[%s219] sm:$0x80]
  %vm221 = vcmask 1047559
  %v222 = vsel %vm221, %v220, %v218
  %223 = vrot.lane.b32.xlu0 %v222, 120
  %v224 = vpop.permute.xlu0 %223
  %vm225 = vcmask 1048512
  %s226 = scalar_lea.vmem %s1, 24
  %227 = vst.msk [vmem:[%s226] sm:$0xff] %vm225, %v224
  %s228 = scalar_lea.vmem %s0, 14
  %v229 = vld [vmem:[%s228] sm:$0x1]
  %s230 = scalar_lea.vmem %s0, 77
  %v231 = vld [vmem:[%s230] sm:$0x2]
  %vm232 = vcmask 1041409
  %v233 = vsel %vm232, %v231, %v229
  %s234 = scalar_lea.vmem %s0, 140
  %v235 = vld [vmem:[%s234] sm:$0x4]
  %vm236 = vcmask 1042434
  %v237 = vsel %vm236, %v235, %v233
  %s238 = scalar_lea.vmem %s0, 203
  %v239 = vld [vmem:[%s238] sm:$0x8]
  %vm240 = vcmask 1043459
  %v241 = vsel %vm240, %v239, %v237
  %s242 = scalar_lea.vmem %s0, 266
  %v243 = vld [vmem:[%s242] sm:$0x10]
  %vm244 = vcmask 1044484
  %v245 = vsel %vm244, %v243, %v241
  %s246 = scalar_lea.vmem %s0, 329
  %v247 = vld [vmem:[%s246] sm:$0x20]
  %vm248 = vcmask 1045509
  %v249 = vsel %vm248, %v247, %v245
  %s250 = scalar_lea.vmem %s0, 392
  %v251 = vld [vmem:[%s250] sm:$0x40]
  %vm252 = vcmask 1046534
  %v253 = vsel %vm252, %v251, %v249
  %s254 = scalar_lea.vmem %s0, 455
  %v255 = vld [vmem:[%s254] sm:$0x80]
  %vm256 = vcmask 1047559
  %v257 = vsel %vm256, %v255, %v253
  %258 = vrot.lane.b32.xlu0 %v257, 112
  %v259 = vpop.permute.xlu0 %258
  %vm260 = vcmask 982912
  %261 = vst.msk [vmem:[%s1] sm:$0xff] %vm260, %v259
  %s262 = scalar_lea.vmem %s0, 30
  %v263 = vld [vmem:[%s262] sm:$0x1]
  %s264 = scalar_lea.vmem %s0, 93
  %v265 = vld [vmem:[%s264] sm:$0x2]
  %vm266 = vcmask 1041409
  %v267 = vsel %vm266, %v265, %v263
  %s268 = scalar_lea.vmem %s0, 156
  %v269 = vld [vmem:[%s268] sm:$0x4]
  %vm270 = vcmask 1042434
  %v271 = vsel %vm270, %v269, %v267
  %s272 = scalar_lea.vmem %s0, 219
  %v273 = vld [vmem:[%s272] sm:$0x8]
  %vm274 = vcmask 1043459
  %v275 = vsel %vm274, %v273, %v271
  %s276 = scalar_lea.vmem %s0, 282
  %v277 = vld [vmem:[%s276] sm:$0x10]
  %vm278 = vcmask 1044484
  %v279 = vsel %vm278, %v277, %v275
  %s280 = scalar_lea.vmem %s0, 345
  %v281 = vld [vmem:[%s280] sm:$0x20]
  %vm282 = vcmask 1045509
  %v283 = vsel %vm282, %v281, %v279
  %s284 = scalar_lea.vmem %s0, 408
  %v285 = vld [vmem:[%s284] sm:$0x40]
  %vm286 = vcmask 1046534
  %v287 = vsel %vm286, %v285, %v283
  %s288 = scalar_lea.vmem %s0, 471
  %v289 = vld [vmem:[%s288] sm:$0x80]
  %vm290 = vcmask 1047559
  %v291 = vsel %vm290, %v289, %v287
  %292 = vrot.lane.b32.xlu0 %v291, 112
  %v293 = vpop.permute.xlu0 %292
  %vm294 = vcmask 982912
  %s295 = scalar_lea.vmem %s1, 8
  %296 = vst.msk [vmem:[%s295] sm:$0xff] %vm294, %v293
  %s297 = scalar_lea.vmem %s0, 46
  %v298 = vld [vmem:[%s297] sm:$0x1]
  %s299 = scalar_lea.vmem %s0, 109
  %v300 = vld [vmem:[%s299] sm:$0x2]
  %vm301 = vcmask 1041409
  %v302 = vsel %vm301, %v300, %v298
  %s303 = scalar_lea.vmem %s0, 172
  %v304 = vld [vmem:[%s303] sm:$0x4]
  %vm305 = vcmask 1042434
  %v306 = vsel %vm305, %v304, %v302
  %s307 = scalar_lea.vmem %s0, 235
  %v308 = vld [vmem:[%s307] sm:$0x8]
  %vm309 = vcmask 1043459
  %v310 = vsel %vm309, %v308, %v306
  %s311 = scalar_lea.vmem %s0, 298
  %v312 = vld [vmem:[%s311] sm:$0x10]
  %vm313 = vcmask 1044484
  %v314 = vsel %vm313, %v312, %v310
  %s315 = scalar_lea.vmem %s0, 361
  %v316 = vld [vmem:[%s315] sm:$0x20]
  %vm317 = vcmask 1045509
  %v318 = vsel %vm317, %v316, %v314
  %s319 = scalar_lea.vmem %s0, 424
  %v320 = vld [vmem:[%s319] sm:$0x40]
  %vm321 = vcmask 1046534
  %v322 = vsel %vm321, %v320, %v318
  %s323 = scalar_lea.vmem %s0, 487
  %v324 = vld [vmem:[%s323] sm:$0x80]
  %vm325 = vcmask 1047559
  %v326 = vsel %vm325, %v324, %v322
  %327 = vrot.lane.b32.xlu0 %v326, 112
  %v328 = vpop.permute.xlu0 %327
  %vm329 = vcmask 982912
  %s330 = scalar_lea.vmem %s1, 16
  %331 = vst.msk [vmem:[%s330] sm:$0xff] %vm329, %v328
  %s332 = scalar_lea.vmem %s0, 62
  %v333 = vld [vmem:[%s332] sm:$0x1]
  %s334 = scalar_lea.vmem %s0, 125
  %v335 = vld [vmem:[%s334] sm:$0x2]
  %vm336 = vcmask 1041409
  %v337 = vsel %vm336, %v335, %v333
  %s338 = scalar_lea.vmem %s0, 188
  %v339 = vld [vmem:[%s338] sm:$0x4]
  %vm340 = vcmask 1042434
  %v341 = vsel %vm340, %v339, %v337
  %s342 = scalar_lea.vmem %s0, 251
  %v343 = vld [vmem:[%s342] sm:$0x8]
  %vm344 = vcmask 1043459
  %v345 = vsel %vm344, %v343, %v341
  %s346 = scalar_lea.vmem %s0, 314
  %v347 = vld [vmem:[%s346] sm:$0x10]
  %vm348 = vcmask 1044484
  %v349 = vsel %vm348, %v347, %v345
  %s350 = scalar_lea.vmem %s0, 377
  %v351 = vld [vmem:[%s350] sm:$0x20]
  %vm352 = vcmask 1045509
  %v353 = vsel %vm352, %v351, %v349
  %s354 = scalar_lea.vmem %s0, 440
  %v355 = vld [vmem:[%s354] sm:$0x40]
  %vm356 = vcmask 1046534
  %v357 = vsel %vm356, %v355, %v353
  %s358 = scalar_lea.vmem %s0, 503
  %v359 = vld [vmem:[%s358] sm:$0x80]
  %vm360 = vcmask 1047559
  %v361 = vsel %vm360, %v359, %v357
  %362 = vrot.lane.b32.xlu0 %v361, 112
  %v363 = vpop.permute.xlu0 %362
  %vm364 = vcmask 982912
  %s365 = scalar_lea.vmem %s1, 24
  %366 = vst.msk [vmem:[%s365] sm:$0xff] %vm364, %v363
  %s367 = scalar_lea.vmem %s0, 13
  %v368 = vld [vmem:[%s367] sm:$0x1]
  %s369 = scalar_lea.vmem %s0, 76
  %v370 = vld [vmem:[%s369] sm:$0x2]
  %vm371 = vcmask 1041409
  %v372 = vsel %vm371, %v370, %v368
  %s373 = scalar_lea.vmem %s0, 139
  %v374 = vld [vmem:[%s373] sm:$0x4]
  %vm375 = vcmask 1042434
  %v376 = vsel %vm375, %v374, %v372
  %s377 = scalar_lea.vmem %s0, 202
  %v378 = vld [vmem:[%s377] sm:$0x8]
  %vm379 = vcmask 1043459
  %v380 = vsel %vm379, %v378, %v376
  %s381 = scalar_lea.vmem %s0, 265
  %v382 = vld [vmem:[%s381] sm:$0x10]
  %vm383 = vcmask 1044484
  %v384 = vsel %vm383, %v382, %v380
  %s385 = scalar_lea.vmem %s0, 328
  %v386 = vld [vmem:[%s385] sm:$0x20]
  %vm387 = vcmask 1045509
  %v388 = vsel %vm387, %v386, %v384
  %s389 = scalar_lea.vmem %s0, 391
  %v390 = vld [vmem:[%s389] sm:$0x40]
  %vm391 = vcmask 1046534
  %v392 = vsel %vm391, %v390, %v388
  %s393 = scalar_lea.vmem %s0, 454
  %v394 = vld [vmem:[%s393] sm:$0x80]
  %vm395 = vcmask 1047559
  %v396 = vsel %vm395, %v394, %v392
  %397 = vrot.lane.b32.xlu0 %v396, 104
  %v398 = vpop.permute.xlu0 %397
  %vm399 = vcmask 917312
  %400 = vst.msk [vmem:[%s1] sm:$0xff] %vm399, %v398
  %s401 = scalar_lea.vmem %s0, 29
  %v402 = vld [vmem:[%s401] sm:$0x1]
  %s403 = scalar_lea.vmem %s0, 92
  %v404 = vld [vmem:[%s403] sm:$0x2]
  %vm405 = vcmask 1041409
  %v406 = vsel %vm405, %v404, %v402
  %s407 = scalar_lea.vmem %s0, 155
  %v408 = vld [vmem:[%s407] sm:$0x4]
  %vm409 = vcmask 1042434
  %v410 = vsel %vm409, %v408, %v406
  %s411 = scalar_lea.vmem %s0, 218
  %v412 = vld [vmem:[%s411] sm:$0x8]
  %vm413 = vcmask 1043459
  %v414 = vsel %vm413, %v412, %v410
  %s415 = scalar_lea.vmem %s0, 281
  %v416 = vld [vmem:[%s415] sm:$0x10]
  %vm417 = vcmask 1044484
  %v418 = vsel %vm417, %v416, %v414
  %s419 = scalar_lea.vmem %s0, 344
  %v420 = vld [vmem:[%s419] sm:$0x20]
  %vm421 = vcmask 1045509
  %v422 = vsel %vm421, %v420, %v418
  %s423 = scalar_lea.vmem %s0, 407
  %v424 = vld [vmem:[%s423] sm:$0x40]
  %vm425 = vcmask 1046534
  %v426 = vsel %vm425, %v424, %v422
  %s427 = scalar_lea.vmem %s0, 470
  %v428 = vld [vmem:[%s427] sm:$0x80]
  %vm429 = vcmask 1047559
  %v430 = vsel %vm429, %v428, %v426
  %431 = vrot.lane.b32.xlu0 %v430, 104
  %v432 = vpop.permute.xlu0 %431
  %vm433 = vcmask 917312
  %s434 = scalar_lea.vmem %s1, 8
  %435 = vst.msk [vmem:[%s434] sm:$0xff] %vm433, %v432
  %s436 = scalar_lea.vmem %s0, 45
  %v437 = vld [vmem:[%s436] sm:$0x1]
  %s438 = scalar_lea.vmem %s0, 108
  %v439 = vld [vmem:[%s438] sm:$0x2]
  %vm440 = vcmask 1041409
  %v441 = vsel %vm440, %v439, %v437
  %s442 = scalar_lea.vmem %s0, 171
  %v443 = vld [vmem:[%s442] sm:$0x4]
  %vm444 = vcmask 1042434
  %v445 = vsel %vm444, %v443, %v441
  %s446 = scalar_lea.vmem %s0, 234
  %v447 = vld [vmem:[%s446] sm:$0x8]
  %vm448 = vcmask 1043459
  %v449 = vsel %vm448, %v447, %v445
  %s450 = scalar_lea.vmem %s0, 297
  %v451 = vld [vmem:[%s450] sm:$0x10]
  %vm452 = vcmask 1044484
  %v453 = vsel %vm452, %v451, %v449
  %s454 = scalar_lea.vmem %s0, 360
  %v455 = vld [vmem:[%s454] sm:$0x20]
  %vm456 = vcmask 1045509
  %v457 = vsel %vm456, %v455, %v453
  %s458 = scalar_lea.vmem %s0, 423
  %v459 = vld [vmem:[%s458] sm:$0x40]
  %vm460 = vcmask 1046534
  %v461 = vsel %vm460, %v459, %v457
  %s462 = scalar_lea.vmem %s0, 486
  %v463 = vld [vmem:[%s462] sm:$0x80]
  %vm464 = vcmask 1047559
  %v465 = vsel %vm464, %v463, %v461
  %466 = vrot.lane.b32.xlu0 %v465, 104
  %v467 = vpop.permute.xlu0 %466
  %vm468 = vcmask 917312
  %s469 = scalar_lea.vmem %s1, 16
  %470 = vst.msk [vmem:[%s469] sm:$0xff] %vm468, %v467
  %s471 = scalar_lea.vmem %s0, 61
  %v472 = vld [vmem:[%s471] sm:$0x1]
  %s473 = scalar_lea.vmem %s0, 124
  %v474 = vld [vmem:[%s473] sm:$0x2]
  %vm475 = vcmask 1041409
  %v476 = vsel %vm475, %v474, %v472
  %s477 = scalar_lea.vmem %s0, 187
  %v478 = vld [vmem:[%s477] sm:$0x4]
  %vm479 = vcmask 1042434
  %v480 = vsel %vm479, %v478, %v476
  %s481 = scalar_lea.vmem %s0, 250
  %v482 = vld [vmem:[%s481] sm:$0x8]
  %vm483 = vcmask 1043459
  %v484 = vsel %vm483, %v482, %v480
  %s485 = scalar_lea.vmem %s0, 313
  %v486 = vld [vmem:[%s485] sm:$0x10]
  %vm487 = vcmask 1044484
  %v488 = vsel %vm487, %v486, %v484
  %s489 = scalar_lea.vmem %s0, 376
  %v490 = vld [vmem:[%s489] sm:$0x20]
  %vm491 = vcmask 1045509
  %v492 = vsel %vm491, %v490, %v488
  %s493 = scalar_lea.vmem %s0, 439
  %v494 = vld [vmem:[%s493] sm:$0x40]
  %vm495 = vcmask 1046534
  %v496 = vsel %vm495, %v494, %v492
  %s497 = scalar_lea.vmem %s0, 502
  %v498 = vld [vmem:[%s497] sm:$0x80]
  %vm499 = vcmask 1047559
  %v500 = vsel %vm499, %v498, %v496
  %501 = vrot.lane.b32.xlu0 %v500, 104
  %v502 = vpop.permute.xlu0 %501
  %vm503 = vcmask 917312
  %s504 = scalar_lea.vmem %s1, 24
  %505 = vst.msk [vmem:[%s504] sm:$0xff] %vm503, %v502
  %s506 = scalar_lea.vmem %s0, 12
  %v507 = vld [vmem:[%s506] sm:$0x1]
  %s508 = scalar_lea.vmem %s0, 75
  %v509 = vld [vmem:[%s508] sm:$0x2]
  %vm510 = vcmask 1041409
  %v511 = vsel %vm510, %v509, %v507
  %s512 = scalar_lea.vmem %s0, 138
  %v513 = vld [vmem:[%s512] sm:$0x4]
  %vm514 = vcmask 1042434
  %v515 = vsel %vm514, %v513, %v511
  %s516 = scalar_lea.vmem %s0, 201
  %v517 = vld [vmem:[%s516] sm:$0x8]
  %vm518 = vcmask 1043459
  %v519 = vsel %vm518, %v517, %v515
  %s520 = scalar_lea.vmem %s0, 264
  %v521 = vld [vmem:[%s520] sm:$0x10]
  %vm522 = vcmask 1044484
  %v523 = vsel %vm522, %v521, %v519
  %s524 = scalar_lea.vmem %s0, 327
  %v525 = vld [vmem:[%s524] sm:$0x20]
  %vm526 = vcmask 1045509
  %v527 = vsel %vm526, %v525, %v523
  %s528 = scalar_lea.vmem %s0, 390
  %v529 = vld [vmem:[%s528] sm:$0x40]
  %vm530 = vcmask 1046534
  %v531 = vsel %vm530, %v529, %v527
  %s532 = scalar_lea.vmem %s0, 453
  %v533 = vld [vmem:[%s532] sm:$0x80]
  %vm534 = vcmask 1047559
  %v535 = vsel %vm534, %v533, %v531
  %536 = vrot.lane.b32.xlu0 %v535, 96
  %v537 = vpop.permute.xlu0 %536
  %vm538 = vcmask 851712
  %539 = vst.msk [vmem:[%s1] sm:$0xff] %vm538, %v537
  %s540 = scalar_lea.vmem %s0, 28
  %v541 = vld [vmem:[%s540] sm:$0x1]
  %s542 = scalar_lea.vmem %s0, 91
  %v543 = vld [vmem:[%s542] sm:$0x2]
  %vm544 = vcmask 1041409
  %v545 = vsel %vm544, %v543, %v541
  %s546 = scalar_lea.vmem %s0, 154
  %v547 = vld [vmem:[%s546] sm:$0x4]
  %vm548 = vcmask 1042434
  %v549 = vsel %vm548, %v547, %v545
  %s550 = scalar_lea.vmem %s0, 217
  %v551 = vld [vmem:[%s550] sm:$0x8]
  %vm552 = vcmask 1043459
  %v553 = vsel %vm552, %v551, %v549
  %s554 = scalar_lea.vmem %s0, 280
  %v555 = vld [vmem:[%s554] sm:$0x10]
  %vm556 = vcmask 1044484
  %v557 = vsel %vm556, %v555, %v553
  %s558 = scalar_lea.vmem %s0, 343
  %v559 = vld [vmem:[%s558] sm:$0x20]
  %vm560 = vcmask 1045509
  %v561 = vsel %vm560, %v559, %v557
  %s562 = scalar_lea.vmem %s0, 406
  %v563 = vld [vmem:[%s562] sm:$0x40]
  %vm564 = vcmask 1046534
  %v565 = vsel %vm564, %v563, %v561
  %s566 = scalar_lea.vmem %s0, 469
  %v567 = vld [vmem:[%s566] sm:$0x80]
  %vm568 = vcmask 1047559
  %v569 = vsel %vm568, %v567, %v565
  %570 = vrot.lane.b32.xlu0 %v569, 96
  %v571 = vpop.permute.xlu0 %570
  %vm572 = vcmask 851712
  %s573 = scalar_lea.vmem %s1, 8
  %574 = vst.msk [vmem:[%s573] sm:$0xff] %vm572, %v571
  %s575 = scalar_lea.vmem %s0, 44
  %v576 = vld [vmem:[%s575] sm:$0x1]
  %s577 = scalar_lea.vmem %s0, 107
  %v578 = vld [vmem:[%s577] sm:$0x2]
  %vm579 = vcmask 1041409
  %v580 = vsel %vm579, %v578, %v576
  %s581 = scalar_lea.vmem %s0, 170
  %v582 = vld [vmem:[%s581] sm:$0x4]
  %vm583 = vcmask 1042434
  %v584 = vsel %vm583, %v582, %v580
  %s585 = scalar_lea.vmem %s0, 233
  %v586 = vld [vmem:[%s585] sm:$0x8]
  %vm587 = vcmask 1043459
  %v588 = vsel %vm587, %v586, %v584
  %s589 = scalar_lea.vmem %s0, 296
  %v590 = vld [vmem:[%s589] sm:$0x10]
  %vm591 = vcmask 1044484
  %v592 = vsel %vm591, %v590, %v588
  %s593 = scalar_lea.vmem %s0, 359
  %v594 = vld [vmem:[%s593] sm:$0x20]
  %vm595 = vcmask 1045509
  %v596 = vsel %vm595, %v594, %v592
  %s597 = scalar_lea.vmem %s0, 422
  %v598 = vld [vmem:[%s597] sm:$0x40]
  %vm599 = vcmask 1046534
  %v600 = vsel %vm599, %v598, %v596
  %s601 = scalar_lea.vmem %s0, 485
  %v602 = vld [vmem:[%s601] sm:$0x80]
  %vm603 = vcmask 1047559
  %v604 = vsel %vm603, %v602, %v600
  %605 = vrot.lane.b32.xlu0 %v604, 96
  %v606 = vpop.permute.xlu0 %605
  %vm607 = vcmask 851712
  %s608 = scalar_lea.vmem %s1, 16
  %609 = vst.msk [vmem:[%s608] sm:$0xff] %vm607, %v606
  %s610 = scalar_lea.vmem %s0, 60
  %v611 = vld [vmem:[%s610] sm:$0x1]
  %s612 = scalar_lea.vmem %s0, 123
  %v613 = vld [vmem:[%s612] sm:$0x2]
  %vm614 = vcmask 1041409
  %v615 = vsel %vm614, %v613, %v611
  %s616 = scalar_lea.vmem %s0, 186
  %v617 = vld [vmem:[%s616] sm:$0x4]
  %vm618 = vcmask 1042434
  %v619 = vsel %vm618, %v617, %v615
  %s620 = scalar_lea.vmem %s0, 249
  %v621 = vld [vmem:[%s620] sm:$0x8]
  %vm622 = vcmask 1043459
  %v623 = vsel %vm622, %v621, %v619
  %s624 = scalar_lea.vmem %s0, 312
  %v625 = vld [vmem:[%s624] sm:$0x10]
  %vm626 = vcmask 1044484
  %v627 = vsel %vm626, %v625, %v623
  %s628 = scalar_lea.vmem %s0, 375
  %v629 = vld [vmem:[%s628] sm:$0x20]
  %vm630 = vcmask 1045509
  %v631 = vsel %vm630, %v629, %v627
  %s632 = scalar_lea.vmem %s0, 438
  %v633 = vld [vmem:[%s632] sm:$0x40]
  %vm634 = vcmask 1046534
  %v635 = vsel %vm634, %v633, %v631
  %s636 = scalar_lea.vmem %s0, 501
  %v637 = vld [vmem:[%s636] sm:$0x80]
  %vm638 = vcmask 1047559
  %v639 = vsel %vm638, %v637, %v635
  %640 = vrot.lane.b32.xlu0 %v639, 96
  %v641 = vpop.permute.xlu0 %640
  %vm642 = vcmask 851712
  %s643 = scalar_lea.vmem %s1, 24
  %644 = vst.msk [vmem:[%s643] sm:$0xff] %vm642, %v641
  %s645 = scalar_lea.vmem %s0, 11
  %v646 = vld [vmem:[%s645] sm:$0x1]
  %s647 = scalar_lea.vmem %s0, 74
  %v648 = vld [vmem:[%s647] sm:$0x2]
  %vm649 = vcmask 1041409
  %v650 = vsel %vm649, %v648, %v646
  %s651 = scalar_lea.vmem %s0, 137
  %v652 = vld [vmem:[%s651] sm:$0x4]
  %vm653 = vcmask 1042434
  %v654 = vsel %vm653, %v652, %v650
  %s655 = scalar_lea.vmem %s0, 200
  %v656 = vld [vmem:[%s655] sm:$0x8]
  %vm657 = vcmask 1043459
  %v658 = vsel %vm657, %v656, %v654
  %s659 = scalar_lea.vmem %s0, 263
  %v660 = vld [vmem:[%s659] sm:$0x10]
  %vm661 = vcmask 1044484
  %v662 = vsel %vm661, %v660, %v658
  %s663 = scalar_lea.vmem %s0, 326
  %v664 = vld [vmem:[%s663] sm:$0x20]
  %vm665 = vcmask 1045509
  %v666 = vsel %vm665, %v664, %v662
  %s667 = scalar_lea.vmem %s0, 389
  %v668 = vld [vmem:[%s667] sm:$0x40]
  %vm669 = vcmask 1046534
  %v670 = vsel %vm669, %v668, %v666
  %s671 = scalar_lea.vmem %s0, 452
  %v672 = vld [vmem:[%s671] sm:$0x80]
  %vm673 = vcmask 1047559
  %v674 = vsel %vm673, %v672, %v670
  %675 = vrot.lane.b32.xlu0 %v674, 88
  %v676 = vpop.permute.xlu0 %675
  %vm677 = vcmask 786112
  %678 = vst.msk [vmem:[%s1] sm:$0xff] %vm677, %v676
  %s679 = scalar_lea.vmem %s0, 27
  %v680 = vld [vmem:[%s679] sm:$0x1]
  %s681 = scalar_lea.vmem %s0, 90
  %v682 = vld [vmem:[%s681] sm:$0x2]
  %vm683 = vcmask 1041409
  %v684 = vsel %vm683, %v682, %v680
  %s685 = scalar_lea.vmem %s0, 153
  %v686 = vld [vmem:[%s685] sm:$0x4]
  %vm687 = vcmask 1042434
  %v688 = vsel %vm687, %v686, %v684
  %s689 = scalar_lea.vmem %s0, 216
  %v690 = vld [vmem:[%s689] sm:$0x8]
  %vm691 = vcmask 1043459
  %v692 = vsel %vm691, %v690, %v688
  %s693 = scalar_lea.vmem %s0, 279
  %v694 = vld [vmem:[%s693] sm:$0x10]
  %vm695 = vcmask 1044484
  %v696 = vsel %vm695, %v694, %v692
  %s697 = scalar_lea.vmem %s0, 342
  %v698 = vld [vmem:[%s697] sm:$0x20]
  %vm699 = vcmask 1045509
  %v700 = vsel %vm699, %v698, %v696
  %s701 = scalar_lea.vmem %s0, 405
  %v702 = vld [vmem:[%s701] sm:$0x40]
  %vm703 = vcmask 1046534
  %v704 = vsel %vm703, %v702, %v700
  %s705 = scalar_lea.vmem %s0, 468
  %v706 = vld [vmem:[%s705] sm:$0x80]
  %vm707 = vcmask 1047559
  %v708 = vsel %vm707, %v706, %v704
  %709 = vrot.lane.b32.xlu0 %v708, 88
  %v710 = vpop.permute.xlu0 %709
  %vm711 = vcmask 786112
  %s712 = scalar_lea.vmem %s1, 8
  %713 = vst.msk [vmem:[%s712] sm:$0xff] %vm711, %v710
  %s714 = scalar_lea.vmem %s0, 43
  %v715 = vld [vmem:[%s714] sm:$0x1]
  %s716 = scalar_lea.vmem %s0, 106
  %v717 = vld [vmem:[%s716] sm:$0x2]
  %vm718 = vcmask 1041409
  %v719 = vsel %vm718, %v717, %v715
  %s720 = scalar_lea.vmem %s0, 169
  %v721 = vld [vmem:[%s720] sm:$0x4]
  %vm722 = vcmask 1042434
  %v723 = vsel %vm722, %v721, %v719
  %s724 = scalar_lea.vmem %s0, 232
  %v725 = vld [vmem:[%s724] sm:$0x8]
  %vm726 = vcmask 1043459
  %v727 = vsel %vm726, %v725, %v723
  %s728 = scalar_lea.vmem %s0, 295
  %v729 = vld [vmem:[%s728] sm:$0x10]
  %vm730 = vcmask 1044484
  %v731 = vsel %vm730, %v729, %v727
  %s732 = scalar_lea.vmem %s0, 358
  %v733 = vld [vmem:[%s732] sm:$0x20]
  %vm734 = vcmask 1045509
  %v735 = vsel %vm734, %v733, %v731
  %s736 = scalar_lea.vmem %s0, 421
  %v737 = vld [vmem:[%s736] sm:$0x40]
  %vm738 = vcmask 1046534
  %v739 = vsel %vm738, %v737, %v735
  %s740 = scalar_lea.vmem %s0, 484
  %v741 = vld [vmem:[%s740] sm:$0x80]
  %vm742 = vcmask 1047559
  %v743 = vsel %vm742, %v741, %v739
  %744 = vrot.lane.b32.xlu0 %v743, 88
  %v745 = vpop.permute.xlu0 %744
  %vm746 = vcmask 786112
  %s747 = scalar_lea.vmem %s1, 16
  %748 = vst.msk [vmem:[%s747] sm:$0xff] %vm746, %v745
  %s749 = scalar_lea.vmem %s0, 59
  %v750 = vld [vmem:[%s749] sm:$0x1]
  %s751 = scalar_lea.vmem %s0, 122
  %v752 = vld [vmem:[%s751] sm:$0x2]
  %vm753 = vcmask 1041409
  %v754 = vsel %vm753, %v752, %v750
  %s755 = scalar_lea.vmem %s0, 185
  %v756 = vld [vmem:[%s755] sm:$0x4]
  %vm757 = vcmask 1042434
  %v758 = vsel %vm757, %v756, %v754
  %s759 = scalar_lea.vmem %s0, 248
  %v760 = vld [vmem:[%s759] sm:$0x8]
  %vm761 = vcmask 1043459
  %v762 = vsel %vm761, %v760, %v758
  %s763 = scalar_lea.vmem %s0, 311
  %v764 = vld [vmem:[%s763] sm:$0x10]
  %vm765 = vcmask 1044484
  %v766 = vsel %vm765, %v764, %v762
  %s767 = scalar_lea.vmem %s0, 374
  %v768 = vld [vmem:[%s767] sm:$0x20]
  %vm769 = vcmask 1045509
  %v770 = vsel %vm769, %v768, %v766
  %s771 = scalar_lea.vmem %s0, 437
  %v772 = vld [vmem:[%s771] sm:$0x40]
  %vm773 = vcmask 1046534
  %v774 = vsel %vm773, %v772, %v770
  %s775 = scalar_lea.vmem %s0, 500
  %v776 = vld [vmem:[%s775] sm:$0x80]
  %vm777 = vcmask 1047559
  %v778 = vsel %vm777, %v776, %v774
  %779 = vrot.lane.b32.xlu0 %v778, 88
  %v780 = vpop.permute.xlu0 %779
  %vm781 = vcmask 786112
  %s782 = scalar_lea.vmem %s1, 24
  %783 = vst.msk [vmem:[%s782] sm:$0xff] %vm781, %v780
  %s784 = scalar_lea.vmem %s0, 10
  %v785 = vld [vmem:[%s784] sm:$0x1]
  %s786 = scalar_lea.vmem %s0, 73
  %v787 = vld [vmem:[%s786] sm:$0x2]
  %vm788 = vcmask 1041409
  %v789 = vsel %vm788, %v787, %v785
  %s790 = scalar_lea.vmem %s0, 136
  %v791 = vld [vmem:[%s790] sm:$0x4]
  %vm792 = vcmask 1042434
  %v793 = vsel %vm792, %v791, %v789
  %s794 = scalar_lea.vmem %s0, 199
  %v795 = vld [vmem:[%s794] sm:$0x8]
  %vm796 = vcmask 1043459
  %v797 = vsel %vm796, %v795, %v793
  %s798 = scalar_lea.vmem %s0, 262
  %v799 = vld [vmem:[%s798] sm:$0x10]
  %vm800 = vcmask 1044484
  %v801 = vsel %vm800, %v799, %v797
  %s802 = scalar_lea.vmem %s0, 325
  %v803 = vld [vmem:[%s802] sm:$0x20]
  %vm804 = vcmask 1045509
  %v805 = vsel %vm804, %v803, %v801
  %s806 = scalar_lea.vmem %s0, 388
  %v807 = vld [vmem:[%s806] sm:$0x40]
  %vm808 = vcmask 1046534
  %v809 = vsel %vm808, %v807, %v805
  %s810 = scalar_lea.vmem %s0, 451
  %v811 = vld [vmem:[%s810] sm:$0x80]
  %vm812 = vcmask 1047559
  %v813 = vsel %vm812, %v811, %v809
  %814 = vrot.lane.b32.xlu0 %v813, 80
  %v815 = vpop.permute.xlu0 %814
  %vm816 = vcmask 720512
  %817 = vst.msk [vmem:[%s1] sm:$0xff] %vm816, %v815
  %s818 = scalar_lea.vmem %s0, 26
  %v819 = vld [vmem:[%s818] sm:$0x1]
  %s820 = scalar_lea.vmem %s0, 89
  %v821 = vld [vmem:[%s820] sm:$0x2]
  %vm822 = vcmask 1041409
  %v823 = vsel %vm822, %v821, %v819
  %s824 = scalar_lea.vmem %s0, 152
  %v825 = vld [vmem:[%s824] sm:$0x4]
  %vm826 = vcmask 1042434
  %v827 = vsel %vm826, %v825, %v823
  %s828 = scalar_lea.vmem %s0, 215
  %v829 = vld [vmem:[%s828] sm:$0x8]
  %vm830 = vcmask 1043459
  %v831 = vsel %vm830, %v829, %v827
  %s832 = scalar_lea.vmem %s0, 278
  %v833 = vld [vmem:[%s832] sm:$0x10]
  %vm834 = vcmask 1044484
  %v835 = vsel %vm834, %v833, %v831
  %s836 = scalar_lea.vmem %s0, 341
  %v837 = vld [vmem:[%s836] sm:$0x20]
  %vm838 = vcmask 1045509
  %v839 = vsel %vm838, %v837, %v835
  %s840 = scalar_lea.vmem %s0, 404
  %v841 = vld [vmem:[%s840] sm:$0x40]
  %vm842 = vcmask 1046534
  %v843 = vsel %vm842, %v841, %v839
  %s844 = scalar_lea.vmem %s0, 467
  %v845 = vld [vmem:[%s844] sm:$0x80]
  %vm846 = vcmask 1047559
  %v847 = vsel %vm846, %v845, %v843
  %848 = vrot.lane.b32.xlu0 %v847, 80
  %v849 = vpop.permute.xlu0 %848
  %vm850 = vcmask 720512
  %s851 = scalar_lea.vmem %s1, 8
  %852 = vst.msk [vmem:[%s851] sm:$0xff] %vm850, %v849
  %s853 = scalar_lea.vmem %s0, 42
  %v854 = vld [vmem:[%s853] sm:$0x1]
  %s855 = scalar_lea.vmem %s0, 105
  %v856 = vld [vmem:[%s855] sm:$0x2]
  %vm857 = vcmask 1041409
  %v858 = vsel %vm857, %v856, %v854
  %s859 = scalar_lea.vmem %s0, 168
  %v860 = vld [vmem:[%s859] sm:$0x4]
  %vm861 = vcmask 1042434
  %v862 = vsel %vm861, %v860, %v858
  %s863 = scalar_lea.vmem %s0, 231
  %v864 = vld [vmem:[%s863] sm:$0x8]
  %vm865 = vcmask 1043459
  %v866 = vsel %vm865, %v864, %v862
  %s867 = scalar_lea.vmem %s0, 294
  %v868 = vld [vmem:[%s867] sm:$0x10]
  %vm869 = vcmask 1044484
  %v870 = vsel %vm869, %v868, %v866
  %s871 = scalar_lea.vmem %s0, 357
  %v872 = vld [vmem:[%s871] sm:$0x20]
  %vm873 = vcmask 1045509
  %v874 = vsel %vm873, %v872, %v870
  %s875 = scalar_lea.vmem %s0, 420
  %v876 = vld [vmem:[%s875] sm:$0x40]
  %vm877 = vcmask 1046534
  %v878 = vsel %vm877, %v876, %v874
  %s879 = scalar_lea.vmem %s0, 483
  %v880 = vld [vmem:[%s879] sm:$0x80]
  %vm881 = vcmask 1047559
  %v882 = vsel %vm881, %v880, %v878
  %883 = vrot.lane.b32.xlu0 %v882, 80
  %v884 = vpop.permute.xlu0 %883
  %vm885 = vcmask 720512
  %s886 = scalar_lea.vmem %s1, 16
  %887 = vst.msk [vmem:[%s886] sm:$0xff] %vm885, %v884
  %s888 = scalar_lea.vmem %s0, 58
  %v889 = vld [vmem:[%s888] sm:$0x1]
  %s890 = scalar_lea.vmem %s0, 121
  %v891 = vld [vmem:[%s890] sm:$0x2]
  %vm892 = vcmask 1041409
  %v893 = vsel %vm892, %v891, %v889
  %s894 = scalar_lea.vmem %s0, 184
  %v895 = vld [vmem:[%s894] sm:$0x4]
  %vm896 = vcmask 1042434
  %v897 = vsel %vm896, %v895, %v893
  %s898 = scalar_lea.vmem %s0, 247
  %v899 = vld [vmem:[%s898] sm:$0x8]
  %vm900 = vcmask 1043459
  %v901 = vsel %vm900, %v899, %v897
  %s902 = scalar_lea.vmem %s0, 310
  %v903 = vld [vmem:[%s902] sm:$0x10]
  %vm904 = vcmask 1044484
  %v905 = vsel %vm904, %v903, %v901
  %s906 = scalar_lea.vmem %s0, 373
  %v907 = vld [vmem:[%s906] sm:$0x20]
  %vm908 = vcmask 1045509
  %v909 = vsel %vm908, %v907, %v905
  %s910 = scalar_lea.vmem %s0, 436
  %v911 = vld [vmem:[%s910] sm:$0x40]
  %vm912 = vcmask 1046534
  %v913 = vsel %vm912, %v911, %v909
  %s914 = scalar_lea.vmem %s0, 499
  %v915 = vld [vmem:[%s914] sm:$0x80]
  %vm916 = vcmask 1047559
  %v917 = vsel %vm916, %v915, %v913
  %918 = vrot.lane.b32.xlu0 %v917, 80
  %v919 = vpop.permute.xlu0 %918
  %vm920 = vcmask 720512
  %s921 = scalar_lea.vmem %s1, 24
  %922 = vst.msk [vmem:[%s921] sm:$0xff] %vm920, %v919
  %s923 = scalar_lea.vmem %s0, 9
  %v924 = vld [vmem:[%s923] sm:$0x1]
  %s925 = scalar_lea.vmem %s0, 72
  %v926 = vld [vmem:[%s925] sm:$0x2]
  %vm927 = vcmask 1041409
  %v928 = vsel %vm927, %v926, %v924
  %s929 = scalar_lea.vmem %s0, 135
  %v930 = vld [vmem:[%s929] sm:$0x4]
  %vm931 = vcmask 1042434
  %v932 = vsel %vm931, %v930, %v928
  %s933 = scalar_lea.vmem %s0, 198
  %v934 = vld [vmem:[%s933] sm:$0x8]
  %vm935 = vcmask 1043459
  %v936 = vsel %vm935, %v934, %v932
  %s937 = scalar_lea.vmem %s0, 261
  %v938 = vld [vmem:[%s937] sm:$0x10]
  %vm939 = vcmask 1044484
  %v940 = vsel %vm939, %v938, %v936
  %s941 = scalar_lea.vmem %s0, 324
  %v942 = vld [vmem:[%s941] sm:$0x20]
  %vm943 = vcmask 1045509
  %v944 = vsel %vm943, %v942, %v940
  %s945 = scalar_lea.vmem %s0, 387
  %v946 = vld [vmem:[%s945] sm:$0x40]
  %vm947 = vcmask 1046534
  %v948 = vsel %vm947, %v946, %v944
  %s949 = scalar_lea.vmem %s0, 450
  %v950 = vld [vmem:[%s949] sm:$0x80]
  %vm951 = vcmask 1047559
  %v952 = vsel %vm951, %v950, %v948
  %953 = vrot.lane.b32.xlu0 %v952, 72
  %v954 = vpop.permute.xlu0 %953
  %vm955 = vcmask 654912
  %956 = vst.msk [vmem:[%s1] sm:$0xff] %vm955, %v954
  %s957 = scalar_lea.vmem %s0, 25
  %v958 = vld [vmem:[%s957] sm:$0x1]
  %s959 = scalar_lea.vmem %s0, 88
  %v960 = vld [vmem:[%s959] sm:$0x2]
  %vm961 = vcmask 1041409
  %v962 = vsel %vm961, %v960, %v958
  %s963 = scalar_lea.vmem %s0, 151
  %v964 = vld [vmem:[%s963] sm:$0x4]
  %vm965 = vcmask 1042434
  %v966 = vsel %vm965, %v964, %v962
  %s967 = scalar_lea.vmem %s0, 214
  %v968 = vld [vmem:[%s967] sm:$0x8]
  %vm969 = vcmask 1043459
  %v970 = vsel %vm969, %v968, %v966
  %s971 = scalar_lea.vmem %s0, 277
  %v972 = vld [vmem:[%s971] sm:$0x10]
  %vm973 = vcmask 1044484
  %v974 = vsel %vm973, %v972, %v970
  %s975 = scalar_lea.vmem %s0, 340
  %v976 = vld [vmem:[%s975] sm:$0x20]
  %vm977 = vcmask 1045509
  %v978 = vsel %vm977, %v976, %v974
  %s979 = scalar_lea.vmem %s0, 403
  %v980 = vld [vmem:[%s979] sm:$0x40]
  %vm981 = vcmask 1046534
  %v982 = vsel %vm981, %v980, %v978
  %s983 = scalar_lea.vmem %s0, 466
  %v984 = vld [vmem:[%s983] sm:$0x80]
  %vm985 = vcmask 1047559
  %v986 = vsel %vm985, %v984, %v982
  %987 = vrot.lane.b32.xlu0 %v986, 72
  %v988 = vpop.permute.xlu0 %987
  %vm989 = vcmask 654912
  %s990 = scalar_lea.vmem %s1, 8
  %991 = vst.msk [vmem:[%s990] sm:$0xff] %vm989, %v988
  %s992 = scalar_lea.vmem %s0, 41
  %v993 = vld [vmem:[%s992] sm:$0x1]
  %s994 = scalar_lea.vmem %s0, 104
  %v995 = vld [vmem:[%s994] sm:$0x2]
  %vm996 = vcmask 1041409
  %v997 = vsel %vm996, %v995, %v993
  %s998 = scalar_lea.vmem %s0, 167
  %v999 = vld [vmem:[%s998] sm:$0x4]
  %vm1000 = vcmask 1042434
  %v1001 = vsel %vm1000, %v999, %v997
  %s1002 = scalar_lea.vmem %s0, 230
  %v1003 = vld [vmem:[%s1002] sm:$0x8]
  %vm1004 = vcmask 1043459
  %v1005 = vsel %vm1004, %v1003, %v1001
  %s1006 = scalar_lea.vmem %s0, 293
  %v1007 = vld [vmem:[%s1006] sm:$0x10]
  %vm1008 = vcmask 1044484
  %v1009 = vsel %vm1008, %v1007, %v1005
  %s1010 = scalar_lea.vmem %s0, 356
  %v1011 = vld [vmem:[%s1010] sm:$0x20]
  %vm1012 = vcmask 1045509
  %v1013 = vsel %vm1012, %v1011, %v1009
  %s1014 = scalar_lea.vmem %s0, 419
  %v1015 = vld [vmem:[%s1014] sm:$0x40]
  %vm1016 = vcmask 1046534
  %v1017 = vsel %vm1016, %v1015, %v1013
  %s1018 = scalar_lea.vmem %s0, 482
  %v1019 = vld [vmem:[%s1018] sm:$0x80]
  %vm1020 = vcmask 1047559
  %v1021 = vsel %vm1020, %v1019, %v1017
  %1022 = vrot.lane.b32.xlu0 %v1021, 72
  %v1023 = vpop.permute.xlu0 %1022
  %vm1024 = vcmask 654912
  %s1025 = scalar_lea.vmem %s1, 16
  %1026 = vst.msk [vmem:[%s1025] sm:$0xff] %vm1024, %v1023
  %s1027 = scalar_lea.vmem %s0, 57
  %v1028 = vld [vmem:[%s1027] sm:$0x1]
  %s1029 = scalar_lea.vmem %s0, 120
  %v1030 = vld [vmem:[%s1029] sm:$0x2]
  %vm1031 = vcmask 1041409
  %v1032 = vsel %vm1031, %v1030, %v1028
  %s1033 = scalar_lea.vmem %s0, 183
  %v1034 = vld [vmem:[%s1033] sm:$0x4]
  %vm1035 = vcmask 1042434
  %v1036 = vsel %vm1035, %v1034, %v1032
  %s1037 = scalar_lea.vmem %s0, 246
  %v1038 = vld [vmem:[%s1037] sm:$0x8]
  %vm1039 = vcmask 1043459
  %v1040 = vsel %vm1039, %v1038, %v1036
  %s1041 = scalar_lea.vmem %s0, 309
  %v1042 = vld [vmem:[%s1041] sm:$0x10]
  %vm1043 = vcmask 1044484
  %v1044 = vsel %vm1043, %v1042, %v1040
  %s1045 = scalar_lea.vmem %s0, 372
  %v1046 = vld [vmem:[%s1045] sm:$0x20]
  %vm1047 = vcmask 1045509
  %v1048 = vsel %vm1047, %v1046, %v1044
  %s1049 = scalar_lea.vmem %s0, 435
  %v1050 = vld [vmem:[%s1049] sm:$0x40]
  %vm1051 = vcmask 1046534
  %v1052 = vsel %vm1051, %v1050, %v1048
  %s1053 = scalar_lea.vmem %s0, 498
  %v1054 = vld [vmem:[%s1053] sm:$0x80]
  %vm1055 = vcmask 1047559
  %v1056 = vsel %vm1055, %v1054, %v1052
  %1057 = vrot.lane.b32.xlu0 %v1056, 72
  %v1058 = vpop.permute.xlu0 %1057
  %vm1059 = vcmask 654912
  %s1060 = scalar_lea.vmem %s1, 24
  %1061 = vst.msk [vmem:[%s1060] sm:$0xff] %vm1059, %v1058
  %s1062 = scalar_lea.vmem %s0, 8
  %v1063 = vld [vmem:[%s1062] sm:$0x1]
  %s1064 = scalar_lea.vmem %s0, 71
  %v1065 = vld [vmem:[%s1064] sm:$0x2]
  %vm1066 = vcmask 1041409
  %v1067 = vsel %vm1066, %v1065, %v1063
  %s1068 = scalar_lea.vmem %s0, 134
  %v1069 = vld [vmem:[%s1068] sm:$0x4]
  %vm1070 = vcmask 1042434
  %v1071 = vsel %vm1070, %v1069, %v1067
  %s1072 = scalar_lea.vmem %s0, 197
  %v1073 = vld [vmem:[%s1072] sm:$0x8]
  %vm1074 = vcmask 1043459
  %v1075 = vsel %vm1074, %v1073, %v1071
  %s1076 = scalar_lea.vmem %s0, 260
  %v1077 = vld [vmem:[%s1076] sm:$0x10]
  %vm1078 = vcmask 1044484
  %v1079 = vsel %vm1078, %v1077, %v1075
  %s1080 = scalar_lea.vmem %s0, 323
  %v1081 = vld [vmem:[%s1080] sm:$0x20]
  %vm1082 = vcmask 1045509
  %v1083 = vsel %vm1082, %v1081, %v1079
  %s1084 = scalar_lea.vmem %s0, 386
  %v1085 = vld [vmem:[%s1084] sm:$0x40]
  %vm1086 = vcmask 1046534
  %v1087 = vsel %vm1086, %v1085, %v1083
  %s1088 = scalar_lea.vmem %s0, 449
  %v1089 = vld [vmem:[%s1088] sm:$0x80]
  %vm1090 = vcmask 1047559
  %v1091 = vsel %vm1090, %v1089, %v1087
  %1092 = vrot.lane.b32.xlu0 %v1091, 64
  %v1093 = vpop.permute.xlu0 %1092
  %vm1094 = vcmask 589312
  %1095 = vst.msk [vmem:[%s1] sm:$0xff] %vm1094, %v1093
  %s1096 = scalar_lea.vmem %s0, 24
  %v1097 = vld [vmem:[%s1096] sm:$0x1]
  %s1098 = scalar_lea.vmem %s0, 87
  %v1099 = vld [vmem:[%s1098] sm:$0x2]
  %vm1100 = vcmask 1041409
  %v1101 = vsel %vm1100, %v1099, %v1097
  %s1102 = scalar_lea.vmem %s0, 150
  %v1103 = vld [vmem:[%s1102] sm:$0x4]
  %vm1104 = vcmask 1042434
  %v1105 = vsel %vm1104, %v1103, %v1101
  %s1106 = scalar_lea.vmem %s0, 213
  %v1107 = vld [vmem:[%s1106] sm:$0x8]
  %vm1108 = vcmask 1043459
  %v1109 = vsel %vm1108, %v1107, %v1105
  %s1110 = scalar_lea.vmem %s0, 276
  %v1111 = vld [vmem:[%s1110] sm:$0x10]
  %vm1112 = vcmask 1044484
  %v1113 = vsel %vm1112, %v1111, %v1109
  %s1114 = scalar_lea.vmem %s0, 339
  %v1115 = vld [vmem:[%s1114] sm:$0x20]
  %vm1116 = vcmask 1045509
  %v1117 = vsel %vm1116, %v1115, %v1113
  %s1118 = scalar_lea.vmem %s0, 402
  %v1119 = vld [vmem:[%s1118] sm:$0x40]
  %vm1120 = vcmask 1046534
  %v1121 = vsel %vm1120, %v1119, %v1117
  %s1122 = scalar_lea.vmem %s0, 465
  %v1123 = vld [vmem:[%s1122] sm:$0x80]
  %vm1124 = vcmask 1047559
  %v1125 = vsel %vm1124, %v1123, %v1121
  %1126 = vrot.lane.b32.xlu0 %v1125, 64
  %v1127 = vpop.permute.xlu0 %1126
  %vm1128 = vcmask 589312
  %s1129 = scalar_lea.vmem %s1, 8
  %1130 = vst.msk [vmem:[%s1129] sm:$0xff] %vm1128, %v1127
  %s1131 = scalar_lea.vmem %s0, 40
  %v1132 = vld [vmem:[%s1131] sm:$0x1]
  %s1133 = scalar_lea.vmem %s0, 103
  %v1134 = vld [vmem:[%s1133] sm:$0x2]
  %vm1135 = vcmask 1041409
  %v1136 = vsel %vm1135, %v1134, %v1132
  %s1137 = scalar_lea.vmem %s0, 166
  %v1138 = vld [vmem:[%s1137] sm:$0x4]
  %vm1139 = vcmask 1042434
  %v1140 = vsel %vm1139, %v1138, %v1136
  %s1141 = scalar_lea.vmem %s0, 229
  %v1142 = vld [vmem:[%s1141] sm:$0x8]
  %vm1143 = vcmask 1043459
  %v1144 = vsel %vm1143, %v1142, %v1140
  %s1145 = scalar_lea.vmem %s0, 292
  %v1146 = vld [vmem:[%s1145] sm:$0x10]
  %vm1147 = vcmask 1044484
  %v1148 = vsel %vm1147, %v1146, %v1144
  %s1149 = scalar_lea.vmem %s0, 355
  %v1150 = vld [vmem:[%s1149] sm:$0x20]
  %vm1151 = vcmask 1045509
  %v1152 = vsel %vm1151, %v1150, %v1148
  %s1153 = scalar_lea.vmem %s0, 418
  %v1154 = vld [vmem:[%s1153] sm:$0x40]
  %vm1155 = vcmask 1046534
  %v1156 = vsel %vm1155, %v1154, %v1152
  %s1157 = scalar_lea.vmem %s0, 481
  %v1158 = vld [vmem:[%s1157] sm:$0x80]
  %vm1159 = vcmask 1047559
  %v1160 = vsel %vm1159, %v1158, %v1156
  %1161 = vrot.lane.b32.xlu0 %v1160, 64
  %v1162 = vpop.permute.xlu0 %1161
  %vm1163 = vcmask 589312
  %s1164 = scalar_lea.vmem %s1, 16
  %1165 = vst.msk [vmem:[%s1164] sm:$0xff] %vm1163, %v1162
  %s1166 = scalar_lea.vmem %s0, 56
  %v1167 = vld [vmem:[%s1166] sm:$0x1]
  %s1168 = scalar_lea.vmem %s0, 119
  %v1169 = vld [vmem:[%s1168] sm:$0x2]
  %vm1170 = vcmask 1041409
  %v1171 = vsel %vm1170, %v1169, %v1167
  %s1172 = scalar_lea.vmem %s0, 182
  %v1173 = vld [vmem:[%s1172] sm:$0x4]
  %vm1174 = vcmask 1042434
  %v1175 = vsel %vm1174, %v1173, %v1171
  %s1176 = scalar_lea.vmem %s0, 245
  %v1177 = vld [vmem:[%s1176] sm:$0x8]
  %vm1178 = vcmask 1043459
  %v1179 = vsel %vm1178, %v1177, %v1175
  %s1180 = scalar_lea.vmem %s0, 308
  %v1181 = vld [vmem:[%s1180] sm:$0x10]
  %vm1182 = vcmask 1044484
  %v1183 = vsel %vm1182, %v1181, %v1179
  %s1184 = scalar_lea.vmem %s0, 371
  %v1185 = vld [vmem:[%s1184] sm:$0x20]
  %vm1186 = vcmask 1045509
  %v1187 = vsel %vm1186, %v1185, %v1183
  %s1188 = scalar_lea.vmem %s0, 434
  %v1189 = vld [vmem:[%s1188] sm:$0x40]
  %vm1190 = vcmask 1046534
  %v1191 = vsel %vm1190, %v1189, %v1187
  %s1192 = scalar_lea.vmem %s0, 497
  %v1193 = vld [vmem:[%s1192] sm:$0x80]
  %vm1194 = vcmask 1047559
  %v1195 = vsel %vm1194, %v1193, %v1191
  %1196 = vrot.lane.b32.xlu0 %v1195, 64
  %v1197 = vpop.permute.xlu0 %1196
  %vm1198 = vcmask 589312
  %s1199 = scalar_lea.vmem %s1, 24
  %1200 = vst.msk [vmem:[%s1199] sm:$0xff] %vm1198, %v1197
  %s1201 = scalar_lea.vmem %s0, 7
  %v1202 = vld [vmem:[%s1201] sm:$0x1]
  %s1203 = scalar_lea.vmem %s0, 70
  %v1204 = vld [vmem:[%s1203] sm:$0x2]
  %vm1205 = vcmask 1041409
  %v1206 = vsel %vm1205, %v1204, %v1202
  %s1207 = scalar_lea.vmem %s0, 133
  %v1208 = vld [vmem:[%s1207] sm:$0x4]
  %vm1209 = vcmask 1042434
  %v1210 = vsel %vm1209, %v1208, %v1206
  %s1211 = scalar_lea.vmem %s0, 196
  %v1212 = vld [vmem:[%s1211] sm:$0x8]
  %vm1213 = vcmask 1043459
  %v1214 = vsel %vm1213, %v1212, %v1210
  %s1215 = scalar_lea.vmem %s0, 259
  %v1216 = vld [vmem:[%s1215] sm:$0x10]
  %vm1217 = vcmask 1044484
  %v1218 = vsel %vm1217, %v1216, %v1214
  %s1219 = scalar_lea.vmem %s0, 322
  %v1220 = vld [vmem:[%s1219] sm:$0x20]
  %vm1221 = vcmask 1045509
  %v1222 = vsel %vm1221, %v1220, %v1218
  %s1223 = scalar_lea.vmem %s0, 385
  %v1224 = vld [vmem:[%s1223] sm:$0x40]
  %vm1225 = vcmask 1046534
  %v1226 = vsel %vm1225, %v1224, %v1222
  %s1227 = scalar_lea.vmem %s0, 448
  %v1228 = vld [vmem:[%s1227] sm:$0x80]
  %vm1229 = vcmask 1047559
  %v1230 = vsel %vm1229, %v1228, %v1226
  %1231 = vrot.lane.b32.xlu0 %v1230, 56
  %v1232 = vpop.permute.xlu0 %1231
  %vm1233 = vcmask 523712
  %1234 = vst.msk [vmem:[%s1] sm:$0xff] %vm1233, %v1232
  %s1235 = scalar_lea.vmem %s0, 23
  %v1236 = vld [vmem:[%s1235] sm:$0x1]
  %s1237 = scalar_lea.vmem %s0, 86
  %v1238 = vld [vmem:[%s1237] sm:$0x2]
  %vm1239 = vcmask 1041409
  %v1240 = vsel %vm1239, %v1238, %v1236
  %s1241 = scalar_lea.vmem %s0, 149
  %v1242 = vld [vmem:[%s1241] sm:$0x4]
  %vm1243 = vcmask 1042434
  %v1244 = vsel %vm1243, %v1242, %v1240
  %s1245 = scalar_lea.vmem %s0, 212
  %v1246 = vld [vmem:[%s1245] sm:$0x8]
  %vm1247 = vcmask 1043459
  %v1248 = vsel %vm1247, %v1246, %v1244
  %s1249 = scalar_lea.vmem %s0, 275
  %v1250 = vld [vmem:[%s1249] sm:$0x10]
  %vm1251 = vcmask 1044484
  %v1252 = vsel %vm1251, %v1250, %v1248
  %s1253 = scalar_lea.vmem %s0, 338
  %v1254 = vld [vmem:[%s1253] sm:$0x20]
  %vm1255 = vcmask 1045509
  %v1256 = vsel %vm1255, %v1254, %v1252
  %s1257 = scalar_lea.vmem %s0, 401
  %v1258 = vld [vmem:[%s1257] sm:$0x40]
  %vm1259 = vcmask 1046534
  %v1260 = vsel %vm1259, %v1258, %v1256
  %s1261 = scalar_lea.vmem %s0, 464
  %v1262 = vld [vmem:[%s1261] sm:$0x80]
  %vm1263 = vcmask 1047559
  %v1264 = vsel %vm1263, %v1262, %v1260
  %1265 = vrot.lane.b32.xlu0 %v1264, 56
  %v1266 = vpop.permute.xlu0 %1265
  %vm1267 = vcmask 523712
  %s1268 = scalar_lea.vmem %s1, 8
  %1269 = vst.msk [vmem:[%s1268] sm:$0xff] %vm1267, %v1266
  %s1270 = scalar_lea.vmem %s0, 39
  %v1271 = vld [vmem:[%s1270] sm:$0x1]
  %s1272 = scalar_lea.vmem %s0, 102
  %v1273 = vld [vmem:[%s1272] sm:$0x2]
  %vm1274 = vcmask 1041409
  %v1275 = vsel %vm1274, %v1273, %v1271
  %s1276 = scalar_lea.vmem %s0, 165
  %v1277 = vld [vmem:[%s1276] sm:$0x4]
  %vm1278 = vcmask 1042434
  %v1279 = vsel %vm1278, %v1277, %v1275
  %s1280 = scalar_lea.vmem %s0, 228
  %v1281 = vld [vmem:[%s1280] sm:$0x8]
  %vm1282 = vcmask 1043459
  %v1283 = vsel %vm1282, %v1281, %v1279
  %s1284 = scalar_lea.vmem %s0, 291
  %v1285 = vld [vmem:[%s1284] sm:$0x10]
  %vm1286 = vcmask 1044484
  %v1287 = vsel %vm1286, %v1285, %v1283
  %s1288 = scalar_lea.vmem %s0, 354
  %v1289 = vld [vmem:[%s1288] sm:$0x20]
  %vm1290 = vcmask 1045509
  %v1291 = vsel %vm1290, %v1289, %v1287
  %s1292 = scalar_lea.vmem %s0, 417
  %v1293 = vld [vmem:[%s1292] sm:$0x40]
  %vm1294 = vcmask 1046534
  %v1295 = vsel %vm1294, %v1293, %v1291
  %s1296 = scalar_lea.vmem %s0, 480
  %v1297 = vld [vmem:[%s1296] sm:$0x80]
  %vm1298 = vcmask 1047559
  %v1299 = vsel %vm1298, %v1297, %v1295
  %1300 = vrot.lane.b32.xlu0 %v1299, 56
  %v1301 = vpop.permute.xlu0 %1300
  %vm1302 = vcmask 523712
  %s1303 = scalar_lea.vmem %s1, 16
  %1304 = vst.msk [vmem:[%s1303] sm:$0xff] %vm1302, %v1301
  %s1305 = scalar_lea.vmem %s0, 55
  %v1306 = vld [vmem:[%s1305] sm:$0x1]
  %s1307 = scalar_lea.vmem %s0, 118
  %v1308 = vld [vmem:[%s1307] sm:$0x2]
  %vm1309 = vcmask 1041409
  %v1310 = vsel %vm1309, %v1308, %v1306
  %s1311 = scalar_lea.vmem %s0, 181
  %v1312 = vld [vmem:[%s1311] sm:$0x4]
  %vm1313 = vcmask 1042434
  %v1314 = vsel %vm1313, %v1312, %v1310
  %s1315 = scalar_lea.vmem %s0, 244
  %v1316 = vld [vmem:[%s1315] sm:$0x8]
  %vm1317 = vcmask 1043459
  %v1318 = vsel %vm1317, %v1316, %v1314
  %s1319 = scalar_lea.vmem %s0, 307
  %v1320 = vld [vmem:[%s1319] sm:$0x10]
  %vm1321 = vcmask 1044484
  %v1322 = vsel %vm1321, %v1320, %v1318
  %s1323 = scalar_lea.vmem %s0, 370
  %v1324 = vld [vmem:[%s1323] sm:$0x20]
  %vm1325 = vcmask 1045509
  %v1326 = vsel %vm1325, %v1324, %v1322
  %s1327 = scalar_lea.vmem %s0, 433
  %v1328 = vld [vmem:[%s1327] sm:$0x40]
  %vm1329 = vcmask 1046534
  %v1330 = vsel %vm1329, %v1328, %v1326
  %s1331 = scalar_lea.vmem %s0, 496
  %v1332 = vld [vmem:[%s1331] sm:$0x80]
  %vm1333 = vcmask 1047559
  %v1334 = vsel %vm1333, %v1332, %v1330
  %1335 = vrot.lane.b32.xlu0 %v1334, 56
  %v1336 = vpop.permute.xlu0 %1335
  %vm1337 = vcmask 523712
  %s1338 = scalar_lea.vmem %s1, 24
  %1339 = vst.msk [vmem:[%s1338] sm:$0xff] %vm1337, %v1336
  %s1340 = scalar_lea.vmem %s0, 6
  %v1341 = vld [vmem:[%s1340] sm:$0x1]
  %s1342 = scalar_lea.vmem %s0, 69
  %v1343 = vld [vmem:[%s1342] sm:$0x2]
  %vm1344 = vcmask 1041409
  %v1345 = vsel %vm1344, %v1343, %v1341
  %s1346 = scalar_lea.vmem %s0, 132
  %v1347 = vld [vmem:[%s1346] sm:$0x4]
  %vm1348 = vcmask 1042434
  %v1349 = vsel %vm1348, %v1347, %v1345
  %s1350 = scalar_lea.vmem %s0, 195
  %v1351 = vld [vmem:[%s1350] sm:$0x8]
  %vm1352 = vcmask 1043459
  %v1353 = vsel %vm1352, %v1351, %v1349
  %s1354 = scalar_lea.vmem %s0, 258
  %v1355 = vld [vmem:[%s1354] sm:$0x10]
  %vm1356 = vcmask 1044484
  %v1357 = vsel %vm1356, %v1355, %v1353
  %s1358 = scalar_lea.vmem %s0, 321
  %v1359 = vld [vmem:[%s1358] sm:$0x20]
  %vm1360 = vcmask 1045509
  %v1361 = vsel %vm1360, %v1359, %v1357
  %s1362 = scalar_lea.vmem %s0, 384
  %v1363 = vld [vmem:[%s1362] sm:$0x40]
  %vm1364 = vcmask 1046534
  %v1365 = vsel %vm1364, %v1363, %v1361
  %s1366 = scalar_lea.vmem %s0, 447
  %v1367 = vld [vmem:[%s1366] sm:$0x80]
  %vm1368 = vcmask 1047559
  %v1369 = vsel %vm1368, %v1367, %v1365
  %1370 = vrot.lane.b32.xlu0 %v1369, 48
  %v1371 = vpop.permute.xlu0 %1370
  %vm1372 = vcmask 458112
  %1373 = vst.msk [vmem:[%s1] sm:$0xff] %vm1372, %v1371
  %s1374 = scalar_lea.vmem %s0, 22
  %v1375 = vld [vmem:[%s1374] sm:$0x1]
  %s1376 = scalar_lea.vmem %s0, 85
  %v1377 = vld [vmem:[%s1376] sm:$0x2]
  %vm1378 = vcmask 1041409
  %v1379 = vsel %vm1378, %v1377, %v1375
  %s1380 = scalar_lea.vmem %s0, 148
  %v1381 = vld [vmem:[%s1380] sm:$0x4]
  %vm1382 = vcmask 1042434
  %v1383 = vsel %vm1382, %v1381, %v1379
  %s1384 = scalar_lea.vmem %s0, 211
  %v1385 = vld [vmem:[%s1384] sm:$0x8]
  %vm1386 = vcmask 1043459
  %v1387 = vsel %vm1386, %v1385, %v1383
  %s1388 = scalar_lea.vmem %s0, 274
  %v1389 = vld [vmem:[%s1388] sm:$0x10]
  %vm1390 = vcmask 1044484
  %v1391 = vsel %vm1390, %v1389, %v1387
  %s1392 = scalar_lea.vmem %s0, 337
  %v1393 = vld [vmem:[%s1392] sm:$0x20]
  %vm1394 = vcmask 1045509
  %v1395 = vsel %vm1394, %v1393, %v1391
  %s1396 = scalar_lea.vmem %s0, 400
  %v1397 = vld [vmem:[%s1396] sm:$0x40]
  %vm1398 = vcmask 1046534
  %v1399 = vsel %vm1398, %v1397, %v1395
  %s1400 = scalar_lea.vmem %s0, 463
  %v1401 = vld [vmem:[%s1400] sm:$0x80]
  %vm1402 = vcmask 1047559
  %v1403 = vsel %vm1402, %v1401, %v1399
  %1404 = vrot.lane.b32.xlu0 %v1403, 48
  %v1405 = vpop.permute.xlu0 %1404
  %vm1406 = vcmask 458112
  %s1407 = scalar_lea.vmem %s1, 8
  %1408 = vst.msk [vmem:[%s1407] sm:$0xff] %vm1406, %v1405
  %s1409 = scalar_lea.vmem %s0, 38
  %v1410 = vld [vmem:[%s1409] sm:$0x1]
  %s1411 = scalar_lea.vmem %s0, 101
  %v1412 = vld [vmem:[%s1411] sm:$0x2]
  %vm1413 = vcmask 1041409
  %v1414 = vsel %vm1413, %v1412, %v1410
  %s1415 = scalar_lea.vmem %s0, 164
  %v1416 = vld [vmem:[%s1415] sm:$0x4]
  %vm1417 = vcmask 1042434
  %v1418 = vsel %vm1417, %v1416, %v1414
  %s1419 = scalar_lea.vmem %s0, 227
  %v1420 = vld [vmem:[%s1419] sm:$0x8]
  %vm1421 = vcmask 1043459
  %v1422 = vsel %vm1421, %v1420, %v1418
  %s1423 = scalar_lea.vmem %s0, 290
  %v1424 = vld [vmem:[%s1423] sm:$0x10]
  %vm1425 = vcmask 1044484
  %v1426 = vsel %vm1425, %v1424, %v1422
  %s1427 = scalar_lea.vmem %s0, 353
  %v1428 = vld [vmem:[%s1427] sm:$0x20]
  %vm1429 = vcmask 1045509
  %v1430 = vsel %vm1429, %v1428, %v1426
  %s1431 = scalar_lea.vmem %s0, 416
  %v1432 = vld [vmem:[%s1431] sm:$0x40]
  %vm1433 = vcmask 1046534
  %v1434 = vsel %vm1433, %v1432, %v1430
  %s1435 = scalar_lea.vmem %s0, 479
  %v1436 = vld [vmem:[%s1435] sm:$0x80]
  %vm1437 = vcmask 1047559
  %v1438 = vsel %vm1437, %v1436, %v1434
  %1439 = vrot.lane.b32.xlu0 %v1438, 48
  %v1440 = vpop.permute.xlu0 %1439
  %vm1441 = vcmask 458112
  %s1442 = scalar_lea.vmem %s1, 16
  %1443 = vst.msk [vmem:[%s1442] sm:$0xff] %vm1441, %v1440
  %s1444 = scalar_lea.vmem %s0, 54
  %v1445 = vld [vmem:[%s1444] sm:$0x1]
  %s1446 = scalar_lea.vmem %s0, 117
  %v1447 = vld [vmem:[%s1446] sm:$0x2]
  %vm1448 = vcmask 1041409
  %v1449 = vsel %vm1448, %v1447, %v1445
  %s1450 = scalar_lea.vmem %s0, 180
  %v1451 = vld [vmem:[%s1450] sm:$0x4]
  %vm1452 = vcmask 1042434
  %v1453 = vsel %vm1452, %v1451, %v1449
  %s1454 = scalar_lea.vmem %s0, 243
  %v1455 = vld [vmem:[%s1454] sm:$0x8]
  %vm1456 = vcmask 1043459
  %v1457 = vsel %vm1456, %v1455, %v1453
  %s1458 = scalar_lea.vmem %s0, 306
  %v1459 = vld [vmem:[%s1458] sm:$0x10]
  %vm1460 = vcmask 1044484
  %v1461 = vsel %vm1460, %v1459, %v1457
  %s1462 = scalar_lea.vmem %s0, 369
  %v1463 = vld [vmem:[%s1462] sm:$0x20]
  %vm1464 = vcmask 1045509
  %v1465 = vsel %vm1464, %v1463, %v1461
  %s1466 = scalar_lea.vmem %s0, 432
  %v1467 = vld [vmem:[%s1466] sm:$0x40]
  %vm1468 = vcmask 1046534
  %v1469 = vsel %vm1468, %v1467, %v1465
  %s1470 = scalar_lea.vmem %s0, 495
  %v1471 = vld [vmem:[%s1470] sm:$0x80]
  %vm1472 = vcmask 1047559
  %v1473 = vsel %vm1472, %v1471, %v1469
  %1474 = vrot.lane.b32.xlu0 %v1473, 48
  %v1475 = vpop.permute.xlu0 %1474
  %vm1476 = vcmask 458112
  %s1477 = scalar_lea.vmem %s1, 24
  %1478 = vst.msk [vmem:[%s1477] sm:$0xff] %vm1476, %v1475
  %s1479 = scalar_lea.vmem %s0, 5
  %v1480 = vld [vmem:[%s1479] sm:$0x1]
  %s1481 = scalar_lea.vmem %s0, 68
  %v1482 = vld [vmem:[%s1481] sm:$0x2]
  %vm1483 = vcmask 1041409
  %v1484 = vsel %vm1483, %v1482, %v1480
  %s1485 = scalar_lea.vmem %s0, 131
  %v1486 = vld [vmem:[%s1485] sm:$0x4]
  %vm1487 = vcmask 1042434
  %v1488 = vsel %vm1487, %v1486, %v1484
  %s1489 = scalar_lea.vmem %s0, 194
  %v1490 = vld [vmem:[%s1489] sm:$0x8]
  %vm1491 = vcmask 1043459
  %v1492 = vsel %vm1491, %v1490, %v1488
  %s1493 = scalar_lea.vmem %s0, 257
  %v1494 = vld [vmem:[%s1493] sm:$0x10]
  %vm1495 = vcmask 1044484
  %v1496 = vsel %vm1495, %v1494, %v1492
  %s1497 = scalar_lea.vmem %s0, 320
  %v1498 = vld [vmem:[%s1497] sm:$0x20]
  %vm1499 = vcmask 1045509
  %v1500 = vsel %vm1499, %v1498, %v1496
  %s1501 = scalar_lea.vmem %s0, 383
  %v1502 = vld [vmem:[%s1501] sm:$0x40]
  %vm1503 = vcmask 1046534
  %v1504 = vsel %vm1503, %v1502, %v1500
  %s1505 = scalar_lea.vmem %s0, 446
  %v1506 = vld [vmem:[%s1505] sm:$0x80]
  %vm1507 = vcmask 1047559
  %v1508 = vsel %vm1507, %v1506, %v1504
  %1509 = vrot.lane.b32.xlu0 %v1508, 40
  %v1510 = vpop.permute.xlu0 %1509
  %vm1511 = vcmask 392512
  %1512 = vst.msk [vmem:[%s1] sm:$0xff] %vm1511, %v1510
  %s1513 = scalar_lea.vmem %s0, 21
  %v1514 = vld [vmem:[%s1513] sm:$0x1]
  %s1515 = scalar_lea.vmem %s0, 84
  %v1516 = vld [vmem:[%s1515] sm:$0x2]
  %vm1517 = vcmask 1041409
  %v1518 = vsel %vm1517, %v1516, %v1514
  %s1519 = scalar_lea.vmem %s0, 147
  %v1520 = vld [vmem:[%s1519] sm:$0x4]
  %vm1521 = vcmask 1042434
  %v1522 = vsel %vm1521, %v1520, %v1518
  %s1523 = scalar_lea.vmem %s0, 210
  %v1524 = vld [vmem:[%s1523] sm:$0x8]
  %vm1525 = vcmask 1043459
  %v1526 = vsel %vm1525, %v1524, %v1522
  %s1527 = scalar_lea.vmem %s0, 273
  %v1528 = vld [vmem:[%s1527] sm:$0x10]
  %vm1529 = vcmask 1044484
  %v1530 = vsel %vm1529, %v1528, %v1526
  %s1531 = scalar_lea.vmem %s0, 336
  %v1532 = vld [vmem:[%s1531] sm:$0x20]
  %vm1533 = vcmask 1045509
  %v1534 = vsel %vm1533, %v1532, %v1530
  %s1535 = scalar_lea.vmem %s0, 399
  %v1536 = vld [vmem:[%s1535] sm:$0x40]
  %vm1537 = vcmask 1046534
  %v1538 = vsel %vm1537, %v1536, %v1534
  %s1539 = scalar_lea.vmem %s0, 462
  %v1540 = vld [vmem:[%s1539] sm:$0x80]
  %vm1541 = vcmask 1047559
  %v1542 = vsel %vm1541, %v1540, %v1538
  %1543 = vrot.lane.b32.xlu0 %v1542, 40
  %v1544 = vpop.permute.xlu0 %1543
  %vm1545 = vcmask 392512
  %s1546 = scalar_lea.vmem %s1, 8
  %1547 = vst.msk [vmem:[%s1546] sm:$0xff] %vm1545, %v1544
  %s1548 = scalar_lea.vmem %s0, 37
  %v1549 = vld [vmem:[%s1548] sm:$0x1]
  %s1550 = scalar_lea.vmem %s0, 100
  %v1551 = vld [vmem:[%s1550] sm:$0x2]
  %vm1552 = vcmask 1041409
  %v1553 = vsel %vm1552, %v1551, %v1549
  %s1554 = scalar_lea.vmem %s0, 163
  %v1555 = vld [vmem:[%s1554] sm:$0x4]
  %vm1556 = vcmask 1042434
  %v1557 = vsel %vm1556, %v1555, %v1553
  %s1558 = scalar_lea.vmem %s0, 226
  %v1559 = vld [vmem:[%s1558] sm:$0x8]
  %vm1560 = vcmask 1043459
  %v1561 = vsel %vm1560, %v1559, %v1557
  %s1562 = scalar_lea.vmem %s0, 289
  %v1563 = vld [vmem:[%s1562] sm:$0x10]
  %vm1564 = vcmask 1044484
  %v1565 = vsel %vm1564, %v1563, %v1561
  %s1566 = scalar_lea.vmem %s0, 352
  %v1567 = vld [vmem:[%s1566] sm:$0x20]
  %vm1568 = vcmask 1045509
  %v1569 = vsel %vm1568, %v1567, %v1565
  %s1570 = scalar_lea.vmem %s0, 415
  %v1571 = vld [vmem:[%s1570] sm:$0x40]
  %vm1572 = vcmask 1046534
  %v1573 = vsel %vm1572, %v1571, %v1569
  %s1574 = scalar_lea.vmem %s0, 478
  %v1575 = vld [vmem:[%s1574] sm:$0x80]
  %vm1576 = vcmask 1047559
  %v1577 = vsel %vm1576, %v1575, %v1573
  %1578 = vrot.lane.b32.xlu0 %v1577, 40
  %v1579 = vpop.permute.xlu0 %1578
  %vm1580 = vcmask 392512
  %s1581 = scalar_lea.vmem %s1, 16
  %1582 = vst.msk [vmem:[%s1581] sm:$0xff] %vm1580, %v1579
  %s1583 = scalar_lea.vmem %s0, 53
  %v1584 = vld [vmem:[%s1583] sm:$0x1]
  %s1585 = scalar_lea.vmem %s0, 116
  %v1586 = vld [vmem:[%s1585] sm:$0x2]
  %vm1587 = vcmask 1041409
  %v1588 = vsel %vm1587, %v1586, %v1584
  %s1589 = scalar_lea.vmem %s0, 179
  %v1590 = vld [vmem:[%s1589] sm:$0x4]
  %vm1591 = vcmask 1042434
  %v1592 = vsel %vm1591, %v1590, %v1588
  %s1593 = scalar_lea.vmem %s0, 242
  %v1594 = vld [vmem:[%s1593] sm:$0x8]
  %vm1595 = vcmask 1043459
  %v1596 = vsel %vm1595, %v1594, %v1592
  %s1597 = scalar_lea.vmem %s0, 305
  %v1598 = vld [vmem:[%s1597] sm:$0x10]
  %vm1599 = vcmask 1044484
  %v1600 = vsel %vm1599, %v1598, %v1596
  %s1601 = scalar_lea.vmem %s0, 368
  %v1602 = vld [vmem:[%s1601] sm:$0x20]
  %vm1603 = vcmask 1045509
  %v1604 = vsel %vm1603, %v1602, %v1600
  %s1605 = scalar_lea.vmem %s0, 431
  %v1606 = vld [vmem:[%s1605] sm:$0x40]
  %vm1607 = vcmask 1046534
  %v1608 = vsel %vm1607, %v1606, %v1604
  %s1609 = scalar_lea.vmem %s0, 494
  %v1610 = vld [vmem:[%s1609] sm:$0x80]
  %vm1611 = vcmask 1047559
  %v1612 = vsel %vm1611, %v1610, %v1608
  %1613 = vrot.lane.b32.xlu0 %v1612, 40
  %v1614 = vpop.permute.xlu0 %1613
  %vm1615 = vcmask 392512
  %s1616 = scalar_lea.vmem %s1, 24
  %1617 = vst.msk [vmem:[%s1616] sm:$0xff] %vm1615, %v1614
  %s1618 = scalar_lea.vmem %s0, 4
  %v1619 = vld [vmem:[%s1618] sm:$0x1]
  %s1620 = scalar_lea.vmem %s0, 67
  %v1621 = vld [vmem:[%s1620] sm:$0x2]
  %vm1622 = vcmask 1041409
  %v1623 = vsel %vm1622, %v1621, %v1619
  %s1624 = scalar_lea.vmem %s0, 130
  %v1625 = vld [vmem:[%s1624] sm:$0x4]
  %vm1626 = vcmask 1042434
  %v1627 = vsel %vm1626, %v1625, %v1623
  %s1628 = scalar_lea.vmem %s0, 193
  %v1629 = vld [vmem:[%s1628] sm:$0x8]
  %vm1630 = vcmask 1043459
  %v1631 = vsel %vm1630, %v1629, %v1627
  %s1632 = scalar_lea.vmem %s0, 256
  %v1633 = vld [vmem:[%s1632] sm:$0x10]
  %vm1634 = vcmask 1044484
  %v1635 = vsel %vm1634, %v1633, %v1631
  %s1636 = scalar_lea.vmem %s0, 319
  %v1637 = vld [vmem:[%s1636] sm:$0x20]
  %vm1638 = vcmask 1045509
  %v1639 = vsel %vm1638, %v1637, %v1635
  %s1640 = scalar_lea.vmem %s0, 382
  %v1641 = vld [vmem:[%s1640] sm:$0x40]
  %vm1642 = vcmask 1046534
  %v1643 = vsel %vm1642, %v1641, %v1639
  %s1644 = scalar_lea.vmem %s0, 445
  %v1645 = vld [vmem:[%s1644] sm:$0x80]
  %vm1646 = vcmask 1047559
  %v1647 = vsel %vm1646, %v1645, %v1643
  %1648 = vrot.lane.b32.xlu0 %v1647, 32
  %v1649 = vpop.permute.xlu0 %1648
  %vm1650 = vcmask 326912
  %1651 = vst.msk [vmem:[%s1] sm:$0xff] %vm1650, %v1649
  %s1652 = scalar_lea.vmem %s0, 20
  %v1653 = vld [vmem:[%s1652] sm:$0x1]
  %s1654 = scalar_lea.vmem %s0, 83
  %v1655 = vld [vmem:[%s1654] sm:$0x2]
  %vm1656 = vcmask 1041409
  %v1657 = vsel %vm1656, %v1655, %v1653
  %s1658 = scalar_lea.vmem %s0, 146
  %v1659 = vld [vmem:[%s1658] sm:$0x4]
  %vm1660 = vcmask 1042434
  %v1661 = vsel %vm1660, %v1659, %v1657
  %s1662 = scalar_lea.vmem %s0, 209
  %v1663 = vld [vmem:[%s1662] sm:$0x8]
  %vm1664 = vcmask 1043459
  %v1665 = vsel %vm1664, %v1663, %v1661
  %s1666 = scalar_lea.vmem %s0, 272
  %v1667 = vld [vmem:[%s1666] sm:$0x10]
  %vm1668 = vcmask 1044484
  %v1669 = vsel %vm1668, %v1667, %v1665
  %s1670 = scalar_lea.vmem %s0, 335
  %v1671 = vld [vmem:[%s1670] sm:$0x20]
  %vm1672 = vcmask 1045509
  %v1673 = vsel %vm1672, %v1671, %v1669
  %s1674 = scalar_lea.vmem %s0, 398
  %v1675 = vld [vmem:[%s1674] sm:$0x40]
  %vm1676 = vcmask 1046534
  %v1677 = vsel %vm1676, %v1675, %v1673
  %s1678 = scalar_lea.vmem %s0, 461
  %v1679 = vld [vmem:[%s1678] sm:$0x80]
  %vm1680 = vcmask 1047559
  %v1681 = vsel %vm1680, %v1679, %v1677
  %1682 = vrot.lane.b32.xlu0 %v1681, 32
  %v1683 = vpop.permute.xlu0 %1682
  %vm1684 = vcmask 326912
  %s1685 = scalar_lea.vmem %s1, 8
  %1686 = vst.msk [vmem:[%s1685] sm:$0xff] %vm1684, %v1683
  %s1687 = scalar_lea.vmem %s0, 36
  %v1688 = vld [vmem:[%s1687] sm:$0x1]
  %s1689 = scalar_lea.vmem %s0, 99
  %v1690 = vld [vmem:[%s1689] sm:$0x2]
  %vm1691 = vcmask 1041409
  %v1692 = vsel %vm1691, %v1690, %v1688
  %s1693 = scalar_lea.vmem %s0, 162
  %v1694 = vld [vmem:[%s1693] sm:$0x4]
  %vm1695 = vcmask 1042434
  %v1696 = vsel %vm1695, %v1694, %v1692
  %s1697 = scalar_lea.vmem %s0, 225
  %v1698 = vld [vmem:[%s1697] sm:$0x8]
  %vm1699 = vcmask 1043459
  %v1700 = vsel %vm1699, %v1698, %v1696
  %s1701 = scalar_lea.vmem %s0, 288
  %v1702 = vld [vmem:[%s1701] sm:$0x10]
  %vm1703 = vcmask 1044484
  %v1704 = vsel %vm1703, %v1702, %v1700
  %s1705 = scalar_lea.vmem %s0, 351
  %v1706 = vld [vmem:[%s1705] sm:$0x20]
  %vm1707 = vcmask 1045509
  %v1708 = vsel %vm1707, %v1706, %v1704
  %s1709 = scalar_lea.vmem %s0, 414
  %v1710 = vld [vmem:[%s1709] sm:$0x40]
  %vm1711 = vcmask 1046534
  %v1712 = vsel %vm1711, %v1710, %v1708
  %s1713 = scalar_lea.vmem %s0, 477
  %v1714 = vld [vmem:[%s1713] sm:$0x80]
  %vm1715 = vcmask 1047559
  %v1716 = vsel %vm1715, %v1714, %v1712
  %1717 = vrot.lane.b32.xlu0 %v1716, 32
  %v1718 = vpop.permute.xlu0 %1717
  %vm1719 = vcmask 326912
  %s1720 = scalar_lea.vmem %s1, 16
  %1721 = vst.msk [vmem:[%s1720] sm:$0xff] %vm1719, %v1718
  %s1722 = scalar_lea.vmem %s0, 52
  %v1723 = vld [vmem:[%s1722] sm:$0x1]
  %s1724 = scalar_lea.vmem %s0, 115
  %v1725 = vld [vmem:[%s1724] sm:$0x2]
  %vm1726 = vcmask 1041409
  %v1727 = vsel %vm1726, %v1725, %v1723
  %s1728 = scalar_lea.vmem %s0, 178
  %v1729 = vld [vmem:[%s1728] sm:$0x4]
  %vm1730 = vcmask 1042434
  %v1731 = vsel %vm1730, %v1729, %v1727
  %s1732 = scalar_lea.vmem %s0, 241
  %v1733 = vld [vmem:[%s1732] sm:$0x8]
  %vm1734 = vcmask 1043459
  %v1735 = vsel %vm1734, %v1733, %v1731
  %s1736 = scalar_lea.vmem %s0, 304
  %v1737 = vld [vmem:[%s1736] sm:$0x10]
  %vm1738 = vcmask 1044484
  %v1739 = vsel %vm1738, %v1737, %v1735
  %s1740 = scalar_lea.vmem %s0, 367
  %v1741 = vld [vmem:[%s1740] sm:$0x20]
  %vm1742 = vcmask 1045509
  %v1743 = vsel %vm1742, %v1741, %v1739
  %s1744 = scalar_lea.vmem %s0, 430
  %v1745 = vld [vmem:[%s1744] sm:$0x40]
  %vm1746 = vcmask 1046534
  %v1747 = vsel %vm1746, %v1745, %v1743
  %s1748 = scalar_lea.vmem %s0, 493
  %v1749 = vld [vmem:[%s1748] sm:$0x80]
  %vm1750 = vcmask 1047559
  %v1751 = vsel %vm1750, %v1749, %v1747
  %1752 = vrot.lane.b32.xlu0 %v1751, 32
  %v1753 = vpop.permute.xlu0 %1752
  %vm1754 = vcmask 326912
  %s1755 = scalar_lea.vmem %s1, 24
  %1756 = vst.msk [vmem:[%s1755] sm:$0xff] %vm1754, %v1753
  %s1757 = scalar_lea.vmem %s0, 3
  %v1758 = vld [vmem:[%s1757] sm:$0x1]
  %s1759 = scalar_lea.vmem %s0, 66
  %v1760 = vld [vmem:[%s1759] sm:$0x2]
  %vm1761 = vcmask 1041409
  %v1762 = vsel %vm1761, %v1760, %v1758
  %s1763 = scalar_lea.vmem %s0, 129
  %v1764 = vld [vmem:[%s1763] sm:$0x4]
  %vm1765 = vcmask 1042434
  %v1766 = vsel %vm1765, %v1764, %v1762
  %s1767 = scalar_lea.vmem %s0, 192
  %v1768 = vld [vmem:[%s1767] sm:$0x8]
  %vm1769 = vcmask 1043459
  %v1770 = vsel %vm1769, %v1768, %v1766
  %s1771 = scalar_lea.vmem %s0, 255
  %v1772 = vld [vmem:[%s1771] sm:$0x10]
  %vm1773 = vcmask 1044484
  %v1774 = vsel %vm1773, %v1772, %v1770
  %s1775 = scalar_lea.vmem %s0, 318
  %v1776 = vld [vmem:[%s1775] sm:$0x20]
  %vm1777 = vcmask 1045509
  %v1778 = vsel %vm1777, %v1776, %v1774
  %s1779 = scalar_lea.vmem %s0, 381
  %v1780 = vld [vmem:[%s1779] sm:$0x40]
  %vm1781 = vcmask 1046534
  %v1782 = vsel %vm1781, %v1780, %v1778
  %s1783 = scalar_lea.vmem %s0, 444
  %v1784 = vld [vmem:[%s1783] sm:$0x80]
  %vm1785 = vcmask 1047559
  %v1786 = vsel %vm1785, %v1784, %v1782
  %1787 = vrot.lane.b32.xlu0 %v1786, 24
  %v1788 = vpop.permute.xlu0 %1787
  %vm1789 = vcmask 261312
  %1790 = vst.msk [vmem:[%s1] sm:$0xff] %vm1789, %v1788
  %s1791 = scalar_lea.vmem %s0, 19
  %v1792 = vld [vmem:[%s1791] sm:$0x1]
  %s1793 = scalar_lea.vmem %s0, 82
  %v1794 = vld [vmem:[%s1793] sm:$0x2]
  %vm1795 = vcmask 1041409
  %v1796 = vsel %vm1795, %v1794, %v1792
  %s1797 = scalar_lea.vmem %s0, 145
  %v1798 = vld [vmem:[%s1797] sm:$0x4]
  %vm1799 = vcmask 1042434
  %v1800 = vsel %vm1799, %v1798, %v1796
  %s1801 = scalar_lea.vmem %s0, 208
  %v1802 = vld [vmem:[%s1801] sm:$0x8]
  %vm1803 = vcmask 1043459
  %v1804 = vsel %vm1803, %v1802, %v1800
  %s1805 = scalar_lea.vmem %s0, 271
  %v1806 = vld [vmem:[%s1805] sm:$0x10]
  %vm1807 = vcmask 1044484
  %v1808 = vsel %vm1807, %v1806, %v1804
  %s1809 = scalar_lea.vmem %s0, 334
  %v1810 = vld [vmem:[%s1809] sm:$0x20]
  %vm1811 = vcmask 1045509
  %v1812 = vsel %vm1811, %v1810, %v1808
  %s1813 = scalar_lea.vmem %s0, 397
  %v1814 = vld [vmem:[%s1813] sm:$0x40]
  %vm1815 = vcmask 1046534
  %v1816 = vsel %vm1815, %v1814, %v1812
  %s1817 = scalar_lea.vmem %s0, 460
  %v1818 = vld [vmem:[%s1817] sm:$0x80]
  %vm1819 = vcmask 1047559
  %v1820 = vsel %vm1819, %v1818, %v1816
  %1821 = vrot.lane.b32.xlu0 %v1820, 24
  %v1822 = vpop.permute.xlu0 %1821
  %vm1823 = vcmask 261312
  %s1824 = scalar_lea.vmem %s1, 8
  %1825 = vst.msk [vmem:[%s1824] sm:$0xff] %vm1823, %v1822
  %s1826 = scalar_lea.vmem %s0, 35
  %v1827 = vld [vmem:[%s1826] sm:$0x1]
  %s1828 = scalar_lea.vmem %s0, 98
  %v1829 = vld [vmem:[%s1828] sm:$0x2]
  %vm1830 = vcmask 1041409
  %v1831 = vsel %vm1830, %v1829, %v1827
  %s1832 = scalar_lea.vmem %s0, 161
  %v1833 = vld [vmem:[%s1832] sm:$0x4]
  %vm1834 = vcmask 1042434
  %v1835 = vsel %vm1834, %v1833, %v1831
  %s1836 = scalar_lea.vmem %s0, 224
  %v1837 = vld [vmem:[%s1836] sm:$0x8]
  %vm1838 = vcmask 1043459
  %v1839 = vsel %vm1838, %v1837, %v1835
  %s1840 = scalar_lea.vmem %s0, 287
  %v1841 = vld [vmem:[%s1840] sm:$0x10]
  %vm1842 = vcmask 1044484
  %v1843 = vsel %vm1842, %v1841, %v1839
  %s1844 = scalar_lea.vmem %s0, 350
  %v1845 = vld [vmem:[%s1844] sm:$0x20]
  %vm1846 = vcmask 1045509
  %v1847 = vsel %vm1846, %v1845, %v1843
  %s1848 = scalar_lea.vmem %s0, 413
  %v1849 = vld [vmem:[%s1848] sm:$0x40]
  %vm1850 = vcmask 1046534
  %v1851 = vsel %vm1850, %v1849, %v1847
  %s1852 = scalar_lea.vmem %s0, 476
  %v1853 = vld [vmem:[%s1852] sm:$0x80]
  %vm1854 = vcmask 1047559
  %v1855 = vsel %vm1854, %v1853, %v1851
  %1856 = vrot.lane.b32.xlu0 %v1855, 24
  %v1857 = vpop.permute.xlu0 %1856
  %vm1858 = vcmask 261312
  %s1859 = scalar_lea.vmem %s1, 16
  %1860 = vst.msk [vmem:[%s1859] sm:$0xff] %vm1858, %v1857
  %s1861 = scalar_lea.vmem %s0, 51
  %v1862 = vld [vmem:[%s1861] sm:$0x1]
  %s1863 = scalar_lea.vmem %s0, 114
  %v1864 = vld [vmem:[%s1863] sm:$0x2]
  %vm1865 = vcmask 1041409
  %v1866 = vsel %vm1865, %v1864, %v1862
  %s1867 = scalar_lea.vmem %s0, 177
  %v1868 = vld [vmem:[%s1867] sm:$0x4]
  %vm1869 = vcmask 1042434
  %v1870 = vsel %vm1869, %v1868, %v1866
  %s1871 = scalar_lea.vmem %s0, 240
  %v1872 = vld [vmem:[%s1871] sm:$0x8]
  %vm1873 = vcmask 1043459
  %v1874 = vsel %vm1873, %v1872, %v1870
  %s1875 = scalar_lea.vmem %s0, 303
  %v1876 = vld [vmem:[%s1875] sm:$0x10]
  %vm1877 = vcmask 1044484
  %v1878 = vsel %vm1877, %v1876, %v1874
  %s1879 = scalar_lea.vmem %s0, 366
  %v1880 = vld [vmem:[%s1879] sm:$0x20]
  %vm1881 = vcmask 1045509
  %v1882 = vsel %vm1881, %v1880, %v1878
  %s1883 = scalar_lea.vmem %s0, 429
  %v1884 = vld [vmem:[%s1883] sm:$0x40]
  %vm1885 = vcmask 1046534
  %v1886 = vsel %vm1885, %v1884, %v1882
  %s1887 = scalar_lea.vmem %s0, 492
  %v1888 = vld [vmem:[%s1887] sm:$0x80]
  %vm1889 = vcmask 1047559
  %v1890 = vsel %vm1889, %v1888, %v1886
  %1891 = vrot.lane.b32.xlu0 %v1890, 24
  %v1892 = vpop.permute.xlu0 %1891
  %vm1893 = vcmask 261312
  %s1894 = scalar_lea.vmem %s1, 24
  %1895 = vst.msk [vmem:[%s1894] sm:$0xff] %vm1893, %v1892
  %s1896 = scalar_lea.vmem %s0, 2
  %v1897 = vld [vmem:[%s1896] sm:$0x1]
  %s1898 = scalar_lea.vmem %s0, 65
  %v1899 = vld [vmem:[%s1898] sm:$0x2]
  %vm1900 = vcmask 1041409
  %v1901 = vsel %vm1900, %v1899, %v1897
  %s1902 = scalar_lea.vmem %s0, 128
  %v1903 = vld [vmem:[%s1902] sm:$0x4]
  %vm1904 = vcmask 1042434
  %v1905 = vsel %vm1904, %v1903, %v1901
  %s1906 = scalar_lea.vmem %s0, 191
  %v1907 = vld [vmem:[%s1906] sm:$0x8]
  %vm1908 = vcmask 1043459
  %v1909 = vsel %vm1908, %v1907, %v1905
  %s1910 = scalar_lea.vmem %s0, 254
  %v1911 = vld [vmem:[%s1910] sm:$0x10]
  %vm1912 = vcmask 1044484
  %v1913 = vsel %vm1912, %v1911, %v1909
  %s1914 = scalar_lea.vmem %s0, 317
  %v1915 = vld [vmem:[%s1914] sm:$0x20]
  %vm1916 = vcmask 1045509
  %v1917 = vsel %vm1916, %v1915, %v1913
  %s1918 = scalar_lea.vmem %s0, 380
  %v1919 = vld [vmem:[%s1918] sm:$0x40]
  %vm1920 = vcmask 1046534
  %v1921 = vsel %vm1920, %v1919, %v1917
  %s1922 = scalar_lea.vmem %s0, 443
  %v1923 = vld [vmem:[%s1922] sm:$0x80]
  %vm1924 = vcmask 1047559
  %v1925 = vsel %vm1924, %v1923, %v1921
  %1926 = vrot.lane.b32.xlu0 %v1925, 16
  %v1927 = vpop.permute.xlu0 %1926
  %vm1928 = vcmask 195712
  %1929 = vst.msk [vmem:[%s1] sm:$0xff] %vm1928, %v1927
  %s1930 = scalar_lea.vmem %s0, 18
  %v1931 = vld [vmem:[%s1930] sm:$0x1]
  %s1932 = scalar_lea.vmem %s0, 81
  %v1933 = vld [vmem:[%s1932] sm:$0x2]
  %vm1934 = vcmask 1041409
  %v1935 = vsel %vm1934, %v1933, %v1931
  %s1936 = scalar_lea.vmem %s0, 144
  %v1937 = vld [vmem:[%s1936] sm:$0x4]
  %vm1938 = vcmask 1042434
  %v1939 = vsel %vm1938, %v1937, %v1935
  %s1940 = scalar_lea.vmem %s0, 207
  %v1941 = vld [vmem:[%s1940] sm:$0x8]
  %vm1942 = vcmask 1043459
  %v1943 = vsel %vm1942, %v1941, %v1939
  %s1944 = scalar_lea.vmem %s0, 270
  %v1945 = vld [vmem:[%s1944] sm:$0x10]
  %vm1946 = vcmask 1044484
  %v1947 = vsel %vm1946, %v1945, %v1943
  %s1948 = scalar_lea.vmem %s0, 333
  %v1949 = vld [vmem:[%s1948] sm:$0x20]
  %vm1950 = vcmask 1045509
  %v1951 = vsel %vm1950, %v1949, %v1947
  %s1952 = scalar_lea.vmem %s0, 396
  %v1953 = vld [vmem:[%s1952] sm:$0x40]
  %vm1954 = vcmask 1046534
  %v1955 = vsel %vm1954, %v1953, %v1951
  %s1956 = scalar_lea.vmem %s0, 459
  %v1957 = vld [vmem:[%s1956] sm:$0x80]
  %vm1958 = vcmask 1047559
  %v1959 = vsel %vm1958, %v1957, %v1955
  %1960 = vrot.lane.b32.xlu0 %v1959, 16
  %v1961 = vpop.permute.xlu0 %1960
  %vm1962 = vcmask 195712
  %s1963 = scalar_lea.vmem %s1, 8
  %1964 = vst.msk [vmem:[%s1963] sm:$0xff] %vm1962, %v1961
  %s1965 = scalar_lea.vmem %s0, 34
  %v1966 = vld [vmem:[%s1965] sm:$0x1]
  %s1967 = scalar_lea.vmem %s0, 97
  %v1968 = vld [vmem:[%s1967] sm:$0x2]
  %vm1969 = vcmask 1041409
  %v1970 = vsel %vm1969, %v1968, %v1966
  %s1971 = scalar_lea.vmem %s0, 160
  %v1972 = vld [vmem:[%s1971] sm:$0x4]
  %vm1973 = vcmask 1042434
  %v1974 = vsel %vm1973, %v1972, %v1970
  %s1975 = scalar_lea.vmem %s0, 223
  %v1976 = vld [vmem:[%s1975] sm:$0x8]
  %vm1977 = vcmask 1043459
  %v1978 = vsel %vm1977, %v1976, %v1974
  %s1979 = scalar_lea.vmem %s0, 286
  %v1980 = vld [vmem:[%s1979] sm:$0x10]
  %vm1981 = vcmask 1044484
  %v1982 = vsel %vm1981, %v1980, %v1978
  %s1983 = scalar_lea.vmem %s0, 349
  %v1984 = vld [vmem:[%s1983] sm:$0x20]
  %vm1985 = vcmask 1045509
  %v1986 = vsel %vm1985, %v1984, %v1982
  %s1987 = scalar_lea.vmem %s0, 412
  %v1988 = vld [vmem:[%s1987] sm:$0x40]
  %vm1989 = vcmask 1046534
  %v1990 = vsel %vm1989, %v1988, %v1986
  %s1991 = scalar_lea.vmem %s0, 475
  %v1992 = vld [vmem:[%s1991] sm:$0x80]
  %vm1993 = vcmask 1047559
  %v1994 = vsel %vm1993, %v1992, %v1990
  %1995 = vrot.lane.b32.xlu0 %v1994, 16
  %v1996 = vpop.permute.xlu0 %1995
  %vm1997 = vcmask 195712
  %s1998 = scalar_lea.vmem %s1, 16
  %1999 = vst.msk [vmem:[%s1998] sm:$0xff] %vm1997, %v1996
  %s2000 = scalar_lea.vmem %s0, 50
  %v2001 = vld [vmem:[%s2000] sm:$0x1]
  %s2002 = scalar_lea.vmem %s0, 113
  %v2003 = vld [vmem:[%s2002] sm:$0x2]
  %vm2004 = vcmask 1041409
  %v2005 = vsel %vm2004, %v2003, %v2001
  %s2006 = scalar_lea.vmem %s0, 176
  %v2007 = vld [vmem:[%s2006] sm:$0x4]
  %vm2008 = vcmask 1042434
  %v2009 = vsel %vm2008, %v2007, %v2005
  %s2010 = scalar_lea.vmem %s0, 239
  %v2011 = vld [vmem:[%s2010] sm:$0x8]
  %vm2012 = vcmask 1043459
  %v2013 = vsel %vm2012, %v2011, %v2009
  %s2014 = scalar_lea.vmem %s0, 302
  %v2015 = vld [vmem:[%s2014] sm:$0x10]
  %vm2016 = vcmask 1044484
  %v2017 = vsel %vm2016, %v2015, %v2013
  %s2018 = scalar_lea.vmem %s0, 365
  %v2019 = vld [vmem:[%s2018] sm:$0x20]
  %vm2020 = vcmask 1045509
  %v2021 = vsel %vm2020, %v2019, %v2017
  %s2022 = scalar_lea.vmem %s0, 428
  %v2023 = vld [vmem:[%s2022] sm:$0x40]
  %vm2024 = vcmask 1046534
  %v2025 = vsel %vm2024, %v2023, %v2021
  %s2026 = scalar_lea.vmem %s0, 491
  %v2027 = vld [vmem:[%s2026] sm:$0x80]
  %vm2028 = vcmask 1047559
  %v2029 = vsel %vm2028, %v2027, %v2025
  %2030 = vrot.lane.b32.xlu0 %v2029, 16
  %v2031 = vpop.permute.xlu0 %2030
  %vm2032 = vcmask 195712
  %s2033 = scalar_lea.vmem %s1, 24
  %2034 = vst.msk [vmem:[%s2033] sm:$0xff] %vm2032, %v2031
  %s2035 = scalar_lea.vmem %s0, 1
  %v2036 = vld [vmem:[%s2035] sm:$0x1]
  %s2037 = scalar_lea.vmem %s0, 64
  %v2038 = vld [vmem:[%s2037] sm:$0x2]
  %vm2039 = vcmask 1041409
  %v2040 = vsel %vm2039, %v2038, %v2036
  %s2041 = scalar_lea.vmem %s0, 127
  %v2042 = vld [vmem:[%s2041] sm:$0x4]
  %vm2043 = vcmask 1042434
  %v2044 = vsel %vm2043, %v2042, %v2040
  %s2045 = scalar_lea.vmem %s0, 190
  %v2046 = vld [vmem:[%s2045] sm:$0x8]
  %vm2047 = vcmask 1043459
  %v2048 = vsel %vm2047, %v2046, %v2044
  %s2049 = scalar_lea.vmem %s0, 253
  %v2050 = vld [vmem:[%s2049] sm:$0x10]
  %vm2051 = vcmask 1044484
  %v2052 = vsel %vm2051, %v2050, %v2048
  %s2053 = scalar_lea.vmem %s0, 316
  %v2054 = vld [vmem:[%s2053] sm:$0x20]
  %vm2055 = vcmask 1045509
  %v2056 = vsel %vm2055, %v2054, %v2052
  %s2057 = scalar_lea.vmem %s0, 379
  %v2058 = vld [vmem:[%s2057] sm:$0x40]
  %vm2059 = vcmask 1046534
  %v2060 = vsel %vm2059, %v2058, %v2056
  %s2061 = scalar_lea.vmem %s0, 442
  %v2062 = vld [vmem:[%s2061] sm:$0x80]
  %vm2063 = vcmask 1047559
  %v2064 = vsel %vm2063, %v2062, %v2060
  %2065 = vrot.lane.b32.xlu0 %v2064, 8
  %v2066 = vpop.permute.xlu0 %2065
  %vm2067 = vcmask 130112
  %2068 = vst.msk [vmem:[%s1] sm:$0xff] %vm2067, %v2066
  %s2069 = scalar_lea.vmem %s0, 17
  %v2070 = vld [vmem:[%s2069] sm:$0x1]
  %s2071 = scalar_lea.vmem %s0, 80
  %v2072 = vld [vmem:[%s2071] sm:$0x2]
  %vm2073 = vcmask 1041409
  %v2074 = vsel %vm2073, %v2072, %v2070
  %s2075 = scalar_lea.vmem %s0, 143
  %v2076 = vld [vmem:[%s2075] sm:$0x4]
  %vm2077 = vcmask 1042434
  %v2078 = vsel %vm2077, %v2076, %v2074
  %s2079 = scalar_lea.vmem %s0, 206
  %v2080 = vld [vmem:[%s2079] sm:$0x8]
  %vm2081 = vcmask 1043459
  %v2082 = vsel %vm2081, %v2080, %v2078
  %s2083 = scalar_lea.vmem %s0, 269
  %v2084 = vld [vmem:[%s2083] sm:$0x10]
  %vm2085 = vcmask 1044484
  %v2086 = vsel %vm2085, %v2084, %v2082
  %s2087 = scalar_lea.vmem %s0, 332
  %v2088 = vld [vmem:[%s2087] sm:$0x20]
  %vm2089 = vcmask 1045509
  %v2090 = vsel %vm2089, %v2088, %v2086
  %s2091 = scalar_lea.vmem %s0, 395
  %v2092 = vld [vmem:[%s2091] sm:$0x40]
  %vm2093 = vcmask 1046534
  %v2094 = vsel %vm2093, %v2092, %v2090
  %s2095 = scalar_lea.vmem %s0, 458
  %v2096 = vld [vmem:[%s2095] sm:$0x80]
  %vm2097 = vcmask 1047559
  %v2098 = vsel %vm2097, %v2096, %v2094
  %2099 = vrot.lane.b32.xlu0 %v2098, 8
  %v2100 = vpop.permute.xlu0 %2099
  %vm2101 = vcmask 130112
  %s2102 = scalar_lea.vmem %s1, 8
  %2103 = vst.msk [vmem:[%s2102] sm:$0xff] %vm2101, %v2100
  %s2104 = scalar_lea.vmem %s0, 33
  %v2105 = vld [vmem:[%s2104] sm:$0x1]
  %s2106 = scalar_lea.vmem %s0, 96
  %v2107 = vld [vmem:[%s2106] sm:$0x2]
  %vm2108 = vcmask 1041409
  %v2109 = vsel %vm2108, %v2107, %v2105
  %s2110 = scalar_lea.vmem %s0, 159
  %v2111 = vld [vmem:[%s2110] sm:$0x4]
  %vm2112 = vcmask 1042434
  %v2113 = vsel %vm2112, %v2111, %v2109
  %s2114 = scalar_lea.vmem %s0, 222
  %v2115 = vld [vmem:[%s2114] sm:$0x8]
  %vm2116 = vcmask 1043459
  %v2117 = vsel %vm2116, %v2115, %v2113
  %s2118 = scalar_lea.vmem %s0, 285
  %v2119 = vld [vmem:[%s2118] sm:$0x10]
  %vm2120 = vcmask 1044484
  %v2121 = vsel %vm2120, %v2119, %v2117
  %s2122 = scalar_lea.vmem %s0, 348
  %v2123 = vld [vmem:[%s2122] sm:$0x20]
  %vm2124 = vcmask 1045509
  %v2125 = vsel %vm2124, %v2123, %v2121
  %s2126 = scalar_lea.vmem %s0, 411
  %v2127 = vld [vmem:[%s2126] sm:$0x40]
  %vm2128 = vcmask 1046534
  %v2129 = vsel %vm2128, %v2127, %v2125
  %s2130 = scalar_lea.vmem %s0, 474
  %v2131 = vld [vmem:[%s2130] sm:$0x80]
  %vm2132 = vcmask 1047559
  %v2133 = vsel %vm2132, %v2131, %v2129
  %2134 = vrot.lane.b32.xlu0 %v2133, 8
  %v2135 = vpop.permute.xlu0 %2134
  %vm2136 = vcmask 130112
  %s2137 = scalar_lea.vmem %s1, 16
  %2138 = vst.msk [vmem:[%s2137] sm:$0xff] %vm2136, %v2135
  %s2139 = scalar_lea.vmem %s0, 49
  %v2140 = vld [vmem:[%s2139] sm:$0x1]
  %s2141 = scalar_lea.vmem %s0, 112
  %v2142 = vld [vmem:[%s2141] sm:$0x2]
  %vm2143 = vcmask 1041409
  %v2144 = vsel %vm2143, %v2142, %v2140
  %s2145 = scalar_lea.vmem %s0, 175
  %v2146 = vld [vmem:[%s2145] sm:$0x4]
  %vm2147 = vcmask 1042434
  %v2148 = vsel %vm2147, %v2146, %v2144
  %s2149 = scalar_lea.vmem %s0, 238
  %v2150 = vld [vmem:[%s2149] sm:$0x8]
  %vm2151 = vcmask 1043459
  %v2152 = vsel %vm2151, %v2150, %v2148
  %s2153 = scalar_lea.vmem %s0, 301
  %v2154 = vld [vmem:[%s2153] sm:$0x10]
  %vm2155 = vcmask 1044484
  %v2156 = vsel %vm2155, %v2154, %v2152
  %s2157 = scalar_lea.vmem %s0, 364
  %v2158 = vld [vmem:[%s2157] sm:$0x20]
  %vm2159 = vcmask 1045509
  %v2160 = vsel %vm2159, %v2158, %v2156
  %s2161 = scalar_lea.vmem %s0, 427
  %v2162 = vld [vmem:[%s2161] sm:$0x40]
  %vm2163 = vcmask 1046534
  %v2164 = vsel %vm2163, %v2162, %v2160
  %s2165 = scalar_lea.vmem %s0, 490
  %v2166 = vld [vmem:[%s2165] sm:$0x80]
  %vm2167 = vcmask 1047559
  %v2168 = vsel %vm2167, %v2166, %v2164
  %2169 = vrot.lane.b32.xlu0 %v2168, 8
  %v2170 = vpop.permute.xlu0 %2169
  %vm2171 = vcmask 130112
  %s2172 = scalar_lea.vmem %s1, 24
  %2173 = vst.msk [vmem:[%s2172] sm:$0xff] %vm2171, %v2170

// kernel: double_conv.1
$region0: #{double_conv.1}
  #allocation0 [shape = 'u32[]', space=smem, size = 0x4, offset = 0x4, fixed_abs, tag = 'smem constant byte address 0x4 - core index']
  #allocation1 [shape = 'u32[144,128]{1,0:T(1,128)}', space=vmem, size = 0x12000, scoped, tag = 'internal scratch']
  %s0 = inlined_call_operand.vmem [shape: f32[16,256], index: 0, kind: input, shape index: {}]
  %s1 = inlined_call_operand.vmem [shape: f32[3,256,512], index: 1, kind: input, shape index: {}]
  %s2 = inlined_call_operand.vmem [shape: f32[3,512,512], index: 2, kind: input, shape index: {}]
  %s3 = inlined_call_operand.vmem [shape: f32[16,16], index: 3, kind: input, shape index: {}]
  %s4 = inlined_call_operand.vmem [shape: f32[16,16], index: 4, kind: input, shape index: {}]
  %s5 = inlined_call_operand.vmem [shape: f32[512,8], index: 5, kind: input, shape index: {}]
  %s6 = inlined_call_operand.vmem [shape: f32[8,512], index: 6, kind: input, shape index: {}]
  %s7 = inlined_call_operand.vmem [shape: f32[1,8], index: 7, kind: input, shape index: {}]
  %s8 = inlined_call_operand.vmem [shape: f32[1,8], index: 8, kind: input, shape index: {}]
  %s9 = inlined_call_operand.vmem [shape: f32[1,8], index: 9, kind: input, shape index: {}]
  %s10 = inlined_call_operand.vmem [shape: f32[1,8], index: 10, kind: input, shape index: {}]
  %s11 = inlined_call_operand.vmem [shape: f32[16,512], index: 11, kind: output, shape index: {}]
  %s12 = sld [smem:[#allocation0]]
  $region54: #{double_conv.1} parent=0
    _
  %s14 = ssub.s32 1, %s12
  %s15 = scalar_select 0, %s14, %s12
  // Predicated region
  $region2: #{double_conv.1} parent=0 // pred_check
    _
  $region3: #{double_conv.1} parent=0 // pred_check_branch
    %17 = sbr.rel (0) target = $region5
  $region4: #{double_conv.1} parent=0 // pred_region
    _
  $region5: #{double_conv.1} parent=0 // pred_fallthru
    _
  // Predicated region
  $region6: #{double_conv.1} parent=0 // pred_check
    _
  $region7: #{double_conv.1} parent=0 // pred_check_branch
    %19 = sbr.rel (0) target = $region9
  $region8: #{double_conv.1} parent=0 // pred_region
    _
  $region9: #{double_conv.1} parent=0 // pred_fallthru
    _
  // Predicated region
  $region10: #{double_conv.1} parent=0 // pred_check
    _
  $region11: #{double_conv.1} parent=0 // pred_check_branch
    %21 = sbr.rel (0) target = $region13
  $region12: #{double_conv.1} parent=0 // pred_region
    _
  $region13: #{double_conv.1} parent=0 // pred_fallthru
    _
  // Predicated region
  $region14: #{double_conv.1} parent=0 // pred_check
    _
  $region15: #{double_conv.1} parent=0 // pred_check_branch
    %23 = sbr.rel (0) target = $region17
  $region16: #{double_conv.1} parent=0 // pred_region
    _
  $region17: #{double_conv.1} parent=0 // pred_fallthru
    _
  // Predicated region
  $region18: #{double_conv.1} parent=0 // pred_check
    _
  $region19: #{double_conv.1} parent=0 // pred_check_branch
    %25 = sbr.rel (0) target = $region21
  $region20: #{double_conv.1} parent=0 // pred_region
    _
  $region21: #{double_conv.1} parent=0 // pred_fallthru
    _
  // Predicated region
  $region22: #{double_conv.1} parent=0 // pred_check
    _
  $region23: #{double_conv.1} parent=0 // pred_check_branch
    %27 = sbr.rel (0) target = $region25
  $region24: #{double_conv.1} parent=0 // pred_region
    _
  $region25: #{double_conv.1} parent=0 // pred_fallthru
    _
  // Predicated region
  $region26: #{double_conv.1} parent=0 // pred_check
    _
  $region27: #{double_conv.1} parent=0 // pred_check_branch
    %29 = sbr.rel (0) target = $region29
  $region28: #{double_conv.1} parent=0 // pred_region
    _
  $region29: #{double_conv.1} parent=0 // pred_fallthru
    _
  // Predicated region
  $region30: #{double_conv.1} parent=0 // pred_check
    _
  $region31: #{double_conv.1} parent=0 // pred_check_branch
    %31 = sbr.rel (0) target = $region33
  $region32: #{double_conv.1} parent=0 // pred_region
    _
  $region33: #{double_conv.1} parent=0 // pred_fallthru
    _
  // Predicated region
  $region34: #{double_conv.1} parent=0 // pred_check
    _
  $region35: #{double_conv.1} parent=0 // pred_check_branch
    %33 = sbr.rel (0) target = $region37
  $region36: #{double_conv.1} parent=0 // pred_region
    _
  $region37: #{double_conv.1} parent=0 // pred_fallthru
    _
  // Predicated region
  $region38: #{double_conv.1} parent=0 // pred_check
    _
  $region39: #{double_conv.1} parent=0 // pred_check_branch
    %35 = sbr.rel (0) target = $region41
  $region40: #{double_conv.1} parent=0 // pred_region
    _
  $region41: #{double_conv.1} parent=0 // pred_fallthru
    _
  // Predicated region
  $region42: #{double_conv.1} parent=0 // pred_check
    _
  $region43: #{double_conv.1} parent=0 // pred_check_branch
    %37 = sbr.rel (0) target = $region45
  $region44: #{double_conv.1} parent=0 // pred_region
    _
  $region45: #{double_conv.1} parent=0 // pred_fallthru
    _
  %v38 = vld [vmem:[%s3] sm:$0xff]
  %v39 = vld [vmem:[%s3 + $0x8] sm:$0xff]
  %v40 = vld [vmem:[%s4] sm:$0xff]
  %v41 = vld [vmem:[%s4 + $0x8] sm:$0xff]
  %v42 = vld [vmem:[%s5] sm:$0xff]
  %v43 = vld [vmem:[%s5 + $0x8] sm:$0xff]
  %v44 = vld [vmem:[%s5 + $0x10] sm:$0xff]
  %v45 = vld [vmem:[%s5 + $0x18] sm:$0xff]
  %v46 = vld [vmem:[%s5 + $0x20] sm:$0xff]
  %v47 = vld [vmem:[%s5 + $0x28] sm:$0xff]
  %v48 = vld [vmem:[%s5 + $0x30] sm:$0xff]
  %v49 = vld [vmem:[%s5 + $0x38] sm:$0xff]
  %v50 = vld [vmem:[%s5 + $0x40] sm:$0xff]
  %v51 = vld [vmem:[%s5 + $0x48] sm:$0xff]
  %v52 = vld [vmem:[%s5 + $0x50] sm:$0xff]
  %v53 = vld [vmem:[%s5 + $0x58] sm:$0xff]
  %v54 = vld [vmem:[%s5 + $0x60] sm:$0xff]
  %v55 = vld [vmem:[%s5 + $0x68] sm:$0xff]
  %v56 = vld [vmem:[%s5 + $0x70] sm:$0xff]
  %v57 = vld [vmem:[%s5 + $0x78] sm:$0xff]
  %v58 = vld [vmem:[%s5 + $0x80] sm:$0xff]
  %v59 = vld [vmem:[%s5 + $0x88] sm:$0xff]
  %v60 = vld [vmem:[%s5 + $0x90] sm:$0xff]
  %v61 = vld [vmem:[%s5 + $0x98] sm:$0xff]
  %v62 = vld [vmem:[%s5 + $0xa0] sm:$0xff]
  %v63 = vld [vmem:[%s5 + $0xa8] sm:$0xff]
  %v64 = vld [vmem:[%s5 + $0xb0] sm:$0xff]
  %v65 = vld [vmem:[%s5 + $0xb8] sm:$0xff]
  %v66 = vld [vmem:[%s5 + $0xc0] sm:$0xff]
  %v67 = vld [vmem:[%s5 + $0xc8] sm:$0xff]
  %v68 = vld [vmem:[%s5 + $0xd0] sm:$0xff]
  %v69 = vld [vmem:[%s5 + $0xd8] sm:$0xff]
  %v70 = vld [vmem:[%s5 + $0xe0] sm:$0xff]
  %v71 = vld [vmem:[%s5 + $0xe8] sm:$0xff]
  %v72 = vld [vmem:[%s5 + $0xf0] sm:$0xff]
  %v73 = vld [vmem:[%s5 + $0xf8] sm:$0xff]
  %v74 = vld [vmem:[%s5 + $0x100] sm:$0xff]
  %v75 = vld [vmem:[%s5 + $0x108] sm:$0xff]
  %v76 = vld [vmem:[%s5 + $0x110] sm:$0xff]
  %v77 = vld [vmem:[%s5 + $0x118] sm:$0xff]
  %v78 = vld [vmem:[%s5 + $0x120] sm:$0xff]
  %v79 = vld [vmem:[%s5 + $0x128] sm:$0xff]
  %v80 = vld [vmem:[%s5 + $0x130] sm:$0xff]
  %v81 = vld [vmem:[%s5 + $0x138] sm:$0xff]
  %v82 = vld [vmem:[%s5 + $0x140] sm:$0xff]
  %v83 = vld [vmem:[%s5 + $0x148] sm:$0xff]
  %v84 = vld [vmem:[%s5 + $0x150] sm:$0xff]
  %v85 = vld [vmem:[%s5 + $0x158] sm:$0xff]
  %v86 = vld [vmem:[%s5 + $0x160] sm:$0xff]
  %v87 = vld [vmem:[%s5 + $0x168] sm:$0xff]
  %v88 = vld [vmem:[%s5 + $0x170] sm:$0xff]
  %v89 = vld [vmem:[%s5 + $0x178] sm:$0xff]
  %v90 = vld [vmem:[%s5 + $0x180] sm:$0xff]
  %v91 = vld [vmem:[%s5 + $0x188] sm:$0xff]
  %v92 = vld [vmem:[%s5 + $0x190] sm:$0xff]
  %v93 = vld [vmem:[%s5 + $0x198] sm:$0xff]
  %v94 = vld [vmem:[%s5 + $0x1a0] sm:$0xff]
  %v95 = vld [vmem:[%s5 + $0x1a8] sm:$0xff]
  %v96 = vld [vmem:[%s5 + $0x1b0] sm:$0xff]
  %v97 = vld [vmem:[%s5 + $0x1b8] sm:$0xff]
  %v98 = vld [vmem:[%s5 + $0x1c0] sm:$0xff]
  %v99 = vld [vmem:[%s5 + $0x1c8] sm:$0xff]
  %v100 = vld [vmem:[%s5 + $0x1d0] sm:$0xff]
  %v101 = vld [vmem:[%s5 + $0x1d8] sm:$0xff]
  %v102 = vld [vmem:[%s5 + $0x1e0] sm:$0xff]
  %v103 = vld [vmem:[%s5 + $0x1e8] sm:$0xff]
  %v104 = vld [vmem:[%s5 + $0x1f0] sm:$0xff]
  %v105 = vld [vmem:[%s5 + $0x1f8] sm:$0xff]
  %v106 = vld [vmem:[%s6] sm:$0xff]
  %v107 = vld [vmem:[%s6 + $0x8] sm:$0xff]
  %v108 = vld [vmem:[%s6 + $0x10] sm:$0xff]
  %v109 = vld [vmem:[%s6 + $0x18] sm:$0xff]
  %v110 = vld [vmem:[%s0] sm:$0xff]
  %v111 = vld [vmem:[%s0 + $0x8] sm:$0xff]
  %v112 = vld [vmem:[%s0 + $0x10] sm:$0xff]
  %v113 = vld [vmem:[%s0 + $0x18] sm:$0xff]
  %v114 = vld [vmem:[%s1] sm:$0xff]
  %v115 = vld [vmem:[%s1 + $0x8] sm:$0xff]
  %v116 = vld [vmem:[%s1 + $0x10] sm:$0xff]
  %v117 = vld [vmem:[%s1 + $0x18] sm:$0xff]
  %v118 = vld [vmem:[%s1 + $0x20] sm:$0xff]
  %v119 = vld [vmem:[%s1 + $0x28] sm:$0xff]
  %v120 = vld [vmem:[%s1 + $0x30] sm:$0xff]
  %v121 = vld [vmem:[%s1 + $0x38] sm:$0xff]
  %v122 = vld [vmem:[%s1 + $0x40] sm:$0xff]
  %v123 = vld [vmem:[%s1 + $0x48] sm:$0xff]
  %v124 = vld [vmem:[%s1 + $0x50] sm:$0xff]
  %v125 = vld [vmem:[%s1 + $0x58] sm:$0xff]
  %v126 = vld [vmem:[%s1 + $0x60] sm:$0xff]
  %v127 = vld [vmem:[%s1 + $0x68] sm:$0xff]
  %v128 = vld [vmem:[%s1 + $0x70] sm:$0xff]
  %v129 = vld [vmem:[%s1 + $0x78] sm:$0xff]
  %v130 = vld [vmem:[%s1 + $0x80] sm:$0xff]
  %v131 = vld [vmem:[%s1 + $0x88] sm:$0xff]
  %v132 = vld [vmem:[%s1 + $0x90] sm:$0xff]
  %v133 = vld [vmem:[%s1 + $0x98] sm:$0xff]
  %v134 = vld [vmem:[%s1 + $0xa0] sm:$0xff]
  %v135 = vld [vmem:[%s1 + $0xa8] sm:$0xff]
  %v136 = vld [vmem:[%s1 + $0xb0] sm:$0xff]
  %v137 = vld [vmem:[%s1 + $0xb8] sm:$0xff]
  %v138 = vld [vmem:[%s1 + $0xc0] sm:$0xff]
  %v139 = vld [vmem:[%s1 + $0xc8] sm:$0xff]
  %v140 = vld [vmem:[%s1 + $0xd0] sm:$0xff]
  %v141 = vld [vmem:[%s1 + $0xd8] sm:$0xff]
  %v142 = vld [vmem:[%s1 + $0xe0] sm:$0xff]
  %v143 = vld [vmem:[%s1 + $0xe8] sm:$0xff]
  %v144 = vld [vmem:[%s1 + $0xf0] sm:$0xff]
  %v145 = vld [vmem:[%s1 + $0xf8] sm:$0xff]
  %v146 = vld [vmem:[%s1 + $0x100] sm:$0xff]
  %v147 = vld [vmem:[%s1 + $0x108] sm:$0xff]
  %v148 = vld [vmem:[%s1 + $0x110] sm:$0xff]
  %v149 = vld [vmem:[%s1 + $0x118] sm:$0xff]
  %v150 = vld [vmem:[%s1 + $0x120] sm:$0xff]
  %v151 = vld [vmem:[%s1 + $0x128] sm:$0xff]
  %v152 = vld [vmem:[%s1 + $0x130] sm:$0xff]
  %v153 = vld [vmem:[%s1 + $0x138] sm:$0xff]
  %v154 = vld [vmem:[%s1 + $0x140] sm:$0xff]
  %v155 = vld [vmem:[%s1 + $0x148] sm:$0xff]
  %v156 = vld [vmem:[%s1 + $0x150] sm:$0xff]
  %v157 = vld [vmem:[%s1 + $0x158] sm:$0xff]
  %v158 = vld [vmem:[%s1 + $0x160] sm:$0xff]
  %v159 = vld [vmem:[%s1 + $0x168] sm:$0xff]
  %v160 = vld [vmem:[%s1 + $0x170] sm:$0xff]
  %v161 = vld [vmem:[%s1 + $0x178] sm:$0xff]
  %v162 = vld [vmem:[%s1 + $0x180] sm:$0xff]
  %v163 = vld [vmem:[%s1 + $0x188] sm:$0xff]
  %v164 = vld [vmem:[%s1 + $0x190] sm:$0xff]
  %v165 = vld [vmem:[%s1 + $0x198] sm:$0xff]
  %v166 = vld [vmem:[%s1 + $0x1a0] sm:$0xff]
  %v167 = vld [vmem:[%s1 + $0x1a8] sm:$0xff]
  %v168 = vld [vmem:[%s1 + $0x1b0] sm:$0xff]
  %v169 = vld [vmem:[%s1 + $0x1b8] sm:$0xff]
  %v170 = vld [vmem:[%s1 + $0x1c0] sm:$0xff]
  %v171 = vld [vmem:[%s1 + $0x1c8] sm:$0xff]
  %v172 = vld [vmem:[%s1 + $0x1d0] sm:$0xff]
  %v173 = vld [vmem:[%s1 + $0x1d8] sm:$0xff]
  %v174 = vld [vmem:[%s1 + $0x1e0] sm:$0xff]
  %v175 = vld [vmem:[%s1 + $0x1e8] sm:$0xff]
  %v176 = vld [vmem:[%s1 + $0x1f0] sm:$0xff]
  %v177 = vld [vmem:[%s1 + $0x1f8] sm:$0xff]
  %v178 = vld [vmem:[%s1 + $0x200] sm:$0xff]
  %v179 = vld [vmem:[%s1 + $0x208] sm:$0xff]
  %v180 = vld [vmem:[%s1 + $0x210] sm:$0xff]
  %v181 = vld [vmem:[%s1 + $0x218] sm:$0xff]
  %v182 = vld [vmem:[%s1 + $0x220] sm:$0xff]
  %v183 = vld [vmem:[%s1 + $0x228] sm:$0xff]
  %v184 = vld [vmem:[%s1 + $0x230] sm:$0xff]
  %v185 = vld [vmem:[%s1 + $0x238] sm:$0xff]
  %v186 = vld [vmem:[%s1 + $0x240] sm:$0xff]
  %v187 = vld [vmem:[%s1 + $0x248] sm:$0xff]
  %v188 = vld [vmem:[%s1 + $0x250] sm:$0xff]
  %v189 = vld [vmem:[%s1 + $0x258] sm:$0xff]
  %v190 = vld [vmem:[%s1 + $0x260] sm:$0xff]
  %v191 = vld [vmem:[%s1 + $0x268] sm:$0xff]
  %v192 = vld [vmem:[%s1 + $0x270] sm:$0xff]
  %v193 = vld [vmem:[%s1 + $0x278] sm:$0xff]
  %v194 = vld [vmem:[%s1 + $0x280] sm:$0xff]
  %v195 = vld [vmem:[%s1 + $0x288] sm:$0xff]
  %v196 = vld [vmem:[%s1 + $0x290] sm:$0xff]
  %v197 = vld [vmem:[%s1 + $0x298] sm:$0xff]
  %v198 = vld [vmem:[%s1 + $0x2a0] sm:$0xff]
  %v199 = vld [vmem:[%s1 + $0x2a8] sm:$0xff]
  %v200 = vld [vmem:[%s1 + $0x2b0] sm:$0xff]
  %v201 = vld [vmem:[%s1 + $0x2b8] sm:$0xff]
  %v202 = vld [vmem:[%s1 + $0x2c0] sm:$0xff]
  %v203 = vld [vmem:[%s1 + $0x2c8] sm:$0xff]
  %v204 = vld [vmem:[%s1 + $0x2d0] sm:$0xff]
  %v205 = vld [vmem:[%s1 + $0x2d8] sm:$0xff]
  %v206 = vld [vmem:[%s1 + $0x2e0] sm:$0xff]
  %v207 = vld [vmem:[%s1 + $0x2e8] sm:$0xff]
  %v208 = vld [vmem:[%s1 + $0x2f0] sm:$0xff]
  %v209 = vld [vmem:[%s1 + $0x2f8] sm:$0xff]
  %v210 = vld [vmem:[%s1 + $0x300] sm:$0xff]
  %v211 = vld [vmem:[%s1 + $0x308] sm:$0xff]
  %v212 = vld [vmem:[%s1 + $0x310] sm:$0xff]
  %v213 = vld [vmem:[%s1 + $0x318] sm:$0xff]
  %v214 = vld [vmem:[%s1 + $0x320] sm:$0xff]
  %v215 = vld [vmem:[%s1 + $0x328] sm:$0xff]
  %v216 = vld [vmem:[%s1 + $0x330] sm:$0xff]
  %v217 = vld [vmem:[%s1 + $0x338] sm:$0xff]
  %v218 = vld [vmem:[%s1 + $0x340] sm:$0xff]
  %v219 = vld [vmem:[%s1 + $0x348] sm:$0xff]
  %v220 = vld [vmem:[%s1 + $0x350] sm:$0xff]
  %v221 = vld [vmem:[%s1 + $0x358] sm:$0xff]
  %v222 = vld [vmem:[%s1 + $0x360] sm:$0xff]
  %v223 = vld [vmem:[%s1 + $0x368] sm:$0xff]
  %v224 = vld [vmem:[%s1 + $0x370] sm:$0xff]
  %v225 = vld [vmem:[%s1 + $0x378] sm:$0xff]
  %v226 = vld [vmem:[%s1 + $0x380] sm:$0xff]
  %v227 = vld [vmem:[%s1 + $0x388] sm:$0xff]
  %v228 = vld [vmem:[%s1 + $0x390] sm:$0xff]
  %v229 = vld [vmem:[%s1 + $0x398] sm:$0xff]
  %v230 = vld [vmem:[%s1 + $0x3a0] sm:$0xff]
  %v231 = vld [vmem:[%s1 + $0x3a8] sm:$0xff]
  %v232 = vld [vmem:[%s1 + $0x3b0] sm:$0xff]
  %v233 = vld [vmem:[%s1 + $0x3b8] sm:$0xff]
  %v234 = vld [vmem:[%s1 + $0x3c0] sm:$0xff]
  %v235 = vld [vmem:[%s1 + $0x3c8] sm:$0xff]
  %v236 = vld [vmem:[%s1 + $0x3d0] sm:$0xff]
  %v237 = vld [vmem:[%s1 + $0x3d8] sm:$0xff]
  %v238 = vld [vmem:[%s1 + $0x3e0] sm:$0xff]
  %v239 = vld [vmem:[%s1 + $0x3e8] sm:$0xff]
  %v240 = vld [vmem:[%s1 + $0x3f0] sm:$0xff]
  %v241 = vld [vmem:[%s1 + $0x3f8] sm:$0xff]
  %242 = vmatprep.subr.mxu0 %v115
  %243 = vmatpush1.msra.mxu0 %v114
  %244 = vmatprep.subr.mxu0 %v119
  %245 = vmatpush1.msra.mxu0 %v118
  %246 = vmatprep.subr.mxu0 %v123
  %247 = vmatpush1.msra.mxu0 %v122
  %248 = vmatprep.subr.mxu0 %v127
  %249 = vmatpush1.msra.mxu0 %v126
  %250 = vmatprep.subr.mxu0 %v131
  %251 = vmatpush1.msra.mxu0 %v130
  %252 = vmatprep.subr.mxu0 %v135
  %253 = vmatpush1.msra.mxu0 %v134
  %254 = vmatprep.subr.mxu0 %v139
  %255 = vmatpush1.msra.mxu0 %v138
  %256 = vmatprep.subr.mxu0 %v143
  %257 = vmatpush1.msra.mxu0 %v142
  %258 = vmatprep.subr.mxu0 %v147
  %259 = vmatpush1.msra.mxu0 %v146
  %260 = vmatprep.subr.mxu0 %v151
  %261 = vmatpush1.msra.mxu0 %v150
  %262 = vmatprep.subr.mxu0 %v155
  %263 = vmatpush1.msra.mxu0 %v154
  %264 = vmatprep.subr.mxu0 %v159
  %265 = vmatpush1.msra.mxu0 %v158
  %266 = vmatprep.subr.mxu0 %v163
  %267 = vmatpush1.msra.mxu0 %v162
  %268 = vmatprep.subr.mxu0 %v167
  %269 = vmatpush1.msra.mxu0 %v166
  %270 = vmatprep.subr.mxu0 %v171
  %271 = vmatpush1.msra.mxu0 %v170
  %272 = vmatprep.subr.mxu0 %v175
  %273 = vmatpush1.msra.mxu0 %v174
  %274 = vmatprep.subr.mxu0 %v179
  %275 = vmatpush1.msra.mxu0 %v178
  %276 = vmatprep.subr.mxu0 %v183
  %277 = vmatpush1.msra.mxu0 %v182
  %278 = vmatprep.subr.mxu0 %v187
  %279 = vmatpush1.msra.mxu0 %v186
  %280 = vmatprep.subr.mxu0 %v191
  %281 = vmatpush1.msra.mxu0 %v190
  %282 = vmatprep.subr.mxu0 %v195
  %283 = vmatpush1.msra.mxu0 %v194
  %284 = vmatprep.subr.mxu0 %v199
  %285 = vmatpush1.msra.mxu0 %v198
  %286 = vmatprep.subr.mxu0 %v203
  %287 = vmatpush1.msra.mxu0 %v202
  %288 = vmatprep.subr.mxu0 %v207
  %289 = vmatpush1.msra.mxu0 %v206
  %290 = vmatprep.subr.mxu0 %v211
  %291 = vmatpush1.msra.mxu0 %v210
  %292 = vmatprep.subr.mxu0 %v215
  %293 = vmatpush1.msra.mxu0 %v214
  %294 = vmatprep.subr.mxu0 %v219
  %295 = vmatpush1.msra.mxu0 %v218
  %296 = vmatprep.subr.mxu0 %v223
  %297 = vmatpush1.msra.mxu0 %v222
  %298 = vmatprep.subr.mxu0 %v227
  %299 = vmatpush1.msra.mxu0 %v226
  %300 = vmatprep.subr.mxu0 %v231
  %301 = vmatpush1.msra.mxu0 %v230
  %302 = vmatprep.subr.mxu0 %v235
  %303 = vmatpush1.msra.mxu0 %v234
  %304 = vmatprep.subr.mxu0 %v239
  %305 = vmatpush1.msra.mxu0 %v238
  %306 = vmatprep.mubr.f32.mxu0 %v111
  %307 = vmatmul.mubr.f32.gmra.mrb[0].mxu0 %v110
  %v308 = vpop.f32.mrb[0].mxu0
  %v309 = vadd.f32 0.0, %v308
  %v310 = vpop.f32.mrb[0].mxu0
  %v311 = vadd.f32 0.0, %v310
  %312 = vmatprep.mubr.f32.mxu0 %v113
  %313 = vmatmul.mubr.f32.gmra.mrb[0].mxu0 %v112
  %v314 = vpop.f32.mrb[0].mxu0
  %v315 = vadd.f32 0.0, %v314
  %v316 = vpop.f32.mrb[0].mxu0
  %v317 = vadd.f32 0.0, %v316
  %318 = vdwg.mxu0
  %319 = vmatprep.subr.mxu0 %v117
  %320 = vmatpush1.msra.mxu0 %v116
  %321 = vmatprep.subr.mxu0 %v121
  %322 = vmatpush1.msra.mxu0 %v120
  %323 = vmatprep.subr.mxu0 %v125
  %324 = vmatpush1.msra.mxu0 %v124
  %325 = vmatprep.subr.mxu0 %v129
  %326 = vmatpush1.msra.mxu0 %v128
  %327 = vmatprep.subr.mxu0 %v133
  %328 = vmatpush1.msra.mxu0 %v132
  %329 = vmatprep.subr.mxu0 %v137
  %330 = vmatpush1.msra.mxu0 %v136
  %331 = vmatprep.subr.mxu0 %v141
  %332 = vmatpush1.msra.mxu0 %v140
  %333 = vmatprep.subr.mxu0 %v145
  %334 = vmatpush1.msra.mxu0 %v144
  %335 = vmatprep.subr.mxu0 %v149
  %336 = vmatpush1.msra.mxu0 %v148
  %337 = vmatprep.subr.mxu0 %v153
  %338 = vmatpush1.msra.mxu0 %v152
  %339 = vmatprep.subr.mxu0 %v157
  %340 = vmatpush1.msra.mxu0 %v156
  %341 = vmatprep.subr.mxu0 %v161
  %342 = vmatpush1.msra.mxu0 %v160
  %343 = vmatprep.subr.mxu0 %v165
  %344 = vmatpush1.msra.mxu0 %v164
  %345 = vmatprep.subr.mxu0 %v169
  %346 = vmatpush1.msra.mxu0 %v168
  %347 = vmatprep.subr.mxu0 %v173
  %348 = vmatpush1.msra.mxu0 %v172
  %349 = vmatprep.subr.mxu0 %v177
  %350 = vmatpush1.msra.mxu0 %v176
  %351 = vmatprep.subr.mxu0 %v181
  %352 = vmatpush1.msra.mxu0 %v180
  %353 = vmatprep.subr.mxu0 %v185
  %354 = vmatpush1.msra.mxu0 %v184
  %355 = vmatprep.subr.mxu0 %v189
  %356 = vmatpush1.msra.mxu0 %v188
  %357 = vmatprep.subr.mxu0 %v193
  %358 = vmatpush1.msra.mxu0 %v192
  %359 = vmatprep.subr.mxu0 %v197
  %360 = vmatpush1.msra.mxu0 %v196
  %361 = vmatprep.subr.mxu0 %v201
  %362 = vmatpush1.msra.mxu0 %v200
  %363 = vmatprep.subr.mxu0 %v205
  %364 = vmatpush1.msra.mxu0 %v204
  %365 = vmatprep.subr.mxu0 %v209
  %366 = vmatpush1.msra.mxu0 %v208
  %367 = vmatprep.subr.mxu0 %v213
  %368 = vmatpush1.msra.mxu0 %v212
  %369 = vmatprep.subr.mxu0 %v217
  %370 = vmatpush1.msra.mxu0 %v216
  %371 = vmatprep.subr.mxu0 %v221
  %372 = vmatpush1.msra.mxu0 %v220
  %373 = vmatprep.subr.mxu0 %v225
  %374 = vmatpush1.msra.mxu0 %v224
  %375 = vmatprep.subr.mxu0 %v229
  %376 = vmatpush1.msra.mxu0 %v228
  %377 = vmatprep.subr.mxu0 %v233
  %378 = vmatpush1.msra.mxu0 %v232
  %379 = vmatprep.subr.mxu0 %v237
  %380 = vmatpush1.msra.mxu0 %v236
  %381 = vmatprep.subr.mxu0 %v241
  %382 = vmatpush1.msra.mxu0 %v240
  %383 = vmatprep.mubr.f32.mxu0 %v111
  %384 = vmatmul.mubr.f32.gmra.mrb[0].mxu0 %v110
  %v385 = vpop.f32.mrb[0].mxu0
  %v386 = vadd.f32 0.0, %v385
  %v387 = vpop.f32.mrb[0].mxu0
  %v388 = vadd.f32 0.0, %v387
  %389 = vmatprep.mubr.f32.mxu0 %v113
  %390 = vmatmul.mubr.f32.gmra.mrb[0].mxu0 %v112
  %v391 = vpop.f32.mrb[0].mxu0
  %v392 = vadd.f32 0.0, %v391
  %v393 = vpop.f32.mrb[0].mxu0
  %v394 = vadd.f32 0.0, %v393
  %395 = vdwg.mxu0
  %s396 = scalar_lea.vmem %s1, 1024
  %v397 = vld [vmem:[%s396] sm:$0xff]
  %v398 = vld [vmem:[%s396 + $0x8] sm:$0xff]
  %v399 = vld [vmem:[%s396 + $0x10] sm:$0xff]
  %v400 = vld [vmem:[%s396 + $0x18] sm:$0xff]
  %v401 = vld [vmem:[%s396 + $0x20] sm:$0xff]
  %v402 = vld [vmem:[%s396 + $0x28] sm:$0xff]
  %v403 = vld [vmem:[%s396 + $0x30] sm:$0xff]
  %v404 = vld [vmem:[%s396 + $0x38] sm:$0xff]
  %v405 = vld [vmem:[%s396 + $0x40] sm:$0xff]
  %v406 = vld [vmem:[%s396 + $0x48] sm:$0xff]
  %v407 = vld [vmem:[%s396 + $0x50] sm:$0xff]
  %v408 = vld [vmem:[%s396 + $0x58] sm:$0xff]
  %v409 = vld [vmem:[%s396 + $0x60] sm:$0xff]
  %v410 = vld [vmem:[%s396 + $0x68] sm:$0xff]
  %v411 = vld [vmem:[%s396 + $0x70] sm:$0xff]
  %v412 = vld [vmem:[%s396 + $0x78] sm:$0xff]
  %v413 = vld [vmem:[%s396 + $0x80] sm:$0xff]
  %v414 = vld [vmem:[%s396 + $0x88] sm:$0xff]
  %v415 = vld [vmem:[%s396 + $0x90] sm:$0xff]
  %v416 = vld [vmem:[%s396 + $0x98] sm:$0xff]
  %v417 = vld [vmem:[%s396 + $0xa0] sm:$0xff]
  %v418 = vld [vmem:[%s396 + $0xa8] sm:$0xff]
  %v419 = vld [vmem:[%s396 + $0xb0] sm:$0xff]
  %v420 = vld [vmem:[%s396 + $0xb8] sm:$0xff]
  %v421 = vld [vmem:[%s396 + $0xc0] sm:$0xff]
  %v422 = vld [vmem:[%s396 + $0xc8] sm:$0xff]
  %v423 = vld [vmem:[%s396 + $0xd0] sm:$0xff]
  %v424 = vld [vmem:[%s396 + $0xd8] sm:$0xff]
  %v425 = vld [vmem:[%s396 + $0xe0] sm:$0xff]
  %v426 = vld [vmem:[%s396 + $0xe8] sm:$0xff]
  %v427 = vld [vmem:[%s396 + $0xf0] sm:$0xff]
  %v428 = vld [vmem:[%s396 + $0xf8] sm:$0xff]
  %v429 = vld [vmem:[%s396 + $0x100] sm:$0xff]
  %v430 = vld [vmem:[%s396 + $0x108] sm:$0xff]
  %v431 = vld [vmem:[%s396 + $0x110] sm:$0xff]
  %v432 = vld [vmem:[%s396 + $0x118] sm:$0xff]
  %v433 = vld [vmem:[%s396 + $0x120] sm:$0xff]
  %v434 = vld [vmem:[%s396 + $0x128] sm:$0xff]
  %v435 = vld [vmem:[%s396 + $0x130] sm:$0xff]
  %v436 = vld [vmem:[%s396 + $0x138] sm:$0xff]
  %v437 = vld [vmem:[%s396 + $0x140] sm:$0xff]
  %v438 = vld [vmem:[%s396 + $0x148] sm:$0xff]
  %v439 = vld [vmem:[%s396 + $0x150] sm:$0xff]
  %v440 = vld [vmem:[%s396 + $0x158] sm:$0xff]
  %v441 = vld [vmem:[%s396 + $0x160] sm:$0xff]
  %v442 = vld [vmem:[%s396 + $0x168] sm:$0xff]
  %v443 = vld [vmem:[%s396 + $0x170] sm:$0xff]
  %v444 = vld [vmem:[%s396 + $0x178] sm:$0xff]
  %v445 = vld [vmem:[%s396 + $0x180] sm:$0xff]
  %v446 = vld [vmem:[%s396 + $0x188] sm:$0xff]
  %v447 = vld [vmem:[%s396 + $0x190] sm:$0xff]
  %v448 = vld [vmem:[%s396 + $0x198] sm:$0xff]
  %v449 = vld [vmem:[%s396 + $0x1a0] sm:$0xff]
  %v450 = vld [vmem:[%s396 + $0x1a8] sm:$0xff]
  %v451 = vld [vmem:[%s396 + $0x1b0] sm:$0xff]
  %v452 = vld [vmem:[%s396 + $0x1b8] sm:$0xff]
  %v453 = vld [vmem:[%s396 + $0x1c0] sm:$0xff]
  %v454 = vld [vmem:[%s396 + $0x1c8] sm:$0xff]
  %v455 = vld [vmem:[%s396 + $0x1d0] sm:$0xff]
  %v456 = vld [vmem:[%s396 + $0x1d8] sm:$0xff]
  %v457 = vld [vmem:[%s396 + $0x1e0] sm:$0xff]
  %v458 = vld [vmem:[%s396 + $0x1e8] sm:$0xff]
  %v459 = vld [vmem:[%s396 + $0x1f0] sm:$0xff]
  %v460 = vld [vmem:[%s396 + $0x1f8] sm:$0xff]
  %v461 = vld [vmem:[%s396 + $0x200] sm:$0xff]
  %v462 = vld [vmem:[%s396 + $0x208] sm:$0xff]
  %v463 = vld [vmem:[%s396 + $0x210] sm:$0xff]
  %v464 = vld [vmem:[%s396 + $0x218] sm:$0xff]
  %v465 = vld [vmem:[%s396 + $0x220] sm:$0xff]
  %v466 = vld [vmem:[%s396 + $0x228] sm:$0xff]
  %v467 = vld [vmem:[%s396 + $0x230] sm:$0xff]
  %v468 = vld [vmem:[%s396 + $0x238] sm:$0xff]
  %v469 = vld [vmem:[%s396 + $0x240] sm:$0xff]
  %v470 = vld [vmem:[%s396 + $0x248] sm:$0xff]
  %v471 = vld [vmem:[%s396 + $0x250] sm:$0xff]
  %v472 = vld [vmem:[%s396 + $0x258] sm:$0xff]
  %v473 = vld [vmem:[%s396 + $0x260] sm:$0xff]
  %v474 = vld [vmem:[%s396 + $0x268] sm:$0xff]
  %v475 = vld [vmem:[%s396 + $0x270] sm:$0xff]
  %v476 = vld [vmem:[%s396 + $0x278] sm:$0xff]
  %v477 = vld [vmem:[%s396 + $0x280] sm:$0xff]
  %v478 = vld [vmem:[%s396 + $0x288] sm:$0xff]
  %v479 = vld [vmem:[%s396 + $0x290] sm:$0xff]
  %v480 = vld [vmem:[%s396 + $0x298] sm:$0xff]
  %v481 = vld [vmem:[%s396 + $0x2a0] sm:$0xff]
  %v482 = vld [vmem:[%s396 + $0x2a8] sm:$0xff]
  %v483 = vld [vmem:[%s396 + $0x2b0] sm:$0xff]
  %v484 = vld [vmem:[%s396 + $0x2b8] sm:$0xff]
  %v485 = vld [vmem:[%s396 + $0x2c0] sm:$0xff]
  %v486 = vld [vmem:[%s396 + $0x2c8] sm:$0xff]
  %v487 = vld [vmem:[%s396 + $0x2d0] sm:$0xff]
  %v488 = vld [vmem:[%s396 + $0x2d8] sm:$0xff]
  %v489 = vld [vmem:[%s396 + $0x2e0] sm:$0xff]
  %v490 = vld [vmem:[%s396 + $0x2e8] sm:$0xff]
  %v491 = vld [vmem:[%s396 + $0x2f0] sm:$0xff]
  %v492 = vld [vmem:[%s396 + $0x2f8] sm:$0xff]
  %v493 = vld [vmem:[%s396 + $0x300] sm:$0xff]
  %v494 = vld [vmem:[%s396 + $0x308] sm:$0xff]
  %v495 = vld [vmem:[%s396 + $0x310] sm:$0xff]
  %v496 = vld [vmem:[%s396 + $0x318] sm:$0xff]
  %v497 = vld [vmem:[%s396 + $0x320] sm:$0xff]
  %v498 = vld [vmem:[%s396 + $0x328] sm:$0xff]
  %v499 = vld [vmem:[%s396 + $0x330] sm:$0xff]
  %v500 = vld [vmem:[%s396 + $0x338] sm:$0xff]
  %v501 = vld [vmem:[%s396 + $0x340] sm:$0xff]
  %v502 = vld [vmem:[%s396 + $0x348] sm:$0xff]
  %v503 = vld [vmem:[%s396 + $0x350] sm:$0xff]
  %v504 = vld [vmem:[%s396 + $0x358] sm:$0xff]
  %v505 = vld [vmem:[%s396 + $0x360] sm:$0xff]
  %v506 = vld [vmem:[%s396 + $0x368] sm:$0xff]
  %v507 = vld [vmem:[%s396 + $0x370] sm:$0xff]
  %v508 = vld [vmem:[%s396 + $0x378] sm:$0xff]
  %v509 = vld [vmem:[%s396 + $0x380] sm:$0xff]
  %v510 = vld [vmem:[%s396 + $0x388] sm:$0xff]
  %v511 = vld [vmem:[%s396 + $0x390] sm:$0xff]
  %v512 = vld [vmem:[%s396 + $0x398] sm:$0xff]
  %v513 = vld [vmem:[%s396 + $0x3a0] sm:$0xff]
  %v514 = vld [vmem:[%s396 + $0x3a8] sm:$0xff]
  %v515 = vld [vmem:[%s396 + $0x3b0] sm:$0xff]
  %v516 = vld [vmem:[%s396 + $0x3b8] sm:$0xff]
  %v517 = vld [vmem:[%s396 + $0x3c0] sm:$0xff]
  %v518 = vld [vmem:[%s396 + $0x3c8] sm:$0xff]
  %v519 = vld [vmem:[%s396 + $0x3d0] sm:$0xff]
  %v520 = vld [vmem:[%s396 + $0x3d8] sm:$0xff]
  %v521 = vld [vmem:[%s396 + $0x3e0] sm:$0xff]
  %v522 = vld [vmem:[%s396 + $0x3e8] sm:$0xff]
  %v523 = vld [vmem:[%s396 + $0x3f0] sm:$0xff]
  %v524 = vld [vmem:[%s396 + $0x3f8] sm:$0xff]
  %s525 = scalar_lea.vmem %s1, 2048
  %v526 = vld [vmem:[%s525] sm:$0xff]
  %v527 = vld [vmem:[%s525 + $0x8] sm:$0xff]
  %v528 = vld [vmem:[%s525 + $0x10] sm:$0xff]
  %v529 = vld [vmem:[%s525 + $0x18] sm:$0xff]
  %v530 = vld [vmem:[%s525 + $0x20] sm:$0xff]
  %v531 = vld [vmem:[%s525 + $0x28] sm:$0xff]
  %v532 = vld [vmem:[%s525 + $0x30] sm:$0xff]
  %v533 = vld [vmem:[%s525 + $0x38] sm:$0xff]
  %v534 = vld [vmem:[%s525 + $0x40] sm:$0xff]
  %v535 = vld [vmem:[%s525 + $0x48] sm:$0xff]
  %v536 = vld [vmem:[%s525 + $0x50] sm:$0xff]
  %v537 = vld [vmem:[%s525 + $0x58] sm:$0xff]
  %v538 = vld [vmem:[%s525 + $0x60] sm:$0xff]
  %v539 = vld [vmem:[%s525 + $0x68] sm:$0xff]
  %v540 = vld [vmem:[%s525 + $0x70] sm:$0xff]
  %v541 = vld [vmem:[%s525 + $0x78] sm:$0xff]
  %v542 = vld [vmem:[%s525 + $0x80] sm:$0xff]
  %v543 = vld [vmem:[%s525 + $0x88] sm:$0xff]
  %v544 = vld [vmem:[%s525 + $0x90] sm:$0xff]
  %v545 = vld [vmem:[%s525 + $0x98] sm:$0xff]
  %v546 = vld [vmem:[%s525 + $0xa0] sm:$0xff]
  %v547 = vld [vmem:[%s525 + $0xa8] sm:$0xff]
  %v548 = vld [vmem:[%s525 + $0xb0] sm:$0xff]
  %v549 = vld [vmem:[%s525 + $0xb8] sm:$0xff]
  %v550 = vld [vmem:[%s525 + $0xc0] sm:$0xff]
  %v551 = vld [vmem:[%s525 + $0xc8] sm:$0xff]
  %v552 = vld [vmem:[%s525 + $0xd0] sm:$0xff]
  %v553 = vld [vmem:[%s525 + $0xd8] sm:$0xff]
  %v554 = vld [vmem:[%s525 + $0xe0] sm:$0xff]
  %v555 = vld [vmem:[%s525 + $0xe8] sm:$0xff]
  %v556 = vld [vmem:[%s525 + $0xf0] sm:$0xff]
  %v557 = vld [vmem:[%s525 + $0xf8] sm:$0xff]
  %v558 = vld [vmem:[%s525 + $0x100] sm:$0xff]
  %v559 = vld [vmem:[%s525 + $0x108] sm:$0xff]
  %v560 = vld [vmem:[%s525 + $0x110] sm:$0xff]
  %v561 = vld [vmem:[%s525 + $0x118] sm:$0xff]
  %v562 = vld [vmem:[%s525 + $0x120] sm:$0xff]
  %v563 = vld [vmem:[%s525 + $0x128] sm:$0xff]
  %v564 = vld [vmem:[%s525 + $0x130] sm:$0xff]
  %v565 = vld [vmem:[%s525 + $0x138] sm:$0xff]
  %v566 = vld [vmem:[%s525 + $0x140] sm:$0xff]
  %v567 = vld [vmem:[%s525 + $0x148] sm:$0xff]
  %v568 = vld [vmem:[%s525 + $0x150] sm:$0xff]
  %v569 = vld [vmem:[%s525 + $0x158] sm:$0xff]
  %v570 = vld [vmem:[%s525 + $0x160] sm:$0xff]
  %v571 = vld [vmem:[%s525 + $0x168] sm:$0xff]
  %v572 = vld [vmem:[%s525 + $0x170] sm:$0xff]
  %v573 = vld [vmem:[%s525 + $0x178] sm:$0xff]
  %v574 = vld [vmem:[%s525 + $0x180] sm:$0xff]
  %v575 = vld [vmem:[%s525 + $0x188] sm:$0xff]
  %v576 = vld [vmem:[%s525 + $0x190] sm:$0xff]
  %v577 = vld [vmem:[%s525 + $0x198] sm:$0xff]
  %v578 = vld [vmem:[%s525 + $0x1a0] sm:$0xff]
  %v579 = vld [vmem:[%s525 + $0x1a8] sm:$0xff]
  %v580 = vld [vmem:[%s525 + $0x1b0] sm:$0xff]
  %v581 = vld [vmem:[%s525 + $0x1b8] sm:$0xff]
  %v582 = vld [vmem:[%s525 + $0x1c0] sm:$0xff]
  %v583 = vld [vmem:[%s525 + $0x1c8] sm:$0xff]
  %v584 = vld [vmem:[%s525 + $0x1d0] sm:$0xff]
  %v585 = vld [vmem:[%s525 + $0x1d8] sm:$0xff]
  %v586 = vld [vmem:[%s525 + $0x1e0] sm:$0xff]
  %v587 = vld [vmem:[%s525 + $0x1e8] sm:$0xff]
  %v588 = vld [vmem:[%s525 + $0x1f0] sm:$0xff]
  %v589 = vld [vmem:[%s525 + $0x1f8] sm:$0xff]
  %v590 = vld [vmem:[%s525 + $0x200] sm:$0xff]
  %v591 = vld [vmem:[%s525 + $0x208] sm:$0xff]
  %v592 = vld [vmem:[%s525 + $0x210] sm:$0xff]
  %v593 = vld [vmem:[%s525 + $0x218] sm:$0xff]
  %v594 = vld [vmem:[%s525 + $0x220] sm:$0xff]
  %v595 = vld [vmem:[%s525 + $0x228] sm:$0xff]
  %v596 = vld [vmem:[%s525 + $0x230] sm:$0xff]
  %v597 = vld [vmem:[%s525 + $0x238] sm:$0xff]
  %v598 = vld [vmem:[%s525 + $0x240] sm:$0xff]
  %v599 = vld [vmem:[%s525 + $0x248] sm:$0xff]
  %v600 = vld [vmem:[%s525 + $0x250] sm:$0xff]
  %v601 = vld [vmem:[%s525 + $0x258] sm:$0xff]
  %v602 = vld [vmem:[%s525 + $0x260] sm:$0xff]
  %v603 = vld [vmem:[%s525 + $0x268] sm:$0xff]
  %v604 = vld [vmem:[%s525 + $0x270] sm:$0xff]
  %v605 = vld [vmem:[%s525 + $0x278] sm:$0xff]
  %v606 = vld [vmem:[%s525 + $0x280] sm:$0xff]
  %v607 = vld [vmem:[%s525 + $0x288] sm:$0xff]
  %v608 = vld [vmem:[%s525 + $0x290] sm:$0xff]
  %v609 = vld [vmem:[%s525 + $0x298] sm:$0xff]
  %v610 = vld [vmem:[%s525 + $0x2a0] sm:$0xff]
  %v611 = vld [vmem:[%s525 + $0x2a8] sm:$0xff]
  %v612 = vld [vmem:[%s525 + $0x2b0] sm:$0xff]
  %v613 = vld [vmem:[%s525 + $0x2b8] sm:$0xff]
  %v614 = vld [vmem:[%s525 + $0x2c0] sm:$0xff]
  %v615 = vld [vmem:[%s525 + $0x2c8] sm:$0xff]
  %v616 = vld [vmem:[%s525 + $0x2d0] sm:$0xff]
  %v617 = vld [vmem:[%s525 + $0x2d8] sm:$0xff]
  %v618 = vld [vmem:[%s525 + $0x2e0] sm:$0xff]
  %v619 = vld [vmem:[%s525 + $0x2e8] sm:$0xff]
  %v620 = vld [vmem:[%s525 + $0x2f0] sm:$0xff]
  %v621 = vld [vmem:[%s525 + $0x2f8] sm:$0xff]
  %v622 = vld [vmem:[%s525 + $0x300] sm:$0xff]
  %v623 = vld [vmem:[%s525 + $0x308] sm:$0xff]
  %v624 = vld [vmem:[%s525 + $0x310] sm:$0xff]
  %v625 = vld [vmem:[%s525 + $0x318] sm:$0xff]
  %v626 = vld [vmem:[%s525 + $0x320] sm:$0xff]
  %v627 = vld [vmem:[%s525 + $0x328] sm:$0xff]
  %v628 = vld [vmem:[%s525 + $0x330] sm:$0xff]
  %v629 = vld [vmem:[%s525 + $0x338] sm:$0xff]
  %v630 = vld [vmem:[%s525 + $0x340] sm:$0xff]
  %v631 = vld [vmem:[%s525 + $0x348] sm:$0xff]
  %v632 = vld [vmem:[%s525 + $0x350] sm:$0xff]
  %v633 = vld [vmem:[%s525 + $0x358] sm:$0xff]
  %v634 = vld [vmem:[%s525 + $0x360] sm:$0xff]
  %v635 = vld [vmem:[%s525 + $0x368] sm:$0xff]
  %v636 = vld [vmem:[%s525 + $0x370] sm:$0xff]
  %v637 = vld [vmem:[%s525 + $0x378] sm:$0xff]
  %v638 = vld [vmem:[%s525 + $0x380] sm:$0xff]
  %v639 = vld [vmem:[%s525 + $0x388] sm:$0xff]
  %v640 = vld [vmem:[%s525 + $0x390] sm:$0xff]
  %v641 = vld [vmem:[%s525 + $0x398] sm:$0xff]
  %v642 = vld [vmem:[%s525 + $0x3a0] sm:$0xff]
  %v643 = vld [vmem:[%s525 + $0x3a8] sm:$0xff]
  %v644 = vld [vmem:[%s525 + $0x3b0] sm:$0xff]
  %v645 = vld [vmem:[%s525 + $0x3b8] sm:$0xff]
  %v646 = vld [vmem:[%s525 + $0x3c0] sm:$0xff]
  %v647 = vld [vmem:[%s525 + $0x3c8] sm:$0xff]
  %v648 = vld [vmem:[%s525 + $0x3d0] sm:$0xff]
  %v649 = vld [vmem:[%s525 + $0x3d8] sm:$0xff]
  %v650 = vld [vmem:[%s525 + $0x3e0] sm:$0xff]
  %v651 = vld [vmem:[%s525 + $0x3e8] sm:$0xff]
  %v652 = vld [vmem:[%s525 + $0x3f0] sm:$0xff]
  %v653 = vld [vmem:[%s525 + $0x3f8] sm:$0xff]
  %654 = vmatprep.subr.mxu0 %v527
  %655 = vmatpush1.msra.mxu0 %v526
  %656 = vmatprep.subr.mxu0 %v531
  %657 = vmatpush1.msra.mxu0 %v530
  %658 = vmatprep.subr.mxu0 %v535
  %659 = vmatpush1.msra.mxu0 %v534
  %660 = vmatprep.subr.mxu0 %v539
  %661 = vmatpush1.msra.mxu0 %v538
  %662 = vmatprep.subr.mxu0 %v543
  %663 = vmatpush1.msra.mxu0 %v542
  %664 = vmatprep.subr.mxu0 %v547
  %665 = vmatpush1.msra.mxu0 %v546
  %666 = vmatprep.subr.mxu0 %v551
  %667 = vmatpush1.msra.mxu0 %v550
  %668 = vmatprep.subr.mxu0 %v555
  %669 = vmatpush1.msra.mxu0 %v554
  %670 = vmatprep.subr.mxu0 %v559
  %671 = vmatpush1.msra.mxu0 %v558
  %672 = vmatprep.subr.mxu0 %v563
  %673 = vmatpush1.msra.mxu0 %v562
  %674 = vmatprep.subr.mxu0 %v567
  %675 = vmatpush1.msra.mxu0 %v566
  %676 = vmatprep.subr.mxu0 %v571
  %677 = vmatpush1.msra.mxu0 %v570
  %678 = vmatprep.subr.mxu0 %v575
  %679 = vmatpush1.msra.mxu0 %v574
  %680 = vmatprep.subr.mxu0 %v579
  %681 = vmatpush1.msra.mxu0 %v578
  %682 = vmatprep.subr.mxu0 %v583
  %683 = vmatpush1.msra.mxu0 %v582
  %684 = vmatprep.subr.mxu0 %v587
  %685 = vmatpush1.msra.mxu0 %v586
  %686 = vmatprep.subr.mxu0 %v591
  %687 = vmatpush1.msra.mxu0 %v590
  %688 = vmatprep.subr.mxu0 %v595
  %689 = vmatpush1.msra.mxu0 %v594
  %690 = vmatprep.subr.mxu0 %v599
  %691 = vmatpush1.msra.mxu0 %v598
  %692 = vmatprep.subr.mxu0 %v603
  %693 = vmatpush1.msra.mxu0 %v602
  %694 = vmatprep.subr.mxu0 %v607
  %695 = vmatpush1.msra.mxu0 %v606
  %696 = vmatprep.subr.mxu0 %v611
  %697 = vmatpush1.msra.mxu0 %v610
  %698 = vmatprep.subr.mxu0 %v615
  %699 = vmatpush1.msra.mxu0 %v614
  %700 = vmatprep.subr.mxu0 %v619
  %701 = vmatpush1.msra.mxu0 %v618
  %702 = vmatprep.subr.mxu0 %v623
  %703 = vmatpush1.msra.mxu0 %v622
  %704 = vmatprep.subr.mxu0 %v627
  %705 = vmatpush1.msra.mxu0 %v626
  %706 = vmatprep.subr.mxu0 %v631
  %707 = vmatpush1.msra.mxu0 %v630
  %708 = vmatprep.subr.mxu0 %v635
  %709 = vmatpush1.msra.mxu0 %v634
  %710 = vmatprep.subr.mxu0 %v639
  %711 = vmatpush1.msra.mxu0 %v638
  %712 = vmatprep.subr.mxu0 %v643
  %713 = vmatpush1.msra.mxu0 %v642
  %714 = vmatprep.subr.mxu0 %v647
  %715 = vmatpush1.msra.mxu0 %v646
  %716 = vmatprep.subr.mxu0 %v651
  %717 = vmatpush1.msra.mxu0 %v650
  %718 = vmatprep.mubr.f32.mxu0 %v111
  %719 = vmatmul.mubr.f32.gmra.mrb[0].mxu0 %v110
  %v720 = vpop.f32.mrb[0].mxu0
  %v721 = vadd.f32 0.0, %v720
  %v722 = vpop.f32.mrb[0].mxu0
  %v723 = vadd.f32 0.0, %v722
  %724 = vmatprep.mubr.f32.mxu0 %v113
  %725 = vmatmul.mubr.f32.gmra.mrb[0].mxu0 %v112
  %v726 = vpop.f32.mrb[0].mxu0
  %v727 = vadd.f32 0.0, %v726
  %v728 = vpop.f32.mrb[0].mxu0
  %v729 = vadd.f32 0.0, %v728
  %730 = vdwg.mxu0
  %731 = vmatprep.subr.mxu0 %v529
  %732 = vmatpush1.msra.mxu0 %v528
  %733 = vmatprep.subr.mxu0 %v533
  %734 = vmatpush1.msra.mxu0 %v532
  %735 = vmatprep.subr.mxu0 %v537
  %736 = vmatpush1.msra.mxu0 %v536
  %737 = vmatprep.subr.mxu0 %v541
  %738 = vmatpush1.msra.mxu0 %v540
  %739 = vmatprep.subr.mxu0 %v545
  %740 = vmatpush1.msra.mxu0 %v544
  %741 = vmatprep.subr.mxu0 %v549
  %742 = vmatpush1.msra.mxu0 %v548
  %743 = vmatprep.subr.mxu0 %v553
  %744 = vmatpush1.msra.mxu0 %v552
  %745 = vmatprep.subr.mxu0 %v557
  %746 = vmatpush1.msra.mxu0 %v556
  %747 = vmatprep.subr.mxu0 %v561
  %748 = vmatpush1.msra.mxu0 %v560
  %749 = vmatprep.subr.mxu0 %v565
  %750 = vmatpush1.msra.mxu0 %v564
  %751 = vmatprep.subr.mxu0 %v569
  %752 = vmatpush1.msra.mxu0 %v568
  %753 = vmatprep.subr.mxu0 %v573
  %754 = vmatpush1.msra.mxu0 %v572
  %755 = vmatprep.subr.mxu0 %v577
  %756 = vmatpush1.msra.mxu0 %v576
  %757 = vmatprep.subr.mxu0 %v581
  %758 = vmatpush1.msra.mxu0 %v580
  %759 = vmatprep.subr.mxu0 %v585
  %760 = vmatpush1.msra.mxu0 %v584
  %761 = vmatprep.subr.mxu0 %v589
  %762 = vmatpush1.msra.mxu0 %v588
  %763 = vmatprep.subr.mxu0 %v593
  %764 = vmatpush1.msra.mxu0 %v592
  %765 = vmatprep.subr.mxu0 %v597
  %766 = vmatpush1.msra.mxu0 %v596
  %767 = vmatprep.subr.mxu0 %v601
  %768 = vmatpush1.msra.mxu0 %v600
  %769 = vmatprep.subr.mxu0 %v605
  %770 = vmatpush1.msra.mxu0 %v604
  %771 = vmatprep.subr.mxu0 %v609
  %772 = vmatpush1.msra.mxu0 %v608
  %773 = vmatprep.subr.mxu0 %v613
  %774 = vmatpush1.msra.mxu0 %v612
  %775 = vmatprep.subr.mxu0 %v617
  %776 = vmatpush1.msra.mxu0 %v616
  %777 = vmatprep.subr.mxu0 %v621
  %778 = vmatpush1.msra.mxu0 %v620
  %779 = vmatprep.subr.mxu0 %v625
  %780 = vmatpush1.msra.mxu0 %v624
  %781 = vmatprep.subr.mxu0 %v629
  %782 = vmatpush1.msra.mxu0 %v628
  %783 = vmatprep.subr.mxu0 %v633
  %784 = vmatpush1.msra.mxu0 %v632
  %785 = vmatprep.subr.mxu0 %v637
  %786 = vmatpush1.msra.mxu0 %v636
  %787 = vmatprep.subr.mxu0 %v641
  %788 = vmatpush1.msra.mxu0 %v640
  %789 = vmatprep.subr.mxu0 %v645
  %790 = vmatpush1.msra.mxu0 %v644
  %791 = vmatprep.subr.mxu0 %v649
  %792 = vmatpush1.msra.mxu0 %v648
  %793 = vmatprep.subr.mxu0 %v653
  %794 = vmatpush1.msra.mxu0 %v652
  %795 = vmatprep.mubr.f32.mxu0 %v111
  %796 = vmatmul.mubr.f32.gmra.mrb[0].mxu0 %v110
  %v797 = vpop.f32.mrb[0].mxu0
  %v798 = vadd.f32 0.0, %v797
  %v799 = vpop.f32.mrb[0].mxu0
  %v800 = vadd.f32 0.0, %v799
  %801 = vmatprep.mubr.f32.mxu0 %v113
  %802 = vmatmul.mubr.f32.gmra.mrb[0].mxu0 %v112
  %v803 = vpop.f32.mrb[0].mxu0
  %v804 = vadd.f32 0.0, %v803
  %v805 = vpop.f32.mrb[0].mxu0
  %v806 = vadd.f32 0.0, %v805
  %807 = vdwg.mxu0
  %vm808 = vcmask 130048
  %v810 = vsel %vm808, %v38, 0
  %v813 = vsel %vm808, %v39, 0
  %815 = vmatprep.subr.mxu0 %v311
  %816 = vmatpush1.msra.mxu0 %v309
  %817 = vmatprep.subr.mxu0 %v317
  %818 = vmatpush1.msra.mxu0 %v315
  %819 = vmatprep.subr.mxu0 0.0
  %820 = vmatpush1.msra.mxu0 0.0
  %821 = vmatprep.subr.mxu0 0.0
  %822 = vmatpush1.msra.mxu0 0.0
  %823 = vmatprep.subr.mxu0 0.0
  %824 = vmatpush1.msra.mxu0 0.0
  %825 = vmatprep.subr.mxu0 0.0
  %826 = vmatpush1.msra.mxu0 0.0
  %827 = vmatprep.subr.mxu0 0.0
  %828 = vmatpush1.msra.mxu0 0.0
  %829 = vmatprep.subr.mxu0 0.0
  %830 = vmatpush1.msra.mxu0 0.0
  %831 = vmatprep.subr.mxu0 0.0
  %832 = vmatpush1.msra.mxu0 0.0
  %833 = vmatprep.subr.mxu0 0.0
  %834 = vmatpush1.msra.mxu0 0.0
  %835 = vmatprep.subr.mxu0 0.0
  %836 = vmatpush1.msra.mxu0 0.0
  %837 = vmatprep.subr.mxu0 0.0
  %838 = vmatpush1.msra.mxu0 0.0
  %839 = vmatprep.subr.mxu0 0.0
  %840 = vmatpush1.msra.mxu0 0.0
  %841 = vmatprep.subr.mxu0 0.0
  %842 = vmatpush1.msra.mxu0 0.0
  %843 = vmatprep.subr.mxu0 0.0
  %844 = vmatpush1.msra.mxu0 0.0
  %845 = vmatprep.subr.mxu0 0.0
  %846 = vmatpush1.msra.mxu0 0.0
  %847 = vmatprep.subr.mxu0 0.0
  %848 = vmatpush1.msra.mxu0 0.0
  %849 = vmatprep.subr.mxu0 0.0
  %850 = vmatpush1.msra.mxu0 0.0
  %851 = vmatprep.subr.mxu0 0.0
  %852 = vmatpush1.msra.mxu0 0.0
  %853 = vmatprep.subr.mxu0 0.0
  %854 = vmatpush1.msra.mxu0 0.0
  %855 = vmatprep.subr.mxu0 0.0
  %856 = vmatpush1.msra.mxu0 0.0
  %857 = vmatprep.subr.mxu0 0.0
  %858 = vmatpush1.msra.mxu0 0.0
  %859 = vmatprep.subr.mxu0 0.0
  %860 = vmatpush1.msra.mxu0 0.0
  %861 = vmatprep.subr.mxu0 0.0
  %862 = vmatpush1.msra.mxu0 0.0
  %863 = vmatprep.subr.mxu0 0.0
  %864 = vmatpush1.msra.mxu0 0.0
  %865 = vmatprep.subr.mxu0 0.0
  %866 = vmatpush1.msra.mxu0 0.0
  %867 = vmatprep.subr.mxu0 0.0
  %868 = vmatpush1.msra.mxu0 0.0
  %869 = vmatprep.subr.mxu0 0.0
  %870 = vmatpush1.msra.mxu0 0.0
  %871 = vmatprep.subr.mxu0 0.0
  %872 = vmatpush1.msra.mxu0 0.0
  %873 = vmatprep.subr.mxu0 0.0
  %874 = vmatpush1.msra.mxu0 0.0
  %875 = vmatprep.subr.mxu0 0.0
  %876 = vmatpush1.msra.mxu0 0.0
  %877 = vmatprep.subr.mxu0 0.0
  %878 = vmatpush1.msra.mxu0 0.0
  %879 = vmatprep.mubr.f32.mxu0 0.0
  %880 = vmatmul.mubr.f32.gmra.mrb[0].mxu0 %v810
  %v881 = vpop.f32.mrb[0].mxu0
  %v882 = vadd.f32 0.0, %v881
  %v883 = vpop.f32.mrb[0].mxu0
  %v884 = vadd.f32 0.0, %v883
  %885 = vmatprep.mubr.f32.mxu0 0.0
  %886 = vmatmul.mubr.f32.gmra.mrb[0].mxu0 %v813
  %v887 = vpop.f32.mrb[0].mxu0
  %v888 = vadd.f32 0.0, %v887
  %v889 = vpop.f32.mrb[0].mxu0
  %v890 = vadd.f32 0.0, %v889
  %891 = vdwg.mxu0
  %892 = vmatprep.subr.mxu0 %v388
  %893 = vmatpush1.msra.mxu0 %v386
  %894 = vmatprep.subr.mxu0 %v394
  %895 = vmatpush1.msra.mxu0 %v392
  %896 = vmatprep.subr.mxu0 0.0
  %897 = vmatpush1.msra.mxu0 0.0
  %898 = vmatprep.subr.mxu0 0.0
  %899 = vmatpush1.msra.mxu0 0.0
  %900 = vmatprep.subr.mxu0 0.0
  %901 = vmatpush1.msra.mxu0 0.0
  %902 = vmatprep.subr.mxu0 0.0
  %903 = vmatpush1.msra.mxu0 0.0
  %904 = vmatprep.subr.mxu0 0.0
  %905 = vmatpush1.msra.mxu0 0.0
  %906 = vmatprep.subr.mxu0 0.0
  %907 = vmatpush1.msra.mxu0 0.0
  %908 = vmatprep.subr.mxu0 0.0
  %909 = vmatpush1.msra.mxu0 0.0
  %910 = vmatprep.subr.mxu0 0.0
  %911 = vmatpush1.msra.mxu0 0.0
  %912 = vmatprep.subr.mxu0 0.0
  %913 = vmatpush1.msra.mxu0 0.0
  %914 = vmatprep.subr.mxu0 0.0
  %915 = vmatpush1.msra.mxu0 0.0
  %916 = vmatprep.subr.mxu0 0.0
  %917 = vmatpush1.msra.mxu0 0.0
  %918 = vmatprep.subr.mxu0 0.0
  %919 = vmatpush1.msra.mxu0 0.0
  %920 = vmatprep.subr.mxu0 0.0
  %921 = vmatpush1.msra.mxu0 0.0
  %922 = vmatprep.subr.mxu0 0.0
  %923 = vmatpush1.msra.mxu0 0.0
  %924 = vmatprep.subr.mxu0 0.0
  %925 = vmatpush1.msra.mxu0 0.0
  %926 = vmatprep.subr.mxu0 0.0
  %927 = vmatpush1.msra.mxu0 0.0
  %928 = vmatprep.subr.mxu0 0.0
  %929 = vmatpush1.msra.mxu0 0.0
  %930 = vmatprep.subr.mxu0 0.0
  %931 = vmatpush1.msra.mxu0 0.0
  %932 = vmatprep.subr.mxu0 0.0
  %933 = vmatpush1.msra.mxu0 0.0
  %934 = vmatprep.subr.mxu0 0.0
  %935 = vmatpush1.msra.mxu0 0.0
  %936 = vmatprep.subr.mxu0 0.0
  %937 = vmatpush1.msra.mxu0 0.0
  %938 = vmatprep.subr.mxu0 0.0
  %939 = vmatpush1.msra.mxu0 0.0
  %940 = vmatprep.subr.mxu0 0.0
  %941 = vmatpush1.msra.mxu0 0.0
  %942 = vmatprep.subr.mxu0 0.0
  %943 = vmatpush1.msra.mxu0 0.0
  %944 = vmatprep.subr.mxu0 0.0
  %945 = vmatpush1.msra.mxu0 0.0
  %946 = vmatprep.subr.mxu0 0.0
  %947 = vmatpush1.msra.mxu0 0.0
  %948 = vmatprep.subr.mxu0 0.0
  %949 = vmatpush1.msra.mxu0 0.0
  %950 = vmatprep.subr.mxu0 0.0
  %951 = vmatpush1.msra.mxu0 0.0
  %952 = vmatprep.subr.mxu0 0.0
  %953 = vmatpush1.msra.mxu0 0.0
  %954 = vmatprep.subr.mxu0 0.0
  %955 = vmatpush1.msra.mxu0 0.0
  %956 = vmatprep.mubr.f32.mxu0 0.0
  %957 = vmatmul.mubr.f32.gmra.mrb[0].mxu0 %v810
  %v958 = vpop.f32.mrb[0].mxu0
  %v959 = vadd.f32 0.0, %v958
  %v960 = vpop.f32.mrb[0].mxu0
  %v961 = vadd.f32 0.0, %v960
  %962 = vmatprep.mubr.f32.mxu0 0.0
  %963 = vmatmul.mubr.f32.gmra.mrb[0].mxu0 %v813
  %v964 = vpop.f32.mrb[0].mxu0
  %v965 = vadd.f32 0.0, %v964
  %v966 = vpop.f32.mrb[0].mxu0
  %v967 = vadd.f32 0.0, %v966
  %968 = vdwg.mxu0
  %969 = vmatprep.subr.mxu0 %v398
  %970 = vmatpush1.msra.mxu0 %v397
  %971 = vmatprep.subr.mxu0 %v402
  %972 = vmatpush1.msra.mxu0 %v401
  %973 = vmatprep.subr.mxu0 %v406
  %974 = vmatpush1.msra.mxu0 %v405
  %975 = vmatprep.subr.mxu0 %v410
  %976 = vmatpush1.msra.mxu0 %v409
  %977 = vmatprep.subr.mxu0 %v414
  %978 = vmatpush1.msra.mxu0 %v413
  %979 = vmatprep.subr.mxu0 %v418
  %980 = vmatpush1.msra.mxu0 %v417
  %981 = vmatprep.subr.mxu0 %v422
  %982 = vmatpush1.msra.mxu0 %v421
  %983 = vmatprep.subr.mxu0 %v426
  %984 = vmatpush1.msra.mxu0 %v425
  %985 = vmatprep.subr.mxu0 %v430
  %986 = vmatpush1.msra.mxu0 %v429
  %987 = vmatprep.subr.mxu0 %v434
  %988 = vmatpush1.msra.mxu0 %v433
  %989 = vmatprep.subr.mxu0 %v438
  %990 = vmatpush1.msra.mxu0 %v437
  %991 = vmatprep.subr.mxu0 %v442
  %992 = vmatpush1.msra.mxu0 %v441
  %993 = vmatprep.subr.mxu0 %v446
  %994 = vmatpush1.msra.mxu0 %v445
  %995 = vmatprep.subr.mxu0 %v450
  %996 = vmatpush1.msra.mxu0 %v449
  %997 = vmatprep.subr.mxu0 %v454
  %998 = vmatpush1.msra.mxu0 %v453
  %999 = vmatprep.subr.mxu0 %v458
  %1000 = vmatpush1.msra.mxu0 %v457
  %1001 = vmatprep.subr.mxu0 %v462
  %1002 = vmatpush1.msra.mxu0 %v461
  %1003 = vmatprep.subr.mxu0 %v466
  %1004 = vmatpush1.msra.mxu0 %v465
  %1005 = vmatprep.subr.mxu0 %v470
  %1006 = vmatpush1.msra.mxu0 %v469
  %1007 = vmatprep.subr.mxu0 %v474
  %1008 = vmatpush1.msra.mxu0 %v473
  %1009 = vmatprep.subr.mxu0 %v478
  %1010 = vmatpush1.msra.mxu0 %v477
  %1011 = vmatprep.subr.mxu0 %v482
  %1012 = vmatpush1.msra.mxu0 %v481
  %1013 = vmatprep.subr.mxu0 %v486
  %1014 = vmatpush1.msra.mxu0 %v485
  %1015 = vmatprep.subr.mxu0 %v490
  %1016 = vmatpush1.msra.mxu0 %v489
  %1017 = vmatprep.subr.mxu0 %v494
  %1018 = vmatpush1.msra.mxu0 %v493
  %1019 = vmatprep.subr.mxu0 %v498
  %1020 = vmatpush1.msra.mxu0 %v497
  %1021 = vmatprep.subr.mxu0 %v502
  %1022 = vmatpush1.msra.mxu0 %v501
  %1023 = vmatprep.subr.mxu0 %v506
  %1024 = vmatpush1.msra.mxu0 %v505
  %1025 = vmatprep.subr.mxu0 %v510
  %1026 = vmatpush1.msra.mxu0 %v509
  %1027 = vmatprep.subr.mxu0 %v514
  %1028 = vmatpush1.msra.mxu0 %v513
  %1029 = vmatprep.subr.mxu0 %v518
  %1030 = vmatpush1.msra.mxu0 %v517
  %1031 = vmatprep.subr.mxu0 %v522
  %1032 = vmatpush1.msra.mxu0 %v521
  %1033 = vmatprep.mubr.f32.mxu0 %v111
  %1034 = vmatmul.mubr.f32.gmra.mrb[0].mxu0 %v110
  %v1035 = vpop.f32.mrb[0].mxu0
  %v1036 = vadd.f32 %v882, %v1035
  %v1037 = vpop.f32.mrb[0].mxu0
  %v1038 = vadd.f32 %v884, %v1037
  %1039 = vmatprep.mubr.f32.mxu0 %v113
  %1040 = vmatmul.mubr.f32.gmra.mrb[0].mxu0 %v112
  %v1041 = vpop.f32.mrb[0].mxu0
  %v1042 = vadd.f32 %v888, %v1041
  %v1043 = vpop.f32.mrb[0].mxu0
  %v1044 = vadd.f32 %v890, %v1043
  %1045 = vdwg.mxu0
  %1046 = vmatprep.subr.mxu0 %v400
  %1047 = vmatpush1.msra.mxu0 %v399
  %1048 = vmatprep.subr.mxu0 %v404
  %1049 = vmatpush1.msra.mxu0 %v403
  %1050 = vmatprep.subr.mxu0 %v408
  %1051 = vmatpush1.msra.mxu0 %v407
  %1052 = vmatprep.subr.mxu0 %v412
  %1053 = vmatpush1.msra.mxu0 %v411
  %1054 = vmatprep.subr.mxu0 %v416
  %1055 = vmatpush1.msra.mxu0 %v415
  %1056 = vmatprep.subr.mxu0 %v420
  %1057 = vmatpush1.msra.mxu0 %v419
  %1058 = vmatprep.subr.mxu0 %v424
  %1059 = vmatpush1.msra.mxu0 %v423
  %1060 = vmatprep.subr.mxu0 %v428
  %1061 = vmatpush1.msra.mxu0 %v427
  %1062 = vmatprep.subr.mxu0 %v432
  %1063 = vmatpush1.msra.mxu0 %v431
  %1064 = vmatprep.subr.mxu0 %v436
  %1065 = vmatpush1.msra.mxu0 %v435
  %1066 = vmatprep.subr.mxu0 %v440
  %1067 = vmatpush1.msra.mxu0 %v439
  %1068 = vmatprep.subr.mxu0 %v444
  %1069 = vmatpush1.msra.mxu0 %v443
  %1070 = vmatprep.subr.mxu0 %v448
  %1071 = vmatpush1.msra.mxu0 %v447
  %1072 = vmatprep.subr.mxu0 %v452
  %1073 = vmatpush1.msra.mxu0 %v451
  %1074 = vmatprep.subr.mxu0 %v456
  %1075 = vmatpush1.msra.mxu0 %v455
  %1076 = vmatprep.subr.mxu0 %v460
  %1077 = vmatpush1.msra.mxu0 %v459
  %1078 = vmatprep.subr.mxu0 %v464
  %1079 = vmatpush1.msra.mxu0 %v463
  %1080 = vmatprep.subr.mxu0 %v468
  %1081 = vmatpush1.msra.mxu0 %v467
  %1082 = vmatprep.subr.mxu0 %v472
  %1083 = vmatpush1.msra.mxu0 %v471
  %1084 = vmatprep.subr.mxu0 %v476
  %1085 = vmatpush1.msra.mxu0 %v475
  %1086 = vmatprep.subr.mxu0 %v480
  %1087 = vmatpush1.msra.mxu0 %v479
  %1088 = vmatprep.subr.mxu0 %v484
  %1089 = vmatpush1.msra.mxu0 %v483
  %1090 = vmatprep.subr.mxu0 %v488
  %1091 = vmatpush1.msra.mxu0 %v487
  %1092 = vmatprep.subr.mxu0 %v492
  %1093 = vmatpush1.msra.mxu0 %v491
  %1094 = vmatprep.subr.mxu0 %v496
  %1095 = vmatpush1.msra.mxu0 %v495
  %1096 = vmatprep.subr.mxu0 %v500
  %1097 = vmatpush1.msra.mxu0 %v499
  %1098 = vmatprep.subr.mxu0 %v504
  %1099 = vmatpush1.msra.mxu0 %v503
  %1100 = vmatprep.subr.mxu0 %v508
  %1101 = vmatpush1.msra.mxu0 %v507
  %1102 = vmatprep.subr.mxu0 %v512
  %1103 = vmatpush1.msra.mxu0 %v511
  %1104 = vmatprep.subr.mxu0 %v516
  %1105 = vmatpush1.msra.mxu0 %v515
  %1106 = vmatprep.subr.mxu0 %v520
  %1107 = vmatpush1.msra.mxu0 %v519
  %1108 = vmatprep.subr.mxu0 %v524
  %1109 = vmatpush1.msra.mxu0 %v523
  %1110 = vmatprep.mubr.f32.mxu0 %v111
  %1111 = vmatmul.mubr.f32.gmra.mrb[0].mxu0 %v110
  %v1112 = vpop.f32.mrb[0].mxu0
  %v1113 = vadd.f32 %v959, %v1112
  %v1114 = vpop.f32.mrb[0].mxu0
  %v1115 = vadd.f32 %v961, %v1114
  %1116 = vmatprep.mubr.f32.mxu0 %v113
  %1117 = vmatmul.mubr.f32.gmra.mrb[0].mxu0 %v112
  %v1118 = vpop.f32.mrb[0].mxu0
  %v1119 = vadd.f32 %v965, %v1118
  %v1120 = vpop.f32.mrb[0].mxu0
  %v1121 = vadd.f32 %v967, %v1120
  %1122 = vdwg.mxu0
  %v1124 = vsel %vm808, %v40, 0
  %v1127 = vsel %vm808, %v41, 0
  %1129 = vmatprep.subr.mxu0 %v723
  %1130 = vmatpush1.msra.mxu0 %v721
  %1131 = vmatprep.subr.mxu0 %v729
  %1132 = vmatpush1.msra.mxu0 %v727
  %1133 = vmatprep.subr.mxu0 0.0
  %1134 = vmatpush1.msra.mxu0 0.0
  %1135 = vmatprep.subr.mxu0 0.0
  %1136 = vmatpush1.msra.mxu0 0.0
  %1137 = vmatprep.subr.mxu0 0.0
  %1138 = vmatpush1.msra.mxu0 0.0
  %1139 = vmatprep.subr.mxu0 0.0
  %1140 = vmatpush1.msra.mxu0 0.0
  %1141 = vmatprep.subr.mxu0 0.0
  %1142 = vmatpush1.msra.mxu0 0.0
  %1143 = vmatprep.subr.mxu0 0.0
  %1144 = vmatpush1.msra.mxu0 0.0
  %1145 = vmatprep.subr.mxu0 0.0
  %1146 = vmatpush1.msra.mxu0 0.0
  %1147 = vmatprep.subr.mxu0 0.0
  %1148 = vmatpush1.msra.mxu0 0.0
  %1149 = vmatprep.subr.mxu0 0.0
  %1150 = vmatpush1.msra.mxu0 0.0
  %1151 = vmatprep.subr.mxu0 0.0
  %1152 = vmatpush1.msra.mxu0 0.0
  %1153 = vmatprep.subr.mxu0 0.0
  %1154 = vmatpush1.msra.mxu0 0.0
  %1155 = vmatprep.subr.mxu0 0.0
  %1156 = vmatpush1.msra.mxu0 0.0
  %1157 = vmatprep.subr.mxu0 0.0
  %1158 = vmatpush1.msra.mxu0 0.0
  %1159 = vmatprep.subr.mxu0 0.0
  %1160 = vmatpush1.msra.mxu0 0.0
  %1161 = vmatprep.subr.mxu0 0.0
  %1162 = vmatpush1.msra.mxu0 0.0
  %1163 = vmatprep.subr.mxu0 0.0
  %1164 = vmatpush1.msra.mxu0 0.0
  %1165 = vmatprep.subr.mxu0 0.0
  %1166 = vmatpush1.msra.mxu0 0.0
  %1167 = vmatprep.subr.mxu0 0.0
  %1168 = vmatpush1.msra.mxu0 0.0
  %1169 = vmatprep.subr.mxu0 0.0
  %1170 = vmatpush1.msra.mxu0 0.0
  %1171 = vmatprep.subr.mxu0 0.0
  %1172 = vmatpush1.msra.mxu0 0.0
  %1173 = vmatprep.subr.mxu0 0.0
  %1174 = vmatpush1.msra.mxu0 0.0
  %1175 = vmatprep.subr.mxu0 0.0
  %1176 = vmatpush1.msra.mxu0 0.0
  %1177 = vmatprep.subr.mxu0 0.0
  %1178 = vmatpush1.msra.mxu0 0.0
  %1179 = vmatprep.subr.mxu0 0.0
  %1180 = vmatpush1.msra.mxu0 0.0
  %1181 = vmatprep.subr.mxu0 0.0
  %1182 = vmatpush1.msra.mxu0 0.0
  %1183 = vmatprep.subr.mxu0 0.0
  %1184 = vmatpush1.msra.mxu0 0.0
  %1185 = vmatprep.subr.mxu0 0.0
  %1186 = vmatpush1.msra.mxu0 0.0
  %1187 = vmatprep.subr.mxu0 0.0
  %1188 = vmatpush1.msra.mxu0 0.0
  %1189 = vmatprep.subr.mxu0 0.0
  %1190 = vmatpush1.msra.mxu0 0.0
  %1191 = vmatprep.subr.mxu0 0.0
  %1192 = vmatpush1.msra.mxu0 0.0
  %1193 = vmatprep.mubr.f32.mxu0 0.0
  %1194 = vmatmul.mubr.f32.gmra.mrb[0].mxu0 %v1124
  %v1195 = vpop.f32.mrb[0].mxu0
  %v1196 = vadd.f32 0.0, %v1195
  %v1197 = vpop.f32.mrb[0].mxu0
  %v1198 = vadd.f32 0.0, %v1197
  %1199 = vmatprep.mubr.f32.mxu0 0.0
  %1200 = vmatmul.mubr.f32.gmra.mrb[0].mxu0 %v1127
  %v1201 = vpop.f32.mrb[0].mxu0
  %v1202 = vadd.f32 0.0, %v1201
  %v1203 = vpop.f32.mrb[0].mxu0
  %v1204 = vadd.f32 0.0, %v1203
  %1205 = vdwg.mxu0
  %1206 = vmatprep.subr.mxu0 %v800
  %1207 = vmatpush1.msra.mxu0 %v798
  %1208 = vmatprep.subr.mxu0 %v806
  %1209 = vmatpush1.msra.mxu0 %v804
  %1210 = vmatprep.subr.mxu0 0.0
  %1211 = vmatpush1.msra.mxu0 0.0
  %1212 = vmatprep.subr.mxu0 0.0
  %1213 = vmatpush1.msra.mxu0 0.0
  %1214 = vmatprep.subr.mxu0 0.0
  %1215 = vmatpush1.msra.mxu0 0.0
  %1216 = vmatprep.subr.mxu0 0.0
  %1217 = vmatpush1.msra.mxu0 0.0
  %1218 = vmatprep.subr.mxu0 0.0
  %1219 = vmatpush1.msra.mxu0 0.0
  %1220 = vmatprep.subr.mxu0 0.0
  %1221 = vmatpush1.msra.mxu0 0.0
  %1222 = vmatprep.subr.mxu0 0.0
  %1223 = vmatpush1.msra.mxu0 0.0
  %1224 = vmatprep.subr.mxu0 0.0
  %1225 = vmatpush1.msra.mxu0 0.0
  %1226 = vmatprep.subr.mxu0 0.0
  %1227 = vmatpush1.msra.mxu0 0.0
  %1228 = vmatprep.subr.mxu0 0.0
  %1229 = vmatpush1.msra.mxu0 0.0
  %1230 = vmatprep.subr.mxu0 0.0
  %1231 = vmatpush1.msra.mxu0 0.0
  %1232 = vmatprep.subr.mxu0 0.0
  %1233 = vmatpush1.msra.mxu0 0.0
  %1234 = vmatprep.subr.mxu0 0.0
  %1235 = vmatpush1.msra.mxu0 0.0
  %1236 = vmatprep.subr.mxu0 0.0
  %1237 = vmatpush1.msra.mxu0 0.0
  %1238 = vmatprep.subr.mxu0 0.0
  %1239 = vmatpush1.msra.mxu0 0.0
  %1240 = vmatprep.subr.mxu0 0.0
  %1241 = vmatpush1.msra.mxu0 0.0
  %1242 = vmatprep.subr.mxu0 0.0
  %1243 = vmatpush1.msra.mxu0 0.0
  %1244 = vmatprep.subr.mxu0 0.0
  %1245 = vmatpush1.msra.mxu0 0.0
  %1246 = vmatprep.subr.mxu0 0.0
  %1247 = vmatpush1.msra.mxu0 0.0
  %1248 = vmatprep.subr.mxu0 0.0
  %1249 = vmatpush1.msra.mxu0 0.0
  %1250 = vmatprep.subr.mxu0 0.0
  %1251 = vmatpush1.msra.mxu0 0.0
  %1252 = vmatprep.subr.mxu0 0.0
  %1253 = vmatpush1.msra.mxu0 0.0
  %1254 = vmatprep.subr.mxu0 0.0
  %1255 = vmatpush1.msra.mxu0 0.0
  %1256 = vmatprep.subr.mxu0 0.0
  %1257 = vmatpush1.msra.mxu0 0.0
  %1258 = vmatprep.subr.mxu0 0.0
  %1259 = vmatpush1.msra.mxu0 0.0
  %1260 = vmatprep.subr.mxu0 0.0
  %1261 = vmatpush1.msra.mxu0 0.0
  %1262 = vmatprep.subr.mxu0 0.0
  %1263 = vmatpush1.msra.mxu0 0.0
  %1264 = vmatprep.subr.mxu0 0.0
  %1265 = vmatpush1.msra.mxu0 0.0
  %1266 = vmatprep.subr.mxu0 0.0
  %1267 = vmatpush1.msra.mxu0 0.0
  %1268 = vmatprep.subr.mxu0 0.0
  %1269 = vmatpush1.msra.mxu0 0.0
  %1270 = vmatprep.mubr.f32.mxu0 0.0
  %1271 = vmatmul.mubr.f32.gmra.mrb[0].mxu0 %v1124
  %v1272 = vpop.f32.mrb[0].mxu0
  %v1273 = vadd.f32 0.0, %v1272
  %v1274 = vpop.f32.mrb[0].mxu0
  %v1275 = vadd.f32 0.0, %v1274
  %1276 = vmatprep.mubr.f32.mxu0 0.0
  %1277 = vmatmul.mubr.f32.gmra.mrb[0].mxu0 %v1127
  %v1278 = vpop.f32.mrb[0].mxu0
  %v1279 = vadd.f32 0.0, %v1278
  %v1280 = vpop.f32.mrb[0].mxu0
  %v1281 = vadd.f32 0.0, %v1280
  %1282 = vdwg.mxu0
  %v1283 = vadd.f32 %v1036, %v1196
  %v1284 = vadd.f32 %v1038, %v1198
  %v1285 = vadd.f32 %v1113, %v1273
  %v1286 = vadd.f32 %v1115, %v1275
  %v1287 = vadd.f32 %v1042, %v1202
  %v1288 = vadd.f32 %v1044, %v1204
  %v1289 = vadd.f32 %v1119, %v1279
  %v1290 = vadd.f32 %v1121, %v1281
  %v1291 = vadd.f32 %v1283, %v1287
  %v1292 = vrot.slane %v1291, 4
  %v1293 = vadd.f32 %v1291, %v1292
  %v1294 = vrot.slane %v1293, 2
  %v1295 = vadd.f32 %v1293, %v1294
  %v1296 = vrot.slane %v1295, 1
  %v1297 = vadd.f32 %v1295, %v1296
  %v1298 = vadd.f32 %v1284, %v1288
  %v1299 = vrot.slane %v1298, 4
  %v1300 = vadd.f32 %v1298, %v1299
  %v1301 = vrot.slane %v1300, 2
  %v1302 = vadd.f32 %v1300, %v1301
  %v1303 = vrot.slane %v1302, 1
  %v1304 = vadd.f32 %v1302, %v1303
  %v1305 = vadd.f32 %v1285, %v1289
  %v1306 = vrot.slane %v1305, 4
  %v1307 = vadd.f32 %v1305, %v1306
  %v1308 = vrot.slane %v1307, 2
  %v1309 = vadd.f32 %v1307, %v1308
  %v1310 = vrot.slane %v1309, 1
  %v1311 = vadd.f32 %v1309, %v1310
  %v1312 = vadd.f32 %v1286, %v1290
  %v1313 = vrot.slane %v1312, 4
  %v1314 = vadd.f32 %v1312, %v1313
  %v1315 = vrot.slane %v1314, 2
  %v1316 = vadd.f32 %v1314, %v1315
  %v1317 = vrot.slane %v1316, 1
  %v1318 = vadd.f32 %v1316, %v1317
  %v1319 = vmul.f32 %v1283, %v1283
  %v1320 = vmul.f32 %v1284, %v1284
  %v1321 = vmul.f32 %v1285, %v1285
  %v1322 = vmul.f32 %v1286, %v1286
  %v1323 = vmul.f32 %v1287, %v1287
  %v1324 = vmul.f32 %v1288, %v1288
  %v1325 = vmul.f32 %v1289, %v1289
  %v1326 = vmul.f32 %v1290, %v1290
  %v1327 = vadd.f32 %v1319, %v1323
  %v1328 = vrot.slane %v1327, 4
  %v1329 = vadd.f32 %v1327, %v1328
  %v1330 = vrot.slane %v1329, 2
  %v1331 = vadd.f32 %v1329, %v1330
  %v1332 = vrot.slane %v1331, 1
  %v1333 = vadd.f32 %v1331, %v1332
  %v1334 = vadd.f32 %v1320, %v1324
  %v1335 = vrot.slane %v1334, 4
  %v1336 = vadd.f32 %v1334, %v1335
  %v1337 = vrot.slane %v1336, 2
  %v1338 = vadd.f32 %v1336, %v1337
  %v1339 = vrot.slane %v1338, 1
  %v1340 = vadd.f32 %v1338, %v1339
  %v1341 = vadd.f32 %v1321, %v1325
  %v1342 = vrot.slane %v1341, 4
  %v1343 = vadd.f32 %v1341, %v1342
  %v1344 = vrot.slane %v1343, 2
  %v1345 = vadd.f32 %v1343, %v1344
  %v1346 = vrot.slane %v1345, 1
  %v1347 = vadd.f32 %v1345, %v1346
  %v1348 = vadd.f32 %v1322, %v1326
  %v1349 = vrot.slane %v1348, 4
  %v1350 = vadd.f32 %v1348, %v1349
  %v1351 = vrot.slane %v1350, 2
  %v1352 = vadd.f32 %v1350, %v1351
  %v1353 = vrot.slane %v1352, 1
  %v1354 = vadd.f32 %v1352, %v1353
  %1355 = vmatprep.subr.mxu0 0.0
  %1356 = vmatpush1.msra.mxu0 %v42
  %1357 = vmatprep.subr.mxu0 0.0
  %1358 = vmatpush1.msra.mxu0 %v43
  %1359 = vmatprep.subr.mxu0 0.0
  %1360 = vmatpush1.msra.mxu0 %v44
  %1361 = vmatprep.subr.mxu0 0.0
  %1362 = vmatpush1.msra.mxu0 %v45
  %1363 = vmatprep.subr.mxu0 0.0
  %1364 = vmatpush1.msra.mxu0 %v46
  %1365 = vmatprep.subr.mxu0 0.0
  %1366 = vmatpush1.msra.mxu0 %v47
  %1367 = vmatprep.subr.mxu0 0.0
  %1368 = vmatpush1.msra.mxu0 %v48
  %1369 = vmatprep.subr.mxu0 0.0
  %1370 = vmatpush1.msra.mxu0 %v49
  %1371 = vmatprep.subr.mxu0 0.0
  %1372 = vmatpush1.msra.mxu0 %v50
  %1373 = vmatprep.subr.mxu0 0.0
  %1374 = vmatpush1.msra.mxu0 %v51
  %1375 = vmatprep.subr.mxu0 0.0
  %1376 = vmatpush1.msra.mxu0 %v52
  %1377 = vmatprep.subr.mxu0 0.0
  %1378 = vmatpush1.msra.mxu0 %v53
  %1379 = vmatprep.subr.mxu0 0.0
  %1380 = vmatpush1.msra.mxu0 %v54
  %1381 = vmatprep.subr.mxu0 0.0
  %1382 = vmatpush1.msra.mxu0 %v55
  %1383 = vmatprep.subr.mxu0 0.0
  %1384 = vmatpush1.msra.mxu0 %v56
  %1385 = vmatprep.subr.mxu0 0.0
  %1386 = vmatpush1.msra.mxu0 %v57
  %1387 = vmatprep.subr.mxu0 0.0
  %1388 = vmatpush1.msra.mxu0 %v58
  %1389 = vmatprep.subr.mxu0 0.0
  %1390 = vmatpush1.msra.mxu0 %v59
  %1391 = vmatprep.subr.mxu0 0.0
  %1392 = vmatpush1.msra.mxu0 %v60
  %1393 = vmatprep.subr.mxu0 0.0
  %1394 = vmatpush1.msra.mxu0 %v61
  %1395 = vmatprep.subr.mxu0 0.0
  %1396 = vmatpush1.msra.mxu0 %v62
  %1397 = vmatprep.subr.mxu0 0.0
  %1398 = vmatpush1.msra.mxu0 %v63
  %1399 = vmatprep.subr.mxu0 0.0
  %1400 = vmatpush1.msra.mxu0 %v64
  %1401 = vmatprep.subr.mxu0 0.0
  %1402 = vmatpush1.msra.mxu0 %v65
  %1403 = vmatprep.subr.mxu0 0.0
  %1404 = vmatpush1.msra.mxu0 %v66
  %1405 = vmatprep.subr.mxu0 0.0
  %1406 = vmatpush1.msra.mxu0 %v67
  %1407 = vmatprep.subr.mxu0 0.0
  %1408 = vmatpush1.msra.mxu0 %v68
  %1409 = vmatprep.subr.mxu0 0.0
  %1410 = vmatpush1.msra.mxu0 %v69
  %1411 = vmatprep.subr.mxu0 0.0
  %1412 = vmatpush1.msra.mxu0 %v70
  %1413 = vmatprep.subr.mxu0 0.0
  %1414 = vmatpush1.msra.mxu0 %v71
  %1415 = vmatprep.subr.mxu0 0.0
  %1416 = vmatpush1.msra.mxu0 %v72
  %1417 = vmatprep.subr.mxu0 0.0
  %1418 = vmatpush1.msra.mxu0 %v73
  %1419 = vmatprep.mubr.f32.mxu0 %v1304
  %1420 = vmatmul.mubr.f32.gmra.mrb[0].mxu0 %v1297
  %v1421 = vpop.f32.mrb[0].mxu0
  %v1422 = vadd.f32 0.0, %v1421
  %v1423 = vpop.f32.mrb[0].mxu0
  %1424 = vdwg.mxu0
  %1425 = vmatprep.subr.mxu0 0.0
  %1426 = vmatpush1.msra.mxu0 %v74
  %1427 = vmatprep.subr.mxu0 0.0
  %1428 = vmatpush1.msra.mxu0 %v75
  %1429 = vmatprep.subr.mxu0 0.0
  %1430 = vmatpush1.msra.mxu0 %v76
  %1431 = vmatprep.subr.mxu0 0.0
  %1432 = vmatpush1.msra.mxu0 %v77
  %1433 = vmatprep.subr.mxu0 0.0
  %1434 = vmatpush1.msra.mxu0 %v78
  %1435 = vmatprep.subr.mxu0 0.0
  %1436 = vmatpush1.msra.mxu0 %v79
  %1437 = vmatprep.subr.mxu0 0.0
  %1438 = vmatpush1.msra.mxu0 %v80
  %1439 = vmatprep.subr.mxu0 0.0
  %1440 = vmatpush1.msra.mxu0 %v81
  %1441 = vmatprep.subr.mxu0 0.0
  %1442 = vmatpush1.msra.mxu0 %v82
  %1443 = vmatprep.subr.mxu0 0.0
  %1444 = vmatpush1.msra.mxu0 %v83
  %1445 = vmatprep.subr.mxu0 0.0
  %1446 = vmatpush1.msra.mxu0 %v84
  %1447 = vmatprep.subr.mxu0 0.0
  %1448 = vmatpush1.msra.mxu0 %v85
  %1449 = vmatprep.subr.mxu0 0.0
  %1450 = vmatpush1.msra.mxu0 %v86
  %1451 = vmatprep.subr.mxu0 0.0
  %1452 = vmatpush1.msra.mxu0 %v87
  %1453 = vmatprep.subr.mxu0 0.0
  %1454 = vmatpush1.msra.mxu0 %v88
  %1455 = vmatprep.subr.mxu0 0.0
  %1456 = vmatpush1.msra.mxu0 %v89
  %1457 = vmatprep.subr.mxu0 0.0
  %1458 = vmatpush1.msra.mxu0 %v90
  %1459 = vmatprep.subr.mxu0 0.0
  %1460 = vmatpush1.msra.mxu0 %v91
  %1461 = vmatprep.subr.mxu0 0.0
  %1462 = vmatpush1.msra.mxu0 %v92
  %1463 = vmatprep.subr.mxu0 0.0
  %1464 = vmatpush1.msra.mxu0 %v93
  %1465 = vmatprep.subr.mxu0 0.0
  %1466 = vmatpush1.msra.mxu0 %v94
  %1467 = vmatprep.subr.mxu0 0.0
  %1468 = vmatpush1.msra.mxu0 %v95
  %1469 = vmatprep.subr.mxu0 0.0
  %1470 = vmatpush1.msra.mxu0 %v96
  %1471 = vmatprep.subr.mxu0 0.0
  %1472 = vmatpush1.msra.mxu0 %v97
  %1473 = vmatprep.subr.mxu0 0.0
  %1474 = vmatpush1.msra.mxu0 %v98
  %1475 = vmatprep.subr.mxu0 0.0
  %1476 = vmatpush1.msra.mxu0 %v99
  %1477 = vmatprep.subr.mxu0 0.0
  %1478 = vmatpush1.msra.mxu0 %v100
  %1479 = vmatprep.subr.mxu0 0.0
  %1480 = vmatpush1.msra.mxu0 %v101
  %1481 = vmatprep.subr.mxu0 0.0
  %1482 = vmatpush1.msra.mxu0 %v102
  %1483 = vmatprep.subr.mxu0 0.0
  %1484 = vmatpush1.msra.mxu0 %v103
  %1485 = vmatprep.subr.mxu0 0.0
  %1486 = vmatpush1.msra.mxu0 %v104
  %1487 = vmatprep.subr.mxu0 0.0
  %1488 = vmatpush1.msra.mxu0 %v105
  %1489 = vmatprep.mubr.f32.mxu0 %v1318
  %1490 = vmatmul.mubr.f32.gmra.mrb[0].mxu0 %v1311
  %v1491 = vpop.f32.mrb[0].mxu0
  %v1492 = vadd.f32 %v1422, %v1491
  %v1493 = vpop.f32.mrb[0].mxu0
  %1494 = vdwg.mxu0
  %1495 = vmatprep.subr.mxu0 0.0
  %1496 = vmatpush1.msra.mxu0 %v42
  %1497 = vmatprep.subr.mxu0 0.0
  %1498 = vmatpush1.msra.mxu0 %v43
  %1499 = vmatprep.subr.mxu0 0.0
  %1500 = vmatpush1.msra.mxu0 %v44
  %1501 = vmatprep.subr.mxu0 0.0
  %1502 = vmatpush1.msra.mxu0 %v45
  %1503 = vmatprep.subr.mxu0 0.0
  %1504 = vmatpush1.msra.mxu0 %v46
  %1505 = vmatprep.subr.mxu0 0.0
  %1506 = vmatpush1.msra.mxu0 %v47
  %1507 = vmatprep.subr.mxu0 0.0
  %1508 = vmatpush1.msra.mxu0 %v48
  %1509 = vmatprep.subr.mxu0 0.0
  %1510 = vmatpush1.msra.mxu0 %v49
  %1511 = vmatprep.subr.mxu0 0.0
  %1512 = vmatpush1.msra.mxu0 %v50
  %1513 = vmatprep.subr.mxu0 0.0
  %1514 = vmatpush1.msra.mxu0 %v51
  %1515 = vmatprep.subr.mxu0 0.0
  %1516 = vmatpush1.msra.mxu0 %v52
  %1517 = vmatprep.subr.mxu0 0.0
  %1518 = vmatpush1.msra.mxu0 %v53
  %1519 = vmatprep.subr.mxu0 0.0
  %1520 = vmatpush1.msra.mxu0 %v54
  %1521 = vmatprep.subr.mxu0 0.0
  %1522 = vmatpush1.msra.mxu0 %v55
  %1523 = vmatprep.subr.mxu0 0.0
  %1524 = vmatpush1.msra.mxu0 %v56
  %1525 = vmatprep.subr.mxu0 0.0
  %1526 = vmatpush1.msra.mxu0 %v57
  %1527 = vmatprep.subr.mxu0 0.0
  %1528 = vmatpush1.msra.mxu0 %v58
  %1529 = vmatprep.subr.mxu0 0.0
  %1530 = vmatpush1.msra.mxu0 %v59
  %1531 = vmatprep.subr.mxu0 0.0
  %1532 = vmatpush1.msra.mxu0 %v60
  %1533 = vmatprep.subr.mxu0 0.0
  %1534 = vmatpush1.msra.mxu0 %v61
  %1535 = vmatprep.subr.mxu0 0.0
  %1536 = vmatpush1.msra.mxu0 %v62
  %1537 = vmatprep.subr.mxu0 0.0
  %1538 = vmatpush1.msra.mxu0 %v63
  %1539 = vmatprep.subr.mxu0 0.0
  %1540 = vmatpush1.msra.mxu0 %v64
  %1541 = vmatprep.subr.mxu0 0.0
  %1542 = vmatpush1.msra.mxu0 %v65
  %1543 = vmatprep.subr.mxu0 0.0
  %1544 = vmatpush1.msra.mxu0 %v66
  %1545 = vmatprep.subr.mxu0 0.0
  %1546 = vmatpush1.msra.mxu0 %v67
  %1547 = vmatprep.subr.mxu0 0.0
  %1548 = vmatpush1.msra.mxu0 %v68
  %1549 = vmatprep.subr.mxu0 0.0
  %1550 = vmatpush1.msra.mxu0 %v69
  %1551 = vmatprep.subr.mxu0 0.0
  %1552 = vmatpush1.msra.mxu0 %v70
  %1553 = vmatprep.subr.mxu0 0.0
  %1554 = vmatpush1.msra.mxu0 %v71
  %1555 = vmatprep.subr.mxu0 0.0
  %1556 = vmatpush1.msra.mxu0 %v72
  %1557 = vmatprep.subr.mxu0 0.0
  %1558 = vmatpush1.msra.mxu0 %v73
  %1559 = vmatprep.mubr.f32.mxu0 %v1340
  %1560 = vmatmul.mubr.f32.gmra.mrb[0].mxu0 %v1333
  %v1561 = vpop.f32.mrb[0].mxu0
  %v1562 = vadd.f32 0.0, %v1561
  %v1563 = vpop.f32.mrb[0].mxu0
  %1564 = vdwg.mxu0
  %1565 = vmatprep.subr.mxu0 0.0
  %1566 = vmatpush1.msra.mxu0 %v74
  %1567 = vmatprep.subr.mxu0 0.0
  %1568 = vmatpush1.msra.mxu0 %v75
  %1569 = vmatprep.subr.mxu0 0.0
  %1570 = vmatpush1.msra.mxu0 %v76
  %1571 = vmatprep.subr.mxu0 0.0
  %1572 = vmatpush1.msra.mxu0 %v77
  %1573 = vmatprep.subr.mxu0 0.0
  %1574 = vmatpush1.msra.mxu0 %v78
  %1575 = vmatprep.subr.mxu0 0.0
  %1576 = vmatpush1.msra.mxu0 %v79
  %1577 = vmatprep.subr.mxu0 0.0
  %1578 = vmatpush1.msra.mxu0 %v80
  %1579 = vmatprep.subr.mxu0 0.0
  %1580 = vmatpush1.msra.mxu0 %v81
  %1581 = vmatprep.subr.mxu0 0.0
  %1582 = vmatpush1.msra.mxu0 %v82
  %1583 = vmatprep.subr.mxu0 0.0
  %1584 = vmatpush1.msra.mxu0 %v83
  %1585 = vmatprep.subr.mxu0 0.0
  %1586 = vmatpush1.msra.mxu0 %v84
  %1587 = vmatprep.subr.mxu0 0.0
  %1588 = vmatpush1.msra.mxu0 %v85
  %1589 = vmatprep.subr.mxu0 0.0
  %1590 = vmatpush1.msra.mxu0 %v86
  %1591 = vmatprep.subr.mxu0 0.0
  %1592 = vmatpush1.msra.mxu0 %v87
  %1593 = vmatprep.subr.mxu0 0.0
  %1594 = vmatpush1.msra.mxu0 %v88
  %1595 = vmatprep.subr.mxu0 0.0
  %1596 = vmatpush1.msra.mxu0 %v89
  %1597 = vmatprep.subr.mxu0 0.0
  %1598 = vmatpush1.msra.mxu0 %v90
  %1599 = vmatprep.subr.mxu0 0.0
  %1600 = vmatpush1.msra.mxu0 %v91
  %1601 = vmatprep.subr.mxu0 0.0
  %1602 = vmatpush1.msra.mxu0 %v92
  %1603 = vmatprep.subr.mxu0 0.0
  %1604 = vmatpush1.msra.mxu0 %v93
  %1605 = vmatprep.subr.mxu0 0.0
  %1606 = vmatpush1.msra.mxu0 %v94
  %1607 = vmatprep.subr.mxu0 0.0
  %1608 = vmatpush1.msra.mxu0 %v95
  %1609 = vmatprep.subr.mxu0 0.0
  %1610 = vmatpush1.msra.mxu0 %v96
  %1611 = vmatprep.subr.mxu0 0.0
  %1612 = vmatpush1.msra.mxu0 %v97
  %1613 = vmatprep.subr.mxu0 0.0
  %1614 = vmatpush1.msra.mxu0 %v98
  %1615 = vmatprep.subr.mxu0 0.0
  %1616 = vmatpush1.msra.mxu0 %v99
  %1617 = vmatprep.subr.mxu0 0.0
  %1618 = vmatpush1.msra.mxu0 %v100
  %1619 = vmatprep.subr.mxu0 0.0
  %1620 = vmatpush1.msra.mxu0 %v101
  %1621 = vmatprep.subr.mxu0 0.0
  %1622 = vmatpush1.msra.mxu0 %v102
  %1623 = vmatprep.subr.mxu0 0.0
  %1624 = vmatpush1.msra.mxu0 %v103
  %1625 = vmatprep.subr.mxu0 0.0
  %1626 = vmatpush1.msra.mxu0 %v104
  %1627 = vmatprep.subr.mxu0 0.0
  %1628 = vmatpush1.msra.mxu0 %v105
  %1629 = vmatprep.mubr.f32.mxu0 %v1354
  %1630 = vmatmul.mubr.f32.gmra.mrb[0].mxu0 %v1347
  %v1631 = vpop.f32.mrb[0].mxu0
  %v1632 = vadd.f32 %v1562, %v1631
  %v1633 = vpop.f32.mrb[0].mxu0
  %1634 = vdwg.mxu0
  %v1635 = vmul.f32 %v1492, %v1492
  %v1636 = vsub.f32 %v1632, %v1635
  %v1637 = vld [vmem:[%s7] sm:$0x1]
  %v1638 = vadd.f32 %v1636, 1e-05
  %v1639 = vrsqrt.pop %v1638
  %v1640 = vmul.f32 %v1637, %v1639
  %v1641 = vld [vmem:[%s8] sm:$0x1]
  %v1642 = vmul.f32 %v1492, %v1640
  %v1643 = vsub.f32 %v1641, %v1642
  %vm1644 = vcmask 64512
  %v1646 = vsel %vm1644, %v1640, 0
  %1648 = vmatprep.subr.mxu0 %v107
  %1649 = vmatpush1.msra.mxu0 %v106
  %1650 = vmatprep.subr.mxu0 0.0
  %1651 = vmatpush1.msra.mxu0 0.0
  %1652 = vmatprep.subr.mxu0 0.0
  %1653 = vmatpush1.msra.mxu0 0.0
  %1654 = vmatprep.subr.mxu0 0.0
  %1655 = vmatpush1.msra.mxu0 0.0
  %1656 = vmatprep.subr.mxu0 0.0
  %1657 = vmatpush1.msra.mxu0 0.0
  %1658 = vmatprep.subr.mxu0 0.0
  %1659 = vmatpush1.msra.mxu0 0.0
  %1660 = vmatprep.subr.mxu0 0.0
  %1661 = vmatpush1.msra.mxu0 0.0
  %1662 = vmatprep.subr.mxu0 0.0
  %1663 = vmatpush1.msra.mxu0 0.0
  %1664 = vmatprep.subr.mxu0 0.0
  %1665 = vmatpush1.msra.mxu0 0.0
  %1666 = vmatprep.subr.mxu0 0.0
  %1667 = vmatpush1.msra.mxu0 0.0
  %1668 = vmatprep.subr.mxu0 0.0
  %1669 = vmatpush1.msra.mxu0 0.0
  %1670 = vmatprep.subr.mxu0 0.0
  %1671 = vmatpush1.msra.mxu0 0.0
  %1672 = vmatprep.subr.mxu0 0.0
  %1673 = vmatpush1.msra.mxu0 0.0
  %1674 = vmatprep.subr.mxu0 0.0
  %1675 = vmatpush1.msra.mxu0 0.0
  %1676 = vmatprep.subr.mxu0 0.0
  %1677 = vmatpush1.msra.mxu0 0.0
  %1678 = vmatprep.subr.mxu0 0.0
  %1679 = vmatpush1.msra.mxu0 0.0
  %1680 = vmatprep.subr.mxu0 0.0
  %1681 = vmatpush1.msra.mxu0 0.0
  %1682 = vmatprep.subr.mxu0 0.0
  %1683 = vmatpush1.msra.mxu0 0.0
  %1684 = vmatprep.subr.mxu0 0.0
  %1685 = vmatpush1.msra.mxu0 0.0
  %1686 = vmatprep.subr.mxu0 0.0
  %1687 = vmatpush1.msra.mxu0 0.0
  %1688 = vmatprep.subr.mxu0 0.0
  %1689 = vmatpush1.msra.mxu0 0.0
  %1690 = vmatprep.subr.mxu0 0.0
  %1691 = vmatpush1.msra.mxu0 0.0
  %1692 = vmatprep.subr.mxu0 0.0
  %1693 = vmatpush1.msra.mxu0 0.0
  %1694 = vmatprep.subr.mxu0 0.0
  %1695 = vmatpush1.msra.mxu0 0.0
  %1696 = vmatprep.subr.mxu0 0.0
  %1697 = vmatpush1.msra.mxu0 0.0
  %1698 = vmatprep.subr.mxu0 0.0
  %1699 = vmatpush1.msra.mxu0 0.0
  %1700 = vmatprep.subr.mxu0 0.0
  %1701 = vmatpush1.msra.mxu0 0.0
  %1702 = vmatprep.subr.mxu0 0.0
  %1703 = vmatpush1.msra.mxu0 0.0
  %1704 = vmatprep.subr.mxu0 0.0
  %1705 = vmatpush1.msra.mxu0 0.0
  %1706 = vmatprep.subr.mxu0 0.0
  %1707 = vmatpush1.msra.mxu0 0.0
  %1708 = vmatprep.subr.mxu0 0.0
  %1709 = vmatpush1.msra.mxu0 0.0
  %1710 = vmatprep.subr.mxu0 0.0
  %1711 = vmatpush1.msra.mxu0 0.0
  %1712 = vmatprep.mubr.f32.mxu0 0.0
  %1713 = vmatmul.mubr.f32.gmra.mrb[0].mxu0 %v1646
  %v1714 = vpop.f32.mrb[0].mxu0
  %v1715 = vadd.f32 0.0, %v1714
  %v1716 = vpop.f32.mrb[0].mxu0
  %v1717 = vadd.f32 0.0, %v1716
  %1718 = vdwg.mxu0
  %1719 = vmatprep.subr.mxu0 %v109
  %1720 = vmatpush1.msra.mxu0 %v108
  %1721 = vmatprep.subr.mxu0 0.0
  %1722 = vmatpush1.msra.mxu0 0.0
  %1723 = vmatprep.subr.mxu0 0.0
  %1724 = vmatpush1.msra.mxu0 0.0
  %1725 = vmatprep.subr.mxu0 0.0
  %1726 = vmatpush1.msra.mxu0 0.0
  %1727 = vmatprep.subr.mxu0 0.0
  %1728 = vmatpush1.msra.mxu0 0.0
  %1729 = vmatprep.subr.mxu0 0.0
  %1730 = vmatpush1.msra.mxu0 0.0
  %1731 = vmatprep.subr.mxu0 0.0
  %1732 = vmatpush1.msra.mxu0 0.0
  %1733 = vmatprep.subr.mxu0 0.0
  %1734 = vmatpush1.msra.mxu0 0.0
  %1735 = vmatprep.subr.mxu0 0.0
  %1736 = vmatpush1.msra.mxu0 0.0
  %1737 = vmatprep.subr.mxu0 0.0
  %1738 = vmatpush1.msra.mxu0 0.0
  %1739 = vmatprep.subr.mxu0 0.0
  %1740 = vmatpush1.msra.mxu0 0.0
  %1741 = vmatprep.subr.mxu0 0.0
  %1742 = vmatpush1.msra.mxu0 0.0
  %1743 = vmatprep.subr.mxu0 0.0
  %1744 = vmatpush1.msra.mxu0 0.0
  %1745 = vmatprep.subr.mxu0 0.0
  %1746 = vmatpush1.msra.mxu0 0.0
  %1747 = vmatprep.subr.mxu0 0.0
  %1748 = vmatpush1.msra.mxu0 0.0
  %1749 = vmatprep.subr.mxu0 0.0
  %1750 = vmatpush1.msra.mxu0 0.0
  %1751 = vmatprep.subr.mxu0 0.0
  %1752 = vmatpush1.msra.mxu0 0.0
  %1753 = vmatprep.subr.mxu0 0.0
  %1754 = vmatpush1.msra.mxu0 0.0
  %1755 = vmatprep.subr.mxu0 0.0
  %1756 = vmatpush1.msra.mxu0 0.0
  %1757 = vmatprep.subr.mxu0 0.0
  %1758 = vmatpush1.msra.mxu0 0.0
  %1759 = vmatprep.subr.mxu0 0.0
  %1760 = vmatpush1.msra.mxu0 0.0
  %1761 = vmatprep.subr.mxu0 0.0
  %1762 = vmatpush1.msra.mxu0 0.0
  %1763 = vmatprep.subr.mxu0 0.0
  %1764 = vmatpush1.msra.mxu0 0.0
  %1765 = vmatprep.subr.mxu0 0.0
  %1766 = vmatpush1.msra.mxu0 0.0
  %1767 = vmatprep.subr.mxu0 0.0
  %1768 = vmatpush1.msra.mxu0 0.0
  %1769 = vmatprep.subr.mxu0 0.0
  %1770 = vmatpush1.msra.mxu0 0.0
  %1771 = vmatprep.subr.mxu0 0.0
  %1772 = vmatpush1.msra.mxu0 0.0
  %1773 = vmatprep.subr.mxu0 0.0
  %1774 = vmatpush1.msra.mxu0 0.0
  %1775 = vmatprep.subr.mxu0 0.0
  %1776 = vmatpush1.msra.mxu0 0.0
  %1777 = vmatprep.subr.mxu0 0.0
  %1778 = vmatpush1.msra.mxu0 0.0
  %1779 = vmatprep.subr.mxu0 0.0
  %1780 = vmatpush1.msra.mxu0 0.0
  %1781 = vmatprep.subr.mxu0 0.0
  %1782 = vmatpush1.msra.mxu0 0.0
  %1783 = vmatprep.mubr.f32.mxu0 0.0
  %1784 = vmatmul.mubr.f32.gmra.mrb[0].mxu0 %v1646
  %v1785 = vpop.f32.mrb[0].mxu0
  %v1786 = vadd.f32 0.0, %v1785
  %v1787 = vpop.f32.mrb[0].mxu0
  %v1788 = vadd.f32 0.0, %v1787
  %1789 = vdwg.mxu0
  %v1791 = vsel %vm1644, %v1643, 0
  %1793 = vmatprep.subr.mxu0 %v107
  %1794 = vmatpush1.msra.mxu0 %v106
  %1795 = vmatprep.subr.mxu0 0.0
  %1796 = vmatpush1.msra.mxu0 0.0
  %1797 = vmatprep.subr.mxu0 0.0
  %1798 = vmatpush1.msra.mxu0 0.0
  %1799 = vmatprep.subr.mxu0 0.0
  %1800 = vmatpush1.msra.mxu0 0.0
  %1801 = vmatprep.subr.mxu0 0.0
  %1802 = vmatpush1.msra.mxu0 0.0
  %1803 = vmatprep.subr.mxu0 0.0
  %1804 = vmatpush1.msra.mxu0 0.0
  %1805 = vmatprep.subr.mxu0 0.0
  %1806 = vmatpush1.msra.mxu0 0.0
  %1807 = vmatprep.subr.mxu0 0.0
  %1808 = vmatpush1.msra.mxu0 0.0
  %1809 = vmatprep.subr.mxu0 0.0
  %1810 = vmatpush1.msra.mxu0 0.0
  %1811 = vmatprep.subr.mxu0 0.0
  %1812 = vmatpush1.msra.mxu0 0.0
  %1813 = vmatprep.subr.mxu0 0.0
  %1814 = vmatpush1.msra.mxu0 0.0
  %1815 = vmatprep.subr.mxu0 0.0
  %1816 = vmatpush1.msra.mxu0 0.0
  %1817 = vmatprep.subr.mxu0 0.0
  %1818 = vmatpush1.msra.mxu0 0.0
  %1819 = vmatprep.subr.mxu0 0.0
  %1820 = vmatpush1.msra.mxu0 0.0
  %1821 = vmatprep.subr.mxu0 0.0
  %1822 = vmatpush1.msra.mxu0 0.0
  %1823 = vmatprep.subr.mxu0 0.0
  %1824 = vmatpush1.msra.mxu0 0.0
  %1825 = vmatprep.subr.mxu0 0.0
  %1826 = vmatpush1.msra.mxu0 0.0
  %1827 = vmatprep.subr.mxu0 0.0
  %1828 = vmatpush1.msra.mxu0 0.0
  %1829 = vmatprep.subr.mxu0 0.0
  %1830 = vmatpush1.msra.mxu0 0.0
  %1831 = vmatprep.subr.mxu0 0.0
  %1832 = vmatpush1.msra.mxu0 0.0
  %1833 = vmatprep.subr.mxu0 0.0
  %1834 = vmatpush1.msra.mxu0 0.0
  %1835 = vmatprep.subr.mxu0 0.0
  %1836 = vmatpush1.msra.mxu0 0.0
  %1837 = vmatprep.subr.mxu0 0.0
  %1838 = vmatpush1.msra.mxu0 0.0
  %1839 = vmatprep.subr.mxu0 0.0
  %1840 = vmatpush1.msra.mxu0 0.0
  %1841 = vmatprep.subr.mxu0 0.0
  %1842 = vmatpush1.msra.mxu0 0.0
  %1843 = vmatprep.subr.mxu0 0.0
  %1844 = vmatpush1.msra.mxu0 0.0
  %1845 = vmatprep.subr.mxu0 0.0
  %1846 = vmatpush1.msra.mxu0 0.0
  %1847 = vmatprep.subr.mxu0 0.0
  %1848 = vmatpush1.msra.mxu0 0.0
  %1849 = vmatprep.subr.mxu0 0.0
  %1850 = vmatpush1.msra.mxu0 0.0
  %1851 = vmatprep.subr.mxu0 0.0
  %1852 = vmatpush1.msra.mxu0 0.0
  %1853 = vmatprep.subr.mxu0 0.0
  %1854 = vmatpush1.msra.mxu0 0.0
  %1855 = vmatprep.subr.mxu0 0.0
  %1856 = vmatpush1.msra.mxu0 0.0
  %1857 = vmatprep.mubr.f32.mxu0 0.0
  %1858 = vmatmul.mubr.f32.gmra.mrb[0].mxu0 %v1791
  %v1859 = vpop.f32.mrb[0].mxu0
  %v1860 = vadd.f32 0.0, %v1859
  %v1861 = vpop.f32.mrb[0].mxu0
  %v1862 = vadd.f32 0.0, %v1861
  %1863 = vdwg.mxu0
  %1864 = vmatprep.subr.mxu0 %v109
  %1865 = vmatpush1.msra.mxu0 %v108
  %1866 = vmatprep.subr.mxu0 0.0
  %1867 = vmatpush1.msra.mxu0 0.0
  %1868 = vmatprep.subr.mxu0 0.0
  %1869 = vmatpush1.msra.mxu0 0.0
  %1870 = vmatprep.subr.mxu0 0.0
  %1871 = vmatpush1.msra.mxu0 0.0
  %1872 = vmatprep.subr.mxu0 0.0
  %1873 = vmatpush1.msra.mxu0 0.0
  %1874 = vmatprep.subr.mxu0 0.0
  %1875 = vmatpush1.msra.mxu0 0.0
  %1876 = vmatprep.subr.mxu0 0.0
  %1877 = vmatpush1.msra.mxu0 0.0
  %1878 = vmatprep.subr.mxu0 0.0
  %1879 = vmatpush1.msra.mxu0 0.0
  %1880 = vmatprep.subr.mxu0 0.0
  %1881 = vmatpush1.msra.mxu0 0.0
  %1882 = vmatprep.subr.mxu0 0.0
  %1883 = vmatpush1.msra.mxu0 0.0
  %1884 = vmatprep.subr.mxu0 0.0
  %1885 = vmatpush1.msra.mxu0 0.0
  %1886 = vmatprep.subr.mxu0 0.0
  %1887 = vmatpush1.msra.mxu0 0.0
  %1888 = vmatprep.subr.mxu0 0.0
  %1889 = vmatpush1.msra.mxu0 0.0
  %1890 = vmatprep.subr.mxu0 0.0
  %1891 = vmatpush1.msra.mxu0 0.0
  %1892 = vmatprep.subr.mxu0 0.0
  %1893 = vmatpush1.msra.mxu0 0.0
  %1894 = vmatprep.subr.mxu0 0.0
  %1895 = vmatpush1.msra.mxu0 0.0
  %1896 = vmatprep.subr.mxu0 0.0
  %1897 = vmatpush1.msra.mxu0 0.0
  %1898 = vmatprep.subr.mxu0 0.0
  %1899 = vmatpush1.msra.mxu0 0.0
  %1900 = vmatprep.subr.mxu0 0.0
  %1901 = vmatpush1.msra.mxu0 0.0
  %1902 = vmatprep.subr.mxu0 0.0
  %1903 = vmatpush1.msra.mxu0 0.0
  %1904 = vmatprep.subr.mxu0 0.0
  %1905 = vmatpush1.msra.mxu0 0.0
  %1906 = vmatprep.subr.mxu0 0.0
  %1907 = vmatpush1.msra.mxu0 0.0
  %1908 = vmatprep.subr.mxu0 0.0
  %1909 = vmatpush1.msra.mxu0 0.0
  %1910 = vmatprep.subr.mxu0 0.0
  %1911 = vmatpush1.msra.mxu0 0.0
  %1912 = vmatprep.subr.mxu0 0.0
  %1913 = vmatpush1.msra.mxu0 0.0
  %1914 = vmatprep.subr.mxu0 0.0
  %1915 = vmatpush1.msra.mxu0 0.0
  %1916 = vmatprep.subr.mxu0 0.0
  %1917 = vmatpush1.msra.mxu0 0.0
  %1918 = vmatprep.subr.mxu0 0.0
  %1919 = vmatpush1.msra.mxu0 0.0
  %1920 = vmatprep.subr.mxu0 0.0
  %1921 = vmatpush1.msra.mxu0 0.0
  %1922 = vmatprep.subr.mxu0 0.0
  %1923 = vmatpush1.msra.mxu0 0.0
  %1924 = vmatprep.subr.mxu0 0.0
  %1925 = vmatpush1.msra.mxu0 0.0
  %1926 = vmatprep.subr.mxu0 0.0
  %1927 = vmatpush1.msra.mxu0 0.0
  %1928 = vmatprep.mubr.f32.mxu0 0.0
  %1929 = vmatmul.mubr.f32.gmra.mrb[0].mxu0 %v1791
  %v1930 = vpop.f32.mrb[0].mxu0
  %v1931 = vadd.f32 0.0, %v1930
  %v1932 = vpop.f32.mrb[0].mxu0
  %v1933 = vadd.f32 0.0, %v1932
  %1934 = vdwg.mxu0
  %v1935 = vlaneseq
  %v1936 = vshrl.u32 %v1935, 7
  %v1937 = vsub.s32 0, %v1936
  %v1938 = vrot.slane %v1715, %v1937
  %v1939 = vlaneseq
  %v1940 = vshrl.u32 %v1939, 7
  %v1941 = vsub.s32 0, %v1940
  %v1942 = vrot.slane %v1717, %v1941
  %v1943 = vlaneseq
  %v1944 = vshrl.u32 %v1943, 7
  %v1945 = vsub.s32 0, %v1944
  %v1946 = vrot.slane %v1786, %v1945
  %v1947 = vlaneseq
  %v1948 = vshrl.u32 %v1947, 7
  %v1949 = vsub.s32 0, %v1948
  %v1950 = vrot.slane %v1788, %v1949
  %v1951 = vmul.f32 %v1283, %v1938
  %v1952 = vmul.f32 %v1284, %v1942
  %v1953 = vmul.f32 %v1285, %v1946
  %v1954 = vmul.f32 %v1286, %v1950
  %v1955 = vmul.f32 %v1287, %v1938
  %v1956 = vmul.f32 %v1288, %v1942
  %v1957 = vmul.f32 %v1289, %v1946
  %v1958 = vmul.f32 %v1290, %v1950
  %v1959 = vlaneseq
  %v1960 = vshrl.u32 %v1959, 7
  %v1961 = vsub.s32 0, %v1960
  %v1962 = vrot.slane %v1860, %v1961
  %v1963 = vlaneseq
  %v1964 = vshrl.u32 %v1963, 7
  %v1965 = vsub.s32 0, %v1964
  %v1966 = vrot.slane %v1862, %v1965
  %v1967 = vlaneseq
  %v1968 = vshrl.u32 %v1967, 7
  %v1969 = vsub.s32 0, %v1968
  %v1970 = vrot.slane %v1931, %v1969
  %v1971 = vlaneseq
  %v1972 = vshrl.u32 %v1971, 7
  %v1973 = vsub.s32 0, %v1972
  %v1974 = vrot.slane %v1933, %v1973
  %v1975 = vadd.f32 %v1951, %v1962
  %v1976 = vadd.f32 %v1952, %v1966
  %v1977 = vadd.f32 %v1953, %v1970
  %v1978 = vadd.f32 %v1954, %v1974
  %v1979 = vadd.f32 %v1955, %v1962
  %v1980 = vadd.f32 %v1956, %v1966
  %v1981 = vadd.f32 %v1957, %v1970
  %v1982 = vadd.f32 %v1958, %v1974
  %v1983 = vmax.f32 %v1975, 0.0
  %v1984 = vmax.f32 %v1976, 0.0
  %v1985 = vmax.f32 %v1977, 0.0
  %v1986 = vmax.f32 %v1978, 0.0
  %v1987 = vmax.f32 %v1979, 0.0
  %v1988 = vmax.f32 %v1980, 0.0
  %v1989 = vmax.f32 %v1981, 0.0
  %v1990 = vmax.f32 %v1982, 0.0
  %v1991 = vld [vmem:[%s2] sm:$0xff]
  %v1992 = vld [vmem:[%s2 + $0x8] sm:$0xff]
  %v1993 = vld [vmem:[%s2 + $0x10] sm:$0xff]
  %v1994 = vld [vmem:[%s2 + $0x18] sm:$0xff]
  %v1995 = vld [vmem:[%s2 + $0x20] sm:$0xff]
  %v1996 = vld [vmem:[%s2 + $0x28] sm:$0xff]
  %v1997 = vld [vmem:[%s2 + $0x30] sm:$0xff]
  %v1998 = vld [vmem:[%s2 + $0x38] sm:$0xff]
  %v1999 = vld [vmem:[%s2 + $0x40] sm:$0xff]
  %v2000 = vld [vmem:[%s2 + $0x48] sm:$0xff]
  %v2001 = vld [vmem:[%s2 + $0x50] sm:$0xff]
  %v2002 = vld [vmem:[%s2 + $0x58] sm:$0xff]
  %v2003 = vld [vmem:[%s2 + $0x60] sm:$0xff]
  %v2004 = vld [vmem:[%s2 + $0x68] sm:$0xff]
  %v2005 = vld [vmem:[%s2 + $0x70] sm:$0xff]
  %v2006 = vld [vmem:[%s2 + $0x78] sm:$0xff]
  %v2007 = vld [vmem:[%s2 + $0x80] sm:$0xff]
  %v2008 = vld [vmem:[%s2 + $0x88] sm:$0xff]
  %v2009 = vld [vmem:[%s2 + $0x90] sm:$0xff]
  %v2010 = vld [vmem:[%s2 + $0x98] sm:$0xff]
  %v2011 = vld [vmem:[%s2 + $0xa0] sm:$0xff]
  %v2012 = vld [vmem:[%s2 + $0xa8] sm:$0xff]
  %v2013 = vld [vmem:[%s2 + $0xb0] sm:$0xff]
  %v2014 = vld [vmem:[%s2 + $0xb8] sm:$0xff]
  %v2015 = vld [vmem:[%s2 + $0xc0] sm:$0xff]
  %v2016 = vld [vmem:[%s2 + $0xc8] sm:$0xff]
  %v2017 = vld [vmem:[%s2 + $0xd0] sm:$0xff]
  %v2018 = vld [vmem:[%s2 + $0xd8] sm:$0xff]
  %v2019 = vld [vmem:[%s2 + $0xe0] sm:$0xff]
  %v2020 = vld [vmem:[%s2 + $0xe8] sm:$0xff]
  %v2021 = vld [vmem:[%s2 + $0xf0] sm:$0xff]
  %v2022 = vld [vmem:[%s2 + $0xf8] sm:$0xff]
  %v2023 = vld [vmem:[%s2 + $0x100] sm:$0xff]
  %v2024 = vld [vmem:[%s2 + $0x108] sm:$0xff]
  %v2025 = vld [vmem:[%s2 + $0x110] sm:$0xff]
  %v2026 = vld [vmem:[%s2 + $0x118] sm:$0xff]
  %v2027 = vld [vmem:[%s2 + $0x120] sm:$0xff]
  %v2028 = vld [vmem:[%s2 + $0x128] sm:$0xff]
  %v2029 = vld [vmem:[%s2 + $0x130] sm:$0xff]
  %v2030 = vld [vmem:[%s2 + $0x138] sm:$0xff]
  %v2031 = vld [vmem:[%s2 + $0x140] sm:$0xff]
  %v2032 = vld [vmem:[%s2 + $0x148] sm:$0xff]
  %v2033 = vld [vmem:[%s2 + $0x150] sm:$0xff]
  %v2034 = vld [vmem:[%s2 + $0x158] sm:$0xff]
  %v2035 = vld [vmem:[%s2 + $0x160] sm:$0xff]
  %v2036 = vld [vmem:[%s2 + $0x168] sm:$0xff]
  %v2037 = vld [vmem:[%s2 + $0x170] sm:$0xff]
  %v2038 = vld [vmem:[%s2 + $0x178] sm:$0xff]
  %v2039 = vld [vmem:[%s2 + $0x180] sm:$0xff]
  %v2040 = vld [vmem:[%s2 + $0x188] sm:$0xff]
  %v2041 = vld [vmem:[%s2 + $0x190] sm:$0xff]
  %v2042 = vld [vmem:[%s2 + $0x198] sm:$0xff]
  %v2043 = vld [vmem:[%s2 + $0x1a0] sm:$0xff]
  %v2044 = vld [vmem:[%s2 + $0x1a8] sm:$0xff]
  %v2045 = vld [vmem:[%s2 + $0x1b0] sm:$0xff]
  %v2046 = vld [vmem:[%s2 + $0x1b8] sm:$0xff]
  %v2047 = vld [vmem:[%s2 + $0x1c0] sm:$0xff]
  %v2048 = vld [vmem:[%s2 + $0x1c8] sm:$0xff]
  %v2049 = vld [vmem:[%s2 + $0x1d0] sm:$0xff]
  %v2050 = vld [vmem:[%s2 + $0x1d8] sm:$0xff]
  %v2051 = vld [vmem:[%s2 + $0x1e0] sm:$0xff]
  %v2052 = vld [vmem:[%s2 + $0x1e8] sm:$0xff]
  %v2053 = vld [vmem:[%s2 + $0x1f0] sm:$0xff]
  %v2054 = vld [vmem:[%s2 + $0x1f8] sm:$0xff]
  %v2055 = vld [vmem:[%s2 + $0x200] sm:$0xff]
  %v2056 = vld [vmem:[%s2 + $0x208] sm:$0xff]
  %v2057 = vld [vmem:[%s2 + $0x210] sm:$0xff]
  %v2058 = vld [vmem:[%s2 + $0x218] sm:$0xff]
  %v2059 = vld [vmem:[%s2 + $0x220] sm:$0xff]
  %v2060 = vld [vmem:[%s2 + $0x228] sm:$0xff]
  %v2061 = vld [vmem:[%s2 + $0x230] sm:$0xff]
  %v2062 = vld [vmem:[%s2 + $0x238] sm:$0xff]
  %v2063 = vld [vmem:[%s2 + $0x240] sm:$0xff]
  %v2064 = vld [vmem:[%s2 + $0x248] sm:$0xff]
  %v2065 = vld [vmem:[%s2 + $0x250] sm:$0xff]
  %v2066 = vld [vmem:[%s2 + $0x258] sm:$0xff]
  %v2067 = vld [vmem:[%s2 + $0x260] sm:$0xff]
  %v2068 = vld [vmem:[%s2 + $0x268] sm:$0xff]
  %v2069 = vld [vmem:[%s2 + $0x270] sm:$0xff]
  %v2070 = vld [vmem:[%s2 + $0x278] sm:$0xff]
  %v2071 = vld [vmem:[%s2 + $0x280] sm:$0xff]
  %v2072 = vld [vmem:[%s2 + $0x288] sm:$0xff]
  %v2073 = vld [vmem:[%s2 + $0x290] sm:$0xff]
  %v2074 = vld [vmem:[%s2 + $0x298] sm:$0xff]
  %v2075 = vld [vmem:[%s2 + $0x2a0] sm:$0xff]
  %v2076 = vld [vmem:[%s2 + $0x2a8] sm:$0xff]
  %v2077 = vld [vmem:[%s2 + $0x2b0] sm:$0xff]
  %v2078 = vld [vmem:[%s2 + $0x2b8] sm:$0xff]
  %v2079 = vld [vmem:[%s2 + $0x2c0] sm:$0xff]
  %v2080 = vld [vmem:[%s2 + $0x2c8] sm:$0xff]
  %v2081 = vld [vmem:[%s2 + $0x2d0] sm:$0xff]
  %v2082 = vld [vmem:[%s2 + $0x2d8] sm:$0xff]
  %v2083 = vld [vmem:[%s2 + $0x2e0] sm:$0xff]
  %v2084 = vld [vmem:[%s2 + $0x2e8] sm:$0xff]
  %v2085 = vld [vmem:[%s2 + $0x2f0] sm:$0xff]
  %v2086 = vld [vmem:[%s2 + $0x2f8] sm:$0xff]
  %v2087 = vld [vmem:[%s2 + $0x300] sm:$0xff]
  %v2088 = vld [vmem:[%s2 + $0x308] sm:$0xff]
  %v2089 = vld [vmem:[%s2 + $0x310] sm:$0xff]
  %v2090 = vld [vmem:[%s2 + $0x318] sm:$0xff]
  %v2091 = vld [vmem:[%s2 + $0x320] sm:$0xff]
  %v2092 = vld [vmem:[%s2 + $0x328] sm:$0xff]
  %v2093 = vld [vmem:[%s2 + $0x330] sm:$0xff]
  %v2094 = vld [vmem:[%s2 + $0x338] sm:$0xff]
  %v2095 = vld [vmem:[%s2 + $0x340] sm:$0xff]
  %v2096 = vld [vmem:[%s2 + $0x348] sm:$0xff]
  %v2097 = vld [vmem:[%s2 + $0x350] sm:$0xff]
  %v2098 = vld [vmem:[%s2 + $0x358] sm:$0xff]
  %v2099 = vld [vmem:[%s2 + $0x360] sm:$0xff]
  %v2100 = vld [vmem:[%s2 + $0x368] sm:$0xff]
  %v2101 = vld [vmem:[%s2 + $0x370] sm:$0xff]
  %v2102 = vld [vmem:[%s2 + $0x378] sm:$0xff]
  %v2103 = vld [vmem:[%s2 + $0x380] sm:$0xff]
  %v2104 = vld [vmem:[%s2 + $0x388] sm:$0xff]
  %v2105 = vld [vmem:[%s2 + $0x390] sm:$0xff]
  %v2106 = vld [vmem:[%s2 + $0x398] sm:$0xff]
  %v2107 = vld [vmem:[%s2 + $0x3a0] sm:$0xff]
  %v2108 = vld [vmem:[%s2 + $0x3a8] sm:$0xff]
  %v2109 = vld [vmem:[%s2 + $0x3b0] sm:$0xff]
  %v2110 = vld [vmem:[%s2 + $0x3b8] sm:$0xff]
  %v2111 = vld [vmem:[%s2 + $0x3c0] sm:$0xff]
  %v2112 = vld [vmem:[%s2 + $0x3c8] sm:$0xff]
  %v2113 = vld [vmem:[%s2 + $0x3d0] sm:$0xff]
  %v2114 = vld [vmem:[%s2 + $0x3d8] sm:$0xff]
  %v2115 = vld [vmem:[%s2 + $0x3e0] sm:$0xff]
  %v2116 = vld [vmem:[%s2 + $0x3e8] sm:$0xff]
  %v2117 = vld [vmem:[%s2 + $0x3f0] sm:$0xff]
  %v2118 = vld [vmem:[%s2 + $0x3f8] sm:$0xff]
  %v2119 = vld [vmem:[%s2 + $0x400] sm:$0xff]
  %v2120 = vld [vmem:[%s2 + $0x408] sm:$0xff]
  %v2121 = vld [vmem:[%s2 + $0x410] sm:$0xff]
  %v2122 = vld [vmem:[%s2 + $0x418] sm:$0xff]
  %v2123 = vld [vmem:[%s2 + $0x420] sm:$0xff]
  %v2124 = vld [vmem:[%s2 + $0x428] sm:$0xff]
  %v2125 = vld [vmem:[%s2 + $0x430] sm:$0xff]
  %v2126 = vld [vmem:[%s2 + $0x438] sm:$0xff]
  %v2127 = vld [vmem:[%s2 + $0x440] sm:$0xff]
  %v2128 = vld [vmem:[%s2 + $0x448] sm:$0xff]
  %v2129 = vld [vmem:[%s2 + $0x450] sm:$0xff]
  %v2130 = vld [vmem:[%s2 + $0x458] sm:$0xff]
  %v2131 = vld [vmem:[%s2 + $0x460] sm:$0xff]
  %v2132 = vld [vmem:[%s2 + $0x468] sm:$0xff]
  %v2133 = vld [vmem:[%s2 + $0x470] sm:$0xff]
  %v2134 = vld [vmem:[%s2 + $0x478] sm:$0xff]
  %v2135 = vld [vmem:[%s2 + $0x480] sm:$0xff]
  %v2136 = vld [vmem:[%s2 + $0x488] sm:$0xff]
  %v2137 = vld [vmem:[%s2 + $0x490] sm:$0xff]
  %v2138 = vld [vmem:[%s2 + $0x498] sm:$0xff]
  %v2139 = vld [vmem:[%s2 + $0x4a0] sm:$0xff]
  %v2140 = vld [vmem:[%s2 + $0x4a8] sm:$0xff]
  %v2141 = vld [vmem:[%s2 + $0x4b0] sm:$0xff]
  %v2142 = vld [vmem:[%s2 + $0x4b8] sm:$0xff]
  %v2143 = vld [vmem:[%s2 + $0x4c0] sm:$0xff]
  %v2144 = vld [vmem:[%s2 + $0x4c8] sm:$0xff]
  %v2145 = vld [vmem:[%s2 + $0x4d0] sm:$0xff]
  %v2146 = vld [vmem:[%s2 + $0x4d8] sm:$0xff]
  %v2147 = vld [vmem:[%s2 + $0x4e0] sm:$0xff]
  %v2148 = vld [vmem:[%s2 + $0x4e8] sm:$0xff]
  %v2149 = vld [vmem:[%s2 + $0x4f0] sm:$0xff]
  %v2150 = vld [vmem:[%s2 + $0x4f8] sm:$0xff]
  %v2151 = vld [vmem:[%s2 + $0x500] sm:$0xff]
  %v2152 = vld [vmem:[%s2 + $0x508] sm:$0xff]
  %v2153 = vld [vmem:[%s2 + $0x510] sm:$0xff]
  %v2154 = vld [vmem:[%s2 + $0x518] sm:$0xff]
  %v2155 = vld [vmem:[%s2 + $0x520] sm:$0xff]
  %v2156 = vld [vmem:[%s2 + $0x528] sm:$0xff]
  %v2157 = vld [vmem:[%s2 + $0x530] sm:$0xff]
  %v2158 = vld [vmem:[%s2 + $0x538] sm:$0xff]
  %v2159 = vld [vmem:[%s2 + $0x540] sm:$0xff]
  %v2160 = vld [vmem:[%s2 + $0x548] sm:$0xff]
  %v2161 = vld [vmem:[%s2 + $0x550] sm:$0xff]
  %v2162 = vld [vmem:[%s2 + $0x558] sm:$0xff]
  %v2163 = vld [vmem:[%s2 + $0x560] sm:$0xff]
  %v2164 = vld [vmem:[%s2 + $0x568] sm:$0xff]
  %v2165 = vld [vmem:[%s2 + $0x570] sm:$0xff]
  %v2166 = vld [vmem:[%s2 + $0x578] sm:$0xff]
  %v2167 = vld [vmem:[%s2 + $0x580] sm:$0xff]
  %v2168 = vld [vmem:[%s2 + $0x588] sm:$0xff]
  %v2169 = vld [vmem:[%s2 + $0x590] sm:$0xff]
  %v2170 = vld [vmem:[%s2 + $0x598] sm:$0xff]
  %v2171 = vld [vmem:[%s2 + $0x5a0] sm:$0xff]
  %v2172 = vld [vmem:[%s2 + $0x5a8] sm:$0xff]
  %v2173 = vld [vmem:[%s2 + $0x5b0] sm:$0xff]
  %v2174 = vld [vmem:[%s2 + $0x5b8] sm:$0xff]
  %v2175 = vld [vmem:[%s2 + $0x5c0] sm:$0xff]
  %v2176 = vld [vmem:[%s2 + $0x5c8] sm:$0xff]
  %v2177 = vld [vmem:[%s2 + $0x5d0] sm:$0xff]
  %v2178 = vld [vmem:[%s2 + $0x5d8] sm:$0xff]
  %v2179 = vld [vmem:[%s2 + $0x5e0] sm:$0xff]
  %v2180 = vld [vmem:[%s2 + $0x5e8] sm:$0xff]
  %v2181 = vld [vmem:[%s2 + $0x5f0] sm:$0xff]
  %v2182 = vld [vmem:[%s2 + $0x5f8] sm:$0xff]
  %v2183 = vld [vmem:[%s2 + $0x600] sm:$0xff]
  %v2184 = vld [vmem:[%s2 + $0x608] sm:$0xff]
  %v2185 = vld [vmem:[%s2 + $0x610] sm:$0xff]
  %v2186 = vld [vmem:[%s2 + $0x618] sm:$0xff]
  %v2187 = vld [vmem:[%s2 + $0x620] sm:$0xff]
  %v2188 = vld [vmem:[%s2 + $0x628] sm:$0xff]
  %v2189 = vld [vmem:[%s2 + $0x630] sm:$0xff]
  %v2190 = vld [vmem:[%s2 + $0x638] sm:$0xff]
  %v2191 = vld [vmem:[%s2 + $0x640] sm:$0xff]
  %v2192 = vld [vmem:[%s2 + $0x648] sm:$0xff]
  %v2193 = vld [vmem:[%s2 + $0x650] sm:$0xff]
  %v2194 = vld [vmem:[%s2 + $0x658] sm:$0xff]
  %v2195 = vld [vmem:[%s2 + $0x660] sm:$0xff]
  %v2196 = vld [vmem:[%s2 + $0x668] sm:$0xff]
  %v2197 = vld [vmem:[%s2 + $0x670] sm:$0xff]
  %v2198 = vld [vmem:[%s2 + $0x678] sm:$0xff]
  %v2199 = vld [vmem:[%s2 + $0x680] sm:$0xff]
  %v2200 = vld [vmem:[%s2 + $0x688] sm:$0xff]
  %v2201 = vld [vmem:[%s2 + $0x690] sm:$0xff]
  %v2202 = vld [vmem:[%s2 + $0x698] sm:$0xff]
  %v2203 = vld [vmem:[%s2 + $0x6a0] sm:$0xff]
  %v2204 = vld [vmem:[%s2 + $0x6a8] sm:$0xff]
  %v2205 = vld [vmem:[%s2 + $0x6b0] sm:$0xff]
  %v2206 = vld [vmem:[%s2 + $0x6b8] sm:$0xff]
  %v2207 = vld [vmem:[%s2 + $0x6c0] sm:$0xff]
  %v2208 = vld [vmem:[%s2 + $0x6c8] sm:$0xff]
  %v2209 = vld [vmem:[%s2 + $0x6d0] sm:$0xff]
  %v2210 = vld [vmem:[%s2 + $0x6d8] sm:$0xff]
  %v2211 = vld [vmem:[%s2 + $0x6e0] sm:$0xff]
  %v2212 = vld [vmem:[%s2 + $0x6e8] sm:$0xff]
  %v2213 = vld [vmem:[%s2 + $0x6f0] sm:$0xff]
  %v2214 = vld [vmem:[%s2 + $0x6f8] sm:$0xff]
  %v2215 = vld [vmem:[%s2 + $0x700] sm:$0xff]
  %v2216 = vld [vmem:[%s2 + $0x708] sm:$0xff]
  %v2217 = vld [vmem:[%s2 + $0x710] sm:$0xff]
  %v2218 = vld [vmem:[%s2 + $0x718] sm:$0xff]
  %v2219 = vld [vmem:[%s2 + $0x720] sm:$0xff]
  %v2220 = vld [vmem:[%s2 + $0x728] sm:$0xff]
  %v2221 = vld [vmem:[%s2 + $0x730] sm:$0xff]
  %v2222 = vld [vmem:[%s2 + $0x738] sm:$0xff]
  %v2223 = vld [vmem:[%s2 + $0x740] sm:$0xff]
  %v2224 = vld [vmem:[%s2 + $0x748] sm:$0xff]
  %v2225 = vld [vmem:[%s2 + $0x750] sm:$0xff]
  %v2226 = vld [vmem:[%s2 + $0x758] sm:$0xff]
  %v2227 = vld [vmem:[%s2 + $0x760] sm:$0xff]
  %v2228 = vld [vmem:[%s2 + $0x768] sm:$0xff]
  %v2229 = vld [vmem:[%s2 + $0x770] sm:$0xff]
  %v2230 = vld [vmem:[%s2 + $0x778] sm:$0xff]
  %v2231 = vld [vmem:[%s2 + $0x780] sm:$0xff]
  %v2232 = vld [vmem:[%s2 + $0x788] sm:$0xff]
  %v2233 = vld [vmem:[%s2 + $0x790] sm:$0xff]
  %v2234 = vld [vmem:[%s2 + $0x798] sm:$0xff]
  %v2235 = vld [vmem:[%s2 + $0x7a0] sm:$0xff]
  %v2236 = vld [vmem:[%s2 + $0x7a8] sm:$0xff]
  %v2237 = vld [vmem:[%s2 + $0x7b0] sm:$0xff]
  %v2238 = vld [vmem:[%s2 + $0x7b8] sm:$0xff]
  %v2239 = vld [vmem:[%s2 + $0x7c0] sm:$0xff]
  %v2240 = vld [vmem:[%s2 + $0x7c8] sm:$0xff]
  %v2241 = vld [vmem:[%s2 + $0x7d0] sm:$0xff]
  %v2242 = vld [vmem:[%s2 + $0x7d8] sm:$0xff]
  %v2243 = vld [vmem:[%s2 + $0x7e0] sm:$0xff]
  %v2244 = vld [vmem:[%s2 + $0x7e8] sm:$0xff]
  %v2245 = vld [vmem:[%s2 + $0x7f0] sm:$0xff]
  %v2246 = vld [vmem:[%s2 + $0x7f8] sm:$0xff]
  %2247 = vmatprep.subr.mxu0 %v1992
  %2248 = vmatpush1.msra.mxu0 %v1991
  %2249 = vmatprep.subr.mxu0 %v1996
  %2250 = vmatpush1.msra.mxu0 %v1995
  %2251 = vmatprep.subr.mxu0 %v2000
  %2252 = vmatpush1.msra.mxu0 %v1999
  %2253 = vmatprep.subr.mxu0 %v2004
  %2254 = vmatpush1.msra.mxu0 %v2003
  %2255 = vmatprep.subr.mxu0 %v2008
  %2256 = vmatpush1.msra.mxu0 %v2007
  %2257 = vmatprep.subr.mxu0 %v2012
  %2258 = vmatpush1.msra.mxu0 %v2011
  %2259 = vmatprep.subr.mxu0 %v2016
  %2260 = vmatpush1.msra.mxu0 %v2015
  %2261 = vmatprep.subr.mxu0 %v2020
  %2262 = vmatpush1.msra.mxu0 %v2019
  %2263 = vmatprep.subr.mxu0 %v2024
  %2264 = vmatpush1.msra.mxu0 %v2023
  %2265 = vmatprep.subr.mxu0 %v2028
  %2266 = vmatpush1.msra.mxu0 %v2027
  %2267 = vmatprep.subr.mxu0 %v2032
  %2268 = vmatpush1.msra.mxu0 %v2031
  %2269 = vmatprep.subr.mxu0 %v2036
  %2270 = vmatpush1.msra.mxu0 %v2035
  %2271 = vmatprep.subr.mxu0 %v2040
  %2272 = vmatpush1.msra.mxu0 %v2039
  %2273 = vmatprep.subr.mxu0 %v2044
  %2274 = vmatpush1.msra.mxu0 %v2043
  %2275 = vmatprep.subr.mxu0 %v2048
  %2276 = vmatpush1.msra.mxu0 %v2047
  %2277 = vmatprep.subr.mxu0 %v2052
  %2278 = vmatpush1.msra.mxu0 %v2051
  %2279 = vmatprep.subr.mxu0 %v2056
  %2280 = vmatpush1.msra.mxu0 %v2055
  %2281 = vmatprep.subr.mxu0 %v2060
  %2282 = vmatpush1.msra.mxu0 %v2059
  %2283 = vmatprep.subr.mxu0 %v2064
  %2284 = vmatpush1.msra.mxu0 %v2063
  %2285 = vmatprep.subr.mxu0 %v2068
  %2286 = vmatpush1.msra.mxu0 %v2067
  %2287 = vmatprep.subr.mxu0 %v2072
  %2288 = vmatpush1.msra.mxu0 %v2071
  %2289 = vmatprep.subr.mxu0 %v2076
  %2290 = vmatpush1.msra.mxu0 %v2075
  %2291 = vmatprep.subr.mxu0 %v2080
  %2292 = vmatpush1.msra.mxu0 %v2079
  %2293 = vmatprep.subr.mxu0 %v2084
  %2294 = vmatpush1.msra.mxu0 %v2083
  %2295 = vmatprep.subr.mxu0 %v2088
  %2296 = vmatpush1.msra.mxu0 %v2087
  %2297 = vmatprep.subr.mxu0 %v2092
  %2298 = vmatpush1.msra.mxu0 %v2091
  %2299 = vmatprep.subr.mxu0 %v2096
  %2300 = vmatpush1.msra.mxu0 %v2095
  %2301 = vmatprep.subr.mxu0 %v2100
  %2302 = vmatpush1.msra.mxu0 %v2099
  %2303 = vmatprep.subr.mxu0 %v2104
  %2304 = vmatpush1.msra.mxu0 %v2103
  %2305 = vmatprep.subr.mxu0 %v2108
  %2306 = vmatpush1.msra.mxu0 %v2107
  %2307 = vmatprep.subr.mxu0 %v2112
  %2308 = vmatpush1.msra.mxu0 %v2111
  %2309 = vmatprep.subr.mxu0 %v2116
  %2310 = vmatpush1.msra.mxu0 %v2115
  %2311 = vmatprep.mubr.f32.mxu0 %v1984
  %2312 = vmatmul.mubr.f32.gmra.mrb[0].mxu0 %v1983
  %v2313 = vpop.f32.mrb[0].mxu0
  %v2314 = vadd.f32 0.0, %v2313
  %v2315 = vpop.f32.mrb[0].mxu0
  %v2316 = vadd.f32 0.0, %v2315
  %2317 = vmatprep.mubr.f32.mxu0 %v1988
  %2318 = vmatmul.mubr.f32.gmra.mrb[0].mxu0 %v1987
  %v2319 = vpop.f32.mrb[0].mxu0
  %v2320 = vadd.f32 0.0, %v2319
  %v2321 = vpop.f32.mrb[0].mxu0
  %v2322 = vadd.f32 0.0, %v2321
  %2323 = vdwg.mxu0
  %2324 = vmatprep.subr.mxu0 %v2120
  %2325 = vmatpush1.msra.mxu0 %v2119
  %2326 = vmatprep.subr.mxu0 %v2124
  %2327 = vmatpush1.msra.mxu0 %v2123
  %2328 = vmatprep.subr.mxu0 %v2128
  %2329 = vmatpush1.msra.mxu0 %v2127
  %2330 = vmatprep.subr.mxu0 %v2132
  %2331 = vmatpush1.msra.mxu0 %v2131
  %2332 = vmatprep.subr.mxu0 %v2136
  %2333 = vmatpush1.msra.mxu0 %v2135
  %2334 = vmatprep.subr.mxu0 %v2140
  %2335 = vmatpush1.msra.mxu0 %v2139
  %2336 = vmatprep.subr.mxu0 %v2144
  %2337 = vmatpush1.msra.mxu0 %v2143
  %2338 = vmatprep.subr.mxu0 %v2148
  %2339 = vmatpush1.msra.mxu0 %v2147
  %2340 = vmatprep.subr.mxu0 %v2152
  %2341 = vmatpush1.msra.mxu0 %v2151
  %2342 = vmatprep.subr.mxu0 %v2156
  %2343 = vmatpush1.msra.mxu0 %v2155
  %2344 = vmatprep.subr.mxu0 %v2160
  %2345 = vmatpush1.msra.mxu0 %v2159
  %2346 = vmatprep.subr.mxu0 %v2164
  %2347 = vmatpush1.msra.mxu0 %v2163
  %2348 = vmatprep.subr.mxu0 %v2168
  %2349 = vmatpush1.msra.mxu0 %v2167
  %2350 = vmatprep.subr.mxu0 %v2172
  %2351 = vmatpush1.msra.mxu0 %v2171
  %2352 = vmatprep.subr.mxu0 %v2176
  %2353 = vmatpush1.msra.mxu0 %v2175
  %2354 = vmatprep.subr.mxu0 %v2180
  %2355 = vmatpush1.msra.mxu0 %v2179
  %2356 = vmatprep.subr.mxu0 %v2184
  %2357 = vmatpush1.msra.mxu0 %v2183
  %2358 = vmatprep.subr.mxu0 %v2188
  %2359 = vmatpush1.msra.mxu0 %v2187
  %2360 = vmatprep.subr.mxu0 %v2192
  %2361 = vmatpush1.msra.mxu0 %v2191
  %2362 = vmatprep.subr.mxu0 %v2196
  %2363 = vmatpush1.msra.mxu0 %v2195
  %2364 = vmatprep.subr.mxu0 %v2200
  %2365 = vmatpush1.msra.mxu0 %v2199
  %2366 = vmatprep.subr.mxu0 %v2204
  %2367 = vmatpush1.msra.mxu0 %v2203
  %2368 = vmatprep.subr.mxu0 %v2208
  %2369 = vmatpush1.msra.mxu0 %v2207
  %2370 = vmatprep.subr.mxu0 %v2212
  %2371 = vmatpush1.msra.mxu0 %v2211
  %2372 = vmatprep.subr.mxu0 %v2216
  %2373 = vmatpush1.msra.mxu0 %v2215
  %2374 = vmatprep.subr.mxu0 %v2220
  %2375 = vmatpush1.msra.mxu0 %v2219
  %2376 = vmatprep.subr.mxu0 %v2224
  %2377 = vmatpush1.msra.mxu0 %v2223
  %2378 = vmatprep.subr.mxu0 %v2228
  %2379 = vmatpush1.msra.mxu0 %v2227
  %2380 = vmatprep.subr.mxu0 %v2232
  %2381 = vmatpush1.msra.mxu0 %v2231
  %2382 = vmatprep.subr.mxu0 %v2236
  %2383 = vmatpush1.msra.mxu0 %v2235
  %2384 = vmatprep.subr.mxu0 %v2240
  %2385 = vmatpush1.msra.mxu0 %v2239
  %2386 = vmatprep.subr.mxu0 %v2244
  %2387 = vmatpush1.msra.mxu0 %v2243
  %2388 = vmatprep.mubr.f32.mxu0 %v1986
  %2389 = vmatmul.mubr.f32.gmra.mrb[0].mxu0 %v1985
  %v2390 = vpop.f32.mrb[0].mxu0
  %v2391 = vadd.f32 %v2314, %v2390
  %v2392 = vpop.f32.mrb[0].mxu0
  %v2393 = vadd.f32 %v2316, %v2392
  %2394 = vmatprep.mubr.f32.mxu0 %v1990
  %2395 = vmatmul.mubr.f32.gmra.mrb[0].mxu0 %v1989
  %v2396 = vpop.f32.mrb[0].mxu0
  %v2397 = vadd.f32 %v2320, %v2396
  %v2398 = vpop.f32.mrb[0].mxu0
  %v2399 = vadd.f32 %v2322, %v2398
  %2400 = vdwg.mxu0
  %2401 = vmatprep.subr.mxu0 %v1994
  %2402 = vmatpush1.msra.mxu0 %v1993
  %2403 = vmatprep.subr.mxu0 %v1998
  %2404 = vmatpush1.msra.mxu0 %v1997
  %2405 = vmatprep.subr.mxu0 %v2002
  %2406 = vmatpush1.msra.mxu0 %v2001
  %2407 = vmatprep.subr.mxu0 %v2006
  %2408 = vmatpush1.msra.mxu0 %v2005
  %2409 = vmatprep.subr.mxu0 %v2010
  %2410 = vmatpush1.msra.mxu0 %v2009
  %2411 = vmatprep.subr.mxu0 %v2014
  %2412 = vmatpush1.msra.mxu0 %v2013
  %2413 = vmatprep.subr.mxu0 %v2018
  %2414 = vmatpush1.msra.mxu0 %v2017
  %2415 = vmatprep.subr.mxu0 %v2022
  %2416 = vmatpush1.msra.mxu0 %v2021
  %2417 = vmatprep.subr.mxu0 %v2026
  %2418 = vmatpush1.msra.mxu0 %v2025
  %2419 = vmatprep.subr.mxu0 %v2030
  %2420 = vmatpush1.msra.mxu0 %v2029
  %2421 = vmatprep.subr.mxu0 %v2034
  %2422 = vmatpush1.msra.mxu0 %v2033
  %2423 = vmatprep.subr.mxu0 %v2038
  %2424 = vmatpush1.msra.mxu0 %v2037
  %2425 = vmatprep.subr.mxu0 %v2042
  %2426 = vmatpush1.msra.mxu0 %v2041
  %2427 = vmatprep.subr.mxu0 %v2046
  %2428 = vmatpush1.msra.mxu0 %v2045
  %2429 = vmatprep.subr.mxu0 %v2050
  %2430 = vmatpush1.msra.mxu0 %v2049
  %2431 = vmatprep.subr.mxu0 %v2054
  %2432 = vmatpush1.msra.mxu0 %v2053
  %2433 = vmatprep.subr.mxu0 %v2058
  %2434 = vmatpush1.msra.mxu0 %v2057
  %2435 = vmatprep.subr.mxu0 %v2062
  %2436 = vmatpush1.msra.mxu0 %v2061
  %2437 = vmatprep.subr.mxu0 %v2066
  %2438 = vmatpush1.msra.mxu0 %v2065
  %2439 = vmatprep.subr.mxu0 %v2070
  %2440 = vmatpush1.msra.mxu0 %v2069
  %2441 = vmatprep.subr.mxu0 %v2074
  %2442 = vmatpush1.msra.mxu0 %v2073
  %2443 = vmatprep.subr.mxu0 %v2078
  %2444 = vmatpush1.msra.mxu0 %v2077
  %2445 = vmatprep.subr.mxu0 %v2082
  %2446 = vmatpush1.msra.mxu0 %v2081
  %2447 = vmatprep.subr.mxu0 %v2086
  %2448 = vmatpush1.msra.mxu0 %v2085
  %2449 = vmatprep.subr.mxu0 %v2090
  %2450 = vmatpush1.msra.mxu0 %v2089
  %2451 = vmatprep.subr.mxu0 %v2094
  %2452 = vmatpush1.msra.mxu0 %v2093
  %2453 = vmatprep.subr.mxu0 %v2098
  %2454 = vmatpush1.msra.mxu0 %v2097
  %2455 = vmatprep.subr.mxu0 %v2102
  %2456 = vmatpush1.msra.mxu0 %v2101
  %2457 = vmatprep.subr.mxu0 %v2106
  %2458 = vmatpush1.msra.mxu0 %v2105
  %2459 = vmatprep.subr.mxu0 %v2110
  %2460 = vmatpush1.msra.mxu0 %v2109
  %2461 = vmatprep.subr.mxu0 %v2114
  %2462 = vmatpush1.msra.mxu0 %v2113
  %2463 = vmatprep.subr.mxu0 %v2118
  %2464 = vmatpush1.msra.mxu0 %v2117
  %2465 = vmatprep.mubr.f32.mxu0 %v1984
  %2466 = vmatmul.mubr.f32.gmra.mrb[0].mxu0 %v1983
  %v2467 = vpop.f32.mrb[0].mxu0
  %v2468 = vadd.f32 0.0, %v2467
  %v2469 = vpop.f32.mrb[0].mxu0
  %v2470 = vadd.f32 0.0, %v2469
  %2471 = vmatprep.mubr.f32.mxu0 %v1988
  %2472 = vmatmul.mubr.f32.gmra.mrb[0].mxu0 %v1987
  %v2473 = vpop.f32.mrb[0].mxu0
  %v2474 = vadd.f32 0.0, %v2473
  %v2475 = vpop.f32.mrb[0].mxu0
  %v2476 = vadd.f32 0.0, %v2475
  %2477 = vdwg.mxu0
  %2478 = vmatprep.subr.mxu0 %v2122
  %2479 = vmatpush1.msra.mxu0 %v2121
  %2480 = vmatprep.subr.mxu0 %v2126
  %2481 = vmatpush1.msra.mxu0 %v2125
  %2482 = vmatprep.subr.mxu0 %v2130
  %2483 = vmatpush1.msra.mxu0 %v2129
  %2484 = vmatprep.subr.mxu0 %v2134
  %2485 = vmatpush1.msra.mxu0 %v2133
  %2486 = vmatprep.subr.mxu0 %v2138
  %2487 = vmatpush1.msra.mxu0 %v2137
  %2488 = vmatprep.subr.mxu0 %v2142
  %2489 = vmatpush1.msra.mxu0 %v2141
  %2490 = vmatprep.subr.mxu0 %v2146
  %2491 = vmatpush1.msra.mxu0 %v2145
  %2492 = vmatprep.subr.mxu0 %v2150
  %2493 = vmatpush1.msra.mxu0 %v2149
  %2494 = vmatprep.subr.mxu0 %v2154
  %2495 = vmatpush1.msra.mxu0 %v2153
  %2496 = vmatprep.subr.mxu0 %v2158
  %2497 = vmatpush1.msra.mxu0 %v2157
  %2498 = vmatprep.subr.mxu0 %v2162
  %2499 = vmatpush1.msra.mxu0 %v2161
  %2500 = vmatprep.subr.mxu0 %v2166
  %2501 = vmatpush1.msra.mxu0 %v2165
  %2502 = vmatprep.subr.mxu0 %v2170
  %2503 = vmatpush1.msra.mxu0 %v2169
  %2504 = vmatprep.subr.mxu0 %v2174
  %2505 = vmatpush1.msra.mxu0 %v2173
  %2506 = vmatprep.subr.mxu0 %v2178
  %2507 = vmatpush1.msra.mxu0 %v2177
  %2508 = vmatprep.subr.mxu0 %v2182
  %2509 = vmatpush1.msra.mxu0 %v2181
  %2510 = vmatprep.subr.mxu0 %v2186
  %2511 = vmatpush1.msra.mxu0 %v2185
  %2512 = vmatprep.subr.mxu0 %v2190
  %2513 = vmatpush1.msra.mxu0 %v2189
  %2514 = vmatprep.subr.mxu0 %v2194
  %2515 = vmatpush1.msra.mxu0 %v2193
  %2516 = vmatprep.subr.mxu0 %v2198
  %2517 = vmatpush1.msra.mxu0 %v2197
  %2518 = vmatprep.subr.mxu0 %v2202
  %2519 = vmatpush1.msra.mxu0 %v2201
  %2520 = vmatprep.subr.mxu0 %v2206
  %2521 = vmatpush1.msra.mxu0 %v2205
  %2522 = vmatprep.subr.mxu0 %v2210
  %2523 = vmatpush1.msra.mxu0 %v2209
  %2524 = vmatprep.subr.mxu0 %v2214
  %2525 = vmatpush1.msra.mxu0 %v2213
  %2526 = vmatprep.subr.mxu0 %v2218
  %2527 = vmatpush1.msra.mxu0 %v2217
  %2528 = vmatprep.subr.mxu0 %v2222
  %2529 = vmatpush1.msra.mxu0 %v2221
  %2530 = vmatprep.subr.mxu0 %v2226
  %2531 = vmatpush1.msra.mxu0 %v2225
  %2532 = vmatprep.subr.mxu0 %v2230
  %2533 = vmatpush1.msra.mxu0 %v2229
  %2534 = vmatprep.subr.mxu0 %v2234
  %2535 = vmatpush1.msra.mxu0 %v2233
  %2536 = vmatprep.subr.mxu0 %v2238
  %2537 = vmatpush1.msra.mxu0 %v2237
  %2538 = vmatprep.subr.mxu0 %v2242
  %2539 = vmatpush1.msra.mxu0 %v2241
  %2540 = vmatprep.subr.mxu0 %v2246
  %2541 = vmatpush1.msra.mxu0 %v2245
  %2542 = vmatprep.mubr.f32.mxu0 %v1986
  %2543 = vmatmul.mubr.f32.gmra.mrb[0].mxu0 %v1985
  %v2544 = vpop.f32.mrb[0].mxu0
  %v2545 = vadd.f32 %v2468, %v2544
  %v2546 = vpop.f32.mrb[0].mxu0
  %v2547 = vadd.f32 %v2470, %v2546
  %2548 = vmatprep.mubr.f32.mxu0 %v1990
  %2549 = vmatmul.mubr.f32.gmra.mrb[0].mxu0 %v1989
  %v2550 = vpop.f32.mrb[0].mxu0
  %v2551 = vadd.f32 %v2474, %v2550
  %v2552 = vpop.f32.mrb[0].mxu0
  %v2553 = vadd.f32 %v2476, %v2552
  %2554 = vdwg.mxu0
  %s2555 = scalar_lea.vmem %s2, 2048
  %v2556 = vld [vmem:[%s2555] sm:$0xff]
  %v2557 = vld [vmem:[%s2555 + $0x8] sm:$0xff]
  %v2558 = vld [vmem:[%s2555 + $0x10] sm:$0xff]
  %v2559 = vld [vmem:[%s2555 + $0x18] sm:$0xff]
  %v2560 = vld [vmem:[%s2555 + $0x20] sm:$0xff]
  %v2561 = vld [vmem:[%s2555 + $0x28] sm:$0xff]
  %v2562 = vld [vmem:[%s2555 + $0x30] sm:$0xff]
  %v2563 = vld [vmem:[%s2555 + $0x38] sm:$0xff]
  %v2564 = vld [vmem:[%s2555 + $0x40] sm:$0xff]
  %v2565 = vld [vmem:[%s2555 + $0x48] sm:$0xff]
  %v2566 = vld [vmem:[%s2555 + $0x50] sm:$0xff]
  %v2567 = vld [vmem:[%s2555 + $0x58] sm:$0xff]
  %v2568 = vld [vmem:[%s2555 + $0x60] sm:$0xff]
  %v2569 = vld [vmem:[%s2555 + $0x68] sm:$0xff]
  %v2570 = vld [vmem:[%s2555 + $0x70] sm:$0xff]
  %v2571 = vld [vmem:[%s2555 + $0x78] sm:$0xff]
  %v2572 = vld [vmem:[%s2555 + $0x80] sm:$0xff]
  %v2573 = vld [vmem:[%s2555 + $0x88] sm:$0xff]
  %v2574 = vld [vmem:[%s2555 + $0x90] sm:$0xff]
  %v2575 = vld [vmem:[%s2555 + $0x98] sm:$0xff]
  %v2576 = vld [vmem:[%s2555 + $0xa0] sm:$0xff]
  %v2577 = vld [vmem:[%s2555 + $0xa8] sm:$0xff]
  %v2578 = vld [vmem:[%s2555 + $0xb0] sm:$0xff]
  %v2579 = vld [vmem:[%s2555 + $0xb8] sm:$0xff]
  %v2580 = vld [vmem:[%s2555 + $0xc0] sm:$0xff]
  %v2581 = vld [vmem:[%s2555 + $0xc8] sm:$0xff]
  %v2582 = vld [vmem:[%s2555 + $0xd0] sm:$0xff]
  %v2583 = vld [vmem:[%s2555 + $0xd8] sm:$0xff]
  %v2584 = vld [vmem:[%s2555 + $0xe0] sm:$0xff]
  %v2585 = vld [vmem:[%s2555 + $0xe8] sm:$0xff]
  %v2586 = vld [vmem:[%s2555 + $0xf0] sm:$0xff]
  %v2587 = vld [vmem:[%s2555 + $0xf8] sm:$0xff]
  %v2588 = vld [vmem:[%s2555 + $0x100] sm:$0xff]
  %v2589 = vld [vmem:[%s2555 + $0x108] sm:$0xff]
  %v2590 = vld [vmem:[%s2555 + $0x110] sm:$0xff]
  %v2591 = vld [vmem:[%s2555 + $0x118] sm:$0xff]
  %v2592 = vld [vmem:[%s2555 + $0x120] sm:$0xff]
  %v2593 = vld [vmem:[%s2555 + $0x128] sm:$0xff]
  %v2594 = vld [vmem:[%s2555 + $0x130] sm:$0xff]
  %v2595 = vld [vmem:[%s2555 + $0x138] sm:$0xff]
  %v2596 = vld [vmem:[%s2555 + $0x140] sm:$0xff]
  %v2597 = vld [vmem:[%s2555 + $0x148] sm:$0xff]
  %v2598 = vld [vmem:[%s2555 + $0x150] sm:$0xff]
  %v2599 = vld [vmem:[%s2555 + $0x158] sm:$0xff]
  %v2600 = vld [vmem:[%s2555 + $0x160] sm:$0xff]
  %v2601 = vld [vmem:[%s2555 + $0x168] sm:$0xff]
  %v2602 = vld [vmem:[%s2555 + $0x170] sm:$0xff]
  %v2603 = vld [vmem:[%s2555 + $0x178] sm:$0xff]
  %v2604 = vld [vmem:[%s2555 + $0x180] sm:$0xff]
  %v2605 = vld [vmem:[%s2555 + $0x188] sm:$0xff]
  %v2606 = vld [vmem:[%s2555 + $0x190] sm:$0xff]
  %v2607 = vld [vmem:[%s2555 + $0x198] sm:$0xff]
  %v2608 = vld [vmem:[%s2555 + $0x1a0] sm:$0xff]
  %v2609 = vld [vmem:[%s2555 + $0x1a8] sm:$0xff]
  %v2610 = vld [vmem:[%s2555 + $0x1b0] sm:$0xff]
  %v2611 = vld [vmem:[%s2555 + $0x1b8] sm:$0xff]
  %v2612 = vld [vmem:[%s2555 + $0x1c0] sm:$0xff]
  %v2613 = vld [vmem:[%s2555 + $0x1c8] sm:$0xff]
  %v2614 = vld [vmem:[%s2555 + $0x1d0] sm:$0xff]
  %v2615 = vld [vmem:[%s2555 + $0x1d8] sm:$0xff]
  %v2616 = vld [vmem:[%s2555 + $0x1e0] sm:$0xff]
  %v2617 = vld [vmem:[%s2555 + $0x1e8] sm:$0xff]
  %v2618 = vld [vmem:[%s2555 + $0x1f0] sm:$0xff]
  %v2619 = vld [vmem:[%s2555 + $0x1f8] sm:$0xff]
  %v2620 = vld [vmem:[%s2555 + $0x200] sm:$0xff]
  %v2621 = vld [vmem:[%s2555 + $0x208] sm:$0xff]
  %v2622 = vld [vmem:[%s2555 + $0x210] sm:$0xff]
  %v2623 = vld [vmem:[%s2555 + $0x218] sm:$0xff]
  %v2624 = vld [vmem:[%s2555 + $0x220] sm:$0xff]
  %v2625 = vld [vmem:[%s2555 + $0x228] sm:$0xff]
  %v2626 = vld [vmem:[%s2555 + $0x230] sm:$0xff]
  %v2627 = vld [vmem:[%s2555 + $0x238] sm:$0xff]
  %v2628 = vld [vmem:[%s2555 + $0x240] sm:$0xff]
  %v2629 = vld [vmem:[%s2555 + $0x248] sm:$0xff]
  %v2630 = vld [vmem:[%s2555 + $0x250] sm:$0xff]
  %v2631 = vld [vmem:[%s2555 + $0x258] sm:$0xff]
  %v2632 = vld [vmem:[%s2555 + $0x260] sm:$0xff]
  %v2633 = vld [vmem:[%s2555 + $0x268] sm:$0xff]
  %v2634 = vld [vmem:[%s2555 + $0x270] sm:$0xff]
  %v2635 = vld [vmem:[%s2555 + $0x278] sm:$0xff]
  %v2636 = vld [vmem:[%s2555 + $0x280] sm:$0xff]
  %v2637 = vld [vmem:[%s2555 + $0x288] sm:$0xff]
  %v2638 = vld [vmem:[%s2555 + $0x290] sm:$0xff]
  %v2639 = vld [vmem:[%s2555 + $0x298] sm:$0xff]
  %v2640 = vld [vmem:[%s2555 + $0x2a0] sm:$0xff]
  %v2641 = vld [vmem:[%s2555 + $0x2a8] sm:$0xff]
  %v2642 = vld [vmem:[%s2555 + $0x2b0] sm:$0xff]
  %v2643 = vld [vmem:[%s2555 + $0x2b8] sm:$0xff]
  %v2644 = vld [vmem:[%s2555 + $0x2c0] sm:$0xff]
  %v2645 = vld [vmem:[%s2555 + $0x2c8] sm:$0xff]
  %v2646 = vld [vmem:[%s2555 + $0x2d0] sm:$0xff]
  %v2647 = vld [vmem:[%s2555 + $0x2d8] sm:$0xff]
  %v2648 = vld [vmem:[%s2555 + $0x2e0] sm:$0xff]
  %v2649 = vld [vmem:[%s2555 + $0x2e8] sm:$0xff]
  %v2650 = vld [vmem:[%s2555 + $0x2f0] sm:$0xff]
  %v2651 = vld [vmem:[%s2555 + $0x2f8] sm:$0xff]
  %v2652 = vld [vmem:[%s2555 + $0x300] sm:$0xff]
  %v2653 = vld [vmem:[%s2555 + $0x308] sm:$0xff]
  %v2654 = vld [vmem:[%s2555 + $0x310] sm:$0xff]
  %v2655 = vld [vmem:[%s2555 + $0x318] sm:$0xff]
  %v2656 = vld [vmem:[%s2555 + $0x320] sm:$0xff]
  %v2657 = vld [vmem:[%s2555 + $0x328] sm:$0xff]
  %v2658 = vld [vmem:[%s2555 + $0x330] sm:$0xff]
  %v2659 = vld [vmem:[%s2555 + $0x338] sm:$0xff]
  %v2660 = vld [vmem:[%s2555 + $0x340] sm:$0xff]
  %v2661 = vld [vmem:[%s2555 + $0x348] sm:$0xff]
  %v2662 = vld [vmem:[%s2555 + $0x350] sm:$0xff]
  %v2663 = vld [vmem:[%s2555 + $0x358] sm:$0xff]
  %v2664 = vld [vmem:[%s2555 + $0x360] sm:$0xff]
  %v2665 = vld [vmem:[%s2555 + $0x368] sm:$0xff]
  %v2666 = vld [vmem:[%s2555 + $0x370] sm:$0xff]
  %v2667 = vld [vmem:[%s2555 + $0x378] sm:$0xff]
  %v2668 = vld [vmem:[%s2555 + $0x380] sm:$0xff]
  %v2669 = vld [vmem:[%s2555 + $0x388] sm:$0xff]
  %v2670 = vld [vmem:[%s2555 + $0x390] sm:$0xff]
  %v2671 = vld [vmem:[%s2555 + $0x398] sm:$0xff]
  %v2672 = vld [vmem:[%s2555 + $0x3a0] sm:$0xff]
  %v2673 = vld [vmem:[%s2555 + $0x3a8] sm:$0xff]
  %v2674 = vld [vmem:[%s2555 + $0x3b0] sm:$0xff]
  %v2675 = vld [vmem:[%s2555 + $0x3b8] sm:$0xff]
  %v2676 = vld [vmem:[%s2555 + $0x3c0] sm:$0xff]
  %v2677 = vld [vmem:[%s2555 + $0x3c8] sm:$0xff]
  %v2678 = vld [vmem:[%s2555 + $0x3d0] sm:$0xff]
  %v2679 = vld [vmem:[%s2555 + $0x3d8] sm:$0xff]
  %v2680 = vld [vmem:[%s2555 + $0x3e0] sm:$0xff]
  %v2681 = vld [vmem:[%s2555 + $0x3e8] sm:$0xff]
  %v2682 = vld [vmem:[%s2555 + $0x3f0] sm:$0xff]
  %v2683 = vld [vmem:[%s2555 + $0x3f8] sm:$0xff]
  %v2684 = vld [vmem:[%s2555 + $0x400] sm:$0xff]
  %v2685 = vld [vmem:[%s2555 + $0x408] sm:$0xff]
  %v2686 = vld [vmem:[%s2555 + $0x410] sm:$0xff]
  %v2687 = vld [vmem:[%s2555 + $0x418] sm:$0xff]
  %v2688 = vld [vmem:[%s2555 + $0x420] sm:$0xff]
  %v2689 = vld [vmem:[%s2555 + $0x428] sm:$0xff]
  %v2690 = vld [vmem:[%s2555 + $0x430] sm:$0xff]
  %v2691 = vld [vmem:[%s2555 + $0x438] sm:$0xff]
  %v2692 = vld [vmem:[%s2555 + $0x440] sm:$0xff]
  %v2693 = vld [vmem:[%s2555 + $0x448] sm:$0xff]
  %v2694 = vld [vmem:[%s2555 + $0x450] sm:$0xff]
  %v2695 = vld [vmem:[%s2555 + $0x458] sm:$0xff]
  %v2696 = vld [vmem:[%s2555 + $0x460] sm:$0xff]
  %v2697 = vld [vmem:[%s2555 + $0x468] sm:$0xff]
  %v2698 = vld [vmem:[%s2555 + $0x470] sm:$0xff]
  %v2699 = vld [vmem:[%s2555 + $0x478] sm:$0xff]
  %v2700 = vld [vmem:[%s2555 + $0x480] sm:$0xff]
  %v2701 = vld [vmem:[%s2555 + $0x488] sm:$0xff]
  %v2702 = vld [vmem:[%s2555 + $0x490] sm:$0xff]
  %v2703 = vld [vmem:[%s2555 + $0x498] sm:$0xff]
  %v2704 = vld [vmem:[%s2555 + $0x4a0] sm:$0xff]
  %v2705 = vld [vmem:[%s2555 + $0x4a8] sm:$0xff]
  %v2706 = vld [vmem:[%s2555 + $0x4b0] sm:$0xff]
  %v2707 = vld [vmem:[%s2555 + $0x4b8] sm:$0xff]
  %v2708 = vld [vmem:[%s2555 + $0x4c0] sm:$0xff]
  %v2709 = vld [vmem:[%s2555 + $0x4c8] sm:$0xff]
  %v2710 = vld [vmem:[%s2555 + $0x4d0] sm:$0xff]
  %v2711 = vld [vmem:[%s2555 + $0x4d8] sm:$0xff]
  %v2712 = vld [vmem:[%s2555 + $0x4e0] sm:$0xff]
  %v2713 = vld [vmem:[%s2555 + $0x4e8] sm:$0xff]
  %v2714 = vld [vmem:[%s2555 + $0x4f0] sm:$0xff]
  %v2715 = vld [vmem:[%s2555 + $0x4f8] sm:$0xff]
  %v2716 = vld [vmem:[%s2555 + $0x500] sm:$0xff]
  %v2717 = vld [vmem:[%s2555 + $0x508] sm:$0xff]
  %v2718 = vld [vmem:[%s2555 + $0x510] sm:$0xff]
  %v2719 = vld [vmem:[%s2555 + $0x518] sm:$0xff]
  %v2720 = vld [vmem:[%s2555 + $0x520] sm:$0xff]
  %v2721 = vld [vmem:[%s2555 + $0x528] sm:$0xff]
  %v2722 = vld [vmem:[%s2555 + $0x530] sm:$0xff]
  %v2723 = vld [vmem:[%s2555 + $0x538] sm:$0xff]
  %v2724 = vld [vmem:[%s2555 + $0x540] sm:$0xff]
  %v2725 = vld [vmem:[%s2555 + $0x548] sm:$0xff]
  %v2726 = vld [vmem:[%s2555 + $0x550] sm:$0xff]
  %v2727 = vld [vmem:[%s2555 + $0x558] sm:$0xff]
  %v2728 = vld [vmem:[%s2555 + $0x560] sm:$0xff]
  %v2729 = vld [vmem:[%s2555 + $0x568] sm:$0xff]
  %v2730 = vld [vmem:[%s2555 + $0x570] sm:$0xff]
  %v2731 = vld [vmem:[%s2555 + $0x578] sm:$0xff]
  %v2732 = vld [vmem:[%s2555 + $0x580] sm:$0xff]
  %v2733 = vld [vmem:[%s2555 + $0x588] sm:$0xff]
  %v2734 = vld [vmem:[%s2555 + $0x590] sm:$0xff]
  %v2735 = vld [vmem:[%s2555 + $0x598] sm:$0xff]
  %v2736 = vld [vmem:[%s2555 + $0x5a0] sm:$0xff]
  %v2737 = vld [vmem:[%s2555 + $0x5a8] sm:$0xff]
  %v2738 = vld [vmem:[%s2555 + $0x5b0] sm:$0xff]
  %v2739 = vld [vmem:[%s2555 + $0x5b8] sm:$0xff]
  %v2740 = vld [vmem:[%s2555 + $0x5c0] sm:$0xff]
  %v2741 = vld [vmem:[%s2555 + $0x5c8] sm:$0xff]
  %v2742 = vld [vmem:[%s2555 + $0x5d0] sm:$0xff]
  %v2743 = vld [vmem:[%s2555 + $0x5d8] sm:$0xff]
  %v2744 = vld [vmem:[%s2555 + $0x5e0] sm:$0xff]
  %v2745 = vld [vmem:[%s2555 + $0x5e8] sm:$0xff]
  %v2746 = vld [vmem:[%s2555 + $0x5f0] sm:$0xff]
  %v2747 = vld [vmem:[%s2555 + $0x5f8] sm:$0xff]
  %v2748 = vld [vmem:[%s2555 + $0x600] sm:$0xff]
  %v2749 = vld [vmem:[%s2555 + $0x608] sm:$0xff]
  %v2750 = vld [vmem:[%s2555 + $0x610] sm:$0xff]
  %v2751 = vld [vmem:[%s2555 + $0x618] sm:$0xff]
  %v2752 = vld [vmem:[%s2555 + $0x620] sm:$0xff]
  %v2753 = vld [vmem:[%s2555 + $0x628] sm:$0xff]
  %v2754 = vld [vmem:[%s2555 + $0x630] sm:$0xff]
  %v2755 = vld [vmem:[%s2555 + $0x638] sm:$0xff]
  %v2756 = vld [vmem:[%s2555 + $0x640] sm:$0xff]
  %v2757 = vld [vmem:[%s2555 + $0x648] sm:$0xff]
  %v2758 = vld [vmem:[%s2555 + $0x650] sm:$0xff]
  %v2759 = vld [vmem:[%s2555 + $0x658] sm:$0xff]
  %v2760 = vld [vmem:[%s2555 + $0x660] sm:$0xff]
  %v2761 = vld [vmem:[%s2555 + $0x668] sm:$0xff]
  %v2762 = vld [vmem:[%s2555 + $0x670] sm:$0xff]
  %v2763 = vld [vmem:[%s2555 + $0x678] sm:$0xff]
  %v2764 = vld [vmem:[%s2555 + $0x680] sm:$0xff]
  %v2765 = vld [vmem:[%s2555 + $0x688] sm:$0xff]
  %v2766 = vld [vmem:[%s2555 + $0x690] sm:$0xff]
  %v2767 = vld [vmem:[%s2555 + $0x698] sm:$0xff]
  %v2768 = vld [vmem:[%s2555 + $0x6a0] sm:$0xff]
  %v2769 = vld [vmem:[%s2555 + $0x6a8] sm:$0xff]
  %v2770 = vld [vmem:[%s2555 + $0x6b0] sm:$0xff]
  %v2771 = vld [vmem:[%s2555 + $0x6b8] sm:$0xff]
  %v2772 = vld [vmem:[%s2555 + $0x6c0] sm:$0xff]
  %v2773 = vld [vmem:[%s2555 + $0x6c8] sm:$0xff]
  %v2774 = vld [vmem:[%s2555 + $0x6d0] sm:$0xff]
  %v2775 = vld [vmem:[%s2555 + $0x6d8] sm:$0xff]
  %v2776 = vld [vmem:[%s2555 + $0x6e0] sm:$0xff]
  %v2777 = vld [vmem:[%s2555 + $0x6e8] sm:$0xff]
  %v2778 = vld [vmem:[%s2555 + $0x6f0] sm:$0xff]
  %v2779 = vld [vmem:[%s2555 + $0x6f8] sm:$0xff]
  %v2780 = vld [vmem:[%s2555 + $0x700] sm:$0xff]
  %v2781 = vld [vmem:[%s2555 + $0x708] sm:$0xff]
  %v2782 = vld [vmem:[%s2555 + $0x710] sm:$0xff]
  %v2783 = vld [vmem:[%s2555 + $0x718] sm:$0xff]
  %v2784 = vld [vmem:[%s2555 + $0x720] sm:$0xff]
  %v2785 = vld [vmem:[%s2555 + $0x728] sm:$0xff]
  %v2786 = vld [vmem:[%s2555 + $0x730] sm:$0xff]
  %v2787 = vld [vmem:[%s2555 + $0x738] sm:$0xff]
  %v2788 = vld [vmem:[%s2555 + $0x740] sm:$0xff]
  %v2789 = vld [vmem:[%s2555 + $0x748] sm:$0xff]
  %v2790 = vld [vmem:[%s2555 + $0x750] sm:$0xff]
  %v2791 = vld [vmem:[%s2555 + $0x758] sm:$0xff]
  %v2792 = vld [vmem:[%s2555 + $0x760] sm:$0xff]
  %v2793 = vld [vmem:[%s2555 + $0x768] sm:$0xff]
  %v2794 = vld [vmem:[%s2555 + $0x770] sm:$0xff]
  %v2795 = vld [vmem:[%s2555 + $0x778] sm:$0xff]
  %v2796 = vld [vmem:[%s2555 + $0x780] sm:$0xff]
  %v2797 = vld [vmem:[%s2555 + $0x788] sm:$0xff]
  %v2798 = vld [vmem:[%s2555 + $0x790] sm:$0xff]
  %v2799 = vld [vmem:[%s2555 + $0x798] sm:$0xff]
  %v2800 = vld [vmem:[%s2555 + $0x7a0] sm:$0xff]
  %v2801 = vld [vmem:[%s2555 + $0x7a8] sm:$0xff]
  %v2802 = vld [vmem:[%s2555 + $0x7b0] sm:$0xff]
  %v2803 = vld [vmem:[%s2555 + $0x7b8] sm:$0xff]
  %v2804 = vld [vmem:[%s2555 + $0x7c0] sm:$0xff]
  %v2805 = vld [vmem:[%s2555 + $0x7c8] sm:$0xff]
  %v2806 = vld [vmem:[%s2555 + $0x7d0] sm:$0xff]
  %v2807 = vld [vmem:[%s2555 + $0x7d8] sm:$0xff]
  %v2808 = vld [vmem:[%s2555 + $0x7e0] sm:$0xff]
  %v2809 = vld [vmem:[%s2555 + $0x7e8] sm:$0xff]
  %v2810 = vld [vmem:[%s2555 + $0x7f0] sm:$0xff]
  %v2811 = vld [vmem:[%s2555 + $0x7f8] sm:$0xff]
  %s2812 = scalar_lea.vmem %s2, 4096
  %v2813 = vld [vmem:[%s2812] sm:$0xff]
  %v2814 = vld [vmem:[%s2812 + $0x8] sm:$0xff]
  %v2815 = vld [vmem:[%s2812 + $0x10] sm:$0xff]
  %v2816 = vld [vmem:[%s2812 + $0x18] sm:$0xff]
  %v2817 = vld [vmem:[%s2812 + $0x20] sm:$0xff]
  %v2818 = vld [vmem:[%s2812 + $0x28] sm:$0xff]
  %v2819 = vld [vmem:[%s2812 + $0x30] sm:$0xff]
  %v2820 = vld [vmem:[%s2812 + $0x38] sm:$0xff]
  %v2821 = vld [vmem:[%s2812 + $0x40] sm:$0xff]
  %v2822 = vld [vmem:[%s2812 + $0x48] sm:$0xff]
  %v2823 = vld [vmem:[%s2812 + $0x50] sm:$0xff]
  %v2824 = vld [vmem:[%s2812 + $0x58] sm:$0xff]
  %v2825 = vld [vmem:[%s2812 + $0x60] sm:$0xff]
  %v2826 = vld [vmem:[%s2812 + $0x68] sm:$0xff]
  %v2827 = vld [vmem:[%s2812 + $0x70] sm:$0xff]
  %v2828 = vld [vmem:[%s2812 + $0x78] sm:$0xff]
  %v2829 = vld [vmem:[%s2812 + $0x80] sm:$0xff]
  %v2830 = vld [vmem:[%s2812 + $0x88] sm:$0xff]
  %v2831 = vld [vmem:[%s2812 + $0x90] sm:$0xff]
  %v2832 = vld [vmem:[%s2812 + $0x98] sm:$0xff]
  %v2833 = vld [vmem:[%s2812 + $0xa0] sm:$0xff]
  %v2834 = vld [vmem:[%s2812 + $0xa8] sm:$0xff]
  %v2835 = vld [vmem:[%s2812 + $0xb0] sm:$0xff]
  %v2836 = vld [vmem:[%s2812 + $0xb8] sm:$0xff]
  %v2837 = vld [vmem:[%s2812 + $0xc0] sm:$0xff]
  %v2838 = vld [vmem:[%s2812 + $0xc8] sm:$0xff]
  %v2839 = vld [vmem:[%s2812 + $0xd0] sm:$0xff]
  %v2840 = vld [vmem:[%s2812 + $0xd8] sm:$0xff]
  %v2841 = vld [vmem:[%s2812 + $0xe0] sm:$0xff]
  %v2842 = vld [vmem:[%s2812 + $0xe8] sm:$0xff]
  %v2843 = vld [vmem:[%s2812 + $0xf0] sm:$0xff]
  %v2844 = vld [vmem:[%s2812 + $0xf8] sm:$0xff]
  %v2845 = vld [vmem:[%s2812 + $0x100] sm:$0xff]
  %v2846 = vld [vmem:[%s2812 + $0x108] sm:$0xff]
  %v2847 = vld [vmem:[%s2812 + $0x110] sm:$0xff]
  %v2848 = vld [vmem:[%s2812 + $0x118] sm:$0xff]
  %v2849 = vld [vmem:[%s2812 + $0x120] sm:$0xff]
  %v2850 = vld [vmem:[%s2812 + $0x128] sm:$0xff]
  %v2851 = vld [vmem:[%s2812 + $0x130] sm:$0xff]
  %v2852 = vld [vmem:[%s2812 + $0x138] sm:$0xff]
  %v2853 = vld [vmem:[%s2812 + $0x140] sm:$0xff]
  %v2854 = vld [vmem:[%s2812 + $0x148] sm:$0xff]
  %v2855 = vld [vmem:[%s2812 + $0x150] sm:$0xff]
  %v2856 = vld [vmem:[%s2812 + $0x158] sm:$0xff]
  %v2857 = vld [vmem:[%s2812 + $0x160] sm:$0xff]
  %v2858 = vld [vmem:[%s2812 + $0x168] sm:$0xff]
  %v2859 = vld [vmem:[%s2812 + $0x170] sm:$0xff]
  %v2860 = vld [vmem:[%s2812 + $0x178] sm:$0xff]
  %v2861 = vld [vmem:[%s2812 + $0x180] sm:$0xff]
  %v2862 = vld [vmem:[%s2812 + $0x188] sm:$0xff]
  %v2863 = vld [vmem:[%s2812 + $0x190] sm:$0xff]
  %v2864 = vld [vmem:[%s2812 + $0x198] sm:$0xff]
  %v2865 = vld [vmem:[%s2812 + $0x1a0] sm:$0xff]
  %v2866 = vld [vmem:[%s2812 + $0x1a8] sm:$0xff]
  %v2867 = vld [vmem:[%s2812 + $0x1b0] sm:$0xff]
  %v2868 = vld [vmem:[%s2812 + $0x1b8] sm:$0xff]
  %v2869 = vld [vmem:[%s2812 + $0x1c0] sm:$0xff]
  %v2870 = vld [vmem:[%s2812 + $0x1c8] sm:$0xff]
  %v2871 = vld [vmem:[%s2812 + $0x1d0] sm:$0xff]
  %v2872 = vld [vmem:[%s2812 + $0x1d8] sm:$0xff]
  %v2873 = vld [vmem:[%s2812 + $0x1e0] sm:$0xff]
  %v2874 = vld [vmem:[%s2812 + $0x1e8] sm:$0xff]
  %v2875 = vld [vmem:[%s2812 + $0x1f0] sm:$0xff]
  %v2876 = vld [vmem:[%s2812 + $0x1f8] sm:$0xff]
  %v2877 = vld [vmem:[%s2812 + $0x200] sm:$0xff]
  %v2878 = vld [vmem:[%s2812 + $0x208] sm:$0xff]
  %v2879 = vld [vmem:[%s2812 + $0x210] sm:$0xff]
  %v2880 = vld [vmem:[%s2812 + $0x218] sm:$0xff]
  %v2881 = vld [vmem:[%s2812 + $0x220] sm:$0xff]
  %v2882 = vld [vmem:[%s2812 + $0x228] sm:$0xff]
  %v2883 = vld [vmem:[%s2812 + $0x230] sm:$0xff]
  %v2884 = vld [vmem:[%s2812 + $0x238] sm:$0xff]
  %v2885 = vld [vmem:[%s2812 + $0x240] sm:$0xff]
  %v2886 = vld [vmem:[%s2812 + $0x248] sm:$0xff]
  %v2887 = vld [vmem:[%s2812 + $0x250] sm:$0xff]
  %v2888 = vld [vmem:[%s2812 + $0x258] sm:$0xff]
  %v2889 = vld [vmem:[%s2812 + $0x260] sm:$0xff]
  %v2890 = vld [vmem:[%s2812 + $0x268] sm:$0xff]
  %v2891 = vld [vmem:[%s2812 + $0x270] sm:$0xff]
  %v2892 = vld [vmem:[%s2812 + $0x278] sm:$0xff]
  %v2893 = vld [vmem:[%s2812 + $0x280] sm:$0xff]
  %v2894 = vld [vmem:[%s2812 + $0x288] sm:$0xff]
  %v2895 = vld [vmem:[%s2812 + $0x290] sm:$0xff]
  %v2896 = vld [vmem:[%s2812 + $0x298] sm:$0xff]
  %v2897 = vld [vmem:[%s2812 + $0x2a0] sm:$0xff]
  %v2898 = vld [vmem:[%s2812 + $0x2a8] sm:$0xff]
  %v2899 = vld [vmem:[%s2812 + $0x2b0] sm:$0xff]
  %v2900 = vld [vmem:[%s2812 + $0x2b8] sm:$0xff]
  %v2901 = vld [vmem:[%s2812 + $0x2c0] sm:$0xff]
  %v2902 = vld [vmem:[%s2812 + $0x2c8] sm:$0xff]
  %v2903 = vld [vmem:[%s2812 + $0x2d0] sm:$0xff]
  %v2904 = vld [vmem:[%s2812 + $0x2d8] sm:$0xff]
  %v2905 = vld [vmem:[%s2812 + $0x2e0] sm:$0xff]
  %v2906 = vld [vmem:[%s2812 + $0x2e8] sm:$0xff]
  %v2907 = vld [vmem:[%s2812 + $0x2f0] sm:$0xff]
  %v2908 = vld [vmem:[%s2812 + $0x2f8] sm:$0xff]
  %v2909 = vld [vmem:[%s2812 + $0x300] sm:$0xff]
  %v2910 = vld [vmem:[%s2812 + $0x308] sm:$0xff]
  %v2911 = vld [vmem:[%s2812 + $0x310] sm:$0xff]
  %v2912 = vld [vmem:[%s2812 + $0x318] sm:$0xff]
  %v2913 = vld [vmem:[%s2812 + $0x320] sm:$0xff]
  %v2914 = vld [vmem:[%s2812 + $0x328] sm:$0xff]
  %v2915 = vld [vmem:[%s2812 + $0x330] sm:$0xff]
  %v2916 = vld [vmem:[%s2812 + $0x338] sm:$0xff]
  %v2917 = vld [vmem:[%s2812 + $0x340] sm:$0xff]
  %v2918 = vld [vmem:[%s2812 + $0x348] sm:$0xff]
  %v2919 = vld [vmem:[%s2812 + $0x350] sm:$0xff]
  %v2920 = vld [vmem:[%s2812 + $0x358] sm:$0xff]
  %v2921 = vld [vmem:[%s2812 + $0x360] sm:$0xff]
  %v2922 = vld [vmem:[%s2812 + $0x368] sm:$0xff]
  %v2923 = vld [vmem:[%s2812 + $0x370] sm:$0xff]
  %v2924 = vld [vmem:[%s2812 + $0x378] sm:$0xff]
  %v2925 = vld [vmem:[%s2812 + $0x380] sm:$0xff]
  %v2926 = vld [vmem:[%s2812 + $0x388] sm:$0xff]
  %v2927 = vld [vmem:[%s2812 + $0x390] sm:$0xff]
  %v2928 = vld [vmem:[%s2812 + $0x398] sm:$0xff]
  %v2929 = vld [vmem:[%s2812 + $0x3a0] sm:$0xff]
  %v2930 = vld [vmem:[%s2812 + $0x3a8] sm:$0xff]
  %v2931 = vld [vmem:[%s2812 + $0x3b0] sm:$0xff]
  %v2932 = vld [vmem:[%s2812 + $0x3b8] sm:$0xff]
  %v2933 = vld [vmem:[%s2812 + $0x3c0] sm:$0xff]
  %v2934 = vld [vmem:[%s2812 + $0x3c8] sm:$0xff]
  %v2935 = vld [vmem:[%s2812 + $0x3d0] sm:$0xff]
  %v2936 = vld [vmem:[%s2812 + $0x3d8] sm:$0xff]
  %v2937 = vld [vmem:[%s2812 + $0x3e0] sm:$0xff]
  %v2938 = vld [vmem:[%s2812 + $0x3e8] sm:$0xff]
  %v2939 = vld [vmem:[%s2812 + $0x3f0] sm:$0xff]
  %v2940 = vld [vmem:[%s2812 + $0x3f8] sm:$0xff]
  %v2941 = vld [vmem:[%s2812 + $0x400] sm:$0xff]
  %v2942 = vld [vmem:[%s2812 + $0x408] sm:$0xff]
  %v2943 = vld [vmem:[%s2812 + $0x410] sm:$0xff]
  %v2944 = vld [vmem:[%s2812 + $0x418] sm:$0xff]
  %v2945 = vld [vmem:[%s2812 + $0x420] sm:$0xff]
  %v2946 = vld [vmem:[%s2812 + $0x428] sm:$0xff]
  %v2947 = vld [vmem:[%s2812 + $0x430] sm:$0xff]
  %v2948 = vld [vmem:[%s2812 + $0x438] sm:$0xff]
  %v2949 = vld [vmem:[%s2812 + $0x440] sm:$0xff]
  %v2950 = vld [vmem:[%s2812 + $0x448] sm:$0xff]
  %v2951 = vld [vmem:[%s2812 + $0x450] sm:$0xff]
  %v2952 = vld [vmem:[%s2812 + $0x458] sm:$0xff]
  %v2953 = vld [vmem:[%s2812 + $0x460] sm:$0xff]
  %v2954 = vld [vmem:[%s2812 + $0x468] sm:$0xff]
  %v2955 = vld [vmem:[%s2812 + $0x470] sm:$0xff]
  %v2956 = vld [vmem:[%s2812 + $0x478] sm:$0xff]
  %v2957 = vld [vmem:[%s2812 + $0x480] sm:$0xff]
  %v2958 = vld [vmem:[%s2812 + $0x488] sm:$0xff]
  %v2959 = vld [vmem:[%s2812 + $0x490] sm:$0xff]
  %v2960 = vld [vmem:[%s2812 + $0x498] sm:$0xff]
  %v2961 = vld [vmem:[%s2812 + $0x4a0] sm:$0xff]
  %v2962 = vld [vmem:[%s2812 + $0x4a8] sm:$0xff]
  %v2963 = vld [vmem:[%s2812 + $0x4b0] sm:$0xff]
  %v2964 = vld [vmem:[%s2812 + $0x4b8] sm:$0xff]
  %v2965 = vld [vmem:[%s2812 + $0x4c0] sm:$0xff]
  %v2966 = vld [vmem:[%s2812 + $0x4c8] sm:$0xff]
  %v2967 = vld [vmem:[%s2812 + $0x4d0] sm:$0xff]
  %v2968 = vld [vmem:[%s2812 + $0x4d8] sm:$0xff]
  %v2969 = vld [vmem:[%s2812 + $0x4e0] sm:$0xff]
  %v2970 = vld [vmem:[%s2812 + $0x4e8] sm:$0xff]
  %v2971 = vld [vmem:[%s2812 + $0x4f0] sm:$0xff]
  %v2972 = vld [vmem:[%s2812 + $0x4f8] sm:$0xff]
  %v2973 = vld [vmem:[%s2812 + $0x500] sm:$0xff]
  %v2974 = vld [vmem:[%s2812 + $0x508] sm:$0xff]
  %v2975 = vld [vmem:[%s2812 + $0x510] sm:$0xff]
  %v2976 = vld [vmem:[%s2812 + $0x518] sm:$0xff]
  %v2977 = vld [vmem:[%s2812 + $0x520] sm:$0xff]
  %v2978 = vld [vmem:[%s2812 + $0x528] sm:$0xff]
  %v2979 = vld [vmem:[%s2812 + $0x530] sm:$0xff]
  %v2980 = vld [vmem:[%s2812 + $0x538] sm:$0xff]
  %v2981 = vld [vmem:[%s2812 + $0x540] sm:$0xff]
  %v2982 = vld [vmem:[%s2812 + $0x548] sm:$0xff]
  %v2983 = vld [vmem:[%s2812 + $0x550] sm:$0xff]
  %v2984 = vld [vmem:[%s2812 + $0x558] sm:$0xff]
  %v2985 = vld [vmem:[%s2812 + $0x560] sm:$0xff]
  %v2986 = vld [vmem:[%s2812 + $0x568] sm:$0xff]
  %v2987 = vld [vmem:[%s2812 + $0x570] sm:$0xff]
  %v2988 = vld [vmem:[%s2812 + $0x578] sm:$0xff]
  %v2989 = vld [vmem:[%s2812 + $0x580] sm:$0xff]
  %v2990 = vld [vmem:[%s2812 + $0x588] sm:$0xff]
  %v2991 = vld [vmem:[%s2812 + $0x590] sm:$0xff]
  %v2992 = vld [vmem:[%s2812 + $0x598] sm:$0xff]
  %v2993 = vld [vmem:[%s2812 + $0x5a0] sm:$0xff]
  %v2994 = vld [vmem:[%s2812 + $0x5a8] sm:$0xff]
  %v2995 = vld [vmem:[%s2812 + $0x5b0] sm:$0xff]
  %v2996 = vld [vmem:[%s2812 + $0x5b8] sm:$0xff]
  %v2997 = vld [vmem:[%s2812 + $0x5c0] sm:$0xff]
  %v2998 = vld [vmem:[%s2812 + $0x5c8] sm:$0xff]
  %v2999 = vld [vmem:[%s2812 + $0x5d0] sm:$0xff]
  %v3000 = vld [vmem:[%s2812 + $0x5d8] sm:$0xff]
  %v3001 = vld [vmem:[%s2812 + $0x5e0] sm:$0xff]
  %v3002 = vld [vmem:[%s2812 + $0x5e8] sm:$0xff]
  %v3003 = vld [vmem:[%s2812 + $0x5f0] sm:$0xff]
  %v3004 = vld [vmem:[%s2812 + $0x5f8] sm:$0xff]
  %v3005 = vld [vmem:[%s2812 + $0x600] sm:$0xff]
  %v3006 = vld [vmem:[%s2812 + $0x608] sm:$0xff]
  %v3007 = vld [vmem:[%s2812 + $0x610] sm:$0xff]
  %v3008 = vld [vmem:[%s2812 + $0x618] sm:$0xff]
  %v3009 = vld [vmem:[%s2812 + $0x620] sm:$0xff]
  %v3010 = vld [vmem:[%s2812 + $0x628] sm:$0xff]
  %v3011 = vld [vmem:[%s2812 + $0x630] sm:$0xff]
  %v3012 = vld [vmem:[%s2812 + $0x638] sm:$0xff]
  %v3013 = vld [vmem:[%s2812 + $0x640] sm:$0xff]
  %v3014 = vld [vmem:[%s2812 + $0x648] sm:$0xff]
  %v3015 = vld [vmem:[%s2812 + $0x650] sm:$0xff]
  %v3016 = vld [vmem:[%s2812 + $0x658] sm:$0xff]
  %v3017 = vld [vmem:[%s2812 + $0x660] sm:$0xff]
  %v3018 = vld [vmem:[%s2812 + $0x668] sm:$0xff]
  %v3019 = vld [vmem:[%s2812 + $0x670] sm:$0xff]
  %v3020 = vld [vmem:[%s2812 + $0x678] sm:$0xff]
  %v3021 = vld [vmem:[%s2812 + $0x680] sm:$0xff]
  %v3022 = vld [vmem:[%s2812 + $0x688] sm:$0xff]
  %v3023 = vld [vmem:[%s2812 + $0x690] sm:$0xff]
  %v3024 = vld [vmem:[%s2812 + $0x698] sm:$0xff]
  %v3025 = vld [vmem:[%s2812 + $0x6a0] sm:$0xff]
  %v3026 = vld [vmem:[%s2812 + $0x6a8] sm:$0xff]
  %v3027 = vld [vmem:[%s2812 + $0x6b0] sm:$0xff]
  %v3028 = vld [vmem:[%s2812 + $0x6b8] sm:$0xff]
  %v3029 = vld [vmem:[%s2812 + $0x6c0] sm:$0xff]
  %v3030 = vld [vmem:[%s2812 + $0x6c8] sm:$0xff]
  %v3031 = vld [vmem:[%s2812 + $0x6d0] sm:$0xff]
  %v3032 = vld [vmem:[%s2812 + $0x6d8] sm:$0xff]
  %v3033 = vld [vmem:[%s2812 + $0x6e0] sm:$0xff]
  %v3034 = vld [vmem:[%s2812 + $0x6e8] sm:$0xff]
  %v3035 = vld [vmem:[%s2812 + $0x6f0] sm:$0xff]
  %v3036 = vld [vmem:[%s2812 + $0x6f8] sm:$0xff]
  %v3037 = vld [vmem:[%s2812 + $0x700] sm:$0xff]
  %v3038 = vld [vmem:[%s2812 + $0x708] sm:$0xff]
  %v3039 = vld [vmem:[%s2812 + $0x710] sm:$0xff]
  %v3040 = vld [vmem:[%s2812 + $0x718] sm:$0xff]
  %v3041 = vld [vmem:[%s2812 + $0x720] sm:$0xff]
  %v3042 = vld [vmem:[%s2812 + $0x728] sm:$0xff]
  %v3043 = vld [vmem:[%s2812 + $0x730] sm:$0xff]
  %v3044 = vld [vmem:[%s2812 + $0x738] sm:$0xff]
  %v3045 = vld [vmem:[%s2812 + $0x740] sm:$0xff]
  %v3046 = vld [vmem:[%s2812 + $0x748] sm:$0xff]
  %v3047 = vld [vmem:[%s2812 + $0x750] sm:$0xff]
  %v3048 = vld [vmem:[%s2812 + $0x758] sm:$0xff]
  %v3049 = vld [vmem:[%s2812 + $0x760] sm:$0xff]
  %v3050 = vld [vmem:[%s2812 + $0x768] sm:$0xff]
  %v3051 = vld [vmem:[%s2812 + $0x770] sm:$0xff]
  %v3052 = vld [vmem:[%s2812 + $0x778] sm:$0xff]
  %v3053 = vld [vmem:[%s2812 + $0x780] sm:$0xff]
  %v3054 = vld [vmem:[%s2812 + $0x788] sm:$0xff]
  %v3055 = vld [vmem:[%s2812 + $0x790] sm:$0xff]
  %v3056 = vld [vmem:[%s2812 + $0x798] sm:$0xff]
  %v3057 = vld [vmem:[%s2812 + $0x7a0] sm:$0xff]
  %v3058 = vld [vmem:[%s2812 + $0x7a8] sm:$0xff]
  %v3059 = vld [vmem:[%s2812 + $0x7b0] sm:$0xff]
  %v3060 = vld [vmem:[%s2812 + $0x7b8] sm:$0xff]
  %v3061 = vld [vmem:[%s2812 + $0x7c0] sm:$0xff]
  %v3062 = vld [vmem:[%s2812 + $0x7c8] sm:$0xff]
  %v3063 = vld [vmem:[%s2812 + $0x7d0] sm:$0xff]
  %v3064 = vld [vmem:[%s2812 + $0x7d8] sm:$0xff]
  %v3065 = vld [vmem:[%s2812 + $0x7e0] sm:$0xff]
  %v3066 = vld [vmem:[%s2812 + $0x7e8] sm:$0xff]
  %v3067 = vld [vmem:[%s2812 + $0x7f0] sm:$0xff]
  %v3068 = vld [vmem:[%s2812 + $0x7f8] sm:$0xff]
  %3069 = vmatprep.subr.mxu0 %v2814
  %3070 = vmatpush1.msra.mxu0 %v2813
  %3071 = vmatprep.subr.mxu0 %v2818
  %3072 = vmatpush1.msra.mxu0 %v2817
  %3073 = vmatprep.subr.mxu0 %v2822
  %3074 = vmatpush1.msra.mxu0 %v2821
  %3075 = vmatprep.subr.mxu0 %v2826
  %3076 = vmatpush1.msra.mxu0 %v2825
  %3077 = vmatprep.subr.mxu0 %v2830
  %3078 = vmatpush1.msra.mxu0 %v2829
  %3079 = vmatprep.subr.mxu0 %v2834
  %3080 = vmatpush1.msra.mxu0 %v2833
  %3081 = vmatprep.subr.mxu0 %v2838
  %3082 = vmatpush1.msra.mxu0 %v2837
  %3083 = vmatprep.subr.mxu0 %v2842
  %3084 = vmatpush1.msra.mxu0 %v2841
  %3085 = vmatprep.subr.mxu0 %v2846
  %3086 = vmatpush1.msra.mxu0 %v2845
  %3087 = vmatprep.subr.mxu0 %v2850
  %3088 = vmatpush1.msra.mxu0 %v2849
  %3089 = vmatprep.subr.mxu0 %v2854
  %3090 = vmatpush1.msra.mxu0 %v2853
  %3091 = vmatprep.subr.mxu0 %v2858
  %3092 = vmatpush1.msra.mxu0 %v2857
  %3093 = vmatprep.subr.mxu0 %v2862
  %3094 = vmatpush1.msra.mxu0 %v2861
  %3095 = vmatprep.subr.mxu0 %v2866
  %3096 = vmatpush1.msra.mxu0 %v2865
  %3097 = vmatprep.subr.mxu0 %v2870
  %3098 = vmatpush1.msra.mxu0 %v2869
  %3099 = vmatprep.subr.mxu0 %v2874
  %3100 = vmatpush1.msra.mxu0 %v2873
  %3101 = vmatprep.subr.mxu0 %v2878
  %3102 = vmatpush1.msra.mxu0 %v2877
  %3103 = vmatprep.subr.mxu0 %v2882
  %3104 = vmatpush1.msra.mxu0 %v2881
  %3105 = vmatprep.subr.mxu0 %v2886
  %3106 = vmatpush1.msra.mxu0 %v2885
  %3107 = vmatprep.subr.mxu0 %v2890
  %3108 = vmatpush1.msra.mxu0 %v2889
  %3109 = vmatprep.subr.mxu0 %v2894
  %3110 = vmatpush1.msra.mxu0 %v2893
  %3111 = vmatprep.subr.mxu0 %v2898
  %3112 = vmatpush1.msra.mxu0 %v2897
  %3113 = vmatprep.subr.mxu0 %v2902
  %3114 = vmatpush1.msra.mxu0 %v2901
  %3115 = vmatprep.subr.mxu0 %v2906
  %3116 = vmatpush1.msra.mxu0 %v2905
  %3117 = vmatprep.subr.mxu0 %v2910
  %3118 = vmatpush1.msra.mxu0 %v2909
  %3119 = vmatprep.subr.mxu0 %v2914
  %3120 = vmatpush1.msra.mxu0 %v2913
  %3121 = vmatprep.subr.mxu0 %v2918
  %3122 = vmatpush1.msra.mxu0 %v2917
  %3123 = vmatprep.subr.mxu0 %v2922
  %3124 = vmatpush1.msra.mxu0 %v2921
  %3125 = vmatprep.subr.mxu0 %v2926
  %3126 = vmatpush1.msra.mxu0 %v2925
  %3127 = vmatprep.subr.mxu0 %v2930
  %3128 = vmatpush1.msra.mxu0 %v2929
  %3129 = vmatprep.subr.mxu0 %v2934
  %3130 = vmatpush1.msra.mxu0 %v2933
  %3131 = vmatprep.subr.mxu0 %v2938
  %3132 = vmatpush1.msra.mxu0 %v2937
  %3133 = vmatprep.mubr.f32.mxu0 %v1984
  %3134 = vmatmul.mubr.f32.gmra.mrb[0].mxu0 %v1983
  %v3135 = vpop.f32.mrb[0].mxu0
  %v3136 = vadd.f32 0.0, %v3135
  %v3137 = vpop.f32.mrb[0].mxu0
  %v3138 = vadd.f32 0.0, %v3137
  %3139 = vmatprep.mubr.f32.mxu0 %v1988
  %3140 = vmatmul.mubr.f32.gmra.mrb[0].mxu0 %v1987
  %v3141 = vpop.f32.mrb[0].mxu0
  %v3142 = vadd.f32 0.0, %v3141
  %v3143 = vpop.f32.mrb[0].mxu0
  %v3144 = vadd.f32 0.0, %v3143
  %3145 = vdwg.mxu0
  %3146 = vmatprep.subr.mxu0 %v2942
  %3147 = vmatpush1.msra.mxu0 %v2941
  %3148 = vmatprep.subr.mxu0 %v2946
  %3149 = vmatpush1.msra.mxu0 %v2945
  %3150 = vmatprep.subr.mxu0 %v2950
  %3151 = vmatpush1.msra.mxu0 %v2949
  %3152 = vmatprep.subr.mxu0 %v2954
  %3153 = vmatpush1.msra.mxu0 %v2953
  %3154 = vmatprep.subr.mxu0 %v2958
  %3155 = vmatpush1.msra.mxu0 %v2957
  %3156 = vmatprep.subr.mxu0 %v2962
  %3157 = vmatpush1.msra.mxu0 %v2961
  %3158 = vmatprep.subr.mxu0 %v2966
  %3159 = vmatpush1.msra.mxu0 %v2965
  %3160 = vmatprep.subr.mxu0 %v2970
  %3161 = vmatpush1.msra.mxu0 %v2969
  %3162 = vmatprep.subr.mxu0 %v2974
  %3163 = vmatpush1.msra.mxu0 %v2973
  %3164 = vmatprep.subr.mxu0 %v2978
  %3165 = vmatpush1.msra.mxu0 %v2977
  %3166 = vmatprep.subr.mxu0 %v2982
  %3167 = vmatpush1.msra.mxu0 %v2981
  %3168 = vmatprep.subr.mxu0 %v2986
  %3169 = vmatpush1.msra.mxu0 %v2985
  %3170 = vmatprep.subr.mxu0 %v2990
  %3171 = vmatpush1.msra.mxu0 %v2989
  %3172 = vmatprep.subr.mxu0 %v2994
  %3173 = vmatpush1.msra.mxu0 %v2993
  %3174 = vmatprep.subr.mxu0 %v2998
  %3175 = vmatpush1.msra.mxu0 %v2997
  %3176 = vmatprep.subr.mxu0 %v3002
  %3177 = vmatpush1.msra.mxu0 %v3001
  %3178 = vmatprep.subr.mxu0 %v3006
  %3179 = vmatpush1.msra.mxu0 %v3005
  %3180 = vmatprep.subr.mxu0 %v3010
  %3181 = vmatpush1.msra.mxu0 %v3009
  %3182 = vmatprep.subr.mxu0 %v3014
  %3183 = vmatpush1.msra.mxu0 %v3013
  %3184 = vmatprep.subr.mxu0 %v3018
  %3185 = vmatpush1.msra.mxu0 %v3017
  %3186 = vmatprep.subr.mxu0 %v3022
  %3187 = vmatpush1.msra.mxu0 %v3021
  %3188 = vmatprep.subr.mxu0 %v3026
  %3189 = vmatpush1.msra.mxu0 %v3025
  %3190 = vmatprep.subr.mxu0 %v3030
  %3191 = vmatpush1.msra.mxu0 %v3029
  %3192 = vmatprep.subr.mxu0 %v3034
  %3193 = vmatpush1.msra.mxu0 %v3033
  %3194 = vmatprep.subr.mxu0 %v3038
  %3195 = vmatpush1.msra.mxu0 %v3037
  %3196 = vmatprep.subr.mxu0 %v3042
  %3197 = vmatpush1.msra.mxu0 %v3041
  %3198 = vmatprep.subr.mxu0 %v3046
  %3199 = vmatpush1.msra.mxu0 %v3045
  %3200 = vmatprep.subr.mxu0 %v3050
  %3201 = vmatpush1.msra.mxu0 %v3049
  %3202 = vmatprep.subr.mxu0 %v3054
  %3203 = vmatpush1.msra.mxu0 %v3053
  %3204 = vmatprep.subr.mxu0 %v3058
  %3205 = vmatpush1.msra.mxu0 %v3057
  %3206 = vmatprep.subr.mxu0 %v3062
  %3207 = vmatpush1.msra.mxu0 %v3061
  %3208 = vmatprep.subr.mxu0 %v3066
  %3209 = vmatpush1.msra.mxu0 %v3065
  %3210 = vmatprep.mubr.f32.mxu0 %v1986
  %3211 = vmatmul.mubr.f32.gmra.mrb[0].mxu0 %v1985
  %v3212 = vpop.f32.mrb[0].mxu0
  %v3213 = vadd.f32 %v3136, %v3212
  %v3214 = vpop.f32.mrb[0].mxu0
  %v3215 = vadd.f32 %v3138, %v3214
  %3216 = vmatprep.mubr.f32.mxu0 %v1990
  %3217 = vmatmul.mubr.f32.gmra.mrb[0].mxu0 %v1989
  %v3218 = vpop.f32.mrb[0].mxu0
  %v3219 = vadd.f32 %v3142, %v3218
  %v3220 = vpop.f32.mrb[0].mxu0
  %v3221 = vadd.f32 %v3144, %v3220
  %3222 = vdwg.mxu0
  %3223 = vmatprep.subr.mxu0 %v2816
  %3224 = vmatpush1.msra.mxu0 %v2815
  %3225 = vmatprep.subr.mxu0 %v2820
  %3226 = vmatpush1.msra.mxu0 %v2819
  %3227 = vmatprep.subr.mxu0 %v2824
  %3228 = vmatpush1.msra.mxu0 %v2823
  %3229 = vmatprep.subr.mxu0 %v2828
  %3230 = vmatpush1.msra.mxu0 %v2827
  %3231 = vmatprep.subr.mxu0 %v2832
  %3232 = vmatpush1.msra.mxu0 %v2831
  %3233 = vmatprep.subr.mxu0 %v2836
  %3234 = vmatpush1.msra.mxu0 %v2835
  %3235 = vmatprep.subr.mxu0 %v2840
  %3236 = vmatpush1.msra.mxu0 %v2839
  %3237 = vmatprep.subr.mxu0 %v2844
  %3238 = vmatpush1.msra.mxu0 %v2843
  %3239 = vmatprep.subr.mxu0 %v2848
  %3240 = vmatpush1.msra.mxu0 %v2847
  %3241 = vmatprep.subr.mxu0 %v2852
  %3242 = vmatpush1.msra.mxu0 %v2851
  %3243 = vmatprep.subr.mxu0 %v2856
  %3244 = vmatpush1.msra.mxu0 %v2855
  %3245 = vmatprep.subr.mxu0 %v2860
  %3246 = vmatpush1.msra.mxu0 %v2859
  %3247 = vmatprep.subr.mxu0 %v2864
  %3248 = vmatpush1.msra.mxu0 %v2863
  %3249 = vmatprep.subr.mxu0 %v2868
  %3250 = vmatpush1.msra.mxu0 %v2867
  %3251 = vmatprep.subr.mxu0 %v2872
  %3252 = vmatpush1.msra.mxu0 %v2871
  %3253 = vmatprep.subr.mxu0 %v2876
  %3254 = vmatpush1.msra.mxu0 %v2875
  %3255 = vmatprep.subr.mxu0 %v2880
  %3256 = vmatpush1.msra.mxu0 %v2879
  %3257 = vmatprep.subr.mxu0 %v2884
  %3258 = vmatpush1.msra.mxu0 %v2883
  %3259 = vmatprep.subr.mxu0 %v2888
  %3260 = vmatpush1.msra.mxu0 %v2887
  %3261 = vmatprep.subr.mxu0 %v2892
  %3262 = vmatpush1.msra.mxu0 %v2891
  %3263 = vmatprep.subr.mxu0 %v2896
  %3264 = vmatpush1.msra.mxu0 %v2895
  %3265 = vmatprep.subr.mxu0 %v2900
  %3266 = vmatpush1.msra.mxu0 %v2899
  %3267 = vmatprep.subr.mxu0 %v2904
  %3268 = vmatpush1.msra.mxu0 %v2903
  %3269 = vmatprep.subr.mxu0 %v2908
  %3270 = vmatpush1.msra.mxu0 %v2907
  %3271 = vmatprep.subr.mxu0 %v2912
  %3272 = vmatpush1.msra.mxu0 %v2911
  %3273 = vmatprep.subr.mxu0 %v2916
  %3274 = vmatpush1.msra.mxu0 %v2915
  %3275 = vmatprep.subr.mxu0 %v2920
  %3276 = vmatpush1.msra.mxu0 %v2919
  %3277 = vmatprep.subr.mxu0 %v2924
  %3278 = vmatpush1.msra.mxu0 %v2923
  %3279 = vmatprep.subr.mxu0 %v2928
  %3280 = vmatpush1.msra.mxu0 %v2927
  %3281 = vmatprep.subr.mxu0 %v2932
  %3282 = vmatpush1.msra.mxu0 %v2931
  %3283 = vmatprep.subr.mxu0 %v2936
  %3284 = vmatpush1.msra.mxu0 %v2935
  %3285 = vmatprep.subr.mxu0 %v2940
  %3286 = vmatpush1.msra.mxu0 %v2939
  %3287 = vmatprep.mubr.f32.mxu0 %v1984
  %3288 = vmatmul.mubr.f32.gmra.mrb[0].mxu0 %v1983
  %v3289 = vpop.f32.mrb[0].mxu0
  %v3290 = vadd.f32 0.0, %v3289
  %v3291 = vpop.f32.mrb[0].mxu0
  %v3292 = vadd.f32 0.0, %v3291
  %3293 = vmatprep.mubr.f32.mxu0 %v1988
  %3294 = vmatmul.mubr.f32.gmra.mrb[0].mxu0 %v1987
  %v3295 = vpop.f32.mrb[0].mxu0
  %v3296 = vadd.f32 0.0, %v3295
  %v3297 = vpop.f32.mrb[0].mxu0
  %v3298 = vadd.f32 0.0, %v3297
  %3299 = vdwg.mxu0
  %3300 = vmatprep.subr.mxu0 %v2944
  %3301 = vmatpush1.msra.mxu0 %v2943
  %3302 = vmatprep.subr.mxu0 %v2948
  %3303 = vmatpush1.msra.mxu0 %v2947
  %3304 = vmatprep.subr.mxu0 %v2952
  %3305 = vmatpush1.msra.mxu0 %v2951
  %3306 = vmatprep.subr.mxu0 %v2956
  %3307 = vmatpush1.msra.mxu0 %v2955
  %3308 = vmatprep.subr.mxu0 %v2960
  %3309 = vmatpush1.msra.mxu0 %v2959
  %3310 = vmatprep.subr.mxu0 %v2964
  %3311 = vmatpush1.msra.mxu0 %v2963
  %3312 = vmatprep.subr.mxu0 %v2968
  %3313 = vmatpush1.msra.mxu0 %v2967
  %3314 = vmatprep.subr.mxu0 %v2972
  %3315 = vmatpush1.msra.mxu0 %v2971
  %3316 = vmatprep.subr.mxu0 %v2976
  %3317 = vmatpush1.msra.mxu0 %v2975
  %3318 = vmatprep.subr.mxu0 %v2980
  %3319 = vmatpush1.msra.mxu0 %v2979
  %3320 = vmatprep.subr.mxu0 %v2984
  %3321 = vmatpush1.msra.mxu0 %v2983
  %3322 = vmatprep.subr.mxu0 %v2988
  %3323 = vmatpush1.msra.mxu0 %v2987
  %3324 = vmatprep.subr.mxu0 %v2992
  %3325 = vmatpush1.msra.mxu0 %v2991
  %3326 = vmatprep.subr.mxu0 %v2996
  %3327 = vmatpush1.msra.mxu0 %v2995
  %3328 = vmatprep.subr.mxu0 %v3000
  %3329 = vmatpush1.msra.mxu0 %v2999
  %3330 = vmatprep.subr.mxu0 %v3004
  %3331 = vmatpush1.msra.mxu0 %v3003
  %3332 = vmatprep.subr.mxu0 %v3008
  %3333 = vmatpush1.msra.mxu0 %v3007
  %3334 = vmatprep.subr.mxu0 %v3012
  %3335 = vmatpush1.msra.mxu0 %v3011
  %3336 = vmatprep.subr.mxu0 %v3016
  %3337 = vmatpush1.msra.mxu0 %v3015
  %3338 = vmatprep.subr.mxu0 %v3020
  %3339 = vmatpush1.msra.mxu0 %v3019
  %3340 = vmatprep.subr.mxu0 %v3024
  %3341 = vmatpush1.msra.mxu0 %v3023
  %3342 = vmatprep.subr.mxu0 %v3028
  %3343 = vmatpush1.msra.mxu0 %v3027
  %3344 = vmatprep.subr.mxu0 %v3032
  %3345 = vmatpush1.msra.mxu0 %v3031
  %3346 = vmatprep.subr.mxu0 %v3036
  %3347 = vmatpush1.msra.mxu0 %v3035
  %3348 = vmatprep.subr.mxu0 %v3040
  %3349 = vmatpush1.msra.mxu0 %v3039
  %3350 = vmatprep.subr.mxu0 %v3044
  %3351 = vmatpush1.msra.mxu0 %v3043
  %3352 = vmatprep.subr.mxu0 %v3048
  %3353 = vmatpush1.msra.mxu0 %v3047
  %3354 = vmatprep.subr.mxu0 %v3052
  %3355 = vmatpush1.msra.mxu0 %v3051
  %3356 = vmatprep.subr.mxu0 %v3056
  %3357 = vmatpush1.msra.mxu0 %v3055
  %3358 = vmatprep.subr.mxu0 %v3060
  %3359 = vmatpush1.msra.mxu0 %v3059
  %3360 = vmatprep.subr.mxu0 %v3064
  %3361 = vmatpush1.msra.mxu0 %v3063
  %3362 = vmatprep.subr.mxu0 %v3068
  %3363 = vmatpush1.msra.mxu0 %v3067
  %3364 = vmatprep.mubr.f32.mxu0 %v1986
  %3365 = vmatmul.mubr.f32.gmra.mrb[0].mxu0 %v1985
  %v3366 = vpop.f32.mrb[0].mxu0
  %v3367 = vadd.f32 %v3290, %v3366
  %v3368 = vpop.f32.mrb[0].mxu0
  %v3369 = vadd.f32 %v3292, %v3368
  %3370 = vmatprep.mubr.f32.mxu0 %v1990
  %3371 = vmatmul.mubr.f32.gmra.mrb[0].mxu0 %v1989
  %v3372 = vpop.f32.mrb[0].mxu0
  %v3373 = vadd.f32 %v3296, %v3372
  %v3374 = vpop.f32.mrb[0].mxu0
  %v3375 = vadd.f32 %v3298, %v3374
  %3376 = vdwg.mxu0
  %3377 = vmatprep.subr.mxu0 %v2393
  %3378 = vmatpush1.msra.mxu0 %v2391
  %3379 = vmatprep.subr.mxu0 %v2399
  %3380 = vmatpush1.msra.mxu0 %v2397
  %3381 = vmatprep.subr.mxu0 0.0
  %3382 = vmatpush1.msra.mxu0 0.0
  %3383 = vmatprep.subr.mxu0 0.0
  %3384 = vmatpush1.msra.mxu0 0.0
  %3385 = vmatprep.subr.mxu0 0.0
  %3386 = vmatpush1.msra.mxu0 0.0
  %3387 = vmatprep.subr.mxu0 0.0
  %3388 = vmatpush1.msra.mxu0 0.0
  %3389 = vmatprep.subr.mxu0 0.0
  %3390 = vmatpush1.msra.mxu0 0.0
  %3391 = vmatprep.subr.mxu0 0.0
  %3392 = vmatpush1.msra.mxu0 0.0
  %3393 = vmatprep.subr.mxu0 0.0
  %3394 = vmatpush1.msra.mxu0 0.0
  %3395 = vmatprep.subr.mxu0 0.0
  %3396 = vmatpush1.msra.mxu0 0.0
  %3397 = vmatprep.subr.mxu0 0.0
  %3398 = vmatpush1.msra.mxu0 0.0
  %3399 = vmatprep.subr.mxu0 0.0
  %3400 = vmatpush1.msra.mxu0 0.0
  %3401 = vmatprep.subr.mxu0 0.0
  %3402 = vmatpush1.msra.mxu0 0.0
  %3403 = vmatprep.subr.mxu0 0.0
  %3404 = vmatpush1.msra.mxu0 0.0
  %3405 = vmatprep.subr.mxu0 0.0
  %3406 = vmatpush1.msra.mxu0 0.0
  %3407 = vmatprep.subr.mxu0 0.0
  %3408 = vmatpush1.msra.mxu0 0.0
  %3409 = vmatprep.subr.mxu0 0.0
  %3410 = vmatpush1.msra.mxu0 0.0
  %3411 = vmatprep.subr.mxu0 0.0
  %3412 = vmatpush1.msra.mxu0 0.0
  %3413 = vmatprep.subr.mxu0 0.0
  %3414 = vmatpush1.msra.mxu0 0.0
  %3415 = vmatprep.subr.mxu0 0.0
  %3416 = vmatpush1.msra.mxu0 0.0
  %3417 = vmatprep.subr.mxu0 0.0
  %3418 = vmatpush1.msra.mxu0 0.0
  %3419 = vmatprep.subr.mxu0 0.0
  %3420 = vmatpush1.msra.mxu0 0.0
  %3421 = vmatprep.subr.mxu0 0.0
  %3422 = vmatpush1.msra.mxu0 0.0
  %3423 = vmatprep.subr.mxu0 0.0
  %3424 = vmatpush1.msra.mxu0 0.0
  %3425 = vmatprep.subr.mxu0 0.0
  %3426 = vmatpush1.msra.mxu0 0.0
  %3427 = vmatprep.subr.mxu0 0.0
  %3428 = vmatpush1.msra.mxu0 0.0
  %3429 = vmatprep.subr.mxu0 0.0
  %3430 = vmatpush1.msra.mxu0 0.0
  %3431 = vmatprep.subr.mxu0 0.0
  %3432 = vmatpush1.msra.mxu0 0.0
  %3433 = vmatprep.subr.mxu0 0.0
  %3434 = vmatpush1.msra.mxu0 0.0
  %3435 = vmatprep.subr.mxu0 0.0
  %3436 = vmatpush1.msra.mxu0 0.0
  %3437 = vmatprep.subr.mxu0 0.0
  %3438 = vmatpush1.msra.mxu0 0.0
  %3439 = vmatprep.subr.mxu0 0.0
  %3440 = vmatpush1.msra.mxu0 0.0
  %3441 = vmatprep.mubr.f32.mxu0 0.0
  %3442 = vmatmul.mubr.f32.gmra.mrb[0].mxu0 %v810
  %v3443 = vpop.f32.mrb[0].mxu0
  %v3444 = vadd.f32 0.0, %v3443
  %v3445 = vpop.f32.mrb[0].mxu0
  %v3446 = vadd.f32 0.0, %v3445
  %3447 = vmatprep.mubr.f32.mxu0 0.0
  %3448 = vmatmul.mubr.f32.gmra.mrb[0].mxu0 %v813
  %v3449 = vpop.f32.mrb[0].mxu0
  %v3450 = vadd.f32 0.0, %v3449
  %v3451 = vpop.f32.mrb[0].mxu0
  %v3452 = vadd.f32 0.0, %v3451
  %3453 = vdwg.mxu0
  %3454 = vmatprep.subr.mxu0 %v2547
  %3455 = vmatpush1.msra.mxu0 %v2545
  %3456 = vmatprep.subr.mxu0 %v2553
  %3457 = vmatpush1.msra.mxu0 %v2551
  %3458 = vmatprep.subr.mxu0 0.0
  %3459 = vmatpush1.msra.mxu0 0.0
  %3460 = vmatprep.subr.mxu0 0.0
  %3461 = vmatpush1.msra.mxu0 0.0
  %3462 = vmatprep.subr.mxu0 0.0
  %3463 = vmatpush1.msra.mxu0 0.0
  %3464 = vmatprep.subr.mxu0 0.0
  %3465 = vmatpush1.msra.mxu0 0.0
  %3466 = vmatprep.subr.mxu0 0.0
  %3467 = vmatpush1.msra.mxu0 0.0
  %3468 = vmatprep.subr.mxu0 0.0
  %3469 = vmatpush1.msra.mxu0 0.0
  %3470 = vmatprep.subr.mxu0 0.0
  %3471 = vmatpush1.msra.mxu0 0.0
  %3472 = vmatprep.subr.mxu0 0.0
  %3473 = vmatpush1.msra.mxu0 0.0
  %3474 = vmatprep.subr.mxu0 0.0
  %3475 = vmatpush1.msra.mxu0 0.0
  %3476 = vmatprep.subr.mxu0 0.0
  %3477 = vmatpush1.msra.mxu0 0.0
  %3478 = vmatprep.subr.mxu0 0.0
  %3479 = vmatpush1.msra.mxu0 0.0
  %3480 = vmatprep.subr.mxu0 0.0
  %3481 = vmatpush1.msra.mxu0 0.0
  %3482 = vmatprep.subr.mxu0 0.0
  %3483 = vmatpush1.msra.mxu0 0.0
  %3484 = vmatprep.subr.mxu0 0.0
  %3485 = vmatpush1.msra.mxu0 0.0
  %3486 = vmatprep.subr.mxu0 0.0
  %3487 = vmatpush1.msra.mxu0 0.0
  %3488 = vmatprep.subr.mxu0 0.0
  %3489 = vmatpush1.msra.mxu0 0.0
  %3490 = vmatprep.subr.mxu0 0.0
  %3491 = vmatpush1.msra.mxu0 0.0
  %3492 = vmatprep.subr.mxu0 0.0
  %3493 = vmatpush1.msra.mxu0 0.0
  %3494 = vmatprep.subr.mxu0 0.0
  %3495 = vmatpush1.msra.mxu0 0.0
  %3496 = vmatprep.subr.mxu0 0.0
  %3497 = vmatpush1.msra.mxu0 0.0
  %3498 = vmatprep.subr.mxu0 0.0
  %3499 = vmatpush1.msra.mxu0 0.0
  %3500 = vmatprep.subr.mxu0 0.0
  %3501 = vmatpush1.msra.mxu0 0.0
  %3502 = vmatprep.subr.mxu0 0.0
  %3503 = vmatpush1.msra.mxu0 0.0
  %3504 = vmatprep.subr.mxu0 0.0
  %3505 = vmatpush1.msra.mxu0 0.0
  %3506 = vmatprep.subr.mxu0 0.0
  %3507 = vmatpush1.msra.mxu0 0.0
  %3508 = vmatprep.subr.mxu0 0.0
  %3509 = vmatpush1.msra.mxu0 0.0
  %3510 = vmatprep.subr.mxu0 0.0
  %3511 = vmatpush1.msra.mxu0 0.0
  %3512 = vmatprep.subr.mxu0 0.0
  %3513 = vmatpush1.msra.mxu0 0.0
  %3514 = vmatprep.subr.mxu0 0.0
  %3515 = vmatpush1.msra.mxu0 0.0
  %3516 = vmatprep.subr.mxu0 0.0
  %3517 = vmatpush1.msra.mxu0 0.0
  %3518 = vmatprep.mubr.f32.mxu0 0.0
  %3519 = vmatmul.mubr.f32.gmra.mrb[0].mxu0 %v810
  %v3520 = vpop.f32.mrb[0].mxu0
  %v3521 = vadd.f32 0.0, %v3520
  %v3522 = vpop.f32.mrb[0].mxu0
  %v3523 = vadd.f32 0.0, %v3522
  %3524 = vmatprep.mubr.f32.mxu0 0.0
  %3525 = vmatmul.mubr.f32.gmra.mrb[0].mxu0 %v813
  %v3526 = vpop.f32.mrb[0].mxu0
  %v3527 = vadd.f32 0.0, %v3526
  %v3528 = vpop.f32.mrb[0].mxu0
  %v3529 = vadd.f32 0.0, %v3528
  %3530 = vdwg.mxu0
  %3531 = vmatprep.subr.mxu0 %v2557
  %3532 = vmatpush1.msra.mxu0 %v2556
  %3533 = vmatprep.subr.mxu0 %v2561
  %3534 = vmatpush1.msra.mxu0 %v2560
  %3535 = vmatprep.subr.mxu0 %v2565
  %3536 = vmatpush1.msra.mxu0 %v2564
  %3537 = vmatprep.subr.mxu0 %v2569
  %3538 = vmatpush1.msra.mxu0 %v2568
  %3539 = vmatprep.subr.mxu0 %v2573
  %3540 = vmatpush1.msra.mxu0 %v2572
  %3541 = vmatprep.subr.mxu0 %v2577
  %3542 = vmatpush1.msra.mxu0 %v2576
  %3543 = vmatprep.subr.mxu0 %v2581
  %3544 = vmatpush1.msra.mxu0 %v2580
  %3545 = vmatprep.subr.mxu0 %v2585
  %3546 = vmatpush1.msra.mxu0 %v2584
  %3547 = vmatprep.subr.mxu0 %v2589
  %3548 = vmatpush1.msra.mxu0 %v2588
  %3549 = vmatprep.subr.mxu0 %v2593
  %3550 = vmatpush1.msra.mxu0 %v2592
  %3551 = vmatprep.subr.mxu0 %v2597
  %3552 = vmatpush1.msra.mxu0 %v2596
  %3553 = vmatprep.subr.mxu0 %v2601
  %3554 = vmatpush1.msra.mxu0 %v2600
  %3555 = vmatprep.subr.mxu0 %v2605
  %3556 = vmatpush1.msra.mxu0 %v2604
  %3557 = vmatprep.subr.mxu0 %v2609
  %3558 = vmatpush1.msra.mxu0 %v2608
  %3559 = vmatprep.subr.mxu0 %v2613
  %3560 = vmatpush1.msra.mxu0 %v2612
  %3561 = vmatprep.subr.mxu0 %v2617
  %3562 = vmatpush1.msra.mxu0 %v2616
  %3563 = vmatprep.subr.mxu0 %v2621
  %3564 = vmatpush1.msra.mxu0 %v2620
  %3565 = vmatprep.subr.mxu0 %v2625
  %3566 = vmatpush1.msra.mxu0 %v2624
  %3567 = vmatprep.subr.mxu0 %v2629
  %3568 = vmatpush1.msra.mxu0 %v2628
  %3569 = vmatprep.subr.mxu0 %v2633
  %3570 = vmatpush1.msra.mxu0 %v2632
  %3571 = vmatprep.subr.mxu0 %v2637
  %3572 = vmatpush1.msra.mxu0 %v2636
  %3573 = vmatprep.subr.mxu0 %v2641
  %3574 = vmatpush1.msra.mxu0 %v2640
  %3575 = vmatprep.subr.mxu0 %v2645
  %3576 = vmatpush1.msra.mxu0 %v2644
  %3577 = vmatprep.subr.mxu0 %v2649
  %3578 = vmatpush1.msra.mxu0 %v2648
  %3579 = vmatprep.subr.mxu0 %v2653
  %3580 = vmatpush1.msra.mxu0 %v2652
  %3581 = vmatprep.subr.mxu0 %v2657
  %3582 = vmatpush1.msra.mxu0 %v2656
  %3583 = vmatprep.subr.mxu0 %v2661
  %3584 = vmatpush1.msra.mxu0 %v2660
  %3585 = vmatprep.subr.mxu0 %v2665
  %3586 = vmatpush1.msra.mxu0 %v2664
  %3587 = vmatprep.subr.mxu0 %v2669
  %3588 = vmatpush1.msra.mxu0 %v2668
  %3589 = vmatprep.subr.mxu0 %v2673
  %3590 = vmatpush1.msra.mxu0 %v2672
  %3591 = vmatprep.subr.mxu0 %v2677
  %3592 = vmatpush1.msra.mxu0 %v2676
  %3593 = vmatprep.subr.mxu0 %v2681
  %3594 = vmatpush1.msra.mxu0 %v2680
  %3595 = vmatprep.mubr.f32.mxu0 %v1984
  %3596 = vmatmul.mubr.f32.gmra.mrb[0].mxu0 %v1983
  %v3597 = vpop.f32.mrb[0].mxu0
  %v3598 = vadd.f32 %v3444, %v3597
  %v3599 = vpop.f32.mrb[0].mxu0
  %v3600 = vadd.f32 %v3446, %v3599
  %3601 = vmatprep.mubr.f32.mxu0 %v1988
  %3602 = vmatmul.mubr.f32.gmra.mrb[0].mxu0 %v1987
  %v3603 = vpop.f32.mrb[0].mxu0
  %v3604 = vadd.f32 %v3450, %v3603
  %v3605 = vpop.f32.mrb[0].mxu0
  %v3606 = vadd.f32 %v3452, %v3605
  %3607 = vdwg.mxu0
  %3608 = vmatprep.subr.mxu0 %v2685
  %3609 = vmatpush1.msra.mxu0 %v2684
  %3610 = vmatprep.subr.mxu0 %v2689
  %3611 = vmatpush1.msra.mxu0 %v2688
  %3612 = vmatprep.subr.mxu0 %v2693
  %3613 = vmatpush1.msra.mxu0 %v2692
  %3614 = vmatprep.subr.mxu0 %v2697
  %3615 = vmatpush1.msra.mxu0 %v2696
  %3616 = vmatprep.subr.mxu0 %v2701
  %3617 = vmatpush1.msra.mxu0 %v2700
  %3618 = vmatprep.subr.mxu0 %v2705
  %3619 = vmatpush1.msra.mxu0 %v2704
  %3620 = vmatprep.subr.mxu0 %v2709
  %3621 = vmatpush1.msra.mxu0 %v2708
  %3622 = vmatprep.subr.mxu0 %v2713
  %3623 = vmatpush1.msra.mxu0 %v2712
  %3624 = vmatprep.subr.mxu0 %v2717
  %3625 = vmatpush1.msra.mxu0 %v2716
  %3626 = vmatprep.subr.mxu0 %v2721
  %3627 = vmatpush1.msra.mxu0 %v2720
  %3628 = vmatprep.subr.mxu0 %v2725
  %3629 = vmatpush1.msra.mxu0 %v2724
  %3630 = vmatprep.subr.mxu0 %v2729
  %3631 = vmatpush1.msra.mxu0 %v2728
  %3632 = vmatprep.subr.mxu0 %v2733
  %3633 = vmatpush1.msra.mxu0 %v2732
  %3634 = vmatprep.subr.mxu0 %v2737
  %3635 = vmatpush1.msra.mxu0 %v2736
  %3636 = vmatprep.subr.mxu0 %v2741
  %3637 = vmatpush1.msra.mxu0 %v2740
  %3638 = vmatprep.subr.mxu0 %v2745
  %3639 = vmatpush1.msra.mxu0 %v2744
  %3640 = vmatprep.subr.mxu0 %v2749
  %3641 = vmatpush1.msra.mxu0 %v2748
  %3642 = vmatprep.subr.mxu0 %v2753
  %3643 = vmatpush1.msra.mxu0 %v2752
  %3644 = vmatprep.subr.mxu0 %v2757
  %3645 = vmatpush1.msra.mxu0 %v2756
  %3646 = vmatprep.subr.mxu0 %v2761
  %3647 = vmatpush1.msra.mxu0 %v2760
  %3648 = vmatprep.subr.mxu0 %v2765
  %3649 = vmatpush1.msra.mxu0 %v2764
  %3650 = vmatprep.subr.mxu0 %v2769
  %3651 = vmatpush1.msra.mxu0 %v2768
  %3652 = vmatprep.subr.mxu0 %v2773
  %3653 = vmatpush1.msra.mxu0 %v2772
  %3654 = vmatprep.subr.mxu0 %v2777
  %3655 = vmatpush1.msra.mxu0 %v2776
  %3656 = vmatprep.subr.mxu0 %v2781
  %3657 = vmatpush1.msra.mxu0 %v2780
  %3658 = vmatprep.subr.mxu0 %v2785
  %3659 = vmatpush1.msra.mxu0 %v2784
  %3660 = vmatprep.subr.mxu0 %v2789
  %3661 = vmatpush1.msra.mxu0 %v2788
  %3662 = vmatprep.subr.mxu0 %v2793
  %3663 = vmatpush1.msra.mxu0 %v2792
  %3664 = vmatprep.subr.mxu0 %v2797
  %3665 = vmatpush1.msra.mxu0 %v2796
  %3666 = vmatprep.subr.mxu0 %v2801
  %3667 = vmatpush1.msra.mxu0 %v2800
  %3668 = vmatprep.subr.mxu0 %v2805
  %3669 = vmatpush1.msra.mxu0 %v2804
  %3670 = vmatprep.subr.mxu0 %v2809
  %3671 = vmatpush1.msra.mxu0 %v2808
  %3672 = vmatprep.mubr.f32.mxu0 %v1986
  %3673 = vmatmul.mubr.f32.gmra.mrb[0].mxu0 %v1985
  %v3674 = vpop.f32.mrb[0].mxu0
  %v3675 = vadd.f32 %v3598, %v3674
  %v3676 = vpop.f32.mrb[0].mxu0
  %v3677 = vadd.f32 %v3600, %v3676
  %3678 = vmatprep.mubr.f32.mxu0 %v1990
  %3679 = vmatmul.mubr.f32.gmra.mrb[0].mxu0 %v1989
  %v3680 = vpop.f32.mrb[0].mxu0
  %v3681 = vadd.f32 %v3604, %v3680
  %v3682 = vpop.f32.mrb[0].mxu0
  %v3683 = vadd.f32 %v3606, %v3682
  %3684 = vdwg.mxu0
  %3685 = vmatprep.subr.mxu0 %v2559
  %3686 = vmatpush1.msra.mxu0 %v2558
  %3687 = vmatprep.subr.mxu0 %v2563
  %3688 = vmatpush1.msra.mxu0 %v2562
  %3689 = vmatprep.subr.mxu0 %v2567
  %3690 = vmatpush1.msra.mxu0 %v2566
  %3691 = vmatprep.subr.mxu0 %v2571
  %3692 = vmatpush1.msra.mxu0 %v2570
  %3693 = vmatprep.subr.mxu0 %v2575
  %3694 = vmatpush1.msra.mxu0 %v2574
  %3695 = vmatprep.subr.mxu0 %v2579
  %3696 = vmatpush1.msra.mxu0 %v2578
  %3697 = vmatprep.subr.mxu0 %v2583
  %3698 = vmatpush1.msra.mxu0 %v2582
  %3699 = vmatprep.subr.mxu0 %v2587
  %3700 = vmatpush1.msra.mxu0 %v2586
  %3701 = vmatprep.subr.mxu0 %v2591
  %3702 = vmatpush1.msra.mxu0 %v2590
  %3703 = vmatprep.subr.mxu0 %v2595
  %3704 = vmatpush1.msra.mxu0 %v2594
  %3705 = vmatprep.subr.mxu0 %v2599
  %3706 = vmatpush1.msra.mxu0 %v2598
  %3707 = vmatprep.subr.mxu0 %v2603
  %3708 = vmatpush1.msra.mxu0 %v2602
  %3709 = vmatprep.subr.mxu0 %v2607
  %3710 = vmatpush1.msra.mxu0 %v2606
  %3711 = vmatprep.subr.mxu0 %v2611
  %3712 = vmatpush1.msra.mxu0 %v2610
  %3713 = vmatprep.subr.mxu0 %v2615
  %3714 = vmatpush1.msra.mxu0 %v2614
  %3715 = vmatprep.subr.mxu0 %v2619
  %3716 = vmatpush1.msra.mxu0 %v2618
  %3717 = vmatprep.subr.mxu0 %v2623
  %3718 = vmatpush1.msra.mxu0 %v2622
  %3719 = vmatprep.subr.mxu0 %v2627
  %3720 = vmatpush1.msra.mxu0 %v2626
  %3721 = vmatprep.subr.mxu0 %v2631
  %3722 = vmatpush1.msra.mxu0 %v2630
  %3723 = vmatprep.subr.mxu0 %v2635
  %3724 = vmatpush1.msra.mxu0 %v2634
  %3725 = vmatprep.subr.mxu0 %v2639
  %3726 = vmatpush1.msra.mxu0 %v2638
  %3727 = vmatprep.subr.mxu0 %v2643
  %3728 = vmatpush1.msra.mxu0 %v2642
  %3729 = vmatprep.subr.mxu0 %v2647
  %3730 = vmatpush1.msra.mxu0 %v2646
  %3731 = vmatprep.subr.mxu0 %v2651
  %3732 = vmatpush1.msra.mxu0 %v2650
  %3733 = vmatprep.subr.mxu0 %v2655
  %3734 = vmatpush1.msra.mxu0 %v2654
  %3735 = vmatprep.subr.mxu0 %v2659
  %3736 = vmatpush1.msra.mxu0 %v2658
  %3737 = vmatprep.subr.mxu0 %v2663
  %3738 = vmatpush1.msra.mxu0 %v2662
  %3739 = vmatprep.subr.mxu0 %v2667
  %3740 = vmatpush1.msra.mxu0 %v2666
  %3741 = vmatprep.subr.mxu0 %v2671
  %3742 = vmatpush1.msra.mxu0 %v2670
  %3743 = vmatprep.subr.mxu0 %v2675
  %3744 = vmatpush1.msra.mxu0 %v2674
  %3745 = vmatprep.subr.mxu0 %v2679
  %3746 = vmatpush1.msra.mxu0 %v2678
  %3747 = vmatprep.subr.mxu0 %v2683
  %3748 = vmatpush1.msra.mxu0 %v2682
  %3749 = vmatprep.mubr.f32.mxu0 %v1984
  %3750 = vmatmul.mubr.f32.gmra.mrb[0].mxu0 %v1983
  %v3751 = vpop.f32.mrb[0].mxu0
  %v3752 = vadd.f32 %v3521, %v3751
  %v3753 = vpop.f32.mrb[0].mxu0
  %v3754 = vadd.f32 %v3523, %v3753
  %3755 = vmatprep.mubr.f32.mxu0 %v1988
  %3756 = vmatmul.mubr.f32.gmra.mrb[0].mxu0 %v1987
  %v3757 = vpop.f32.mrb[0].mxu0
  %v3758 = vadd.f32 %v3527, %v3757
  %v3759 = vpop.f32.mrb[0].mxu0
  %v3760 = vadd.f32 %v3529, %v3759
  %3761 = vdwg.mxu0
  %3762 = vmatprep.subr.mxu0 %v2687
  %3763 = vmatpush1.msra.mxu0 %v2686
  %3764 = vmatprep.subr.mxu0 %v2691
  %3765 = vmatpush1.msra.mxu0 %v2690
  %3766 = vmatprep.subr.mxu0 %v2695
  %3767 = vmatpush1.msra.mxu0 %v2694
  %3768 = vmatprep.subr.mxu0 %v2699
  %3769 = vmatpush1.msra.mxu0 %v2698
  %3770 = vmatprep.subr.mxu0 %v2703
  %3771 = vmatpush1.msra.mxu0 %v2702
  %3772 = vmatprep.subr.mxu0 %v2707
  %3773 = vmatpush1.msra.mxu0 %v2706
  %3774 = vmatprep.subr.mxu0 %v2711
  %3775 = vmatpush1.msra.mxu0 %v2710
  %3776 = vmatprep.subr.mxu0 %v2715
  %3777 = vmatpush1.msra.mxu0 %v2714
  %3778 = vmatprep.subr.mxu0 %v2719
  %3779 = vmatpush1.msra.mxu0 %v2718
  %3780 = vmatprep.subr.mxu0 %v2723
  %3781 = vmatpush1.msra.mxu0 %v2722
  %3782 = vmatprep.subr.mxu0 %v2727
  %3783 = vmatpush1.msra.mxu0 %v2726
  %3784 = vmatprep.subr.mxu0 %v2731
  %3785 = vmatpush1.msra.mxu0 %v2730
  %3786 = vmatprep.subr.mxu0 %v2735
  %3787 = vmatpush1.msra.mxu0 %v2734
  %3788 = vmatprep.subr.mxu0 %v2739
  %3789 = vmatpush1.msra.mxu0 %v2738
  %3790 = vmatprep.subr.mxu0 %v2743
  %3791 = vmatpush1.msra.mxu0 %v2742
  %3792 = vmatprep.subr.mxu0 %v2747
  %3793 = vmatpush1.msra.mxu0 %v2746
  %3794 = vmatprep.subr.mxu0 %v2751
  %3795 = vmatpush1.msra.mxu0 %v2750
  %3796 = vmatprep.subr.mxu0 %v2755
  %3797 = vmatpush1.msra.mxu0 %v2754
  %3798 = vmatprep.subr.mxu0 %v2759
  %3799 = vmatpush1.msra.mxu0 %v2758
  %3800 = vmatprep.subr.mxu0 %v2763
  %3801 = vmatpush1.msra.mxu0 %v2762
  %3802 = vmatprep.subr.mxu0 %v2767
  %3803 = vmatpush1.msra.mxu0 %v2766
  %3804 = vmatprep.subr.mxu0 %v2771
  %3805 = vmatpush1.msra.mxu0 %v2770
  %3806 = vmatprep.subr.mxu0 %v2775
  %3807 = vmatpush1.msra.mxu0 %v2774
  %3808 = vmatprep.subr.mxu0 %v2779
  %3809 = vmatpush1.msra.mxu0 %v2778
  %3810 = vmatprep.subr.mxu0 %v2783
  %3811 = vmatpush1.msra.mxu0 %v2782
  %3812 = vmatprep.subr.mxu0 %v2787
  %3813 = vmatpush1.msra.mxu0 %v2786
  %3814 = vmatprep.subr.mxu0 %v2791
  %3815 = vmatpush1.msra.mxu0 %v2790
  %3816 = vmatprep.subr.mxu0 %v2795
  %3817 = vmatpush1.msra.mxu0 %v2794
  %3818 = vmatprep.subr.mxu0 %v2799
  %3819 = vmatpush1.msra.mxu0 %v2798
  %3820 = vmatprep.subr.mxu0 %v2803
  %3821 = vmatpush1.msra.mxu0 %v2802
  %3822 = vmatprep.subr.mxu0 %v2807
  %3823 = vmatpush1.msra.mxu0 %v2806
  %3824 = vmatprep.subr.mxu0 %v2811
  %3825 = vmatpush1.msra.mxu0 %v2810
  %3826 = vmatprep.mubr.f32.mxu0 %v1986
  %3827 = vmatmul.mubr.f32.gmra.mrb[0].mxu0 %v1985
  %v3828 = vpop.f32.mrb[0].mxu0
  %v3829 = vadd.f32 %v3752, %v3828
  %v3830 = vpop.f32.mrb[0].mxu0
  %v3831 = vadd.f32 %v3754, %v3830
  %3832 = vmatprep.mubr.f32.mxu0 %v1990
  %3833 = vmatmul.mubr.f32.gmra.mrb[0].mxu0 %v1989
  %v3834 = vpop.f32.mrb[0].mxu0
  %v3835 = vadd.f32 %v3758, %v3834
  %v3836 = vpop.f32.mrb[0].mxu0
  %v3837 = vadd.f32 %v3760, %v3836
  %3838 = vdwg.mxu0
  %3839 = vmatprep.subr.mxu0 %v3215
  %3840 = vmatpush1.msra.mxu0 %v3213
  %3841 = vmatprep.subr.mxu0 %v3221
  %3842 = vmatpush1.msra.mxu0 %v3219
  %3843 = vmatprep.subr.mxu0 0.0
  %3844 = vmatpush1.msra.mxu0 0.0
  %3845 = vmatprep.subr.mxu0 0.0
  %3846 = vmatpush1.msra.mxu0 0.0
  %3847 = vmatprep.subr.mxu0 0.0
  %3848 = vmatpush1.msra.mxu0 0.0
  %3849 = vmatprep.subr.mxu0 0.0
  %3850 = vmatpush1.msra.mxu0 0.0
  %3851 = vmatprep.subr.mxu0 0.0
  %3852 = vmatpush1.msra.mxu0 0.0
  %3853 = vmatprep.subr.mxu0 0.0
  %3854 = vmatpush1.msra.mxu0 0.0
  %3855 = vmatprep.subr.mxu0 0.0
  %3856 = vmatpush1.msra.mxu0 0.0
  %3857 = vmatprep.subr.mxu0 0.0
  %3858 = vmatpush1.msra.mxu0 0.0
  %3859 = vmatprep.subr.mxu0 0.0
  %3860 = vmatpush1.msra.mxu0 0.0
  %3861 = vmatprep.subr.mxu0 0.0
  %3862 = vmatpush1.msra.mxu0 0.0
  %3863 = vmatprep.subr.mxu0 0.0
  %3864 = vmatpush1.msra.mxu0 0.0
  %3865 = vmatprep.subr.mxu0 0.0
  %3866 = vmatpush1.msra.mxu0 0.0
  %3867 = vmatprep.subr.mxu0 0.0
  %3868 = vmatpush1.msra.mxu0 0.0
  %3869 = vmatprep.subr.mxu0 0.0
  %3870 = vmatpush1.msra.mxu0 0.0
  %3871 = vmatprep.subr.mxu0 0.0
  %3872 = vmatpush1.msra.mxu0 0.0
  %3873 = vmatprep.subr.mxu0 0.0
  %3874 = vmatpush1.msra.mxu0 0.0
  %3875 = vmatprep.subr.mxu0 0.0
  %3876 = vmatpush1.msra.mxu0 0.0
  %3877 = vmatprep.subr.mxu0 0.0
  %3878 = vmatpush1.msra.mxu0 0.0
  %3879 = vmatprep.subr.mxu0 0.0
  %3880 = vmatpush1.msra.mxu0 0.0
  %3881 = vmatprep.subr.mxu0 0.0
  %3882 = vmatpush1.msra.mxu0 0.0
  %3883 = vmatprep.subr.mxu0 0.0
  %3884 = vmatpush1.msra.mxu0 0.0
  %3885 = vmatprep.subr.mxu0 0.0
  %3886 = vmatpush1.msra.mxu0 0.0
  %3887 = vmatprep.subr.mxu0 0.0
  %3888 = vmatpush1.msra.mxu0 0.0
  %3889 = vmatprep.subr.mxu0 0.0
  %3890 = vmatpush1.msra.mxu0 0.0
  %3891 = vmatprep.subr.mxu0 0.0
  %3892 = vmatpush1.msra.mxu0 0.0
  %3893 = vmatprep.subr.mxu0 0.0
  %3894 = vmatpush1.msra.mxu0 0.0
  %3895 = vmatprep.subr.mxu0 0.0
  %3896 = vmatpush1.msra.mxu0 0.0
  %3897 = vmatprep.subr.mxu0 0.0
  %3898 = vmatpush1.msra.mxu0 0.0
  %3899 = vmatprep.subr.mxu0 0.0
  %3900 = vmatpush1.msra.mxu0 0.0
  %3901 = vmatprep.subr.mxu0 0.0
  %3902 = vmatpush1.msra.mxu0 0.0
  %3903 = vmatprep.mubr.f32.mxu0 0.0
  %3904 = vmatmul.mubr.f32.gmra.mrb[0].mxu0 %v1124
  %v3905 = vpop.f32.mrb[0].mxu0
  %v3906 = vadd.f32 0.0, %v3905
  %v3907 = vpop.f32.mrb[0].mxu0
  %v3908 = vadd.f32 0.0, %v3907
  %3909 = vmatprep.mubr.f32.mxu0 0.0
  %3910 = vmatmul.mubr.f32.gmra.mrb[0].mxu0 %v1127
  %v3911 = vpop.f32.mrb[0].mxu0
  %v3912 = vadd.f32 0.0, %v3911
  %v3913 = vpop.f32.mrb[0].mxu0
  %v3914 = vadd.f32 0.0, %v3913
  %3915 = vdwg.mxu0
  %3916 = vmatprep.subr.mxu0 %v3369
  %3917 = vmatpush1.msra.mxu0 %v3367
  %3918 = vmatprep.subr.mxu0 %v3375
  %3919 = vmatpush1.msra.mxu0 %v3373
  %3920 = vmatprep.subr.mxu0 0.0
  %3921 = vmatpush1.msra.mxu0 0.0
  %3922 = vmatprep.subr.mxu0 0.0
  %3923 = vmatpush1.msra.mxu0 0.0
  %3924 = vmatprep.subr.mxu0 0.0
  %3925 = vmatpush1.msra.mxu0 0.0
  %3926 = vmatprep.subr.mxu0 0.0
  %3927 = vmatpush1.msra.mxu0 0.0
  %3928 = vmatprep.subr.mxu0 0.0
  %3929 = vmatpush1.msra.mxu0 0.0
  %3930 = vmatprep.subr.mxu0 0.0
  %3931 = vmatpush1.msra.mxu0 0.0
  %3932 = vmatprep.subr.mxu0 0.0
  %3933 = vmatpush1.msra.mxu0 0.0
  %3934 = vmatprep.subr.mxu0 0.0
  %3935 = vmatpush1.msra.mxu0 0.0
  %3936 = vmatprep.subr.mxu0 0.0
  %3937 = vmatpush1.msra.mxu0 0.0
  %3938 = vmatprep.subr.mxu0 0.0
  %3939 = vmatpush1.msra.mxu0 0.0
  %3940 = vmatprep.subr.mxu0 0.0
  %3941 = vmatpush1.msra.mxu0 0.0
  %3942 = vmatprep.subr.mxu0 0.0
  %3943 = vmatpush1.msra.mxu0 0.0
  %3944 = vmatprep.subr.mxu0 0.0
  %3945 = vmatpush1.msra.mxu0 0.0
  %3946 = vmatprep.subr.mxu0 0.0
  %3947 = vmatpush1.msra.mxu0 0.0
  %3948 = vmatprep.subr.mxu0 0.0
  %3949 = vmatpush1.msra.mxu0 0.0
  %3950 = vmatprep.subr.mxu0 0.0
  %3951 = vmatpush1.msra.mxu0 0.0
  %3952 = vmatprep.subr.mxu0 0.0
  %3953 = vmatpush1.msra.mxu0 0.0
  %3954 = vmatprep.subr.mxu0 0.0
  %3955 = vmatpush1.msra.mxu0 0.0
  %3956 = vmatprep.subr.mxu0 0.0
  %3957 = vmatpush1.msra.mxu0 0.0
  %3958 = vmatprep.subr.mxu0 0.0
  %3959 = vmatpush1.msra.mxu0 0.0
  %3960 = vmatprep.subr.mxu0 0.0
  %3961 = vmatpush1.msra.mxu0 0.0
  %3962 = vmatprep.subr.mxu0 0.0
  %3963 = vmatpush1.msra.mxu0 0.0
  %3964 = vmatprep.subr.mxu0 0.0
  %3965 = vmatpush1.msra.mxu0 0.0
  %3966 = vmatprep.subr.mxu0 0.0
  %3967 = vmatpush1.msra.mxu0 0.0
  %3968 = vmatprep.subr.mxu0 0.0
  %3969 = vmatpush1.msra.mxu0 0.0
  %3970 = vmatprep.subr.mxu0 0.0
  %3971 = vmatpush1.msra.mxu0 0.0
  %3972 = vmatprep.subr.mxu0 0.0
  %3973 = vmatpush1.msra.mxu0 0.0
  %3974 = vmatprep.subr.mxu0 0.0
  %3975 = vmatpush1.msra.mxu0 0.0
  %3976 = vmatprep.subr.mxu0 0.0
  %3977 = vmatpush1.msra.mxu0 0.0
  %3978 = vmatprep.subr.mxu0 0.0
  %3979 = vmatpush1.msra.mxu0 0.0
  %3980 = vmatprep.mubr.f32.mxu0 0.0
  %3981 = vmatmul.mubr.f32.gmra.mrb[0].mxu0 %v1124
  %v3982 = vpop.f32.mrb[0].mxu0
  %v3983 = vadd.f32 0.0, %v3982
  %v3984 = vpop.f32.mrb[0].mxu0
  %v3985 = vadd.f32 0.0, %v3984
  %3986 = vmatprep.mubr.f32.mxu0 0.0
  %3987 = vmatmul.mubr.f32.gmra.mrb[0].mxu0 %v1127
  %v3988 = vpop.f32.mrb[0].mxu0
  %v3989 = vadd.f32 0.0, %v3988
  %v3990 = vpop.f32.mrb[0].mxu0
  %v3991 = vadd.f32 0.0, %v3990
  %3992 = vdwg.mxu0
  %v3993 = vadd.f32 %v3675, %v3906
  %v3994 = vadd.f32 %v3677, %v3908
  %v3995 = vadd.f32 %v3829, %v3983
  %v3996 = vadd.f32 %v3831, %v3985
  %v3997 = vadd.f32 %v3681, %v3912
  %v3998 = vadd.f32 %v3683, %v3914
  %v3999 = vadd.f32 %v3835, %v3989
  %v4000 = vadd.f32 %v3837, %v3991
  %v4001 = vadd.f32 %v3993, %v3997
  %v4002 = vrot.slane %v4001, 4
  %v4003 = vadd.f32 %v4001, %v4002
  %v4004 = vrot.slane %v4003, 2
  %v4005 = vadd.f32 %v4003, %v4004
  %v4006 = vrot.slane %v4005, 1
  %v4007 = vadd.f32 %v4005, %v4006
  %v4008 = vadd.f32 %v3994, %v3998
  %v4009 = vrot.slane %v4008, 4
  %v4010 = vadd.f32 %v4008, %v4009
  %v4011 = vrot.slane %v4010, 2
  %v4012 = vadd.f32 %v4010, %v4011
  %v4013 = vrot.slane %v4012, 1
  %v4014 = vadd.f32 %v4012, %v4013
  %v4015 = vadd.f32 %v3995, %v3999
  %v4016 = vrot.slane %v4015, 4
  %v4017 = vadd.f32 %v4015, %v4016
  %v4018 = vrot.slane %v4017, 2
  %v4019 = vadd.f32 %v4017, %v4018
  %v4020 = vrot.slane %v4019, 1
  %v4021 = vadd.f32 %v4019, %v4020
  %v4022 = vadd.f32 %v3996, %v4000
  %v4023 = vrot.slane %v4022, 4
  %v4024 = vadd.f32 %v4022, %v4023
  %v4025 = vrot.slane %v4024, 2
  %v4026 = vadd.f32 %v4024, %v4025
  %v4027 = vrot.slane %v4026, 1
  %v4028 = vadd.f32 %v4026, %v4027
  %v4029 = vmul.f32 %v3993, %v3993
  %v4030 = vmul.f32 %v3994, %v3994
  %v4031 = vmul.f32 %v3995, %v3995
  %v4032 = vmul.f32 %v3996, %v3996
  %v4033 = vmul.f32 %v3997, %v3997
  %v4034 = vmul.f32 %v3998, %v3998
  %v4035 = vmul.f32 %v3999, %v3999
  %v4036 = vmul.f32 %v4000, %v4000
  %v4037 = vadd.f32 %v4029, %v4033
  %v4038 = vrot.slane %v4037, 4
  %v4039 = vadd.f32 %v4037, %v4038
  %v4040 = vrot.slane %v4039, 2
  %v4041 = vadd.f32 %v4039, %v4040
  %v4042 = vrot.slane %v4041, 1
  %v4043 = vadd.f32 %v4041, %v4042
  %v4044 = vadd.f32 %v4030, %v4034
  %v4045 = vrot.slane %v4044, 4
  %v4046 = vadd.f32 %v4044, %v4045
  %v4047 = vrot.slane %v4046, 2
  %v4048 = vadd.f32 %v4046, %v4047
  %v4049 = vrot.slane %v4048, 1
  %v4050 = vadd.f32 %v4048, %v4049
  %v4051 = vadd.f32 %v4031, %v4035
  %v4052 = vrot.slane %v4051, 4
  %v4053 = vadd.f32 %v4051, %v4052
  %v4054 = vrot.slane %v4053, 2
  %v4055 = vadd.f32 %v4053, %v4054
  %v4056 = vrot.slane %v4055, 1
  %v4057 = vadd.f32 %v4055, %v4056
  %v4058 = vadd.f32 %v4032, %v4036
  %v4059 = vrot.slane %v4058, 4
  %v4060 = vadd.f32 %v4058, %v4059
  %v4061 = vrot.slane %v4060, 2
  %v4062 = vadd.f32 %v4060, %v4061
  %v4063 = vrot.slane %v4062, 1
  %v4064 = vadd.f32 %v4062, %v4063
  %4065 = vmatprep.subr.mxu0 0.0
  %4066 = vmatpush1.msra.mxu0 %v42
  %4067 = vmatprep.subr.mxu0 0.0
  %4068 = vmatpush1.msra.mxu0 %v43
  %4069 = vmatprep.subr.mxu0 0.0
  %4070 = vmatpush1.msra.mxu0 %v44
  %4071 = vmatprep.subr.mxu0 0.0
  %4072 = vmatpush1.msra.mxu0 %v45
  %4073 = vmatprep.subr.mxu0 0.0
  %4074 = vmatpush1.msra.mxu0 %v46
  %4075 = vmatprep.subr.mxu0 0.0
  %4076 = vmatpush1.msra.mxu0 %v47
  %4077 = vmatprep.subr.mxu0 0.0
  %4078 = vmatpush1.msra.mxu0 %v48
  %4079 = vmatprep.subr.mxu0 0.0
  %4080 = vmatpush1.msra.mxu0 %v49
  %4081 = vmatprep.subr.mxu0 0.0
  %4082 = vmatpush1.msra.mxu0 %v50
  %4083 = vmatprep.subr.mxu0 0.0
  %4084 = vmatpush1.msra.mxu0 %v51
  %4085 = vmatprep.subr.mxu0 0.0
  %4086 = vmatpush1.msra.mxu0 %v52
  %4087 = vmatprep.subr.mxu0 0.0
  %4088 = vmatpush1.msra.mxu0 %v53
  %4089 = vmatprep.subr.mxu0 0.0
  %4090 = vmatpush1.msra.mxu0 %v54
  %4091 = vmatprep.subr.mxu0 0.0
  %4092 = vmatpush1.msra.mxu0 %v55
  %4093 = vmatprep.subr.mxu0 0.0
  %4094 = vmatpush1.msra.mxu0 %v56
  %4095 = vmatprep.subr.mxu0 0.0
  %4096 = vmatpush1.msra.mxu0 %v57
  %4097 = vmatprep.subr.mxu0 0.0
  %4098 = vmatpush1.msra.mxu0 %v58
  %4099 = vmatprep.subr.mxu0 0.0
  %4100 = vmatpush1.msra.mxu0 %v59
  %4101 = vmatprep.subr.mxu0 0.0
  %4102 = vmatpush1.msra.mxu0 %v60
  %4103 = vmatprep.subr.mxu0 0.0
  %4104 = vmatpush1.msra.mxu0 %v61
  %4105 = vmatprep.subr.mxu0 0.0
  %4106 = vmatpush1.msra.mxu0 %v62
  %4107 = vmatprep.subr.mxu0 0.0
  %4108 = vmatpush1.msra.mxu0 %v63
  %4109 = vmatprep.subr.mxu0 0.0
  %4110 = vmatpush1.msra.mxu0 %v64
  %4111 = vmatprep.subr.mxu0 0.0
  %4112 = vmatpush1.msra.mxu0 %v65
  %4113 = vmatprep.subr.mxu0 0.0
  %4114 = vmatpush1.msra.mxu0 %v66
  %4115 = vmatprep.subr.mxu0 0.0
  %4116 = vmatpush1.msra.mxu0 %v67
  %4117 = vmatprep.subr.mxu0 0.0
  %4118 = vmatpush1.msra.mxu0 %v68
  %4119 = vmatprep.subr.mxu0 0.0
  %4120 = vmatpush1.msra.mxu0 %v69
  %4121 = vmatprep.subr.mxu0 0.0
  %4122 = vmatpush1.msra.mxu0 %v70
  %4123 = vmatprep.subr.mxu0 0.0
  %4124 = vmatpush1.msra.mxu0 %v71
  %4125 = vmatprep.subr.mxu0 0.0
  %4126 = vmatpush1.msra.mxu0 %v72
  %4127 = vmatprep.subr.mxu0 0.0
  %4128 = vmatpush1.msra.mxu0 %v73
  %4129 = vmatprep.mubr.f32.mxu0 %v4014
  %4130 = vmatmul.mubr.f32.gmra.mrb[0].mxu0 %v4007
  %v4131 = vpop.f32.mrb[0].mxu0
  %v4132 = vadd.f32 0.0, %v4131
  %v4133 = vpop.f32.mrb[0].mxu0
  %4134 = vdwg.mxu0
  %4135 = vmatprep.subr.mxu0 0.0
  %4136 = vmatpush1.msra.mxu0 %v74
  %4137 = vmatprep.subr.mxu0 0.0
  %4138 = vmatpush1.msra.mxu0 %v75
  %4139 = vmatprep.subr.mxu0 0.0
  %4140 = vmatpush1.msra.mxu0 %v76
  %4141 = vmatprep.subr.mxu0 0.0
  %4142 = vmatpush1.msra.mxu0 %v77
  %4143 = vmatprep.subr.mxu0 0.0
  %4144 = vmatpush1.msra.mxu0 %v78
  %4145 = vmatprep.subr.mxu0 0.0
  %4146 = vmatpush1.msra.mxu0 %v79
  %4147 = vmatprep.subr.mxu0 0.0
  %4148 = vmatpush1.msra.mxu0 %v80
  %4149 = vmatprep.subr.mxu0 0.0
  %4150 = vmatpush1.msra.mxu0 %v81
  %4151 = vmatprep.subr.mxu0 0.0
  %4152 = vmatpush1.msra.mxu0 %v82
  %4153 = vmatprep.subr.mxu0 0.0
  %4154 = vmatpush1.msra.mxu0 %v83
  %4155 = vmatprep.subr.mxu0 0.0
  %4156 = vmatpush1.msra.mxu0 %v84
  %4157 = vmatprep.subr.mxu0 0.0
  %4158 = vmatpush1.msra.mxu0 %v85
  %4159 = vmatprep.subr.mxu0 0.0
  %4160 = vmatpush1.msra.mxu0 %v86
  %4161 = vmatprep.subr.mxu0 0.0
  %4162 = vmatpush1.msra.mxu0 %v87
  %4163 = vmatprep.subr.mxu0 0.0
  %4164 = vmatpush1.msra.mxu0 %v88
  %4165 = vmatprep.subr.mxu0 0.0
  %4166 = vmatpush1.msra.mxu0 %v89
  %4167 = vmatprep.subr.mxu0 0.0
  %4168 = vmatpush1.msra.mxu0 %v90
  %4169 = vmatprep.subr.mxu0 0.0
  %4170 = vmatpush1.msra.mxu0 %v91
  %4171 = vmatprep.subr.mxu0 0.0
  %4172 = vmatpush1.msra.mxu0 %v92
  %4173 = vmatprep.subr.mxu0 0.0
  %4174 = vmatpush1.msra.mxu0 %v93
  %4175 = vmatprep.subr.mxu0 0.0
  %4176 = vmatpush1.msra.mxu0 %v94
  %4177 = vmatprep.subr.mxu0 0.0
  %4178 = vmatpush1.msra.mxu0 %v95
  %4179 = vmatprep.subr.mxu0 0.0
  %4180 = vmatpush1.msra.mxu0 %v96
  %4181 = vmatprep.subr.mxu0 0.0
  %4182 = vmatpush1.msra.mxu0 %v97
  %4183 = vmatprep.subr.mxu0 0.0
  %4184 = vmatpush1.msra.mxu0 %v98
  %4185 = vmatprep.subr.mxu0 0.0
  %4186 = vmatpush1.msra.mxu0 %v99
  %4187 = vmatprep.subr.mxu0 0.0
  %4188 = vmatpush1.msra.mxu0 %v100
  %4189 = vmatprep.subr.mxu0 0.0
  %4190 = vmatpush1.msra.mxu0 %v101
  %4191 = vmatprep.subr.mxu0 0.0
  %4192 = vmatpush1.msra.mxu0 %v102
  %4193 = vmatprep.subr.mxu0 0.0
  %4194 = vmatpush1.msra.mxu0 %v103
  %4195 = vmatprep.subr.mxu0 0.0
  %4196 = vmatpush1.msra.mxu0 %v104
  %4197 = vmatprep.subr.mxu0 0.0
  %4198 = vmatpush1.msra.mxu0 %v105
  %4199 = vmatprep.mubr.f32.mxu0 %v4028
  %4200 = vmatmul.mubr.f32.gmra.mrb[0].mxu0 %v4021
  %v4201 = vpop.f32.mrb[0].mxu0
  %v4202 = vadd.f32 %v4132, %v4201
  %v4203 = vpop.f32.mrb[0].mxu0
  %4204 = vdwg.mxu0
  %4205 = vmatprep.subr.mxu0 0.0
  %4206 = vmatpush1.msra.mxu0 %v42
  %4207 = vmatprep.subr.mxu0 0.0
  %4208 = vmatpush1.msra.mxu0 %v43
  %4209 = vmatprep.subr.mxu0 0.0
  %4210 = vmatpush1.msra.mxu0 %v44
  %4211 = vmatprep.subr.mxu0 0.0
  %4212 = vmatpush1.msra.mxu0 %v45
  %4213 = vmatprep.subr.mxu0 0.0
  %4214 = vmatpush1.msra.mxu0 %v46
  %4215 = vmatprep.subr.mxu0 0.0
  %4216 = vmatpush1.msra.mxu0 %v47
  %4217 = vmatprep.subr.mxu0 0.0
  %4218 = vmatpush1.msra.mxu0 %v48
  %4219 = vmatprep.subr.mxu0 0.0
  %4220 = vmatpush1.msra.mxu0 %v49
  %4221 = vmatprep.subr.mxu0 0.0
  %4222 = vmatpush1.msra.mxu0 %v50
  %4223 = vmatprep.subr.mxu0 0.0
  %4224 = vmatpush1.msra.mxu0 %v51
  %4225 = vmatprep.subr.mxu0 0.0
  %4226 = vmatpush1.msra.mxu0 %v52
  %4227 = vmatprep.subr.mxu0 0.0
  %4228 = vmatpush1.msra.mxu0 %v53
  %4229 = vmatprep.subr.mxu0 0.0
  %4230 = vmatpush1.msra.mxu0 %v54
  %4231 = vmatprep.subr.mxu0 0.0
  %4232 = vmatpush1.msra.mxu0 %v55
  %4233 = vmatprep.subr.mxu0 0.0
  %4234 = vmatpush1.msra.mxu0 %v56
  %4235 = vmatprep.subr.mxu0 0.0
  %4236 = vmatpush1.msra.mxu0 %v57
  %4237 = vmatprep.subr.mxu0 0.0
  %4238 = vmatpush1.msra.mxu0 %v58
  %4239 = vmatprep.subr.mxu0 0.0
  %4240 = vmatpush1.msra.mxu0 %v59
  %4241 = vmatprep.subr.mxu0 0.0
  %4242 = vmatpush1.msra.mxu0 %v60
  %4243 = vmatprep.subr.mxu0 0.0
  %4244 = vmatpush1.msra.mxu0 %v61
  %4245 = vmatprep.subr.mxu0 0.0
  %4246 = vmatpush1.msra.mxu0 %v62
  %4247 = vmatprep.subr.mxu0 0.0
  %4248 = vmatpush1.msra.mxu0 %v63
  %4249 = vmatprep.subr.mxu0 0.0
  %4250 = vmatpush1.msra.mxu0 %v64
  %4251 = vmatprep.subr.mxu0 0.0
  %4252 = vmatpush1.msra.mxu0 %v65
  %4253 = vmatprep.subr.mxu0 0.0
  %4254 = vmatpush1.msra.mxu0 %v66
  %4255 = vmatprep.subr.mxu0 0.0
  %4256 = vmatpush1.msra.mxu0 %v67
  %4257 = vmatprep.subr.mxu0 0.0
  %4258 = vmatpush1.msra.mxu0 %v68
  %4259 = vmatprep.subr.mxu0 0.0
  %4260 = vmatpush1.msra.mxu0 %v69
  %4261 = vmatprep.subr.mxu0 0.0
  %4262 = vmatpush1.msra.mxu0 %v70
  %4263 = vmatprep.subr.mxu0 0.0
  %4264 = vmatpush1.msra.mxu0 %v71
  %4265 = vmatprep.subr.mxu0 0.0
  %4266 = vmatpush1.msra.mxu0 %v72
  %4267 = vmatprep.subr.mxu0 0.0
  %4268 = vmatpush1.msra.mxu0 %v73
  %4269 = vmatprep.mubr.f32.mxu0 %v4050
  %4270 = vmatmul.mubr.f32.gmra.mrb[0].mxu0 %v4043
  %v4271 = vpop.f32.mrb[0].mxu0
  %v4272 = vadd.f32 0.0, %v4271
  %v4273 = vpop.f32.mrb[0].mxu0
  %4274 = vdwg.mxu0
  %4275 = vmatprep.subr.mxu0 0.0
  %4276 = vmatpush1.msra.mxu0 %v74
  %4277 = vmatprep.subr.mxu0 0.0
  %4278 = vmatpush1.msra.mxu0 %v75
  %4279 = vmatprep.subr.mxu0 0.0
  %4280 = vmatpush1.msra.mxu0 %v76
  %4281 = vmatprep.subr.mxu0 0.0
  %4282 = vmatpush1.msra.mxu0 %v77
  %4283 = vmatprep.subr.mxu0 0.0
  %4284 = vmatpush1.msra.mxu0 %v78
  %4285 = vmatprep.subr.mxu0 0.0
  %4286 = vmatpush1.msra.mxu0 %v79
  %4287 = vmatprep.subr.mxu0 0.0
  %4288 = vmatpush1.msra.mxu0 %v80
  %4289 = vmatprep.subr.mxu0 0.0
  %4290 = vmatpush1.msra.mxu0 %v81
  %4291 = vmatprep.subr.mxu0 0.0
  %4292 = vmatpush1.msra.mxu0 %v82
  %4293 = vmatprep.subr.mxu0 0.0
  %4294 = vmatpush1.msra.mxu0 %v83
  %4295 = vmatprep.subr.mxu0 0.0
  %4296 = vmatpush1.msra.mxu0 %v84
  %4297 = vmatprep.subr.mxu0 0.0
  %4298 = vmatpush1.msra.mxu0 %v85
  %4299 = vmatprep.subr.mxu0 0.0
  %4300 = vmatpush1.msra.mxu0 %v86
  %4301 = vmatprep.subr.mxu0 0.0
  %4302 = vmatpush1.msra.mxu0 %v87
  %4303 = vmatprep.subr.mxu0 0.0
  %4304 = vmatpush1.msra.mxu0 %v88
  %4305 = vmatprep.subr.mxu0 0.0
  %4306 = vmatpush1.msra.mxu0 %v89
  %4307 = vmatprep.subr.mxu0 0.0
  %4308 = vmatpush1.msra.mxu0 %v90
  %4309 = vmatprep.subr.mxu0 0.0
  %4310 = vmatpush1.msra.mxu0 %v91
  %4311 = vmatprep.subr.mxu0 0.0
  %4312 = vmatpush1.msra.mxu0 %v92
  %4313 = vmatprep.subr.mxu0 0.0
  %4314 = vmatpush1.msra.mxu0 %v93
  %4315 = vmatprep.subr.mxu0 0.0
  %4316 = vmatpush1.msra.mxu0 %v94
  %4317 = vmatprep.subr.mxu0 0.0
  %4318 = vmatpush1.msra.mxu0 %v95
  %4319 = vmatprep.subr.mxu0 0.0
  %4320 = vmatpush1.msra.mxu0 %v96
  %4321 = vmatprep.subr.mxu0 0.0
  %4322 = vmatpush1.msra.mxu0 %v97
  %4323 = vmatprep.subr.mxu0 0.0
  %4324 = vmatpush1.msra.mxu0 %v98
  %4325 = vmatprep.subr.mxu0 0.0
  %4326 = vmatpush1.msra.mxu0 %v99
  %4327 = vmatprep.subr.mxu0 0.0
  %4328 = vmatpush1.msra.mxu0 %v100
  %4329 = vmatprep.subr.mxu0 0.0
  %4330 = vmatpush1.msra.mxu0 %v101
  %4331 = vmatprep.subr.mxu0 0.0
  %4332 = vmatpush1.msra.mxu0 %v102
  %4333 = vmatprep.subr.mxu0 0.0
  %4334 = vmatpush1.msra.mxu0 %v103
  %4335 = vmatprep.subr.mxu0 0.0
  %4336 = vmatpush1.msra.mxu0 %v104
  %4337 = vmatprep.subr.mxu0 0.0
  %4338 = vmatpush1.msra.mxu0 %v105
  %4339 = vmatprep.mubr.f32.mxu0 %v4064
  %4340 = vmatmul.mubr.f32.gmra.mrb[0].mxu0 %v4057
  %v4341 = vpop.f32.mrb[0].mxu0
  %v4342 = vadd.f32 %v4272, %v4341
  %v4343 = vpop.f32.mrb[0].mxu0
  %4344 = vdwg.mxu0
  %v4345 = vmul.f32 %v4202, %v4202
  %v4346 = vsub.f32 %v4342, %v4345
  %v4347 = vld [vmem:[%s9] sm:$0x1]
  %v4348 = vadd.f32 %v4346, 1e-05
  %v4349 = vrsqrt.pop %v4348
  %v4350 = vmul.f32 %v4347, %v4349
  %v4351 = vld [vmem:[%s10] sm:$0x1]
  %v4352 = vmul.f32 %v4202, %v4350
  %v4353 = vsub.f32 %v4351, %v4352
  %v4355 = vsel %vm1644, %v4350, 0
  %4357 = vmatprep.subr.mxu0 %v107
  %4358 = vmatpush1.msra.mxu0 %v106
  %4359 = vmatprep.subr.mxu0 0.0
  %4360 = vmatpush1.msra.mxu0 0.0
  %4361 = vmatprep.subr.mxu0 0.0
  %4362 = vmatpush1.msra.mxu0 0.0
  %4363 = vmatprep.subr.mxu0 0.0
  %4364 = vmatpush1.msra.mxu0 0.0
  %4365 = vmatprep.subr.mxu0 0.0
  %4366 = vmatpush1.msra.mxu0 0.0
  %4367 = vmatprep.subr.mxu0 0.0
  %4368 = vmatpush1.msra.mxu0 0.0
  %4369 = vmatprep.subr.mxu0 0.0
  %4370 = vmatpush1.msra.mxu0 0.0
  %4371 = vmatprep.subr.mxu0 0.0
  %4372 = vmatpush1.msra.mxu0 0.0
  %4373 = vmatprep.subr.mxu0 0.0
  %4374 = vmatpush1.msra.mxu0 0.0
  %4375 = vmatprep.subr.mxu0 0.0
  %4376 = vmatpush1.msra.mxu0 0.0
  %4377 = vmatprep.subr.mxu0 0.0
  %4378 = vmatpush1.msra.mxu0 0.0
  %4379 = vmatprep.subr.mxu0 0.0
  %4380 = vmatpush1.msra.mxu0 0.0
  %4381 = vmatprep.subr.mxu0 0.0
  %4382 = vmatpush1.msra.mxu0 0.0
  %4383 = vmatprep.subr.mxu0 0.0
  %4384 = vmatpush1.msra.mxu0 0.0
  %4385 = vmatprep.subr.mxu0 0.0
  %4386 = vmatpush1.msra.mxu0 0.0
  %4387 = vmatprep.subr.mxu0 0.0
  %4388 = vmatpush1.msra.mxu0 0.0
  %4389 = vmatprep.subr.mxu0 0.0
  %4390 = vmatpush1.msra.mxu0 0.0
  %4391 = vmatprep.subr.mxu0 0.0
  %4392 = vmatpush1.msra.mxu0 0.0
  %4393 = vmatprep.subr.mxu0 0.0
  %4394 = vmatpush1.msra.mxu0 0.0
  %4395 = vmatprep.subr.mxu0 0.0
  %4396 = vmatpush1.msra.mxu0 0.0
  %4397 = vmatprep.subr.mxu0 0.0
  %4398 = vmatpush1.msra.mxu0 0.0
  %4399 = vmatprep.subr.mxu0 0.0
  %4400 = vmatpush1.msra.mxu0 0.0
  %4401 = vmatprep.subr.mxu0 0.0
  %4402 = vmatpush1.msra.mxu0 0.0
  %4403 = vmatprep.subr.mxu0 0.0
  %4404 = vmatpush1.msra.mxu0 0.0
  %4405 = vmatprep.subr.mxu0 0.0
  %4406 = vmatpush1.msra.mxu0 0.0
  %4407 = vmatprep.subr.mxu0 0.0
  %4408 = vmatpush1.msra.mxu0 0.0
  %4409 = vmatprep.subr.mxu0 0.0
  %4410 = vmatpush1.msra.mxu0 0.0
  %4411 = vmatprep.subr.mxu0 0.0
  %4412 = vmatpush1.msra.mxu0 0.0
  %4413 = vmatprep.subr.mxu0 0.0
  %4414 = vmatpush1.msra.mxu0 0.0
  %4415 = vmatprep.subr.mxu0 0.0
  %4416 = vmatpush1.msra.mxu0 0.0
  %4417 = vmatprep.subr.mxu0 0.0
  %4418 = vmatpush1.msra.mxu0 0.0
  %4419 = vmatprep.subr.mxu0 0.0
  %4420 = vmatpush1.msra.mxu0 0.0
  %4421 = vmatprep.mubr.f32.mxu0 0.0
  %4422 = vmatmul.mubr.f32.gmra.mrb[0].mxu0 %v4355
  %v4423 = vpop.f32.mrb[0].mxu0
  %v4424 = vadd.f32 0.0, %v4423
  %v4425 = vpop.f32.mrb[0].mxu0
  %v4426 = vadd.f32 0.0, %v4425
  %4427 = vdwg.mxu0
  %4428 = vmatprep.subr.mxu0 %v109
  %4429 = vmatpush1.msra.mxu0 %v108
  %4430 = vmatprep.subr.mxu0 0.0
  %4431 = vmatpush1.msra.mxu0 0.0
  %4432 = vmatprep.subr.mxu0 0.0
  %4433 = vmatpush1.msra.mxu0 0.0
  %4434 = vmatprep.subr.mxu0 0.0
  %4435 = vmatpush1.msra.mxu0 0.0
  %4436 = vmatprep.subr.mxu0 0.0
  %4437 = vmatpush1.msra.mxu0 0.0
  %4438 = vmatprep.subr.mxu0 0.0
  %4439 = vmatpush1.msra.mxu0 0.0
  %4440 = vmatprep.subr.mxu0 0.0
  %4441 = vmatpush1.msra.mxu0 0.0
  %4442 = vmatprep.subr.mxu0 0.0
  %4443 = vmatpush1.msra.mxu0 0.0
  %4444 = vmatprep.subr.mxu0 0.0
  %4445 = vmatpush1.msra.mxu0 0.0
  %4446 = vmatprep.subr.mxu0 0.0
  %4447 = vmatpush1.msra.mxu0 0.0
  %4448 = vmatprep.subr.mxu0 0.0
  %4449 = vmatpush1.msra.mxu0 0.0
  %4450 = vmatprep.subr.mxu0 0.0
  %4451 = vmatpush1.msra.mxu0 0.0
  %4452 = vmatprep.subr.mxu0 0.0
  %4453 = vmatpush1.msra.mxu0 0.0
  %4454 = vmatprep.subr.mxu0 0.0
  %4455 = vmatpush1.msra.mxu0 0.0
  %4456 = vmatprep.subr.mxu0 0.0
  %4457 = vmatpush1.msra.mxu0 0.0
  %4458 = vmatprep.subr.mxu0 0.0
  %4459 = vmatpush1.msra.mxu0 0.0
  %4460 = vmatprep.subr.mxu0 0.0
  %4461 = vmatpush1.msra.mxu0 0.0
  %4462 = vmatprep.subr.mxu0 0.0
  %4463 = vmatpush1.msra.mxu0 0.0
  %4464 = vmatprep.subr.mxu0 0.0
  %4465 = vmatpush1.msra.mxu0 0.0
  %4466 = vmatprep.subr.mxu0 0.0
  %4467 = vmatpush1.msra.mxu0 0.0
  %4468 = vmatprep.subr.mxu0 0.0
  %4469 = vmatpush1.msra.mxu0 0.0
  %4470 = vmatprep.subr.mxu0 0.0
  %4471 = vmatpush1.msra.mxu0 0.0
  %4472 = vmatprep.subr.mxu0 0.0
  %4473 = vmatpush1.msra.mxu0 0.0
  %4474 = vmatprep.subr.mxu0 0.0
  %4475 = vmatpush1.msra.mxu0 0.0
  %4476 = vmatprep.subr.mxu0 0.0
  %4477 = vmatpush1.msra.mxu0 0.0
  %4478 = vmatprep.subr.mxu0 0.0
  %4479 = vmatpush1.msra.mxu0 0.0
  %4480 = vmatprep.subr.mxu0 0.0
  %4481 = vmatpush1.msra.mxu0 0.0
  %4482 = vmatprep.subr.mxu0 0.0
  %4483 = vmatpush1.msra.mxu0 0.0
  %4484 = vmatprep.subr.mxu0 0.0
  %4485 = vmatpush1.msra.mxu0 0.0
  %4486 = vmatprep.subr.mxu0 0.0
  %4487 = vmatpush1.msra.mxu0 0.0
  %4488 = vmatprep.subr.mxu0 0.0
  %4489 = vmatpush1.msra.mxu0 0.0
  %4490 = vmatprep.subr.mxu0 0.0
  %4491 = vmatpush1.msra.mxu0 0.0
  %4492 = vmatprep.mubr.f32.mxu0 0.0
  %4493 = vmatmul.mubr.f32.gmra.mrb[0].mxu0 %v4355
  %v4494 = vpop.f32.mrb[0].mxu0
  %v4495 = vadd.f32 0.0, %v4494
  %v4496 = vpop.f32.mrb[0].mxu0
  %v4497 = vadd.f32 0.0, %v4496
  %4498 = vdwg.mxu0
  %v4500 = vsel %vm1644, %v4353, 0
  %4502 = vmatprep.subr.mxu0 %v107
  %4503 = vmatpush1.msra.mxu0 %v106
  %4504 = vmatprep.subr.mxu0 0.0
  %4505 = vmatpush1.msra.mxu0 0.0
  %4506 = vmatprep.subr.mxu0 0.0
  %4507 = vmatpush1.msra.mxu0 0.0
  %4508 = vmatprep.subr.mxu0 0.0
  %4509 = vmatpush1.msra.mxu0 0.0
  %4510 = vmatprep.subr.mxu0 0.0
  %4511 = vmatpush1.msra.mxu0 0.0
  %4512 = vmatprep.subr.mxu0 0.0
  %4513 = vmatpush1.msra.mxu0 0.0
  %4514 = vmatprep.subr.mxu0 0.0
  %4515 = vmatpush1.msra.mxu0 0.0
  %4516 = vmatprep.subr.mxu0 0.0
  %4517 = vmatpush1.msra.mxu0 0.0
  %4518 = vmatprep.subr.mxu0 0.0
  %4519 = vmatpush1.msra.mxu0 0.0
  %4520 = vmatprep.subr.mxu0 0.0
  %4521 = vmatpush1.msra.mxu0 0.0
  %4522 = vmatprep.subr.mxu0 0.0
  %4523 = vmatpush1.msra.mxu0 0.0
  %4524 = vmatprep.subr.mxu0 0.0
  %4525 = vmatpush1.msra.mxu0 0.0
  %4526 = vmatprep.subr.mxu0 0.0
  %4527 = vmatpush1.msra.mxu0 0.0
  %4528 = vmatprep.subr.mxu0 0.0
  %4529 = vmatpush1.msra.mxu0 0.0
  %4530 = vmatprep.subr.mxu0 0.0
  %4531 = vmatpush1.msra.mxu0 0.0
  %4532 = vmatprep.subr.mxu0 0.0
  %4533 = vmatpush1.msra.mxu0 0.0
  %4534 = vmatprep.subr.mxu0 0.0
  %4535 = vmatpush1.msra.mxu0 0.0
  %4536 = vmatprep.subr.mxu0 0.0
  %4537 = vmatpush1.msra.mxu0 0.0
  %4538 = vmatprep.subr.mxu0 0.0
  %4539 = vmatpush1.msra.mxu0 0.0
  %4540 = vmatprep.subr.mxu0 0.0
  %4541 = vmatpush1.msra.mxu0 0.0
  %4542 = vmatprep.subr.mxu0 0.0
  %4543 = vmatpush1.msra.mxu0 0.0
  %4544 = vmatprep.subr.mxu0 0.0
  %4545 = vmatpush1.msra.mxu0 0.0
  %4546 = vmatprep.subr.mxu0 0.0
  %4547 = vmatpush1.msra.mxu0 0.0
  %4548 = vmatprep.subr.mxu0 0.0
  %4549 = vmatpush1.msra.mxu0 0.0
  %4550 = vmatprep.subr.mxu0 0.0
  %4551 = vmatpush1.msra.mxu0 0.0
  %4552 = vmatprep.subr.mxu0 0.0
  %4553 = vmatpush1.msra.mxu0 0.0
  %4554 = vmatprep.subr.mxu0 0.0
  %4555 = vmatpush1.msra.mxu0 0.0
  %4556 = vmatprep.subr.mxu0 0.0
  %4557 = vmatpush1.msra.mxu0 0.0
  %4558 = vmatprep.subr.mxu0 0.0
  %4559 = vmatpush1.msra.mxu0 0.0
  %4560 = vmatprep.subr.mxu0 0.0
  %4561 = vmatpush1.msra.mxu0 0.0
  %4562 = vmatprep.subr.mxu0 0.0
  %4563 = vmatpush1.msra.mxu0 0.0
  %4564 = vmatprep.subr.mxu0 0.0
  %4565 = vmatpush1.msra.mxu0 0.0
  %4566 = vmatprep.mubr.f32.mxu0 0.0
  %4567 = vmatmul.mubr.f32.gmra.mrb[0].mxu0 %v4500
  %v4568 = vpop.f32.mrb[0].mxu0
  %v4569 = vadd.f32 0.0, %v4568
  %v4570 = vpop.f32.mrb[0].mxu0
  %v4571 = vadd.f32 0.0, %v4570
  %4572 = vdwg.mxu0
  %4573 = vmatprep.subr.mxu0 %v109
  %4574 = vmatpush1.msra.mxu0 %v108
  %4575 = vmatprep.subr.mxu0 0.0
  %4576 = vmatpush1.msra.mxu0 0.0
  %4577 = vmatprep.subr.mxu0 0.0
  %4578 = vmatpush1.msra.mxu0 0.0
  %4579 = vmatprep.subr.mxu0 0.0
  %4580 = vmatpush1.msra.mxu0 0.0
  %4581 = vmatprep.subr.mxu0 0.0
  %4582 = vmatpush1.msra.mxu0 0.0
  %4583 = vmatprep.subr.mxu0 0.0
  %4584 = vmatpush1.msra.mxu0 0.0
  %4585 = vmatprep.subr.mxu0 0.0
  %4586 = vmatpush1.msra.mxu0 0.0
  %4587 = vmatprep.subr.mxu0 0.0
  %4588 = vmatpush1.msra.mxu0 0.0
  %4589 = vmatprep.subr.mxu0 0.0
  %4590 = vmatpush1.msra.mxu0 0.0
  %4591 = vmatprep.subr.mxu0 0.0
  %4592 = vmatpush1.msra.mxu0 0.0
  %4593 = vmatprep.subr.mxu0 0.0
  %4594 = vmatpush1.msra.mxu0 0.0
  %4595 = vmatprep.subr.mxu0 0.0
  %4596 = vmatpush1.msra.mxu0 0.0
  %4597 = vmatprep.subr.mxu0 0.0
  %4598 = vmatpush1.msra.mxu0 0.0
  %4599 = vmatprep.subr.mxu0 0.0
  %4600 = vmatpush1.msra.mxu0 0.0
  %4601 = vmatprep.subr.mxu0 0.0
  %4602 = vmatpush1.msra.mxu0 0.0
  %4603 = vmatprep.subr.mxu0 0.0
  %4604 = vmatpush1.msra.mxu0 0.0
  %4605 = vmatprep.subr.mxu0 0.0
  %4606 = vmatpush1.msra.mxu0 0.0
  %4607 = vmatprep.subr.mxu0 0.0
  %4608 = vmatpush1.msra.mxu0 0.0
  %4609 = vmatprep.subr.mxu0 0.0
  %4610 = vmatpush1.msra.mxu0 0.0
  %4611 = vmatprep.subr.mxu0 0.0
  %4612 = vmatpush1.msra.mxu0 0.0
  %4613 = vmatprep.subr.mxu0 0.0
  %4614 = vmatpush1.msra.mxu0 0.0
  %4615 = vmatprep.subr.mxu0 0.0
  %4616 = vmatpush1.msra.mxu0 0.0
  %4617 = vmatprep.subr.mxu0 0.0
  %4618 = vmatpush1.msra.mxu0 0.0
  %4619 = vmatprep.subr.mxu0 0.0
  %4620 = vmatpush1.msra.mxu0 0.0
  %4621 = vmatprep.subr.mxu0 0.0
  %4622 = vmatpush1.msra.mxu0 0.0
  %4623 = vmatprep.subr.mxu0 0.0
  %4624 = vmatpush1.msra.mxu0 0.0
  %4625 = vmatprep.subr.mxu0 0.0
  %4626 = vmatpush1.msra.mxu0 0.0
  %4627 = vmatprep.subr.mxu0 0.0
  %4628 = vmatpush1.msra.mxu0 0.0
  %4629 = vmatprep.subr.mxu0 0.0
  %4630 = vmatpush1.msra.mxu0 0.0
  %4631 = vmatprep.subr.mxu0 0.0
  %4632 = vmatpush1.msra.mxu0 0.0
  %4633 = vmatprep.subr.mxu0 0.0
  %4634 = vmatpush1.msra.mxu0 0.0
  %4635 = vmatprep.subr.mxu0 0.0
  %4636 = vmatpush1.msra.mxu0 0.0
  %4637 = vmatprep.mubr.f32.mxu0 0.0
  %4638 = vmatmul.mubr.f32.gmra.mrb[0].mxu0 %v4500
  %v4639 = vpop.f32.mrb[0].mxu0
  %v4640 = vadd.f32 0.0, %v4639
  %v4641 = vpop.f32.mrb[0].mxu0
  %v4642 = vadd.f32 0.0, %v4641
  %4643 = vdwg.mxu0
  %v4644 = vlaneseq
  %v4645 = vshrl.u32 %v4644, 7
  %v4646 = vsub.s32 0, %v4645
  %v4647 = vrot.slane %v4424, %v4646
  %v4648 = vlaneseq
  %v4649 = vshrl.u32 %v4648, 7
  %v4650 = vsub.s32 0, %v4649
  %v4651 = vrot.slane %v4426, %v4650
  %v4652 = vlaneseq
  %v4653 = vshrl.u32 %v4652, 7
  %v4654 = vsub.s32 0, %v4653
  %v4655 = vrot.slane %v4495, %v4654
  %v4656 = vlaneseq
  %v4657 = vshrl.u32 %v4656, 7
  %v4658 = vsub.s32 0, %v4657
  %v4659 = vrot.slane %v4497, %v4658
  %v4660 = vmul.f32 %v3993, %v4647
  %v4661 = vmul.f32 %v3994, %v4651
  %v4662 = vmul.f32 %v3995, %v4655
  %v4663 = vmul.f32 %v3996, %v4659
  %v4664 = vmul.f32 %v3997, %v4647
  %v4665 = vmul.f32 %v3998, %v4651
  %v4666 = vmul.f32 %v3999, %v4655
  %v4667 = vmul.f32 %v4000, %v4659
  %v4668 = vlaneseq
  %v4669 = vshrl.u32 %v4668, 7
  %v4670 = vsub.s32 0, %v4669
  %v4671 = vrot.slane %v4569, %v4670
  %v4672 = vlaneseq
  %v4673 = vshrl.u32 %v4672, 7
  %v4674 = vsub.s32 0, %v4673
  %v4675 = vrot.slane %v4571, %v4674
  %v4676 = vlaneseq
  %v4677 = vshrl.u32 %v4676, 7
  %v4678 = vsub.s32 0, %v4677
  %v4679 = vrot.slane %v4640, %v4678
  %v4680 = vlaneseq
  %v4681 = vshrl.u32 %v4680, 7
  %v4682 = vsub.s32 0, %v4681
  %v4683 = vrot.slane %v4642, %v4682
  %v4684 = vadd.f32 %v4660, %v4671
  %v4685 = vadd.f32 %v4661, %v4675
  %v4686 = vadd.f32 %v4662, %v4679
  %v4687 = vadd.f32 %v4663, %v4683
  %v4688 = vadd.f32 %v4664, %v4671
  %v4689 = vadd.f32 %v4665, %v4675
  %v4690 = vadd.f32 %v4666, %v4679
  %v4691 = vadd.f32 %v4667, %v4683
  %v4692 = vmax.f32 %v4684, 0.0
  %v4693 = vmax.f32 %v4685, 0.0
  %v4694 = vmax.f32 %v4686, 0.0
  %v4695 = vmax.f32 %v4687, 0.0
  %v4696 = vmax.f32 %v4688, 0.0
  %v4697 = vmax.f32 %v4689, 0.0
  %v4698 = vmax.f32 %v4690, 0.0
  %v4699 = vmax.f32 %v4691, 0.0
  %4700 = vst [vmem:[%s11] sm:$0xff] %v4692
  %4701 = vst [vmem:[%s11 + $0x8] sm:$0xff] %v4693
  %4702 = vst [vmem:[%s11 + $0x10] sm:$0xff] %v4694
  %4703 = vst [vmem:[%s11 + $0x18] sm:$0xff] %v4695
  %4704 = vst [vmem:[%s11 + $0x20] sm:$0xff] %v4696
  %4705 = vst [vmem:[%s11 + $0x28] sm:$0xff] %v4697
  %4706 = vst [vmem:[%s11 + $0x30] sm:$0xff] %v4698
  %4707 = vst [vmem:[%s11 + $0x38] sm:$0xff] %v4699
  // Predicated region
  $region46: #{double_conv.1} parent=0 // pred_check
    _
  $region47: #{double_conv.1} parent=0 // pred_check_branch
    %4709 = sbr.rel (0) target = $region49
  $region48: #{double_conv.1} parent=0 // pred_region
    _
  $region49: #{double_conv.1} parent=0 // pred_fallthru
    _
  // Predicated region
  $region50: #{double_conv.1} parent=0 // pred_check
    _
  $region51: #{double_conv.1} parent=0 // pred_check_branch
    %4711 = sbr.rel (0) target = $region53
  $region52: #{double_conv.1} parent=0 // pred_region
    _
  $region53: #{double_conv.1} parent=0 // pred_fallthru
    _

</llo_original>
